<compile_context>
chip_gen: v6e
topology: v6e:2x2x1
jax: 0.10.0
libtpu: 0.0.40
codegen_flags: <defaults>
</compile_context>

<pallas_src>
import functools

import jax
import jax.numpy as jnp
from jax.experimental import pallas as pl
from jax.experimental.pallas import tpu as pltpu

_EPS = 1e-5  # nn.BatchNorm2d default


def _round_up(x, m):
    return ((x + m - 1) // m) * m


def _vmem_capacity_bytes():
    try:
        cap = getattr(pltpu.get_tpu_info(), "vmem_capacity_bytes", None)
    except Exception:  # pragma: no cover - info query unavailable
        cap = None
    return int(cap) if cap else (64 << 20)


def _vmem_limit_bytes(est_bytes, cap_bytes):
    # 2x the static estimate + 1 MiB slack, clamped to 75% of physical VMEM
    # (leaves headroom for Mosaic internal scratch; ~48 MiB on v7x).
    hard = int(cap_bytes * 3 // 4)
    want = int(2 * est_bytes + (1 << 20))
    return max(min(want, hard), min(8 << 20, hard))


def _pick_block_n(n, per_image_bytes, budget_bytes, max_b=8):
    b = min(n, max_b)
    while b > 1 and (n % b != 0 or b * per_image_bytes > budget_bytes):
        b -= 1
    return max(1, b)


# ---------------------------------------------------------------------------
# Shared conv helper: 3x3 conv read directly from a bf16 padded scratch.
# ---------------------------------------------------------------------------
def _conv3x3(pad_ref, w_ref, B, Ho, Wo, K, Cp, stride, use_im2col):
    """Returns (B*Ho*Wo, Cp) f32.

    pad_ref: (B, Hin+2, Win+2, K) bf16 scratch (zero halo + BN/ReLU interior).
    w_ref:   (9*K, Cp) bf16 if use_im2col else (9, K, Cp) bf16.
    """
    def win(dy, dx):
        if stride == 1:
            v = pad_ref[:, dy:dy + Ho, dx:dx + Wo, :]
        else:
            # TODO(synk): stride on the W (sublane) axis costs XLU relayouts; a
            # phase-decomposed pad buffer would avoid it (review item).
            v = pad_ref[:, pl.ds(dy, Ho, stride=stride),
                        pl.ds(dx, Wo, stride=stride), :]
        return v.reshape(B * Ho * Wo, K)

    taps = [(dy, dx) for dy in range(3) for dx in range(3)]
    if use_im2col:
        # Thin K: one fat (M, 9K) x (9K, Cp) matmul; windows are already bf16.
        lhs = jnp.concatenate([win(dy, dx) for dy, dx in taps], axis=-1)
        return jnp.dot(lhs, w_ref[...], preferred_element_type=jnp.float32)
    # Wide K: 9 accumulating matmuls, no im2col buffer (maps onto v7x MRB).
    acc = jnp.zeros((B * Ho * Wo, Cp), jnp.float32)
    for t, (dy, dx) in enumerate(taps):
        acc = acc + jnp.dot(win(dy, dx), w_ref[t],
                            preferred_element_type=jnp.float32)
    return acc


def _zero_halo(pad_ref, B, H, W, C):
    # Only the 1-pixel ring; the interior is fully rewritten every step.
    # (Not gated on program_id==0: unsafe under megacore grid sharding.)
    zrow = jnp.zeros((B, 1, W + 2, C), jnp.bfloat16)
    zcol = jnp.zeros((B, H + 2, 1, C), jnp.bfloat16)
    pad_ref[:, 0:1, :, :] = zrow
    pad_ref[:, H + 1:H + 2, :, :] = zrow
    pad_ref[:, :, 0:1, :] = zcol
    pad_ref[:, :, W + 1:W + 2, :] = zcol


# ---------------------------------------------------------------------------
# Stage 1: z1 = Conv3x3(ReLU(BN1(x)), stride)   [+ fused 1x1 stride-s skip]
#          + per-block BN2 statistics (sum / sum-of-squares of z1).
# ---------------------------------------------------------------------------
def _stage1_kernel(stride, B, H, W, Cin, Cp, Ho, Wo, use_im2col, has_skip, *refs):
    if has_skip:
        (x_ref, s1_ref, t1_ref, w1_ref, wsk_ref,
         z1_ref, skip_ref, st_ref, pad_ref) = refs
    else:
        x_ref, s1_ref, t1_ref, w1_ref, z1_ref, st_ref, pad_ref = refs

    x = x_ref[...]                                            # (B,H,W,Cin) f32
    # BN1 as precomputed per-channel scale/shift + ReLU, rounded once to bf16
    # directly for the padded scratch (no f32 im2col / later recast).
    y1 = jnp.maximum(x * s1_ref[...] + t1_ref[...], 0.0).astype(jnp.bfloat16)

    _zero_halo(pad_ref, B, H, W, Cin)
    pad_ref[:, 1:H + 1, 1:W + 1, :] = y1

    z1 = _conv3x3(pad_ref, w1_ref, B, Ho, Wo, Cin, Cp, stride, use_im2col)
    z1_ref[...] = z1.reshape(B, Ho, Wo, Cp)

    # BN2 statistics fused here: per-block per-channel sum and sum-of-squares,
    # reduced in the wrapper -> no extra HBM read of z1 just for stats.
    st_ref[0] = jnp.concatenate(
        [jnp.sum(z1, axis=0, keepdims=True),
         jnp.sum(z1 * z1, axis=0, keepdims=True)], axis=0)

    if has_skip:
        # 1x1 stride-s skip conv fused here (x is already resident in VMEM).
        xs = x_ref[:, pl.ds(0, Ho, stride=stride), pl.ds(0, Wo, stride=stride), :]
        sk = jnp.dot(xs.reshape(B * Ho * Wo, Cin).astype(jnp.bfloat16),
                     wsk_ref[...], preferred_element_type=jnp.float32)
        skip_ref[...] = sk.reshape(B, Ho, Wo, Cp)


# ---------------------------------------------------------------------------
# Stage 2: out = Conv3x3(ReLU(BN2(z1)), stride=1) + skip
# ---------------------------------------------------------------------------
def _stage2_kernel(B, Ho, Wo, Cp, Cskip, use_im2col,
                   z1_ref, skip_ref, s2_ref, t2_ref, w2_ref, o_ref, pad_ref):
    z1 = z1_ref[...]                                          # (B,Ho,Wo,Cp) f32
    y2 = jnp.maximum(z1 * s2_ref[...] + t2_ref[...], 0.0).astype(jnp.bfloat16)

    _zero_halo(pad_ref, B, Ho, Wo, Cp)
    pad_ref[:, 1:Ho + 1, 1:Wo + 1, :] = y2

    z2 = _conv3x3(pad_ref, w2_ref, B, Ho, Wo, Cp, Cp, 1, use_im2col)
    out = z2.reshape(B, Ho, Wo, Cp)

    sk = skip_ref[...].astype(jnp.float32)                    # (B,Ho,Wo,Cskip)
    if Cskip != Cp:
        # Identity skip with Cout < 128: lane-pad with zeros so the output
        # store stays a single dense (Cp-wide) store.
        sk = jnp.concatenate(
            [sk, jnp.zeros((B, Ho, Wo, Cp - Cskip), jnp.float32)], axis=-1)
    o_ref[...] = (out + sk).astype(o_ref.dtype)


def pre_basic_block_nhwc(x, params, stride=1):
    """PreBasicBlock forward in NHWC.  x: (N, H, W, Cin) float32."""
    f32, bf16 = jnp.float32, jnp.bfloat16
    x = x.astype(f32)
    N, H, W, Cin = x.shape
    Cout = params["w1"].shape[-1]
    Cp = _round_up(Cout, 128)          # lane-pad output channels -> dense stores
    Ho = (H + 2 - 3) // stride + 1
    Wo = (W + 2 - 3) // stride + 1
    if stride == 1 and Cin != Cout:
        raise ValueError("stride == 1 requires in_channels == out_channels "
                         "(identity skip), as in the PyTorch module.")

    # --- BN1 batch statistics (cheap per-channel reductions over x, f32). ---
    m1 = jnp.mean(x, axis=(0, 1, 2))
    v1 = jnp.var(x, axis=(0, 1, 2))                 # biased, like BatchNorm2d
    s1 = params["g1"].astype(f32) * jax.lax.rsqrt(v1 + _EPS)
    t1 = params["b1"].astype(f32) - m1 * s1

    # --- Conv weights: HWIO, output channels zero-padded to Cp, bf16. ---
    w1p = jnp.pad(params["w1"], ((0, 0), (0, 0), (0, 0), (0, Cp - Cout))).astype(bf16)
    w2p = jnp.pad(params["w2"],
                  ((0, 0), (0, 0), (0, Cp - Cout), (0, Cp - Cout))).astype(bf16)
    im2col1 = Cin < 128                       # thin K -> one fat im2col matmul
    w1m = w1p.reshape(9 * Cin, Cp) if im2col1 else w1p.reshape(9, Cin, Cp)
    im2col2 = False                           # K = Cp >= 128 -> 9 acc matmuls
    w2m = w2p.reshape(9, Cp, Cp)

    # --- Tile-size / VMEM budgeting (generation-aware). ---
    cap = _vmem_capacity_bytes()
    per_img1 = (2 * H * W * Cin * 4
                + 2 * Ho * Wo * Cp * 4 * (2 if stride != 1 else 1)
                + (H + 2) * (W + 2) * Cin * 2
                + Ho * Wo * (9 * Cin * 2 if im2col1 else Cp * 4))
    per_img2 = (4 * Ho * Wo * Cp * 4
                + 2 * Ho * Wo * (Cp if stride != 1 else Cin) * 4
                + (Ho + 2) * (Wo + 2) * Cp * 2
                + Ho * Wo * Cp * 4)
    fixed1 = 2 * (9 * Cin + Cin) * Cp * 2 + (1 << 20)
    fixed2 = 2 * 9 * Cp * Cp * 2 + (1 << 20)
    Bn = _pick_block_n(N, max(per_img1, per_img2), max(cap // 3, 4 << 20))
    est1 = fixed1 + Bn * per_img1
    est2 = fixed2 + Bn * per_img2
    grid = (N // Bn,)

    s1r, t1r = s1.reshape(1, Cin), t1.reshape(1, Cin)
    stage1 = functools.partial(_stage1_kernel, stride, Bn, H, W, Cin, Cp, Ho, Wo,
                               im2col1, stride != 1)
    cp1 = pltpu.CompilerParams(dimension_semantics=("parallel",),
                               vmem_limit_bytes=_vmem_limit_bytes(est1, cap))
    common_in = [
        pl.BlockSpec((Bn, H, W, Cin), lambda n: (n, 0, 0, 0)),
        pl.BlockSpec((1, Cin), lambda n: (0, 0)),
        pl.BlockSpec((1, Cin), lambda n: (0, 0)),
        pl.BlockSpec(w1m.shape, lambda n: (0,) * w1m.ndim),
    ]
    z_spec = pl.BlockSpec((Bn, Ho, Wo, Cp), lambda n: (n, 0, 0, 0))
    st_spec = pl.BlockSpec((1, 2, Cp), lambda n: (n, 0, 0))
    z_shape = jax.ShapeDtypeStruct((N, Ho, Wo, Cp), f32)
    st_shape = jax.ShapeDtypeStruct((N // Bn, 2, Cp), f32)
    scratch1 = [pltpu.VMEM((Bn, H + 2, W + 2, Cin), bf16)]

    if stride != 1:
        wskp = jnp.pad(params["wskip"], ((0, 0), (0, Cp - Cout))).astype(bf16)
        z1, skip, st = pl.pallas_call(
            stage1, grid=grid,
            in_specs=common_in + [pl.BlockSpec((Cin, Cp), lambda n: (0, 0))],
            out_specs=(z_spec, z_spec, st_spec),
            out_shape=(z_shape, z_shape, st_shape),
            scratch_shapes=scratch1, compiler_params=cp1,
        )(x, s1r, t1r, w1m, wskp)
        Cskip = Cp
    else:
        z1, st = pl.pallas_call(
            stage1, grid=grid,
            in_specs=common_in,
            out_specs=(z_spec, st_spec),
            out_shape=(z_shape, st_shape),
            scratch_shapes=scratch1, compiler_params=cp1,
        )(x, s1r, t1r, w1m)
        skip = x                                              # nn.Identity()
        Cskip = Cin

    # --- BN2 batch statistics from the fused per-block sums (no z1 re-read). ---
    cnt = float(N * Ho * Wo)
    m2 = jnp.sum(st[:, 0, :], axis=0) / cnt
    v2 = jnp.maximum(jnp.sum(st[:, 1, :], axis=0) / cnt - m2 * m2, 0.0)
    g2p = jnp.pad(params["g2"].astype(f32), (0, Cp - Cout))
    b2p = jnp.pad(params["b2"].astype(f32), (0, Cp - Cout))
    s2 = g2p * jax.lax.rsqrt(v2 + _EPS)
    t2 = b2p - m2 * s2

    stage2 = functools.partial(_stage2_kernel, Bn, Ho, Wo, Cp, Cskip, im2col2)
    cp2 = pltpu.CompilerParams(dimension_semantics=("parallel",),
                               vmem_limit_bytes=_vmem_limit_bytes(est2, cap))
    out_p = pl.pallas_call(
        stage2, grid=grid,
        in_specs=[
            z_spec,
            pl.BlockSpec((Bn, Ho, Wo, Cskip), lambda n: (n, 0, 0, 0)),
            pl.BlockSpec((1, Cp), lambda n: (0, 0)),
            pl.BlockSpec((1, Cp), lambda n: (0, 0)),
            pl.BlockSpec((9, Cp, Cp), lambda n: (0, 0, 0)),
        ],
        out_specs=z_spec,
        out_shape=jax.ShapeDtypeStruct((N, Ho, Wo, Cp), f32),
        scratch_shapes=[pltpu.VMEM((Bn, Ho + 2, Wo + 2, Cp), bf16)],
        compiler_params=cp2,
    )(z1, skip, s2.reshape(1, Cp), t2.reshape(1, Cp), w2m)

    return out_p[..., :Cout]


def pre_basic_block(x_nchw, params, stride=1):
    """PyTorch-layout entry point.  x_nchw: (N, Cin, H, W) float32."""
    # TODO(synk): keep the surrounding model in NHWC to avoid these two
    # whole-tensor transposes (extra HBM round trips, worst on v5e).
    x = jnp.transpose(x_nchw, (0, 2, 3, 1))
    out = pre_basic_block_nhwc(x, params, stride)
    return jnp.transpose(out, (0, 3, 1, 2))


# ----------------------- deterministic parameter init -----------------------
def init_params(key, in_channels, out_channels, stride=1):
    k1, k2, k3 = jax.random.split(key, 3)

    def kaiming_hwio(k, cout, cin, kh, kw):
        fan_in = cin * kh * kw                       # kaiming_normal_, fan_in, gain=sqrt(2)
        w_oihw = jax.random.normal(k, (cout, cin, kh, kw), jnp.float32) * jnp.sqrt(2.0 / fan_in)
        return jnp.transpose(w_oihw, (2, 3, 1, 0))   # OIHW -> HWIO

    params = {
        "g1": jnp.ones((in_channels,), jnp.float32),   # BN affine init: weight=1
        "b1": jnp.zeros((in_channels,), jnp.float32),  #                 bias=0
        "w1": kaiming_hwio(k1, out_channels, in_channels, 3, 3),
        "g2": jnp.ones((out_channels,), jnp.float32),
        "b2": jnp.zeros((out_channels,), jnp.float32),
        "w2": kaiming_hwio(k2, out_channels, out_channels, 3, 3),
    }
    if stride != 1:
        params["wskip"] = (jax.random.normal(k3, (in_channels, out_channels), jnp.float32)
                           * jnp.sqrt(1.0 / in_channels))
    return params


# ------------------------------ pure-JAX reference ---------------------------
def pre_basic_block_ref(x_nchw, params, stride=1):
    def bn_relu(x, g, b):
        m = jnp.mean(x, axis=(0, 2, 3), keepdims=True)
        v = jnp.mean((x - m) ** 2, axis=(0, 2, 3), keepdims=True)
        xn = (x - m) * jax.lax.rsqrt(v + _EPS)
        return jnp.maximum(xn * g.reshape(1, -1, 1, 1) + b.reshape(1, -1, 1, 1), 0.0)

    def conv(x, w_hwio, s, pad):
        return jax.lax.conv_general_dilated(
            x, w_hwio, (s, s), [(pad, pad), (pad, pad)],
            dimension_numbers=("NCHW", "HWIO", "NCHW"))

    y = bn_relu(x_nchw, params["g1"], params["b1"])
    z = conv(y, params["w1"], stride, 1)
    y = bn_relu(z, params["g2"], params["b2"])
    z = conv(y, params["w2"], 1, 1)
    if stride != 1:
        cin, cout = params["wskip"].shape
        skip = conv(x_nchw, params["wskip"].reshape(1, 1, cin, cout), stride, 0)
    else:
        skip = x_nchw
    return z + skip


if __name__ == "__main__":
    key = jax.random.PRNGKey(0)
    kx, kp = jax.random.split(key)

    N, C, H, W = 2, 4, 16, 16
    stride = 1                                  # identity skip path (PyTorch default)
    x = jax.random.normal(kx, (N, C, H, W), jnp.float32)
    params = init_params(kp, C, C, stride)

    out = jax.block_until_ready(pre_basic_block(x, params, stride))
    ref = pre_basic_block_ref(x, params, stride)
    assert out.shape == ref.shape, (out.shape, ref.shape)

    # bf16 MXU operands with f32 accumulation -> compare to the all-f32
    # reference with a bf16-appropriate tolerance (outputs are O(1..5)).
    max_err = float(jnp.max(jnp.abs(out - ref)))
    mean_err = float(jnp.mean(jnp.abs(out - ref)))
    if not (max_err < 1e-1 and mean_err < 2e-2):
        raise AssertionError(
            f"Pallas kernel mismatch vs reference: max {max_err}, mean {mean_err}")
    print("KERNEL_OK")
</pallas_src>

<mosaic_0001>
module attributes {stable_mosaic.version = 11 : i64} {
  func.func @_stage1_kernel(%arg0: i32, %arg1: memref<2x16x16x4xf32, #tpu.memory_space<vmem>>, %arg2: memref<1x4xf32, #tpu.memory_space<vmem>>, %arg3: memref<1x4xf32, #tpu.memory_space<vmem>>, %arg4: memref<36x128xbf16, #tpu.memory_space<vmem>>, %arg5: memref<2x16x16x128xf32, #tpu.memory_space<vmem>>, %arg6: memref<1x2x128xf32, #tpu.memory_space<vmem>>, %arg7: memref<2x18x18x4xbf16, #tpu.memory_space<vmem>>) attributes {dimension_semantics = [#tpu.dimension_semantics<parallel>], iteration_bounds = array<i64: 1>, scalar_prefetch = 0 : i64, scratch_operands = 1 : i64, tpu.core_type = #tpu.core_type<tc>, window_params = [{transform_indices = @transform_0, window_bounds = array<i64: 2, 16, 16, 4>}, {pipeline_mode = #tpu.pipeline_mode<synchronous>, transform_indices = @transform_1, window_bounds = array<i64: 1, 4>}, {pipeline_mode = #tpu.pipeline_mode<synchronous>, transform_indices = @transform_2, window_bounds = array<i64: 1, 4>}, {pipeline_mode = #tpu.pipeline_mode<synchronous>, transform_indices = @transform_3, window_bounds = array<i64: 36, 128>}, {transform_indices = @transform_4, window_bounds = array<i64: 2, 16, 16, 128>}, {transform_indices = @transform_5, window_bounds = array<i64: 1, 2, 128>}]} {
    %c0 = arith.constant 0 : index
    %c0_0 = arith.constant 0 : index
    %c0_1 = arith.constant 0 : index
    %c0_2 = arith.constant 0 : index
    %0 = vector.load %arg1[%c0, %c0_0, %c0_1, %c0_2] : memref<2x16x16x4xf32, #tpu.memory_space<vmem>>, vector<2x16x16x4xf32>
    %c0_3 = arith.constant 0 : index
    %c0_4 = arith.constant 0 : index
    %1 = vector.load %arg2[%c0_3, %c0_4] : memref<1x4xf32, #tpu.memory_space<vmem>>, vector<1x4xf32>
    %2 = vector.shape_cast %1 : vector<1x4xf32> to vector<1x1x1x4xf32>
    %3 = vector.broadcast %2 : vector<1x1x1x4xf32> to vector<2x16x16x4xf32>
    %4 = arith.mulf %0, %3 : vector<2x16x16x4xf32>
    %c0_5 = arith.constant 0 : index
    %c0_6 = arith.constant 0 : index
    %5 = vector.load %arg3[%c0_5, %c0_6] : memref<1x4xf32, #tpu.memory_space<vmem>>, vector<1x4xf32>
    %6 = vector.shape_cast %5 : vector<1x4xf32> to vector<1x1x1x4xf32>
    %7 = vector.broadcast %6 : vector<1x1x1x4xf32> to vector<2x16x16x4xf32>
    %8 = arith.addf %4, %7 : vector<2x16x16x4xf32>
    %cst = arith.constant 0.000000e+00 : f32
    %9 = vector.broadcast %cst : f32 to vector<2x16x16x4xf32>
    %10 = arith.maximumf %8, %9 : vector<2x16x16x4xf32>
    %11 = arith.truncf %10 : vector<2x16x16x4xf32> to vector<2x16x16x4xbf16>
    %cst_7 = arith.constant 0.000000e+00 : bf16
    %12 = vector.broadcast %cst_7 : bf16 to vector<2x1x18x4xbf16>
    %cst_8 = arith.constant 0.000000e+00 : bf16
    %13 = vector.broadcast %cst_8 : bf16 to vector<2x18x1x4xbf16>
    %c0_9 = arith.constant 0 : index
    %c0_10 = arith.constant 0 : index
    %c0_11 = arith.constant 0 : index
    %c0_12 = arith.constant 0 : index
    %14 = vector.load %arg7[%c0_9, %c0_10, %c0_11, %c0_12] : memref<2x18x18x4xbf16, #tpu.memory_space<vmem>>, vector<2x1x18x4xbf16>
    tpu.vector_store %arg7[%c0_9, %c0_10, %c0_11, %c0_12], %12 {strides = array<i32>} : memref<2x18x18x4xbf16, #tpu.memory_space<vmem>>, vector<2x1x18x4xbf16>,
    %c0_13 = arith.constant 0 : index
    %c17 = arith.constant 17 : index
    %c0_14 = arith.constant 0 : index
    %c0_15 = arith.constant 0 : index
    %15 = vector.load %arg7[%c0_13, %c17, %c0_14, %c0_15] : memref<2x18x18x4xbf16, #tpu.memory_space<vmem>>, vector<2x1x18x4xbf16>
    tpu.vector_store %arg7[%c0_13, %c17, %c0_14, %c0_15], %12 {strides = array<i32>} : memref<2x18x18x4xbf16, #tpu.memory_space<vmem>>, vector<2x1x18x4xbf16>,
    %c0_16 = arith.constant 0 : index
    %c0_17 = arith.constant 0 : index
    %c0_18 = arith.constant 0 : index
    %c0_19 = arith.constant 0 : index
    %16 = vector.load %arg7[%c0_16, %c0_17, %c0_18, %c0_19] : memref<2x18x18x4xbf16, #tpu.memory_space<vmem>>, vector<2x18x1x4xbf16>
    tpu.vector_store %arg7[%c0_16, %c0_17, %c0_18, %c0_19], %13 {strides = array<i32>} : memref<2x18x18x4xbf16, #tpu.memory_space<vmem>>, vector<2x18x1x4xbf16>,
    %c0_20 = arith.constant 0 : index
    %c0_21 = arith.constant 0 : index
    %c17_22 = arith.constant 17 : index
    %c0_23 = arith.constant 0 : index
    %17 = vector.load %arg7[%c0_20, %c0_21, %c17_22, %c0_23] : memref<2x18x18x4xbf16, #tpu.memory_space<vmem>>, vector<2x18x1x4xbf16>
    tpu.vector_store %arg7[%c0_20, %c0_21, %c17_22, %c0_23], %13 {strides = array<i32>} : memref<2x18x18x4xbf16, #tpu.memory_space<vmem>>, vector<2x18x1x4xbf16>,
    %c0_24 = arith.constant 0 : index
    %c1 = arith.constant 1 : index
    %c1_25 = arith.constant 1 : index
    %c0_26 = arith.constant 0 : index
    %18 = vector.load %arg7[%c0_24, %c1, %c1_25, %c0_26] : memref<2x18x18x4xbf16, #tpu.memory_space<vmem>>, vector<2x16x16x4xbf16>
    tpu.vector_store %arg7[%c0_24, %c1, %c1_25, %c0_26], %11 {strides = array<i32>} : memref<2x18x18x4xbf16, #tpu.memory_space<vmem>>, vector<2x16x16x4xbf16>,
    %c0_27 = arith.constant 0 : index
    %c0_28 = arith.constant 0 : index
    %c0_29 = arith.constant 0 : index
    %c0_30 = arith.constant 0 : index
    %19 = vector.load %arg7[%c0_27, %c0_28, %c0_29, %c0_30] : memref<2x18x18x4xbf16, #tpu.memory_space<vmem>>, vector<2x16x16x4xbf16>
    %20 = vector.shape_cast %19 : vector<2x16x16x4xbf16> to vector<512x4xbf16>
    %c0_31 = arith.constant 0 : index
    %c0_32 = arith.constant 0 : index
    %c1_33 = arith.constant 1 : index
    %c0_34 = arith.constant 0 : index
    %21 = vector.load %arg7[%c0_31, %c0_32, %c1_33, %c0_34] : memref<2x18x18x4xbf16, #tpu.memory_space<vmem>>, vector<2x16x16x4xbf16>
    %22 = vector.shape_cast %21 : vector<2x16x16x4xbf16> to vector<512x4xbf16>
    %c0_35 = arith.constant 0 : index
    %c0_36 = arith.constant 0 : index
    %c2 = arith.constant 2 : index
    %c0_37 = arith.constant 0 : index
    %23 = vector.load %arg7[%c0_35, %c0_36, %c2, %c0_37] : memref<2x18x18x4xbf16, #tpu.memory_space<vmem>>, vector<2x16x16x4xbf16>
    %24 = vector.shape_cast %23 : vector<2x16x16x4xbf16> to vector<512x4xbf16>
    %c0_38 = arith.constant 0 : index
    %c1_39 = arith.constant 1 : index
    %c0_40 = arith.constant 0 : index
    %c0_41 = arith.constant 0 : index
    %25 = vector.load %arg7[%c0_38, %c1_39, %c0_40, %c0_41] : memref<2x18x18x4xbf16, #tpu.memory_space<vmem>>, vector<2x16x16x4xbf16>
    %26 = vector.shape_cast %25 : vector<2x16x16x4xbf16> to vector<512x4xbf16>
    %c0_42 = arith.constant 0 : index
    %c1_43 = arith.constant 1 : index
    %c1_44 = arith.constant 1 : index
    %c0_45 = arith.constant 0 : index
    %27 = vector.load %arg7[%c0_42, %c1_43, %c1_44, %c0_45] : memref<2x18x18x4xbf16, #tpu.memory_space<vmem>>, vector<2x16x16x4xbf16>
    %28 = vector.shape_cast %27 : vector<2x16x16x4xbf16> to vector<512x4xbf16>
    %c0_46 = arith.constant 0 : index
    %c1_47 = arith.constant 1 : index
    %c2_48 = arith.constant 2 : index
    %c0_49 = arith.constant 0 : index
    %29 = vector.load %arg7[%c0_46, %c1_47, %c2_48, %c0_49] : memref<2x18x18x4xbf16, #tpu.memory_space<vmem>>, vector<2x16x16x4xbf16>
    %30 = vector.shape_cast %29 : vector<2x16x16x4xbf16> to vector<512x4xbf16>
    %c0_50 = arith.constant 0 : index
    %c2_51 = arith.constant 2 : index
    %c0_52 = arith.constant 0 : index
    %c0_53 = arith.constant 0 : index
    %31 = vector.load %arg7[%c0_50, %c2_51, %c0_52, %c0_53] : memref<2x18x18x4xbf16, #tpu.memory_space<vmem>>, vector<2x16x16x4xbf16>
    %32 = vector.shape_cast %31 : vector<2x16x16x4xbf16> to vector<512x4xbf16>
    %c0_54 = arith.constant 0 : index
    %c2_55 = arith.constant 2 : index
    %c1_56 = arith.constant 1 : index
    %c0_57 = arith.constant 0 : index
    %33 = vector.load %arg7[%c0_54, %c2_55, %c1_56, %c0_57] : memref<2x18x18x4xbf16, #tpu.memory_space<vmem>>, vector<2x16x16x4xbf16>
    %34 = vector.shape_cast %33 : vector<2x16x16x4xbf16> to vector<512x4xbf16>
    %c0_58 = arith.constant 0 : index
    %c2_59 = arith.constant 2 : index
    %c2_60 = arith.constant 2 : index
    %c0_61 = arith.constant 0 : index
    %35 = vector.load %arg7[%c0_58, %c2_59, %c2_60, %c0_61] : memref<2x18x18x4xbf16, #tpu.memory_space<vmem>>, vector<2x16x16x4xbf16>
    %36 = vector.shape_cast %35 : vector<2x16x16x4xbf16> to vector<512x4xbf16>
    %37 = tpu.concatenate %20, %22, %24, %26, %28, %30, %32, %34, %36 in 1 : vector<512x4xbf16>, vector<512x4xbf16>, vector<512x4xbf16>, vector<512x4xbf16>, vector<512x4xbf16>, vector<512x4xbf16>, vector<512x4xbf16>, vector<512x4xbf16>, vector<512x4xbf16> -> vector<512x36xbf16>
    %c0_62 = arith.constant 0 : index
    %c0_63 = arith.constant 0 : index
    %38 = vector.load %arg4[%c0_62, %c0_63] : memref<36x128xbf16, #tpu.memory_space<vmem>>, vector<36x128xbf16>
    %cst_64 = arith.constant dense<0.000000e+00> : vector<512x128xf32>
    %39 = tpu.matmul %37, %38, %cst_64 {dimension_numbers = #tpu.dot_dimension_numbers<[1], [0], [0], [1], [0, 0, 1, 1], [], []>} : vector<512x36xbf16>, vector<36x128xbf16>, vector<512x128xf32> -> vector<512x128xf32>
    %40 = vector.shape_cast %39 : vector<512x128xf32> to vector<2x16x16x128xf32>
    %c0_65 = arith.constant 0 : index
    %c0_66 = arith.constant 0 : index
    %c0_67 = arith.constant 0 : index
    %c0_68 = arith.constant 0 : index
    %41 = vector.load %arg5[%c0_65, %c0_66, %c0_67, %c0_68] : memref<2x16x16x128xf32, #tpu.memory_space<vmem>>, vector<2x16x16x128xf32>
    tpu.vector_store %arg5[%c0_65, %c0_66, %c0_67, %c0_68], %40 {strides = array<i32>} : memref<2x16x16x128xf32, #tpu.memory_space<vmem>>, vector<2x16x16x128xf32>,
    %cst_69 = arith.constant dense<0.000000e+00> : vector<128xf32>
    %42 = vector.multi_reduction <add>, %39, %cst_69 [0] : vector<512x128xf32> to vector<128xf32>
    %43 = vector.shape_cast %42 : vector<128xf32> to vector<1x128xf32>
    %44 = arith.mulf %39, %39 : vector<512x128xf32>
    %cst_70 = arith.constant dense<0.000000e+00> : vector<128xf32>
    %45 = vector.multi_reduction <add>, %44, %cst_70 [0] : vector<512x128xf32> to vector<128xf32>
    %46 = vector.shape_cast %45 : vector<128xf32> to vector<1x128xf32>
    %47 = tpu.concatenate %43, %46 in 0 : vector<1x128xf32>, vector<1x128xf32> -> vector<2x128xf32>
    %c0_71 = arith.constant 0 : index
    %c0_72 = arith.constant 0 : index
    %c0_73 = arith.constant 0 : index
    %48 = vector.load %arg6[%c0_71, %c0_72, %c0_73] : memref<1x2x128xf32, #tpu.memory_space<vmem>>, vector<1x2x128xf32>
    %49 = vector.shape_cast %48 : vector<1x2x128xf32> to vector<2x128xf32>
    %50 = vector.shape_cast %47 : vector<2x128xf32> to vector<1x2x128xf32>
    tpu.vector_store %arg6[%c0_71, %c0_72, %c0_73], %50 {strides = array<i32>} : memref<1x2x128xf32, #tpu.memory_space<vmem>>, vector<1x2x128xf32>,
    return
  }
  func.func @transform_0(%arg0: i32) -> (i32, i32, i32, i32) {
    %c0_i32 = arith.constant 0 : i32
    %c0_i32_0 = arith.constant 0 : i32
    %c0_i32_1 = arith.constant 0 : i32
    %c0_i32_2 = arith.constant 0 : i32
    return %arg0, %c0_i32, %c0_i32_0, %c0_i32_1 : i32, i32, i32, i32
  }
  func.func @transform_1(%arg0: i32) -> (i32, i32) {
    %c0_i32 = arith.constant 0 : i32
    %c0_i32_0 = arith.constant 0 : i32
    %c0_i32_1 = arith.constant 0 : i32
    return %c0_i32, %c0_i32_0 : i32, i32
  }
  func.func @transform_2(%arg0: i32) -> (i32, i32) {
    %c0_i32 = arith.constant 0 : i32
    %c0_i32_0 = arith.constant 0 : i32
    %c0_i32_1 = arith.constant 0 : i32
    return %c0_i32, %c0_i32_0 : i32, i32
  }
  func.func @transform_3(%arg0: i32) -> (i32, i32) {
    %c0_i32 = arith.constant 0 : i32
    %c0_i32_0 = arith.constant 0 : i32
    %c0_i32_1 = arith.constant 0 : i32
    return %c0_i32, %c0_i32_0 : i32, i32
  }
  func.func @transform_4(%arg0: i32) -> (i32, i32, i32, i32) {
    %c0_i32 = arith.constant 0 : i32
    %c0_i32_0 = arith.constant 0 : i32
    %c0_i32_1 = arith.constant 0 : i32
    %c0_i32_2 = arith.constant 0 : i32
    return %arg0, %c0_i32, %c0_i32_0, %c0_i32_1 : i32, i32, i32, i32
  }
  func.func @transform_5(%arg0: i32) -> (i32, i32, i32) {
    %c0_i32 = arith.constant 0 : i32
    %c0_i32_0 = arith.constant 0 : i32
    %c0_i32_1 = arith.constant 0 : i32
    return %arg0, %c0_i32, %c0_i32_0 : i32, i32, i32
  }
}

</mosaic_0001>

<llo_original>
// kernel: tpu_custom_call.1
$region0: #{tpu_custom_call.1}
  #allocation0 [shape = 'u32[]', space=smem, size = 0x4, offset = 0x4, fixed_abs, tag = 'smem constant byte address 0x4 - core index']
  #allocation1 [shape = 'u32[144,128]{1,0:T(1,128)}', space=vmem, size = 0x12000, scoped, tag = 'internal scratch']
  #allocation2 [shape = 'bf16[2,18,18,4]{3,2,1,0:T(8,128)(2,1)}', space=vmem, size = 0x36000, scoped, tag = 'scratch operand']
  %s0 = inlined_call_operand.vmem [shape: f32[2,16,16,4], index: 0, kind: input, shape index: {}]
  %s1 = inlined_call_operand.vmem [shape: f32[1,4], index: 1, kind: input, shape index: {}]
  %s2 = inlined_call_operand.vmem [shape: f32[1,4], index: 2, kind: input, shape index: {}]
  %s3 = inlined_call_operand.vmem [shape: bf16[36,128], index: 3, kind: input, shape index: {}]
  %s4 = inlined_call_operand.hbm [shape: f32[2,16,16,128], index: 4, kind: output, shape index: {0}]
  %s5 = inlined_call_operand.hbm [shape: f32[1,2,128], index: 5, kind: output, shape index: {1}]
  %6 = xla_tuple %s4, %s5
  %s7 = sld [smem:[#allocation0]]
  $region34: #{tpu_custom_call.1} parent=0
    _
  %s9 = ssub.s32 1, %s7
  %s10 = scalar_select 0, %s9, %s7
  $region1: #{tpu_custom_call.1} parent=0
    #allocation3 [shape = 'u8[262144]{0}', space=vmem, size = 0x40000, scoped, tag = 'output window, operand 0, single buffered']
    #allocation4 [shape = 's32[1]{0}', space=sflag, size = 0x4, scoped, tag = 'scoped memory for tpu_custom_call.1']
    #allocation5 [shape = 'u8[1024]{0}', space=vmem, size = 0x400, scoped, tag = 'output window, operand 1, single buffered']
    #allocation6 [shape = 's32[1]{0}', space=sflag, size = 0x4, scoped, tag = 'scoped memory for tpu_custom_call.1']
    %11 = vsyncpa [#allocation4], 0
    %12 = vsyncpa [#allocation6], 0
    // Predicated region
    $region2: #{tpu_custom_call.1} parent=1 // pred_check
      _
    $region3: #{tpu_custom_call.1} parent=1 // pred_check_branch
      %14 = sbr.rel (0) target = $region5
    $region4: #{tpu_custom_call.1} parent=1 // pred_region
      _
    $region5: #{tpu_custom_call.1} parent=1 // pred_fallthru
      _
    // Predicated region
    $region6: #{tpu_custom_call.1} parent=1 // pred_check
      _
    $region7: #{tpu_custom_call.1} parent=1 // pred_check_branch
      %16 = sbr.rel (0) target = $region9
    $region8: #{tpu_custom_call.1} parent=1 // pred_region
      _
    $region9: #{tpu_custom_call.1} parent=1 // pred_fallthru
      _
    // Predicated region
    $region10: #{tpu_custom_call.1} parent=1 // pred_check
      _
    $region11: #{tpu_custom_call.1} parent=1 // pred_check_branch
      %18 = sbr.rel (0) target = $region13
    $region12: #{tpu_custom_call.1} parent=1 // pred_region
      _
    $region13: #{tpu_custom_call.1} parent=1 // pred_fallthru
      _
    // Predicated region
    $region14: #{tpu_custom_call.1} parent=1 // pred_check
      _
    $region15: #{tpu_custom_call.1} parent=1 // pred_check_branch
      %20 = sbr.rel (0) target = $region17
    $region16: #{tpu_custom_call.1} parent=1 // pred_region
      _
    $region17: #{tpu_custom_call.1} parent=1 // pred_fallthru
      _
    %v22 = vld [vmem:[%s0] sm:$0xff]
    %v23 = vld [vmem:[%s0 + $0x8] sm:$0xff]
    %v24 = vld [vmem:[%s0 + $0x10] sm:$0xff]
    %v25 = vld [vmem:[%s0 + $0x18] sm:$0xff]
    %v26 = vld [vmem:[%s0 + $0x20] sm:$0xff]
    %v27 = vld [vmem:[%s0 + $0x28] sm:$0xff]
    %v28 = vld [vmem:[%s0 + $0x30] sm:$0xff]
    %v29 = vld [vmem:[%s0 + $0x38] sm:$0xff]
    %v30 = vld [vmem:[%s0 + $0x40] sm:$0xff]
    %v31 = vld [vmem:[%s0 + $0x48] sm:$0xff]
    %v32 = vld [vmem:[%s0 + $0x50] sm:$0xff]
    %v33 = vld [vmem:[%s0 + $0x58] sm:$0xff]
    %v34 = vld [vmem:[%s0 + $0x60] sm:$0xff]
    %v35 = vld [vmem:[%s0 + $0x68] sm:$0xff]
    %v36 = vld [vmem:[%s0 + $0x70] sm:$0xff]
    %v37 = vld [vmem:[%s0 + $0x78] sm:$0xff]
    %v38 = vld [vmem:[%s0 + $0x80] sm:$0xff]
    %v39 = vld [vmem:[%s0 + $0x88] sm:$0xff]
    %v40 = vld [vmem:[%s0 + $0x90] sm:$0xff]
    %v41 = vld [vmem:[%s0 + $0x98] sm:$0xff]
    %v42 = vld [vmem:[%s0 + $0xa0] sm:$0xff]
    %v43 = vld [vmem:[%s0 + $0xa8] sm:$0xff]
    %v44 = vld [vmem:[%s0 + $0xb0] sm:$0xff]
    %v45 = vld [vmem:[%s0 + $0xb8] sm:$0xff]
    %v46 = vld [vmem:[%s0 + $0xc0] sm:$0xff]
    %v47 = vld [vmem:[%s0 + $0xc8] sm:$0xff]
    %v48 = vld [vmem:[%s0 + $0xd0] sm:$0xff]
    %v49 = vld [vmem:[%s0 + $0xd8] sm:$0xff]
    %v50 = vld [vmem:[%s0 + $0xe0] sm:$0xff]
    %v51 = vld [vmem:[%s0 + $0xe8] sm:$0xff]
    %v52 = vld [vmem:[%s0 + $0xf0] sm:$0xff]
    %v53 = vld [vmem:[%s0 + $0xf8] sm:$0xff]
    %v54 = vld [vmem:[%s0 + $0x100] sm:$0xff]
    %v55 = vld [vmem:[%s0 + $0x108] sm:$0xff]
    %v56 = vld [vmem:[%s0 + $0x110] sm:$0xff]
    %v57 = vld [vmem:[%s0 + $0x118] sm:$0xff]
    %v58 = vld [vmem:[%s0 + $0x120] sm:$0xff]
    %v59 = vld [vmem:[%s0 + $0x128] sm:$0xff]
    %v60 = vld [vmem:[%s0 + $0x130] sm:$0xff]
    %v61 = vld [vmem:[%s0 + $0x138] sm:$0xff]
    %v62 = vld [vmem:[%s0 + $0x140] sm:$0xff]
    %v63 = vld [vmem:[%s0 + $0x148] sm:$0xff]
    %v64 = vld [vmem:[%s0 + $0x150] sm:$0xff]
    %v65 = vld [vmem:[%s0 + $0x158] sm:$0xff]
    %v66 = vld [vmem:[%s0 + $0x160] sm:$0xff]
    %v67 = vld [vmem:[%s0 + $0x168] sm:$0xff]
    %v68 = vld [vmem:[%s0 + $0x170] sm:$0xff]
    %v69 = vld [vmem:[%s0 + $0x178] sm:$0xff]
    %v70 = vld [vmem:[%s0 + $0x180] sm:$0xff]
    %v71 = vld [vmem:[%s0 + $0x188] sm:$0xff]
    %v72 = vld [vmem:[%s0 + $0x190] sm:$0xff]
    %v73 = vld [vmem:[%s0 + $0x198] sm:$0xff]
    %v74 = vld [vmem:[%s0 + $0x1a0] sm:$0xff]
    %v75 = vld [vmem:[%s0 + $0x1a8] sm:$0xff]
    %v76 = vld [vmem:[%s0 + $0x1b0] sm:$0xff]
    %v77 = vld [vmem:[%s0 + $0x1b8] sm:$0xff]
    %v78 = vld [vmem:[%s0 + $0x1c0] sm:$0xff]
    %v79 = vld [vmem:[%s0 + $0x1c8] sm:$0xff]
    %v80 = vld [vmem:[%s0 + $0x1d0] sm:$0xff]
    %v81 = vld [vmem:[%s0 + $0x1d8] sm:$0xff]
    %v82 = vld [vmem:[%s0 + $0x1e0] sm:$0xff]
    %v83 = vld [vmem:[%s0 + $0x1e8] sm:$0xff]
    %v84 = vld [vmem:[%s0 + $0x1f0] sm:$0xff]
    %v85 = vld [vmem:[%s0 + $0x1f8] sm:$0xff]
    %v86 = vld [vmem:[%s1] sm:$0x1]
    %v88 = vlaneseq
    %v89 = vshrl.u32 %v88, 7
    %v90 = vsub.s32 0, %v89
    %v91 = vrot.slane %v86, %v90
    %v93 = vmul.f32 %v22, %v91
    %v94 = vmul.f32 %v23, %v91
    %v95 = vmul.f32 %v24, %v91
    %v96 = vmul.f32 %v25, %v91
    %v97 = vmul.f32 %v26, %v91
    %v98 = vmul.f32 %v27, %v91
    %v99 = vmul.f32 %v28, %v91
    %v100 = vmul.f32 %v29, %v91
    %v101 = vmul.f32 %v30, %v91
    %v102 = vmul.f32 %v31, %v91
    %v103 = vmul.f32 %v32, %v91
    %v104 = vmul.f32 %v33, %v91
    %v105 = vmul.f32 %v34, %v91
    %v106 = vmul.f32 %v35, %v91
    %v107 = vmul.f32 %v36, %v91
    %v108 = vmul.f32 %v37, %v91
    %v109 = vmul.f32 %v38, %v91
    %v110 = vmul.f32 %v39, %v91
    %v111 = vmul.f32 %v40, %v91
    %v112 = vmul.f32 %v41, %v91
    %v113 = vmul.f32 %v42, %v91
    %v114 = vmul.f32 %v43, %v91
    %v115 = vmul.f32 %v44, %v91
    %v116 = vmul.f32 %v45, %v91
    %v117 = vmul.f32 %v46, %v91
    %v118 = vmul.f32 %v47, %v91
    %v119 = vmul.f32 %v48, %v91
    %v120 = vmul.f32 %v49, %v91
    %v121 = vmul.f32 %v50, %v91
    %v122 = vmul.f32 %v51, %v91
    %v123 = vmul.f32 %v52, %v91
    %v124 = vmul.f32 %v53, %v91
    %v125 = vmul.f32 %v54, %v91
    %v126 = vmul.f32 %v55, %v91
    %v127 = vmul.f32 %v56, %v91
    %v128 = vmul.f32 %v57, %v91
    %v129 = vmul.f32 %v58, %v91
    %v130 = vmul.f32 %v59, %v91
    %v131 = vmul.f32 %v60, %v91
    %v132 = vmul.f32 %v61, %v91
    %v133 = vmul.f32 %v62, %v91
    %v134 = vmul.f32 %v63, %v91
    %v135 = vmul.f32 %v64, %v91
    %v136 = vmul.f32 %v65, %v91
    %v137 = vmul.f32 %v66, %v91
    %v138 = vmul.f32 %v67, %v91
    %v139 = vmul.f32 %v68, %v91
    %v140 = vmul.f32 %v69, %v91
    %v141 = vmul.f32 %v70, %v91
    %v142 = vmul.f32 %v71, %v91
    %v143 = vmul.f32 %v72, %v91
    %v144 = vmul.f32 %v73, %v91
    %v145 = vmul.f32 %v74, %v91
    %v146 = vmul.f32 %v75, %v91
    %v147 = vmul.f32 %v76, %v91
    %v148 = vmul.f32 %v77, %v91
    %v149 = vmul.f32 %v78, %v91
    %v150 = vmul.f32 %v79, %v91
    %v151 = vmul.f32 %v80, %v91
    %v152 = vmul.f32 %v81, %v91
    %v153 = vmul.f32 %v82, %v91
    %v154 = vmul.f32 %v83, %v91
    %v155 = vmul.f32 %v84, %v91
    %v156 = vmul.f32 %v85, %v91
    %v157 = vld [vmem:[%s2] sm:$0x1]
    %v159 = vlaneseq
    %v160 = vshrl.u32 %v159, 7
    %v161 = vsub.s32 0, %v160
    %v162 = vrot.slane %v157, %v161
    %v164 = vadd.f32 %v93, %v162
    %v165 = vadd.f32 %v94, %v162
    %v166 = vadd.f32 %v95, %v162
    %v167 = vadd.f32 %v96, %v162
    %v168 = vadd.f32 %v97, %v162
    %v169 = vadd.f32 %v98, %v162
    %v170 = vadd.f32 %v99, %v162
    %v171 = vadd.f32 %v100, %v162
    %v172 = vadd.f32 %v101, %v162
    %v173 = vadd.f32 %v102, %v162
    %v174 = vadd.f32 %v103, %v162
    %v175 = vadd.f32 %v104, %v162
    %v176 = vadd.f32 %v105, %v162
    %v177 = vadd.f32 %v106, %v162
    %v178 = vadd.f32 %v107, %v162
    %v179 = vadd.f32 %v108, %v162
    %v180 = vadd.f32 %v109, %v162
    %v181 = vadd.f32 %v110, %v162
    %v182 = vadd.f32 %v111, %v162
    %v183 = vadd.f32 %v112, %v162
    %v184 = vadd.f32 %v113, %v162
    %v185 = vadd.f32 %v114, %v162
    %v186 = vadd.f32 %v115, %v162
    %v187 = vadd.f32 %v116, %v162
    %v188 = vadd.f32 %v117, %v162
    %v189 = vadd.f32 %v118, %v162
    %v190 = vadd.f32 %v119, %v162
    %v191 = vadd.f32 %v120, %v162
    %v192 = vadd.f32 %v121, %v162
    %v193 = vadd.f32 %v122, %v162
    %v194 = vadd.f32 %v123, %v162
    %v195 = vadd.f32 %v124, %v162
    %v196 = vadd.f32 %v125, %v162
    %v197 = vadd.f32 %v126, %v162
    %v198 = vadd.f32 %v127, %v162
    %v199 = vadd.f32 %v128, %v162
    %v200 = vadd.f32 %v129, %v162
    %v201 = vadd.f32 %v130, %v162
    %v202 = vadd.f32 %v131, %v162
    %v203 = vadd.f32 %v132, %v162
    %v204 = vadd.f32 %v133, %v162
    %v205 = vadd.f32 %v134, %v162
    %v206 = vadd.f32 %v135, %v162
    %v207 = vadd.f32 %v136, %v162
    %v208 = vadd.f32 %v137, %v162
    %v209 = vadd.f32 %v138, %v162
    %v210 = vadd.f32 %v139, %v162
    %v211 = vadd.f32 %v140, %v162
    %v212 = vadd.f32 %v141, %v162
    %v213 = vadd.f32 %v142, %v162
    %v214 = vadd.f32 %v143, %v162
    %v215 = vadd.f32 %v144, %v162
    %v216 = vadd.f32 %v145, %v162
    %v217 = vadd.f32 %v146, %v162
    %v218 = vadd.f32 %v147, %v162
    %v219 = vadd.f32 %v148, %v162
    %v220 = vadd.f32 %v149, %v162
    %v221 = vadd.f32 %v150, %v162
    %v222 = vadd.f32 %v151, %v162
    %v223 = vadd.f32 %v152, %v162
    %v224 = vadd.f32 %v153, %v162
    %v225 = vadd.f32 %v154, %v162
    %v226 = vadd.f32 %v155, %v162
    %v227 = vadd.f32 %v156, %v162
    %v228 = vmax.f32 %v164, 0.0
    %v229 = vmax.f32 %v165, 0.0
    %v230 = vmax.f32 %v166, 0.0
    %v231 = vmax.f32 %v167, 0.0
    %v232 = vmax.f32 %v168, 0.0
    %v233 = vmax.f32 %v169, 0.0
    %v234 = vmax.f32 %v170, 0.0
    %v235 = vmax.f32 %v171, 0.0
    %v236 = vmax.f32 %v172, 0.0
    %v237 = vmax.f32 %v173, 0.0
    %v238 = vmax.f32 %v174, 0.0
    %v239 = vmax.f32 %v175, 0.0
    %v240 = vmax.f32 %v176, 0.0
    %v241 = vmax.f32 %v177, 0.0
    %v242 = vmax.f32 %v178, 0.0
    %v243 = vmax.f32 %v179, 0.0
    %v244 = vmax.f32 %v180, 0.0
    %v245 = vmax.f32 %v181, 0.0
    %v246 = vmax.f32 %v182, 0.0
    %v247 = vmax.f32 %v183, 0.0
    %v248 = vmax.f32 %v184, 0.0
    %v249 = vmax.f32 %v185, 0.0
    %v250 = vmax.f32 %v186, 0.0
    %v251 = vmax.f32 %v187, 0.0
    %v252 = vmax.f32 %v188, 0.0
    %v253 = vmax.f32 %v189, 0.0
    %v254 = vmax.f32 %v190, 0.0
    %v255 = vmax.f32 %v191, 0.0
    %v256 = vmax.f32 %v192, 0.0
    %v257 = vmax.f32 %v193, 0.0
    %v258 = vmax.f32 %v194, 0.0
    %v259 = vmax.f32 %v195, 0.0
    %v260 = vmax.f32 %v196, 0.0
    %v261 = vmax.f32 %v197, 0.0
    %v262 = vmax.f32 %v198, 0.0
    %v263 = vmax.f32 %v199, 0.0
    %v264 = vmax.f32 %v200, 0.0
    %v265 = vmax.f32 %v201, 0.0
    %v266 = vmax.f32 %v202, 0.0
    %v267 = vmax.f32 %v203, 0.0
    %v268 = vmax.f32 %v204, 0.0
    %v269 = vmax.f32 %v205, 0.0
    %v270 = vmax.f32 %v206, 0.0
    %v271 = vmax.f32 %v207, 0.0
    %v272 = vmax.f32 %v208, 0.0
    %v273 = vmax.f32 %v209, 0.0
    %v274 = vmax.f32 %v210, 0.0
    %v275 = vmax.f32 %v211, 0.0
    %v276 = vmax.f32 %v212, 0.0
    %v277 = vmax.f32 %v213, 0.0
    %v278 = vmax.f32 %v214, 0.0
    %v279 = vmax.f32 %v215, 0.0
    %v280 = vmax.f32 %v216, 0.0
    %v281 = vmax.f32 %v217, 0.0
    %v282 = vmax.f32 %v218, 0.0
    %v283 = vmax.f32 %v219, 0.0
    %v284 = vmax.f32 %v220, 0.0
    %v285 = vmax.f32 %v221, 0.0
    %v286 = vmax.f32 %v222, 0.0
    %v287 = vmax.f32 %v223, 0.0
    %v288 = vmax.f32 %v224, 0.0
    %v289 = vmax.f32 %v225, 0.0
    %v290 = vmax.f32 %v226, 0.0
    %v291 = vmax.f32 %v227, 0.0
    %v292 = vpack.c.bf16 %v229, %v228
    %v293 = vpack.c.bf16 %v231, %v230
    %v294 = vpack.c.bf16 %v233, %v232
    %v295 = vpack.c.bf16 %v235, %v234
    %v296 = vpack.c.bf16 %v237, %v236
    %v297 = vpack.c.bf16 %v239, %v238
    %v298 = vpack.c.bf16 %v241, %v240
    %v299 = vpack.c.bf16 %v243, %v242
    %v300 = vpack.c.bf16 %v245, %v244
    %v301 = vpack.c.bf16 %v247, %v246
    %v302 = vpack.c.bf16 %v249, %v248
    %v303 = vpack.c.bf16 %v251, %v250
    %v304 = vpack.c.bf16 %v253, %v252
    %v305 = vpack.c.bf16 %v255, %v254
    %v306 = vpack.c.bf16 %v257, %v256
    %v307 = vpack.c.bf16 %v259, %v258
    %v308 = vpack.c.bf16 %v261, %v260
    %v309 = vpack.c.bf16 %v263, %v262
    %v310 = vpack.c.bf16 %v265, %v264
    %v311 = vpack.c.bf16 %v267, %v266
    %v312 = vpack.c.bf16 %v269, %v268
    %v313 = vpack.c.bf16 %v271, %v270
    %v314 = vpack.c.bf16 %v273, %v272
    %v315 = vpack.c.bf16 %v275, %v274
    %v316 = vpack.c.bf16 %v277, %v276
    %v317 = vpack.c.bf16 %v279, %v278
    %v318 = vpack.c.bf16 %v281, %v280
    %v319 = vpack.c.bf16 %v283, %v282
    %v320 = vpack.c.bf16 %v285, %v284
    %v321 = vpack.c.bf16 %v287, %v286
    %v322 = vpack.c.bf16 %v289, %v288
    %v323 = vpack.c.bf16 %v291, %v290
    %vm324 = vcmask 27648
    %325 = vst.msk [vmem:[#allocation2] sm:$0xf] %vm324, 0
    %326 = vst.msk [vmem:[#allocation2 + $0x4] sm:$0xf] %vm324, 0
    %vm327 = vcmask 24576
    %328 = vst.msk [vmem:[#allocation2 + $0x8] sm:$0x1] %vm327, 0
    %329 = vst.msk [vmem:[#allocation2 + $0xd8] sm:$0xf] %vm324, 0
    %330 = vst.msk [vmem:[#allocation2 + $0xdc] sm:$0xf] %vm324, 0
    %331 = vst.msk [vmem:[#allocation2 + $0xe0] sm:$0x1] %vm327, 0
    %s332 = scalar_lea.vmem [#allocation2], 204
    %333 = vst.msk [vmem:[%s332] sm:$0xf] %vm324, 0
    %334 = vst.msk [vmem:[%s332 + $0x4] sm:$0xf] %vm324, 0
    %335 = vst.msk [vmem:[%s332 + $0x8] sm:$0x1] %vm327, 0
    %336 = vst.msk [vmem:[%s332 + $0xd8] sm:$0xf] %vm324, 0
    %337 = vst.msk [vmem:[%s332 + $0xdc] sm:$0xf] %vm324, 0
    %338 = vst.msk [vmem:[%s332 + $0xe0] sm:$0x1] %vm327, 0
    %vm339 = vcmask 24576
    %vm340 = vsmask.f32 256
    %vm341 = vmand %vm339, %vm340
    %v342 = vld [vmem:[#allocation2] sm:$0x1]
    %v343 = vsel %vm341, 0, %v342
    %344 = vst [vmem:[#allocation2] sm:$0x1] %v343
    %v345 = vld [vmem:[#allocation2 + $0xc] sm:$0x1]
    %v346 = vsel %vm341, 0, %v345
    %347 = vst [vmem:[#allocation2 + $0xc] sm:$0x1] %v346
    %v348 = vld [vmem:[#allocation2 + $0x18] sm:$0x1]
    %v349 = vsel %vm341, 0, %v348
    %350 = vst [vmem:[#allocation2 + $0x18] sm:$0x1] %v349
    %v351 = vld [vmem:[#allocation2 + $0x24] sm:$0x1]
    %v352 = vsel %vm341, 0, %v351
    %353 = vst [vmem:[#allocation2 + $0x24] sm:$0x1] %v352
    %v354 = vld [vmem:[#allocation2 + $0x30] sm:$0x1]
    %v355 = vsel %vm341, 0, %v354
    %356 = vst [vmem:[#allocation2 + $0x30] sm:$0x1] %v355
    %v357 = vld [vmem:[#allocation2 + $0x3c] sm:$0x1]
    %v358 = vsel %vm341, 0, %v357
    %359 = vst [vmem:[#allocation2 + $0x3c] sm:$0x1] %v358
    %v360 = vld [vmem:[#allocation2 + $0x48] sm:$0x1]
    %v361 = vsel %vm341, 0, %v360
    %362 = vst [vmem:[#allocation2 + $0x48] sm:$0x1] %v361
    %v363 = vld [vmem:[#allocation2 + $0x54] sm:$0x1]
    %v364 = vsel %vm341, 0, %v363
    %365 = vst [vmem:[#allocation2 + $0x54] sm:$0x1] %v364
    %v366 = vld [vmem:[#allocation2 + $0x60] sm:$0x1]
    %v367 = vsel %vm341, 0, %v366
    %368 = vst [vmem:[#allocation2 + $0x60] sm:$0x1] %v367
    %v369 = vld [vmem:[#allocation2 + $0x6c] sm:$0x1]
    %v370 = vsel %vm341, 0, %v369
    %371 = vst [vmem:[#allocation2 + $0x6c] sm:$0x1] %v370
    %v372 = vld [vmem:[#allocation2 + $0x78] sm:$0x1]
    %v373 = vsel %vm341, 0, %v372
    %374 = vst [vmem:[#allocation2 + $0x78] sm:$0x1] %v373
    %v375 = vld [vmem:[#allocation2 + $0x84] sm:$0x1]
    %v376 = vsel %vm341, 0, %v375
    %377 = vst [vmem:[#allocation2 + $0x84] sm:$0x1] %v376
    %v378 = vld [vmem:[#allocation2 + $0x90] sm:$0x1]
    %v379 = vsel %vm341, 0, %v378
    %380 = vst [vmem:[#allocation2 + $0x90] sm:$0x1] %v379
    %v381 = vld [vmem:[#allocation2 + $0x9c] sm:$0x1]
    %v382 = vsel %vm341, 0, %v381
    %383 = vst [vmem:[#allocation2 + $0x9c] sm:$0x1] %v382
    %v384 = vld [vmem:[#allocation2 + $0xa8] sm:$0x1]
    %v385 = vsel %vm341, 0, %v384
    %386 = vst [vmem:[#allocation2 + $0xa8] sm:$0x1] %v385
    %v387 = vld [vmem:[#allocation2 + $0xb4] sm:$0x1]
    %v388 = vsel %vm341, 0, %v387
    %389 = vst [vmem:[#allocation2 + $0xb4] sm:$0x1] %v388
    %v390 = vld [vmem:[#allocation2 + $0xc0] sm:$0x1]
    %v391 = vsel %vm341, 0, %v390
    %392 = vst [vmem:[#allocation2 + $0xc0] sm:$0x1] %v391
    %v393 = vld [vmem:[#allocation2 + $0xcc] sm:$0x1]
    %v394 = vsel %vm341, 0, %v393
    %395 = vst [vmem:[#allocation2 + $0xcc] sm:$0x1] %v394
    %v396 = vld [vmem:[#allocation2 + $0xd8] sm:$0x1]
    %v397 = vsel %vm341, 0, %v396
    %398 = vst [vmem:[#allocation2 + $0xd8] sm:$0x1] %v397
    %v399 = vld [vmem:[#allocation2 + $0xe4] sm:$0x1]
    %v400 = vsel %vm341, 0, %v399
    %401 = vst [vmem:[#allocation2 + $0xe4] sm:$0x1] %v400
    %v402 = vld [vmem:[#allocation2 + $0xf0] sm:$0x1]
    %v403 = vsel %vm341, 0, %v402
    %404 = vst [vmem:[#allocation2 + $0xf0] sm:$0x1] %v403
    %v405 = vld [vmem:[#allocation2 + $0xfc] sm:$0x1]
    %v406 = vsel %vm341, 0, %v405
    %407 = vst [vmem:[#allocation2 + $0xfc] sm:$0x1] %v406
    %v408 = vld [vmem:[#allocation2 + $0x108] sm:$0x1]
    %v409 = vsel %vm341, 0, %v408
    %410 = vst [vmem:[#allocation2 + $0x108] sm:$0x1] %v409
    %v411 = vld [vmem:[#allocation2 + $0x114] sm:$0x1]
    %v412 = vsel %vm341, 0, %v411
    %413 = vst [vmem:[#allocation2 + $0x114] sm:$0x1] %v412
    %v414 = vld [vmem:[#allocation2 + $0x120] sm:$0x1]
    %v415 = vsel %vm341, 0, %v414
    %416 = vst [vmem:[#allocation2 + $0x120] sm:$0x1] %v415
    %v417 = vld [vmem:[#allocation2 + $0x12c] sm:$0x1]
    %v418 = vsel %vm341, 0, %v417
    %419 = vst [vmem:[#allocation2 + $0x12c] sm:$0x1] %v418
    %v420 = vld [vmem:[#allocation2 + $0x138] sm:$0x1]
    %v421 = vsel %vm341, 0, %v420
    %422 = vst [vmem:[#allocation2 + $0x138] sm:$0x1] %v421
    %v423 = vld [vmem:[#allocation2 + $0x144] sm:$0x1]
    %v424 = vsel %vm341, 0, %v423
    %425 = vst [vmem:[#allocation2 + $0x144] sm:$0x1] %v424
    %v426 = vld [vmem:[#allocation2 + $0x150] sm:$0x1]
    %v427 = vsel %vm341, 0, %v426
    %428 = vst [vmem:[#allocation2 + $0x150] sm:$0x1] %v427
    %v429 = vld [vmem:[#allocation2 + $0x15c] sm:$0x1]
    %v430 = vsel %vm341, 0, %v429
    %431 = vst [vmem:[#allocation2 + $0x15c] sm:$0x1] %v430
    %v432 = vld [vmem:[#allocation2 + $0x168] sm:$0x1]
    %v433 = vsel %vm341, 0, %v432
    %434 = vst [vmem:[#allocation2 + $0x168] sm:$0x1] %v433
    %v435 = vld [vmem:[#allocation2 + $0x174] sm:$0x1]
    %v436 = vsel %vm341, 0, %v435
    %437 = vst [vmem:[#allocation2 + $0x174] sm:$0x1] %v436
    %v438 = vld [vmem:[#allocation2 + $0x180] sm:$0x1]
    %v439 = vsel %vm341, 0, %v438
    %440 = vst [vmem:[#allocation2 + $0x180] sm:$0x1] %v439
    %v441 = vld [vmem:[#allocation2 + $0x18c] sm:$0x1]
    %v442 = vsel %vm341, 0, %v441
    %443 = vst [vmem:[#allocation2 + $0x18c] sm:$0x1] %v442
    %v444 = vld [vmem:[#allocation2 + $0x198] sm:$0x1]
    %v445 = vsel %vm341, 0, %v444
    %446 = vst [vmem:[#allocation2 + $0x198] sm:$0x1] %v445
    %v447 = vld [vmem:[#allocation2 + $0x1a4] sm:$0x1]
    %v448 = vsel %vm341, 0, %v447
    %449 = vst [vmem:[#allocation2 + $0x1a4] sm:$0x1] %v448
    %vm450 = vsmask.f32 7938
    %vm451 = vmand %vm339, %vm450
    %v452 = vld [vmem:[#allocation2 + $0x8] sm:$0x1]
    %v453 = vsel %vm451, 0, %v452
    %454 = vst [vmem:[#allocation2 + $0x8] sm:$0x1] %v453
    %v455 = vld [vmem:[#allocation2 + $0x14] sm:$0x1]
    %v456 = vsel %vm451, 0, %v455
    %457 = vst [vmem:[#allocation2 + $0x14] sm:$0x1] %v456
    %v458 = vld [vmem:[#allocation2 + $0x20] sm:$0x1]
    %v459 = vsel %vm451, 0, %v458
    %460 = vst [vmem:[#allocation2 + $0x20] sm:$0x1] %v459
    %v461 = vld [vmem:[#allocation2 + $0x2c] sm:$0x1]
    %v462 = vsel %vm451, 0, %v461
    %463 = vst [vmem:[#allocation2 + $0x2c] sm:$0x1] %v462
    %v464 = vld [vmem:[#allocation2 + $0x38] sm:$0x1]
    %v465 = vsel %vm451, 0, %v464
    %466 = vst [vmem:[#allocation2 + $0x38] sm:$0x1] %v465
    %v467 = vld [vmem:[#allocation2 + $0x44] sm:$0x1]
    %v468 = vsel %vm451, 0, %v467
    %469 = vst [vmem:[#allocation2 + $0x44] sm:$0x1] %v468
    %v470 = vld [vmem:[#allocation2 + $0x50] sm:$0x1]
    %v471 = vsel %vm451, 0, %v470
    %472 = vst [vmem:[#allocation2 + $0x50] sm:$0x1] %v471
    %v473 = vld [vmem:[#allocation2 + $0x5c] sm:$0x1]
    %v474 = vsel %vm451, 0, %v473
    %475 = vst [vmem:[#allocation2 + $0x5c] sm:$0x1] %v474
    %v476 = vld [vmem:[#allocation2 + $0x68] sm:$0x1]
    %v477 = vsel %vm451, 0, %v476
    %478 = vst [vmem:[#allocation2 + $0x68] sm:$0x1] %v477
    %v479 = vld [vmem:[#allocation2 + $0x74] sm:$0x1]
    %v480 = vsel %vm451, 0, %v479
    %481 = vst [vmem:[#allocation2 + $0x74] sm:$0x1] %v480
    %v482 = vld [vmem:[#allocation2 + $0x80] sm:$0x1]
    %v483 = vsel %vm451, 0, %v482
    %484 = vst [vmem:[#allocation2 + $0x80] sm:$0x1] %v483
    %v485 = vld [vmem:[#allocation2 + $0x8c] sm:$0x1]
    %v486 = vsel %vm451, 0, %v485
    %487 = vst [vmem:[#allocation2 + $0x8c] sm:$0x1] %v486
    %v488 = vld [vmem:[#allocation2 + $0x98] sm:$0x1]
    %v489 = vsel %vm451, 0, %v488
    %490 = vst [vmem:[#allocation2 + $0x98] sm:$0x1] %v489
    %v491 = vld [vmem:[#allocation2 + $0xa4] sm:$0x1]
    %v492 = vsel %vm451, 0, %v491
    %493 = vst [vmem:[#allocation2 + $0xa4] sm:$0x1] %v492
    %v494 = vld [vmem:[#allocation2 + $0xb0] sm:$0x1]
    %v495 = vsel %vm451, 0, %v494
    %496 = vst [vmem:[#allocation2 + $0xb0] sm:$0x1] %v495
    %v497 = vld [vmem:[#allocation2 + $0xbc] sm:$0x1]
    %v498 = vsel %vm451, 0, %v497
    %499 = vst [vmem:[#allocation2 + $0xbc] sm:$0x1] %v498
    %v500 = vld [vmem:[#allocation2 + $0xc8] sm:$0x1]
    %v501 = vsel %vm451, 0, %v500
    %502 = vst [vmem:[#allocation2 + $0xc8] sm:$0x1] %v501
    %v503 = vld [vmem:[#allocation2 + $0xd4] sm:$0x1]
    %v504 = vsel %vm451, 0, %v503
    %505 = vst [vmem:[#allocation2 + $0xd4] sm:$0x1] %v504
    %v506 = vld [vmem:[#allocation2 + $0xe0] sm:$0x1]
    %v507 = vsel %vm451, 0, %v506
    %508 = vst [vmem:[#allocation2 + $0xe0] sm:$0x1] %v507
    %v509 = vld [vmem:[#allocation2 + $0xec] sm:$0x1]
    %v510 = vsel %vm451, 0, %v509
    %511 = vst [vmem:[#allocation2 + $0xec] sm:$0x1] %v510
    %v512 = vld [vmem:[#allocation2 + $0xf8] sm:$0x1]
    %v513 = vsel %vm451, 0, %v512
    %514 = vst [vmem:[#allocation2 + $0xf8] sm:$0x1] %v513
    %v515 = vld [vmem:[#allocation2 + $0x104] sm:$0x1]
    %v516 = vsel %vm451, 0, %v515
    %517 = vst [vmem:[#allocation2 + $0x104] sm:$0x1] %v516
    %v518 = vld [vmem:[#allocation2 + $0x110] sm:$0x1]
    %v519 = vsel %vm451, 0, %v518
    %520 = vst [vmem:[#allocation2 + $0x110] sm:$0x1] %v519
    %v521 = vld [vmem:[#allocation2 + $0x11c] sm:$0x1]
    %v522 = vsel %vm451, 0, %v521
    %523 = vst [vmem:[#allocation2 + $0x11c] sm:$0x1] %v522
    %v524 = vld [vmem:[#allocation2 + $0x128] sm:$0x1]
    %v525 = vsel %vm451, 0, %v524
    %526 = vst [vmem:[#allocation2 + $0x128] sm:$0x1] %v525
    %v527 = vld [vmem:[#allocation2 + $0x134] sm:$0x1]
    %v528 = vsel %vm451, 0, %v527
    %529 = vst [vmem:[#allocation2 + $0x134] sm:$0x1] %v528
    %v530 = vld [vmem:[#allocation2 + $0x140] sm:$0x1]
    %v531 = vsel %vm451, 0, %v530
    %532 = vst [vmem:[#allocation2 + $0x140] sm:$0x1] %v531
    %v533 = vld [vmem:[#allocation2 + $0x14c] sm:$0x1]
    %v534 = vsel %vm451, 0, %v533
    %535 = vst [vmem:[#allocation2 + $0x14c] sm:$0x1] %v534
    %v536 = vld [vmem:[#allocation2 + $0x158] sm:$0x1]
    %v537 = vsel %vm451, 0, %v536
    %538 = vst [vmem:[#allocation2 + $0x158] sm:$0x1] %v537
    %v539 = vld [vmem:[#allocation2 + $0x164] sm:$0x1]
    %v540 = vsel %vm451, 0, %v539
    %541 = vst [vmem:[#allocation2 + $0x164] sm:$0x1] %v540
    %v542 = vld [vmem:[#allocation2 + $0x170] sm:$0x1]
    %v543 = vsel %vm451, 0, %v542
    %544 = vst [vmem:[#allocation2 + $0x170] sm:$0x1] %v543
    %v545 = vld [vmem:[#allocation2 + $0x17c] sm:$0x1]
    %v546 = vsel %vm451, 0, %v545
    %547 = vst [vmem:[#allocation2 + $0x17c] sm:$0x1] %v546
    %v548 = vld [vmem:[#allocation2 + $0x188] sm:$0x1]
    %v549 = vsel %vm451, 0, %v548
    %550 = vst [vmem:[#allocation2 + $0x188] sm:$0x1] %v549
    %v551 = vld [vmem:[#allocation2 + $0x194] sm:$0x1]
    %v552 = vsel %vm451, 0, %v551
    %553 = vst [vmem:[#allocation2 + $0x194] sm:$0x1] %v552
    %v554 = vld [vmem:[#allocation2 + $0x1a0] sm:$0x1]
    %v555 = vsel %vm451, 0, %v554
    %556 = vst [vmem:[#allocation2 + $0x1a0] sm:$0x1] %v555
    %v557 = vld [vmem:[#allocation2 + $0x1ac] sm:$0x1]
    %v558 = vsel %vm451, 0, %v557
    %559 = vst [vmem:[#allocation2 + $0x1ac] sm:$0x1] %v558
    %v592 = vunpack.c.l.b16 %v292
    %v593 = vunpack.c.h.b16 %v292
    %v594 = vunpack.c.l.b16 %v293
    %v595 = vunpack.c.h.b16 %v293
    %v596 = vunpack.c.l.b16 %v294
    %v597 = vunpack.c.h.b16 %v294
    %v598 = vunpack.c.l.b16 %v295
    %v599 = vunpack.c.h.b16 %v295
    %v600 = vunpack.c.l.b16 %v296
    %v601 = vunpack.c.h.b16 %v296
    %v602 = vunpack.c.l.b16 %v297
    %v603 = vunpack.c.h.b16 %v297
    %v604 = vunpack.c.l.b16 %v298
    %v605 = vunpack.c.h.b16 %v298
    %v606 = vunpack.c.l.b16 %v299
    %v607 = vunpack.c.h.b16 %v299
    %v608 = vunpack.c.l.b16 %v300
    %v609 = vunpack.c.h.b16 %v300
    %v610 = vunpack.c.l.b16 %v301
    %v611 = vunpack.c.h.b16 %v301
    %v612 = vunpack.c.l.b16 %v302
    %v613 = vunpack.c.h.b16 %v302
    %v614 = vunpack.c.l.b16 %v303
    %v615 = vunpack.c.h.b16 %v303
    %v616 = vunpack.c.l.b16 %v304
    %v617 = vunpack.c.h.b16 %v304
    %v618 = vunpack.c.l.b16 %v305
    %v619 = vunpack.c.h.b16 %v305
    %v620 = vunpack.c.l.b16 %v306
    %v621 = vunpack.c.h.b16 %v306
    %v622 = vunpack.c.l.b16 %v307
    %v623 = vunpack.c.h.b16 %v307
    %v624 = vunpack.c.l.b16 %v308
    %v625 = vunpack.c.h.b16 %v308
    %v626 = vunpack.c.l.b16 %v309
    %v627 = vunpack.c.h.b16 %v309
    %v628 = vunpack.c.l.b16 %v310
    %v629 = vunpack.c.h.b16 %v310
    %v630 = vunpack.c.l.b16 %v311
    %v631 = vunpack.c.h.b16 %v311
    %v632 = vunpack.c.l.b16 %v312
    %v633 = vunpack.c.h.b16 %v312
    %v634 = vunpack.c.l.b16 %v313
    %v635 = vunpack.c.h.b16 %v313
    %v636 = vunpack.c.l.b16 %v314
    %v637 = vunpack.c.h.b16 %v314
    %v638 = vunpack.c.l.b16 %v315
    %v639 = vunpack.c.h.b16 %v315
    %v640 = vunpack.c.l.b16 %v316
    %v641 = vunpack.c.h.b16 %v316
    %v642 = vunpack.c.l.b16 %v317
    %v643 = vunpack.c.h.b16 %v317
    %v644 = vunpack.c.l.b16 %v318
    %v645 = vunpack.c.h.b16 %v318
    %v646 = vunpack.c.l.b16 %v319
    %v647 = vunpack.c.h.b16 %v319
    %v648 = vunpack.c.l.b16 %v320
    %v649 = vunpack.c.h.b16 %v320
    %v650 = vunpack.c.l.b16 %v321
    %v651 = vunpack.c.h.b16 %v321
    %v652 = vunpack.c.l.b16 %v322
    %v653 = vunpack.c.h.b16 %v322
    %v654 = vunpack.c.l.b16 %v323
    %v655 = vunpack.c.h.b16 %v323
    %v656 = vpack.c.b16 %v592, %v592
    %v657 = vpack.c.b16 %v593, %v593
    %v658 = vpack.c.b16 %v594, %v594
    %v659 = vpack.c.b16 %v595, %v595
    %v660 = vpack.c.b16 %v596, %v596
    %v661 = vpack.c.b16 %v597, %v597
    %v662 = vpack.c.b16 %v598, %v598
    %v663 = vpack.c.b16 %v599, %v599
    %v664 = vpack.c.b16 %v600, %v600
    %v665 = vpack.c.b16 %v601, %v601
    %v666 = vpack.c.b16 %v602, %v602
    %v667 = vpack.c.b16 %v603, %v603
    %v668 = vpack.c.b16 %v604, %v604
    %v669 = vpack.c.b16 %v605, %v605
    %v670 = vpack.c.b16 %v606, %v606
    %v671 = vpack.c.b16 %v607, %v607
    %v672 = vpack.c.b16 %v608, %v608
    %v673 = vpack.c.b16 %v609, %v609
    %v674 = vpack.c.b16 %v610, %v610
    %v675 = vpack.c.b16 %v611, %v611
    %v676 = vpack.c.b16 %v612, %v612
    %v677 = vpack.c.b16 %v613, %v613
    %v678 = vpack.c.b16 %v614, %v614
    %v679 = vpack.c.b16 %v615, %v615
    %v680 = vpack.c.b16 %v616, %v616
    %v681 = vpack.c.b16 %v617, %v617
    %v682 = vpack.c.b16 %v618, %v618
    %v683 = vpack.c.b16 %v619, %v619
    %v684 = vpack.c.b16 %v620, %v620
    %v685 = vpack.c.b16 %v621, %v621
    %v686 = vpack.c.b16 %v622, %v622
    %v687 = vpack.c.b16 %v623, %v623
    %v688 = vpack.c.b16 %v624, %v624
    %v689 = vpack.c.b16 %v625, %v625
    %v690 = vpack.c.b16 %v626, %v626
    %v691 = vpack.c.b16 %v627, %v627
    %v692 = vpack.c.b16 %v628, %v628
    %v693 = vpack.c.b16 %v629, %v629
    %v694 = vpack.c.b16 %v630, %v630
    %v695 = vpack.c.b16 %v631, %v631
    %v696 = vpack.c.b16 %v632, %v632
    %v697 = vpack.c.b16 %v633, %v633
    %v698 = vpack.c.b16 %v634, %v634
    %v699 = vpack.c.b16 %v635, %v635
    %v700 = vpack.c.b16 %v636, %v636
    %v701 = vpack.c.b16 %v637, %v637
    %v702 = vpack.c.b16 %v638, %v638
    %v703 = vpack.c.b16 %v639, %v639
    %v704 = vpack.c.b16 %v640, %v640
    %v705 = vpack.c.b16 %v641, %v641
    %v706 = vpack.c.b16 %v642, %v642
    %v707 = vpack.c.b16 %v643, %v643
    %v708 = vpack.c.b16 %v644, %v644
    %v709 = vpack.c.b16 %v645, %v645
    %v710 = vpack.c.b16 %v646, %v646
    %v711 = vpack.c.b16 %v647, %v647
    %v712 = vpack.c.b16 %v648, %v648
    %v713 = vpack.c.b16 %v649, %v649
    %v714 = vpack.c.b16 %v650, %v650
    %v715 = vpack.c.b16 %v651, %v651
    %v716 = vpack.c.b16 %v652, %v652
    %v717 = vpack.c.b16 %v653, %v653
    %v718 = vpack.c.b16 %v654, %v654
    %v719 = vpack.c.b16 %v655, %v655
    %vm720 = vsmask.f32 4368
    %vm721 = vmor %vm340, %vm720
    %v723 = vshrl.u32 %v656, 16
    %v725 = vrot.slane %v723, 7
    %v726 = vshll.u32 %v656, 16
    %v728 = vor.u32 %v725, %v726
    %v729 = vrot.slane %v725, 4
    %v731 = vshrl.u32 %v657, 16
    %v733 = vrot.slane %v731, 7
    %v734 = vshll.u32 %v657, 16
    %v736 = vor.u32 %v733, %v734
    %v737 = vsel %vm721, %v729, %v736
    %v738 = vrot.slane %v733, 4
    %v740 = vshrl.u32 %v658, 16
    %v742 = vrot.slane %v740, 7
    %v743 = vshll.u32 %v658, 16
    %v745 = vor.u32 %v742, %v743
    %v746 = vrot.slane %v742, 4
    %v748 = vshrl.u32 %v659, 16
    %v750 = vrot.slane %v748, 7
    %v751 = vshll.u32 %v659, 16
    %v753 = vor.u32 %v750, %v751
    %v754 = vsel %vm721, %v746, %v753
    %v755 = vrot.slane %v750, 4
    %v757 = vshrl.u32 %v660, 16
    %v759 = vrot.slane %v757, 7
    %v760 = vshll.u32 %v660, 16
    %v762 = vor.u32 %v759, %v760
    %v763 = vrot.slane %v759, 4
    %v765 = vshrl.u32 %v661, 16
    %v767 = vrot.slane %v765, 7
    %v768 = vshll.u32 %v661, 16
    %v770 = vor.u32 %v767, %v768
    %v771 = vsel %vm721, %v763, %v770
    %v772 = vrot.slane %v767, 4
    %v774 = vshrl.u32 %v662, 16
    %v776 = vrot.slane %v774, 7
    %v777 = vshll.u32 %v662, 16
    %v779 = vor.u32 %v776, %v777
    %v780 = vrot.slane %v776, 4
    %v782 = vshrl.u32 %v663, 16
    %v784 = vrot.slane %v782, 7
    %v785 = vshll.u32 %v663, 16
    %v787 = vor.u32 %v784, %v785
    %v788 = vsel %vm721, %v780, %v787
    %v789 = vrot.slane %v784, 4
    %v791 = vshrl.u32 %v664, 16
    %v793 = vrot.slane %v791, 7
    %v794 = vshll.u32 %v664, 16
    %v796 = vor.u32 %v793, %v794
    %v797 = vrot.slane %v793, 4
    %v799 = vshrl.u32 %v665, 16
    %v801 = vrot.slane %v799, 7
    %v802 = vshll.u32 %v665, 16
    %v804 = vor.u32 %v801, %v802
    %v805 = vsel %vm721, %v797, %v804
    %v806 = vrot.slane %v801, 4
    %v808 = vshrl.u32 %v666, 16
    %v810 = vrot.slane %v808, 7
    %v811 = vshll.u32 %v666, 16
    %v813 = vor.u32 %v810, %v811
    %v814 = vrot.slane %v810, 4
    %v816 = vshrl.u32 %v667, 16
    %v818 = vrot.slane %v816, 7
    %v819 = vshll.u32 %v667, 16
    %v821 = vor.u32 %v818, %v819
    %v822 = vsel %vm721, %v814, %v821
    %v823 = vrot.slane %v818, 4
    %v825 = vshrl.u32 %v668, 16
    %v827 = vrot.slane %v825, 7
    %v828 = vshll.u32 %v668, 16
    %v830 = vor.u32 %v827, %v828
    %v831 = vrot.slane %v827, 4
    %v833 = vshrl.u32 %v669, 16
    %v835 = vrot.slane %v833, 7
    %v836 = vshll.u32 %v669, 16
    %v838 = vor.u32 %v835, %v836
    %v839 = vsel %vm721, %v831, %v838
    %v840 = vrot.slane %v835, 4
    %v842 = vshrl.u32 %v670, 16
    %v844 = vrot.slane %v842, 7
    %v845 = vshll.u32 %v670, 16
    %v847 = vor.u32 %v844, %v845
    %v848 = vrot.slane %v844, 4
    %v850 = vshrl.u32 %v671, 16
    %v852 = vrot.slane %v850, 7
    %v853 = vshll.u32 %v671, 16
    %v855 = vor.u32 %v852, %v853
    %v856 = vsel %vm721, %v848, %v855
    %v857 = vrot.slane %v852, 4
    %v859 = vshrl.u32 %v672, 16
    %v861 = vrot.slane %v859, 7
    %v862 = vshll.u32 %v672, 16
    %v864 = vor.u32 %v861, %v862
    %v865 = vrot.slane %v861, 4
    %v867 = vshrl.u32 %v673, 16
    %v869 = vrot.slane %v867, 7
    %v870 = vshll.u32 %v673, 16
    %v872 = vor.u32 %v869, %v870
    %v873 = vsel %vm721, %v865, %v872
    %v874 = vrot.slane %v869, 4
    %v876 = vshrl.u32 %v674, 16
    %v878 = vrot.slane %v876, 7
    %v879 = vshll.u32 %v674, 16
    %v881 = vor.u32 %v878, %v879
    %v882 = vrot.slane %v878, 4
    %v884 = vshrl.u32 %v675, 16
    %v886 = vrot.slane %v884, 7
    %v887 = vshll.u32 %v675, 16
    %v889 = vor.u32 %v886, %v887
    %v890 = vsel %vm721, %v882, %v889
    %v891 = vrot.slane %v886, 4
    %v893 = vshrl.u32 %v676, 16
    %v895 = vrot.slane %v893, 7
    %v896 = vshll.u32 %v676, 16
    %v898 = vor.u32 %v895, %v896
    %v899 = vrot.slane %v895, 4
    %v901 = vshrl.u32 %v677, 16
    %v903 = vrot.slane %v901, 7
    %v904 = vshll.u32 %v677, 16
    %v906 = vor.u32 %v903, %v904
    %v907 = vsel %vm721, %v899, %v906
    %v908 = vrot.slane %v903, 4
    %v910 = vshrl.u32 %v678, 16
    %v912 = vrot.slane %v910, 7
    %v913 = vshll.u32 %v678, 16
    %v915 = vor.u32 %v912, %v913
    %v916 = vrot.slane %v912, 4
    %v918 = vshrl.u32 %v679, 16
    %v920 = vrot.slane %v918, 7
    %v921 = vshll.u32 %v679, 16
    %v923 = vor.u32 %v920, %v921
    %v924 = vsel %vm721, %v916, %v923
    %v925 = vrot.slane %v920, 4
    %v927 = vshrl.u32 %v680, 16
    %v929 = vrot.slane %v927, 7
    %v930 = vshll.u32 %v680, 16
    %v932 = vor.u32 %v929, %v930
    %v933 = vrot.slane %v929, 4
    %v935 = vshrl.u32 %v681, 16
    %v937 = vrot.slane %v935, 7
    %v938 = vshll.u32 %v681, 16
    %v940 = vor.u32 %v937, %v938
    %v941 = vsel %vm721, %v933, %v940
    %v942 = vrot.slane %v937, 4
    %v944 = vshrl.u32 %v682, 16
    %v946 = vrot.slane %v944, 7
    %v947 = vshll.u32 %v682, 16
    %v949 = vor.u32 %v946, %v947
    %v950 = vrot.slane %v946, 4
    %v952 = vshrl.u32 %v683, 16
    %v954 = vrot.slane %v952, 7
    %v955 = vshll.u32 %v683, 16
    %v957 = vor.u32 %v954, %v955
    %v958 = vsel %vm721, %v950, %v957
    %v959 = vrot.slane %v954, 4
    %v961 = vshrl.u32 %v684, 16
    %v963 = vrot.slane %v961, 7
    %v964 = vshll.u32 %v684, 16
    %v966 = vor.u32 %v963, %v964
    %v967 = vrot.slane %v963, 4
    %v969 = vshrl.u32 %v685, 16
    %v971 = vrot.slane %v969, 7
    %v972 = vshll.u32 %v685, 16
    %v974 = vor.u32 %v971, %v972
    %v975 = vsel %vm721, %v967, %v974
    %v976 = vrot.slane %v971, 4
    %v978 = vshrl.u32 %v686, 16
    %v980 = vrot.slane %v978, 7
    %v981 = vshll.u32 %v686, 16
    %v983 = vor.u32 %v980, %v981
    %v984 = vrot.slane %v980, 4
    %v986 = vshrl.u32 %v687, 16
    %v988 = vrot.slane %v986, 7
    %v989 = vshll.u32 %v687, 16
    %v991 = vor.u32 %v988, %v989
    %v992 = vsel %vm721, %v984, %v991
    %v993 = vrot.slane %v988, 4
    %v995 = vshrl.u32 %v688, 16
    %v997 = vrot.slane %v995, 7
    %v998 = vshll.u32 %v688, 16
    %v1000 = vor.u32 %v997, %v998
    %v1001 = vrot.slane %v997, 4
    %v1003 = vshrl.u32 %v689, 16
    %v1005 = vrot.slane %v1003, 7
    %v1006 = vshll.u32 %v689, 16
    %v1008 = vor.u32 %v1005, %v1006
    %v1009 = vsel %vm721, %v1001, %v1008
    %v1010 = vrot.slane %v1005, 4
    %v1012 = vshrl.u32 %v690, 16
    %v1014 = vrot.slane %v1012, 7
    %v1015 = vshll.u32 %v690, 16
    %v1017 = vor.u32 %v1014, %v1015
    %v1018 = vrot.slane %v1014, 4
    %v1020 = vshrl.u32 %v691, 16
    %v1022 = vrot.slane %v1020, 7
    %v1023 = vshll.u32 %v691, 16
    %v1025 = vor.u32 %v1022, %v1023
    %v1026 = vsel %vm721, %v1018, %v1025
    %v1027 = vrot.slane %v1022, 4
    %v1029 = vshrl.u32 %v692, 16
    %v1031 = vrot.slane %v1029, 7
    %v1032 = vshll.u32 %v692, 16
    %v1034 = vor.u32 %v1031, %v1032
    %v1035 = vrot.slane %v1031, 4
    %v1037 = vshrl.u32 %v693, 16
    %v1039 = vrot.slane %v1037, 7
    %v1040 = vshll.u32 %v693, 16
    %v1042 = vor.u32 %v1039, %v1040
    %v1043 = vsel %vm721, %v1035, %v1042
    %v1044 = vrot.slane %v1039, 4
    %v1046 = vshrl.u32 %v694, 16
    %v1048 = vrot.slane %v1046, 7
    %v1049 = vshll.u32 %v694, 16
    %v1051 = vor.u32 %v1048, %v1049
    %v1052 = vrot.slane %v1048, 4
    %v1054 = vshrl.u32 %v695, 16
    %v1056 = vrot.slane %v1054, 7
    %v1057 = vshll.u32 %v695, 16
    %v1059 = vor.u32 %v1056, %v1057
    %v1060 = vsel %vm721, %v1052, %v1059
    %v1061 = vrot.slane %v1056, 4
    %v1063 = vshrl.u32 %v696, 16
    %v1065 = vrot.slane %v1063, 7
    %v1066 = vshll.u32 %v696, 16
    %v1068 = vor.u32 %v1065, %v1066
    %v1069 = vrot.slane %v1065, 4
    %v1071 = vshrl.u32 %v697, 16
    %v1073 = vrot.slane %v1071, 7
    %v1074 = vshll.u32 %v697, 16
    %v1076 = vor.u32 %v1073, %v1074
    %v1077 = vsel %vm721, %v1069, %v1076
    %v1078 = vrot.slane %v1073, 4
    %v1080 = vshrl.u32 %v698, 16
    %v1082 = vrot.slane %v1080, 7
    %v1083 = vshll.u32 %v698, 16
    %v1085 = vor.u32 %v1082, %v1083
    %v1086 = vrot.slane %v1082, 4
    %v1088 = vshrl.u32 %v699, 16
    %v1090 = vrot.slane %v1088, 7
    %v1091 = vshll.u32 %v699, 16
    %v1093 = vor.u32 %v1090, %v1091
    %v1094 = vsel %vm721, %v1086, %v1093
    %v1095 = vrot.slane %v1090, 4
    %v1097 = vshrl.u32 %v700, 16
    %v1099 = vrot.slane %v1097, 7
    %v1100 = vshll.u32 %v700, 16
    %v1102 = vor.u32 %v1099, %v1100
    %v1103 = vrot.slane %v1099, 4
    %v1105 = vshrl.u32 %v701, 16
    %v1107 = vrot.slane %v1105, 7
    %v1108 = vshll.u32 %v701, 16
    %v1110 = vor.u32 %v1107, %v1108
    %v1111 = vsel %vm721, %v1103, %v1110
    %v1112 = vrot.slane %v1107, 4
    %v1114 = vshrl.u32 %v702, 16
    %v1116 = vrot.slane %v1114, 7
    %v1117 = vshll.u32 %v702, 16
    %v1119 = vor.u32 %v1116, %v1117
    %v1120 = vrot.slane %v1116, 4
    %v1122 = vshrl.u32 %v703, 16
    %v1124 = vrot.slane %v1122, 7
    %v1125 = vshll.u32 %v703, 16
    %v1127 = vor.u32 %v1124, %v1125
    %v1128 = vsel %vm721, %v1120, %v1127
    %v1129 = vrot.slane %v1124, 4
    %v1131 = vshrl.u32 %v704, 16
    %v1133 = vrot.slane %v1131, 7
    %v1134 = vshll.u32 %v704, 16
    %v1136 = vor.u32 %v1133, %v1134
    %v1137 = vrot.slane %v1133, 4
    %v1139 = vshrl.u32 %v705, 16
    %v1141 = vrot.slane %v1139, 7
    %v1142 = vshll.u32 %v705, 16
    %v1144 = vor.u32 %v1141, %v1142
    %v1145 = vsel %vm721, %v1137, %v1144
    %v1146 = vrot.slane %v1141, 4
    %v1148 = vshrl.u32 %v706, 16
    %v1150 = vrot.slane %v1148, 7
    %v1151 = vshll.u32 %v706, 16
    %v1153 = vor.u32 %v1150, %v1151
    %v1154 = vrot.slane %v1150, 4
    %v1156 = vshrl.u32 %v707, 16
    %v1158 = vrot.slane %v1156, 7
    %v1159 = vshll.u32 %v707, 16
    %v1161 = vor.u32 %v1158, %v1159
    %v1162 = vsel %vm721, %v1154, %v1161
    %v1163 = vrot.slane %v1158, 4
    %v1165 = vshrl.u32 %v708, 16
    %v1167 = vrot.slane %v1165, 7
    %v1168 = vshll.u32 %v708, 16
    %v1170 = vor.u32 %v1167, %v1168
    %v1171 = vrot.slane %v1167, 4
    %v1173 = vshrl.u32 %v709, 16
    %v1175 = vrot.slane %v1173, 7
    %v1176 = vshll.u32 %v709, 16
    %v1178 = vor.u32 %v1175, %v1176
    %v1179 = vsel %vm721, %v1171, %v1178
    %v1180 = vrot.slane %v1175, 4
    %v1182 = vshrl.u32 %v710, 16
    %v1184 = vrot.slane %v1182, 7
    %v1185 = vshll.u32 %v710, 16
    %v1187 = vor.u32 %v1184, %v1185
    %v1188 = vrot.slane %v1184, 4
    %v1190 = vshrl.u32 %v711, 16
    %v1192 = vrot.slane %v1190, 7
    %v1193 = vshll.u32 %v711, 16
    %v1195 = vor.u32 %v1192, %v1193
    %v1196 = vsel %vm721, %v1188, %v1195
    %v1197 = vrot.slane %v1192, 4
    %v1199 = vshrl.u32 %v712, 16
    %v1201 = vrot.slane %v1199, 7
    %v1202 = vshll.u32 %v712, 16
    %v1204 = vor.u32 %v1201, %v1202
    %v1205 = vrot.slane %v1201, 4
    %v1207 = vshrl.u32 %v713, 16
    %v1209 = vrot.slane %v1207, 7
    %v1210 = vshll.u32 %v713, 16
    %v1212 = vor.u32 %v1209, %v1210
    %v1213 = vsel %vm721, %v1205, %v1212
    %v1214 = vrot.slane %v1209, 4
    %v1216 = vshrl.u32 %v714, 16
    %v1218 = vrot.slane %v1216, 7
    %v1219 = vshll.u32 %v714, 16
    %v1221 = vor.u32 %v1218, %v1219
    %v1222 = vrot.slane %v1218, 4
    %v1224 = vshrl.u32 %v715, 16
    %v1226 = vrot.slane %v1224, 7
    %v1227 = vshll.u32 %v715, 16
    %v1229 = vor.u32 %v1226, %v1227
    %v1230 = vsel %vm721, %v1222, %v1229
    %v1231 = vrot.slane %v1226, 4
    %v1233 = vshrl.u32 %v716, 16
    %v1235 = vrot.slane %v1233, 7
    %v1236 = vshll.u32 %v716, 16
    %v1238 = vor.u32 %v1235, %v1236
    %v1239 = vrot.slane %v1235, 4
    %v1241 = vshrl.u32 %v717, 16
    %v1243 = vrot.slane %v1241, 7
    %v1244 = vshll.u32 %v717, 16
    %v1246 = vor.u32 %v1243, %v1244
    %v1247 = vsel %vm721, %v1239, %v1246
    %v1248 = vrot.slane %v1243, 4
    %v1250 = vshrl.u32 %v718, 16
    %v1252 = vrot.slane %v1250, 7
    %v1253 = vshll.u32 %v718, 16
    %v1255 = vor.u32 %v1252, %v1253
    %v1256 = vrot.slane %v1252, 4
    %v1258 = vshrl.u32 %v719, 16
    %v1260 = vrot.slane %v1258, 7
    %v1261 = vshll.u32 %v719, 16
    %v1263 = vor.u32 %v1260, %v1261
    %v1264 = vsel %vm721, %v1256, %v1263
    %v1265 = vrot.slane %v1260, 4
    %s1362 = scalar_lea.vmem [#allocation2], 12
    %vm1363 = vcmask 27648
    %vm1364 = vmand %vm1363, %vm450
    %v1365 = vld [vmem:[%s1362] sm:$0xf]
    %v1366 = vsel %vm1364, %v728, %v1365
    %1367 = vst [vmem:[%s1362] sm:$0xf] %v1366
    %1368 = vst.msk [vmem:[%s1362 + $0x4] sm:$0xf] %vm324, %v737
    %v1369 = vld [vmem:[%s1362 + $0x8] sm:$0x1]
    %v1370 = vsel %vm341, %v738, %v1369
    %1371 = vst [vmem:[%s1362 + $0x8] sm:$0x1] %v1370
    %v1372 = vld [vmem:[%s1362 + $0xc] sm:$0xf]
    %v1373 = vsel %vm1364, %v745, %v1372
    %1374 = vst [vmem:[%s1362 + $0xc] sm:$0xf] %v1373
    %1375 = vst.msk [vmem:[%s1362 + $0x10] sm:$0xf] %vm324, %v754
    %v1376 = vld [vmem:[%s1362 + $0x14] sm:$0x1]
    %v1377 = vsel %vm341, %v755, %v1376
    %1378 = vst [vmem:[%s1362 + $0x14] sm:$0x1] %v1377
    %v1379 = vld [vmem:[%s1362 + $0x18] sm:$0xf]
    %v1380 = vsel %vm1364, %v762, %v1379
    %1381 = vst [vmem:[%s1362 + $0x18] sm:$0xf] %v1380
    %1382 = vst.msk [vmem:[%s1362 + $0x1c] sm:$0xf] %vm324, %v771
    %v1383 = vld [vmem:[%s1362 + $0x20] sm:$0x1]
    %v1384 = vsel %vm341, %v772, %v1383
    %1385 = vst [vmem:[%s1362 + $0x20] sm:$0x1] %v1384
    %v1386 = vld [vmem:[%s1362 + $0x24] sm:$0xf]
    %v1387 = vsel %vm1364, %v779, %v1386
    %1388 = vst [vmem:[%s1362 + $0x24] sm:$0xf] %v1387
    %1389 = vst.msk [vmem:[%s1362 + $0x28] sm:$0xf] %vm324, %v788
    %v1390 = vld [vmem:[%s1362 + $0x2c] sm:$0x1]
    %v1391 = vsel %vm341, %v789, %v1390
    %1392 = vst [vmem:[%s1362 + $0x2c] sm:$0x1] %v1391
    %v1393 = vld [vmem:[%s1362 + $0x30] sm:$0xf]
    %v1394 = vsel %vm1364, %v796, %v1393
    %1395 = vst [vmem:[%s1362 + $0x30] sm:$0xf] %v1394
    %1396 = vst.msk [vmem:[%s1362 + $0x34] sm:$0xf] %vm324, %v805
    %v1397 = vld [vmem:[%s1362 + $0x38] sm:$0x1]
    %v1398 = vsel %vm341, %v806, %v1397
    %1399 = vst [vmem:[%s1362 + $0x38] sm:$0x1] %v1398
    %v1400 = vld [vmem:[%s1362 + $0x3c] sm:$0xf]
    %v1401 = vsel %vm1364, %v813, %v1400
    %1402 = vst [vmem:[%s1362 + $0x3c] sm:$0xf] %v1401
    %1403 = vst.msk [vmem:[%s1362 + $0x40] sm:$0xf] %vm324, %v822
    %v1404 = vld [vmem:[%s1362 + $0x44] sm:$0x1]
    %v1405 = vsel %vm341, %v823, %v1404
    %1406 = vst [vmem:[%s1362 + $0x44] sm:$0x1] %v1405
    %v1407 = vld [vmem:[%s1362 + $0x48] sm:$0xf]
    %v1408 = vsel %vm1364, %v830, %v1407
    %1409 = vst [vmem:[%s1362 + $0x48] sm:$0xf] %v1408
    %1410 = vst.msk [vmem:[%s1362 + $0x4c] sm:$0xf] %vm324, %v839
    %v1411 = vld [vmem:[%s1362 + $0x50] sm:$0x1]
    %v1412 = vsel %vm341, %v840, %v1411
    %1413 = vst [vmem:[%s1362 + $0x50] sm:$0x1] %v1412
    %v1414 = vld [vmem:[%s1362 + $0x54] sm:$0xf]
    %v1415 = vsel %vm1364, %v847, %v1414
    %1416 = vst [vmem:[%s1362 + $0x54] sm:$0xf] %v1415
    %1417 = vst.msk [vmem:[%s1362 + $0x58] sm:$0xf] %vm324, %v856
    %v1418 = vld [vmem:[%s1362 + $0x5c] sm:$0x1]
    %v1419 = vsel %vm341, %v857, %v1418
    %1420 = vst [vmem:[%s1362 + $0x5c] sm:$0x1] %v1419
    %v1421 = vld [vmem:[%s1362 + $0x60] sm:$0xf]
    %v1422 = vsel %vm1364, %v864, %v1421
    %1423 = vst [vmem:[%s1362 + $0x60] sm:$0xf] %v1422
    %1424 = vst.msk [vmem:[%s1362 + $0x64] sm:$0xf] %vm324, %v873
    %v1425 = vld [vmem:[%s1362 + $0x68] sm:$0x1]
    %v1426 = vsel %vm341, %v874, %v1425
    %1427 = vst [vmem:[%s1362 + $0x68] sm:$0x1] %v1426
    %v1428 = vld [vmem:[%s1362 + $0x6c] sm:$0xf]
    %v1429 = vsel %vm1364, %v881, %v1428
    %1430 = vst [vmem:[%s1362 + $0x6c] sm:$0xf] %v1429
    %1431 = vst.msk [vmem:[%s1362 + $0x70] sm:$0xf] %vm324, %v890
    %v1432 = vld [vmem:[%s1362 + $0x74] sm:$0x1]
    %v1433 = vsel %vm341, %v891, %v1432
    %1434 = vst [vmem:[%s1362 + $0x74] sm:$0x1] %v1433
    %v1435 = vld [vmem:[%s1362 + $0x78] sm:$0xf]
    %v1436 = vsel %vm1364, %v898, %v1435
    %1437 = vst [vmem:[%s1362 + $0x78] sm:$0xf] %v1436
    %1438 = vst.msk [vmem:[%s1362 + $0x7c] sm:$0xf] %vm324, %v907
    %v1439 = vld [vmem:[%s1362 + $0x80] sm:$0x1]
    %v1440 = vsel %vm341, %v908, %v1439
    %1441 = vst [vmem:[%s1362 + $0x80] sm:$0x1] %v1440
    %v1442 = vld [vmem:[%s1362 + $0x84] sm:$0xf]
    %v1443 = vsel %vm1364, %v915, %v1442
    %1444 = vst [vmem:[%s1362 + $0x84] sm:$0xf] %v1443
    %1445 = vst.msk [vmem:[%s1362 + $0x88] sm:$0xf] %vm324, %v924
    %v1446 = vld [vmem:[%s1362 + $0x8c] sm:$0x1]
    %v1447 = vsel %vm341, %v925, %v1446
    %1448 = vst [vmem:[%s1362 + $0x8c] sm:$0x1] %v1447
    %v1449 = vld [vmem:[%s1362 + $0x90] sm:$0xf]
    %v1450 = vsel %vm1364, %v932, %v1449
    %1451 = vst [vmem:[%s1362 + $0x90] sm:$0xf] %v1450
    %1452 = vst.msk [vmem:[%s1362 + $0x94] sm:$0xf] %vm324, %v941
    %v1453 = vld [vmem:[%s1362 + $0x98] sm:$0x1]
    %v1454 = vsel %vm341, %v942, %v1453
    %1455 = vst [vmem:[%s1362 + $0x98] sm:$0x1] %v1454
    %v1456 = vld [vmem:[%s1362 + $0x9c] sm:$0xf]
    %v1457 = vsel %vm1364, %v949, %v1456
    %1458 = vst [vmem:[%s1362 + $0x9c] sm:$0xf] %v1457
    %1459 = vst.msk [vmem:[%s1362 + $0xa0] sm:$0xf] %vm324, %v958
    %v1460 = vld [vmem:[%s1362 + $0xa4] sm:$0x1]
    %v1461 = vsel %vm341, %v959, %v1460
    %1462 = vst [vmem:[%s1362 + $0xa4] sm:$0x1] %v1461
    %v1463 = vld [vmem:[%s1362 + $0xa8] sm:$0xf]
    %v1464 = vsel %vm1364, %v966, %v1463
    %1465 = vst [vmem:[%s1362 + $0xa8] sm:$0xf] %v1464
    %1466 = vst.msk [vmem:[%s1362 + $0xac] sm:$0xf] %vm324, %v975
    %v1467 = vld [vmem:[%s1362 + $0xb0] sm:$0x1]
    %v1468 = vsel %vm341, %v976, %v1467
    %1469 = vst [vmem:[%s1362 + $0xb0] sm:$0x1] %v1468
    %v1470 = vld [vmem:[%s1362 + $0xb4] sm:$0xf]
    %v1471 = vsel %vm1364, %v983, %v1470
    %1472 = vst [vmem:[%s1362 + $0xb4] sm:$0xf] %v1471
    %1473 = vst.msk [vmem:[%s1362 + $0xb8] sm:$0xf] %vm324, %v992
    %v1474 = vld [vmem:[%s1362 + $0xbc] sm:$0x1]
    %v1475 = vsel %vm341, %v993, %v1474
    %1476 = vst [vmem:[%s1362 + $0xbc] sm:$0x1] %v1475
    %v1477 = vld [vmem:[%s1362 + $0xd8] sm:$0xf]
    %v1478 = vsel %vm1364, %v1000, %v1477
    %1479 = vst [vmem:[%s1362 + $0xd8] sm:$0xf] %v1478
    %1480 = vst.msk [vmem:[%s1362 + $0xdc] sm:$0xf] %vm324, %v1009
    %v1481 = vld [vmem:[%s1362 + $0xe0] sm:$0x1]
    %v1482 = vsel %vm341, %v1010, %v1481
    %1483 = vst [vmem:[%s1362 + $0xe0] sm:$0x1] %v1482
    %v1484 = vld [vmem:[%s1362 + $0xe4] sm:$0xf]
    %v1485 = vsel %vm1364, %v1017, %v1484
    %1486 = vst [vmem:[%s1362 + $0xe4] sm:$0xf] %v1485
    %1487 = vst.msk [vmem:[%s1362 + $0xe8] sm:$0xf] %vm324, %v1026
    %v1488 = vld [vmem:[%s1362 + $0xec] sm:$0x1]
    %v1489 = vsel %vm341, %v1027, %v1488
    %1490 = vst [vmem:[%s1362 + $0xec] sm:$0x1] %v1489
    %v1491 = vld [vmem:[%s1362 + $0xf0] sm:$0xf]
    %v1492 = vsel %vm1364, %v1034, %v1491
    %1493 = vst [vmem:[%s1362 + $0xf0] sm:$0xf] %v1492
    %1494 = vst.msk [vmem:[%s1362 + $0xf4] sm:$0xf] %vm324, %v1043
    %v1495 = vld [vmem:[%s1362 + $0xf8] sm:$0x1]
    %v1496 = vsel %vm341, %v1044, %v1495
    %1497 = vst [vmem:[%s1362 + $0xf8] sm:$0x1] %v1496
    %v1498 = vld [vmem:[%s1362 + $0xfc] sm:$0xf]
    %v1499 = vsel %vm1364, %v1051, %v1498
    %1500 = vst [vmem:[%s1362 + $0xfc] sm:$0xf] %v1499
    %1501 = vst.msk [vmem:[%s1362 + $0x100] sm:$0xf] %vm324, %v1060
    %v1502 = vld [vmem:[%s1362 + $0x104] sm:$0x1]
    %v1503 = vsel %vm341, %v1061, %v1502
    %1504 = vst [vmem:[%s1362 + $0x104] sm:$0x1] %v1503
    %v1505 = vld [vmem:[%s1362 + $0x108] sm:$0xf]
    %v1506 = vsel %vm1364, %v1068, %v1505
    %1507 = vst [vmem:[%s1362 + $0x108] sm:$0xf] %v1506
    %1508 = vst.msk [vmem:[%s1362 + $0x10c] sm:$0xf] %vm324, %v1077
    %v1509 = vld [vmem:[%s1362 + $0x110] sm:$0x1]
    %v1510 = vsel %vm341, %v1078, %v1509
    %1511 = vst [vmem:[%s1362 + $0x110] sm:$0x1] %v1510
    %v1512 = vld [vmem:[%s1362 + $0x114] sm:$0xf]
    %v1513 = vsel %vm1364, %v1085, %v1512
    %1514 = vst [vmem:[%s1362 + $0x114] sm:$0xf] %v1513
    %1515 = vst.msk [vmem:[%s1362 + $0x118] sm:$0xf] %vm324, %v1094
    %v1516 = vld [vmem:[%s1362 + $0x11c] sm:$0x1]
    %v1517 = vsel %vm341, %v1095, %v1516
    %1518 = vst [vmem:[%s1362 + $0x11c] sm:$0x1] %v1517
    %v1519 = vld [vmem:[%s1362 + $0x120] sm:$0xf]
    %v1520 = vsel %vm1364, %v1102, %v1519
    %1521 = vst [vmem:[%s1362 + $0x120] sm:$0xf] %v1520
    %1522 = vst.msk [vmem:[%s1362 + $0x124] sm:$0xf] %vm324, %v1111
    %v1523 = vld [vmem:[%s1362 + $0x128] sm:$0x1]
    %v1524 = vsel %vm341, %v1112, %v1523
    %1525 = vst [vmem:[%s1362 + $0x128] sm:$0x1] %v1524
    %v1526 = vld [vmem:[%s1362 + $0x12c] sm:$0xf]
    %v1527 = vsel %vm1364, %v1119, %v1526
    %1528 = vst [vmem:[%s1362 + $0x12c] sm:$0xf] %v1527
    %1529 = vst.msk [vmem:[%s1362 + $0x130] sm:$0xf] %vm324, %v1128
    %v1530 = vld [vmem:[%s1362 + $0x134] sm:$0x1]
    %v1531 = vsel %vm341, %v1129, %v1530
    %1532 = vst [vmem:[%s1362 + $0x134] sm:$0x1] %v1531
    %v1533 = vld [vmem:[%s1362 + $0x138] sm:$0xf]
    %v1534 = vsel %vm1364, %v1136, %v1533
    %1535 = vst [vmem:[%s1362 + $0x138] sm:$0xf] %v1534
    %1536 = vst.msk [vmem:[%s1362 + $0x13c] sm:$0xf] %vm324, %v1145
    %v1537 = vld [vmem:[%s1362 + $0x140] sm:$0x1]
    %v1538 = vsel %vm341, %v1146, %v1537
    %1539 = vst [vmem:[%s1362 + $0x140] sm:$0x1] %v1538
    %v1540 = vld [vmem:[%s1362 + $0x144] sm:$0xf]
    %v1541 = vsel %vm1364, %v1153, %v1540
    %1542 = vst [vmem:[%s1362 + $0x144] sm:$0xf] %v1541
    %1543 = vst.msk [vmem:[%s1362 + $0x148] sm:$0xf] %vm324, %v1162
    %v1544 = vld [vmem:[%s1362 + $0x14c] sm:$0x1]
    %v1545 = vsel %vm341, %v1163, %v1544
    %1546 = vst [vmem:[%s1362 + $0x14c] sm:$0x1] %v1545
    %v1547 = vld [vmem:[%s1362 + $0x150] sm:$0xf]
    %v1548 = vsel %vm1364, %v1170, %v1547
    %1549 = vst [vmem:[%s1362 + $0x150] sm:$0xf] %v1548
    %1550 = vst.msk [vmem:[%s1362 + $0x154] sm:$0xf] %vm324, %v1179
    %v1551 = vld [vmem:[%s1362 + $0x158] sm:$0x1]
    %v1552 = vsel %vm341, %v1180, %v1551
    %1553 = vst [vmem:[%s1362 + $0x158] sm:$0x1] %v1552
    %v1554 = vld [vmem:[%s1362 + $0x15c] sm:$0xf]
    %v1555 = vsel %vm1364, %v1187, %v1554
    %1556 = vst [vmem:[%s1362 + $0x15c] sm:$0xf] %v1555
    %1557 = vst.msk [vmem:[%s1362 + $0x160] sm:$0xf] %vm324, %v1196
    %v1558 = vld [vmem:[%s1362 + $0x164] sm:$0x1]
    %v1559 = vsel %vm341, %v1197, %v1558
    %1560 = vst [vmem:[%s1362 + $0x164] sm:$0x1] %v1559
    %v1561 = vld [vmem:[%s1362 + $0x168] sm:$0xf]
    %v1562 = vsel %vm1364, %v1204, %v1561
    %1563 = vst [vmem:[%s1362 + $0x168] sm:$0xf] %v1562
    %1564 = vst.msk [vmem:[%s1362 + $0x16c] sm:$0xf] %vm324, %v1213
    %v1565 = vld [vmem:[%s1362 + $0x170] sm:$0x1]
    %v1566 = vsel %vm341, %v1214, %v1565
    %1567 = vst [vmem:[%s1362 + $0x170] sm:$0x1] %v1566
    %v1568 = vld [vmem:[%s1362 + $0x174] sm:$0xf]
    %v1569 = vsel %vm1364, %v1221, %v1568
    %1570 = vst [vmem:[%s1362 + $0x174] sm:$0xf] %v1569
    %1571 = vst.msk [vmem:[%s1362 + $0x178] sm:$0xf] %vm324, %v1230
    %v1572 = vld [vmem:[%s1362 + $0x17c] sm:$0x1]
    %v1573 = vsel %vm341, %v1231, %v1572
    %1574 = vst [vmem:[%s1362 + $0x17c] sm:$0x1] %v1573
    %v1575 = vld [vmem:[%s1362 + $0x180] sm:$0xf]
    %v1576 = vsel %vm1364, %v1238, %v1575
    %1577 = vst [vmem:[%s1362 + $0x180] sm:$0xf] %v1576
    %1578 = vst.msk [vmem:[%s1362 + $0x184] sm:$0xf] %vm324, %v1247
    %v1579 = vld [vmem:[%s1362 + $0x188] sm:$0x1]
    %v1580 = vsel %vm341, %v1248, %v1579
    %1581 = vst [vmem:[%s1362 + $0x188] sm:$0x1] %v1580
    %v1582 = vld [vmem:[%s1362 + $0x18c] sm:$0xf]
    %v1583 = vsel %vm1364, %v1255, %v1582
    %1584 = vst [vmem:[%s1362 + $0x18c] sm:$0xf] %v1583
    %1585 = vst.msk [vmem:[%s1362 + $0x190] sm:$0xf] %vm324, %v1264
    %v1586 = vld [vmem:[%s1362 + $0x194] sm:$0x1]
    %v1587 = vsel %vm341, %v1265, %v1586
    %1588 = vst [vmem:[%s1362 + $0x194] sm:$0x1] %v1587
    %v1589 = vld [vmem:[#allocation2] sm:$0xf]
    %v1590 = vld [vmem:[#allocation2 + $0x4] sm:$0xf]
    %v1591 = vld [vmem:[#allocation2 + $0xc] sm:$0xf]
    %v1592 = vld [vmem:[#allocation2 + $0x10] sm:$0xf]
    %v1593 = vld [vmem:[#allocation2 + $0x18] sm:$0xf]
    %v1594 = vld [vmem:[#allocation2 + $0x1c] sm:$0xf]
    %v1595 = vld [vmem:[#allocation2 + $0x24] sm:$0xf]
    %v1596 = vld [vmem:[#allocation2 + $0x28] sm:$0xf]
    %v1597 = vld [vmem:[#allocation2 + $0x30] sm:$0xf]
    %v1598 = vld [vmem:[#allocation2 + $0x34] sm:$0xf]
    %v1599 = vld [vmem:[#allocation2 + $0x3c] sm:$0xf]
    %v1600 = vld [vmem:[#allocation2 + $0x40] sm:$0xf]
    %v1601 = vld [vmem:[#allocation2 + $0x48] sm:$0xf]
    %v1602 = vld [vmem:[#allocation2 + $0x4c] sm:$0xf]
    %v1603 = vld [vmem:[#allocation2 + $0x54] sm:$0xf]
    %v1604 = vld [vmem:[#allocation2 + $0x58] sm:$0xf]
    %v1605 = vld [vmem:[#allocation2 + $0x60] sm:$0xf]
    %v1606 = vld [vmem:[#allocation2 + $0x64] sm:$0xf]
    %v1607 = vld [vmem:[#allocation2 + $0x6c] sm:$0xf]
    %v1608 = vld [vmem:[#allocation2 + $0x70] sm:$0xf]
    %v1609 = vld [vmem:[#allocation2 + $0x78] sm:$0xf]
    %v1610 = vld [vmem:[#allocation2 + $0x7c] sm:$0xf]
    %v1611 = vld [vmem:[#allocation2 + $0x84] sm:$0xf]
    %v1612 = vld [vmem:[#allocation2 + $0x88] sm:$0xf]
    %v1613 = vld [vmem:[#allocation2 + $0x90] sm:$0xf]
    %v1614 = vld [vmem:[#allocation2 + $0x94] sm:$0xf]
    %v1615 = vld [vmem:[#allocation2 + $0x9c] sm:$0xf]
    %v1616 = vld [vmem:[#allocation2 + $0xa0] sm:$0xf]
    %v1617 = vld [vmem:[#allocation2 + $0xa8] sm:$0xf]
    %v1618 = vld [vmem:[#allocation2 + $0xac] sm:$0xf]
    %v1619 = vld [vmem:[#allocation2 + $0xb4] sm:$0xf]
    %v1620 = vld [vmem:[#allocation2 + $0xb8] sm:$0xf]
    %v1621 = vld [vmem:[#allocation2 + $0xd8] sm:$0xf]
    %v1622 = vld [vmem:[#allocation2 + $0xdc] sm:$0xf]
    %v1623 = vld [vmem:[#allocation2 + $0xe4] sm:$0xf]
    %v1624 = vld [vmem:[#allocation2 + $0xe8] sm:$0xf]
    %v1625 = vld [vmem:[#allocation2 + $0xf0] sm:$0xf]
    %v1626 = vld [vmem:[#allocation2 + $0xf4] sm:$0xf]
    %v1627 = vld [vmem:[#allocation2 + $0xfc] sm:$0xf]
    %v1628 = vld [vmem:[#allocation2 + $0x100] sm:$0xf]
    %v1629 = vld [vmem:[#allocation2 + $0x108] sm:$0xf]
    %v1630 = vld [vmem:[#allocation2 + $0x10c] sm:$0xf]
    %v1631 = vld [vmem:[#allocation2 + $0x114] sm:$0xf]
    %v1632 = vld [vmem:[#allocation2 + $0x118] sm:$0xf]
    %v1633 = vld [vmem:[#allocation2 + $0x120] sm:$0xf]
    %v1634 = vld [vmem:[#allocation2 + $0x124] sm:$0xf]
    %v1635 = vld [vmem:[#allocation2 + $0x12c] sm:$0xf]
    %v1636 = vld [vmem:[#allocation2 + $0x130] sm:$0xf]
    %v1637 = vld [vmem:[#allocation2 + $0x138] sm:$0xf]
    %v1638 = vld [vmem:[#allocation2 + $0x13c] sm:$0xf]
    %v1639 = vld [vmem:[#allocation2 + $0x144] sm:$0xf]
    %v1640 = vld [vmem:[#allocation2 + $0x148] sm:$0xf]
    %v1641 = vld [vmem:[#allocation2 + $0x150] sm:$0xf]
    %v1642 = vld [vmem:[#allocation2 + $0x154] sm:$0xf]
    %v1643 = vld [vmem:[#allocation2 + $0x15c] sm:$0xf]
    %v1644 = vld [vmem:[#allocation2 + $0x160] sm:$0xf]
    %v1645 = vld [vmem:[#allocation2 + $0x168] sm:$0xf]
    %v1646 = vld [vmem:[#allocation2 + $0x16c] sm:$0xf]
    %v1647 = vld [vmem:[#allocation2 + $0x174] sm:$0xf]
    %v1648 = vld [vmem:[#allocation2 + $0x178] sm:$0xf]
    %v1649 = vld [vmem:[#allocation2 + $0x180] sm:$0xf]
    %v1650 = vld [vmem:[#allocation2 + $0x184] sm:$0xf]
    %v1651 = vld [vmem:[#allocation2 + $0x18c] sm:$0xf]
    %v1652 = vld [vmem:[#allocation2 + $0x190] sm:$0xf]
    %v1653 = vld [vmem:[#allocation2 + $0x8] sm:$0x1]
    %v1654 = vld [vmem:[#allocation2 + $0x14] sm:$0x1]
    %v1655 = vld [vmem:[#allocation2 + $0x20] sm:$0x1]
    %v1656 = vld [vmem:[#allocation2 + $0x2c] sm:$0x1]
    %v1657 = vld [vmem:[#allocation2 + $0x38] sm:$0x1]
    %v1658 = vld [vmem:[#allocation2 + $0x44] sm:$0x1]
    %v1659 = vld [vmem:[#allocation2 + $0x50] sm:$0x1]
    %v1660 = vld [vmem:[#allocation2 + $0x5c] sm:$0x1]
    %v1661 = vld [vmem:[#allocation2 + $0x68] sm:$0x1]
    %v1662 = vld [vmem:[#allocation2 + $0x74] sm:$0x1]
    %v1663 = vld [vmem:[#allocation2 + $0x80] sm:$0x1]
    %v1664 = vld [vmem:[#allocation2 + $0x8c] sm:$0x1]
    %v1665 = vld [vmem:[#allocation2 + $0x98] sm:$0x1]
    %v1666 = vld [vmem:[#allocation2 + $0xa4] sm:$0x1]
    %v1667 = vld [vmem:[#allocation2 + $0xb0] sm:$0x1]
    %v1668 = vld [vmem:[#allocation2 + $0xbc] sm:$0x1]
    %v1669 = vld [vmem:[#allocation2 + $0xe0] sm:$0x1]
    %v1670 = vld [vmem:[#allocation2 + $0xec] sm:$0x1]
    %v1671 = vld [vmem:[#allocation2 + $0xf8] sm:$0x1]
    %v1672 = vld [vmem:[#allocation2 + $0x104] sm:$0x1]
    %v1673 = vld [vmem:[#allocation2 + $0x110] sm:$0x1]
    %v1674 = vld [vmem:[#allocation2 + $0x11c] sm:$0x1]
    %v1675 = vld [vmem:[#allocation2 + $0x128] sm:$0x1]
    %v1676 = vld [vmem:[#allocation2 + $0x134] sm:$0x1]
    %v1677 = vld [vmem:[#allocation2 + $0x140] sm:$0x1]
    %v1678 = vld [vmem:[#allocation2 + $0x14c] sm:$0x1]
    %v1679 = vld [vmem:[#allocation2 + $0x158] sm:$0x1]
    %v1680 = vld [vmem:[#allocation2 + $0x164] sm:$0x1]
    %v1681 = vld [vmem:[#allocation2 + $0x170] sm:$0x1]
    %v1682 = vld [vmem:[#allocation2 + $0x17c] sm:$0x1]
    %v1683 = vld [vmem:[#allocation2 + $0x188] sm:$0x1]
    %v1684 = vld [vmem:[#allocation2 + $0x194] sm:$0x1]
    %vm1685 = vsmask.f32 3328
    %vm1686 = vsmask.f32 7440
    %vm1687 = vmor %vm1685, %vm1686
    %v1689 = vshrl.u32 %v1589, 16
    %v1691 = vrot.slane %v1689, 4
    %v1692 = vshll.u32 %v1589, 16
    %v1694 = vrot.slane %v1692, 5
    %v1695 = vor.u32 %v1691, %v1694
    %v1696 = vrot.slane %v1695, 4
    %v1698 = vshll.u32 %v1590, 16
    %v1700 = vrot.slane %v1698, 5
    %v1701 = vsel %vm1687, %v1696, %v1700
    %v1702 = vshrl.u32 %v1590, 16
    %v1704 = vrot.slane %v1702, 4
    %v1705 = vor.u32 %v1704, %v1700
    %v1706 = vrot.slane %v1705, 4
    %v1708 = vshll.u32 %v1653, 16
    %v1710 = vrot.slane %v1708, 5
    %v1711 = vsel %vm1687, %v1706, %v1710
    %v1713 = vshrl.u32 %v1591, 16
    %v1715 = vrot.slane %v1713, 4
    %v1716 = vshll.u32 %v1591, 16
    %v1718 = vrot.slane %v1716, 5
    %v1719 = vor.u32 %v1715, %v1718
    %v1720 = vrot.slane %v1719, 4
    %v1722 = vshll.u32 %v1592, 16
    %v1724 = vrot.slane %v1722, 5
    %v1725 = vsel %vm1687, %v1720, %v1724
    %v1726 = vshrl.u32 %v1592, 16
    %v1728 = vrot.slane %v1726, 4
    %v1729 = vor.u32 %v1728, %v1724
    %v1730 = vrot.slane %v1729, 4
    %v1732 = vshll.u32 %v1654, 16
    %v1734 = vrot.slane %v1732, 5
    %v1735 = vsel %vm1687, %v1730, %v1734
    %v1737 = vshrl.u32 %v1593, 16
    %v1739 = vrot.slane %v1737, 4
    %v1740 = vshll.u32 %v1593, 16
    %v1742 = vrot.slane %v1740, 5
    %v1743 = vor.u32 %v1739, %v1742
    %v1744 = vrot.slane %v1743, 4
    %v1746 = vshll.u32 %v1594, 16
    %v1748 = vrot.slane %v1746, 5
    %v1749 = vsel %vm1687, %v1744, %v1748
    %v1750 = vshrl.u32 %v1594, 16
    %v1752 = vrot.slane %v1750, 4
    %v1753 = vor.u32 %v1752, %v1748
    %v1754 = vrot.slane %v1753, 4
    %v1756 = vshll.u32 %v1655, 16
    %v1758 = vrot.slane %v1756, 5
    %v1759 = vsel %vm1687, %v1754, %v1758
    %v1761 = vshrl.u32 %v1595, 16
    %v1763 = vrot.slane %v1761, 4
    %v1764 = vshll.u32 %v1595, 16
    %v1766 = vrot.slane %v1764, 5
    %v1767 = vor.u32 %v1763, %v1766
    %v1768 = vrot.slane %v1767, 4
    %v1770 = vshll.u32 %v1596, 16
    %v1772 = vrot.slane %v1770, 5
    %v1773 = vsel %vm1687, %v1768, %v1772
    %v1774 = vshrl.u32 %v1596, 16
    %v1776 = vrot.slane %v1774, 4
    %v1777 = vor.u32 %v1776, %v1772
    %v1778 = vrot.slane %v1777, 4
    %v1780 = vshll.u32 %v1656, 16
    %v1782 = vrot.slane %v1780, 5
    %v1783 = vsel %vm1687, %v1778, %v1782
    %v1785 = vshrl.u32 %v1597, 16
    %v1787 = vrot.slane %v1785, 4
    %v1788 = vshll.u32 %v1597, 16
    %v1790 = vrot.slane %v1788, 5
    %v1791 = vor.u32 %v1787, %v1790
    %v1792 = vrot.slane %v1791, 4
    %v1794 = vshll.u32 %v1598, 16
    %v1796 = vrot.slane %v1794, 5
    %v1797 = vsel %vm1687, %v1792, %v1796
    %v1798 = vshrl.u32 %v1598, 16
    %v1800 = vrot.slane %v1798, 4
    %v1801 = vor.u32 %v1800, %v1796
    %v1802 = vrot.slane %v1801, 4
    %v1804 = vshll.u32 %v1657, 16
    %v1806 = vrot.slane %v1804, 5
    %v1807 = vsel %vm1687, %v1802, %v1806
    %v1809 = vshrl.u32 %v1599, 16
    %v1811 = vrot.slane %v1809, 4
    %v1812 = vshll.u32 %v1599, 16
    %v1814 = vrot.slane %v1812, 5
    %v1815 = vor.u32 %v1811, %v1814
    %v1816 = vrot.slane %v1815, 4
    %v1818 = vshll.u32 %v1600, 16
    %v1820 = vrot.slane %v1818, 5
    %v1821 = vsel %vm1687, %v1816, %v1820
    %v1822 = vshrl.u32 %v1600, 16
    %v1824 = vrot.slane %v1822, 4
    %v1825 = vor.u32 %v1824, %v1820
    %v1826 = vrot.slane %v1825, 4
    %v1828 = vshll.u32 %v1658, 16
    %v1830 = vrot.slane %v1828, 5
    %v1831 = vsel %vm1687, %v1826, %v1830
    %v1833 = vshrl.u32 %v1601, 16
    %v1835 = vrot.slane %v1833, 4
    %v1836 = vshll.u32 %v1601, 16
    %v1838 = vrot.slane %v1836, 5
    %v1839 = vor.u32 %v1835, %v1838
    %v1840 = vrot.slane %v1839, 4
    %v1842 = vshll.u32 %v1602, 16
    %v1844 = vrot.slane %v1842, 5
    %v1845 = vsel %vm1687, %v1840, %v1844
    %v1846 = vshrl.u32 %v1602, 16
    %v1848 = vrot.slane %v1846, 4
    %v1849 = vor.u32 %v1848, %v1844
    %v1850 = vrot.slane %v1849, 4
    %v1852 = vshll.u32 %v1659, 16
    %v1854 = vrot.slane %v1852, 5
    %v1855 = vsel %vm1687, %v1850, %v1854
    %v1857 = vshrl.u32 %v1603, 16
    %v1859 = vrot.slane %v1857, 4
    %v1860 = vshll.u32 %v1603, 16
    %v1862 = vrot.slane %v1860, 5
    %v1863 = vor.u32 %v1859, %v1862
    %v1864 = vrot.slane %v1863, 4
    %v1866 = vshll.u32 %v1604, 16
    %v1868 = vrot.slane %v1866, 5
    %v1869 = vsel %vm1687, %v1864, %v1868
    %v1870 = vshrl.u32 %v1604, 16
    %v1872 = vrot.slane %v1870, 4
    %v1873 = vor.u32 %v1872, %v1868
    %v1874 = vrot.slane %v1873, 4
    %v1876 = vshll.u32 %v1660, 16
    %v1878 = vrot.slane %v1876, 5
    %v1879 = vsel %vm1687, %v1874, %v1878
    %v1881 = vshrl.u32 %v1605, 16
    %v1883 = vrot.slane %v1881, 4
    %v1884 = vshll.u32 %v1605, 16
    %v1886 = vrot.slane %v1884, 5
    %v1887 = vor.u32 %v1883, %v1886
    %v1888 = vrot.slane %v1887, 4
    %v1890 = vshll.u32 %v1606, 16
    %v1892 = vrot.slane %v1890, 5
    %v1893 = vsel %vm1687, %v1888, %v1892
    %v1894 = vshrl.u32 %v1606, 16
    %v1896 = vrot.slane %v1894, 4
    %v1897 = vor.u32 %v1896, %v1892
    %v1898 = vrot.slane %v1897, 4
    %v1900 = vshll.u32 %v1661, 16
    %v1902 = vrot.slane %v1900, 5
    %v1903 = vsel %vm1687, %v1898, %v1902
    %v1905 = vshrl.u32 %v1607, 16
    %v1907 = vrot.slane %v1905, 4
    %v1908 = vshll.u32 %v1607, 16
    %v1910 = vrot.slane %v1908, 5
    %v1911 = vor.u32 %v1907, %v1910
    %v1912 = vrot.slane %v1911, 4
    %v1914 = vshll.u32 %v1608, 16
    %v1916 = vrot.slane %v1914, 5
    %v1917 = vsel %vm1687, %v1912, %v1916
    %v1918 = vshrl.u32 %v1608, 16
    %v1920 = vrot.slane %v1918, 4
    %v1921 = vor.u32 %v1920, %v1916
    %v1922 = vrot.slane %v1921, 4
    %v1924 = vshll.u32 %v1662, 16
    %v1926 = vrot.slane %v1924, 5
    %v1927 = vsel %vm1687, %v1922, %v1926
    %v1929 = vshrl.u32 %v1609, 16
    %v1931 = vrot.slane %v1929, 4
    %v1932 = vshll.u32 %v1609, 16
    %v1934 = vrot.slane %v1932, 5
    %v1935 = vor.u32 %v1931, %v1934
    %v1936 = vrot.slane %v1935, 4
    %v1938 = vshll.u32 %v1610, 16
    %v1940 = vrot.slane %v1938, 5
    %v1941 = vsel %vm1687, %v1936, %v1940
    %v1942 = vshrl.u32 %v1610, 16
    %v1944 = vrot.slane %v1942, 4
    %v1945 = vor.u32 %v1944, %v1940
    %v1946 = vrot.slane %v1945, 4
    %v1948 = vshll.u32 %v1663, 16
    %v1950 = vrot.slane %v1948, 5
    %v1951 = vsel %vm1687, %v1946, %v1950
    %v1953 = vshrl.u32 %v1611, 16
    %v1955 = vrot.slane %v1953, 4
    %v1956 = vshll.u32 %v1611, 16
    %v1958 = vrot.slane %v1956, 5
    %v1959 = vor.u32 %v1955, %v1958
    %v1960 = vrot.slane %v1959, 4
    %v1962 = vshll.u32 %v1612, 16
    %v1964 = vrot.slane %v1962, 5
    %v1965 = vsel %vm1687, %v1960, %v1964
    %v1966 = vshrl.u32 %v1612, 16
    %v1968 = vrot.slane %v1966, 4
    %v1969 = vor.u32 %v1968, %v1964
    %v1970 = vrot.slane %v1969, 4
    %v1972 = vshll.u32 %v1664, 16
    %v1974 = vrot.slane %v1972, 5
    %v1975 = vsel %vm1687, %v1970, %v1974
    %v1977 = vshrl.u32 %v1613, 16
    %v1979 = vrot.slane %v1977, 4
    %v1980 = vshll.u32 %v1613, 16
    %v1982 = vrot.slane %v1980, 5
    %v1983 = vor.u32 %v1979, %v1982
    %v1984 = vrot.slane %v1983, 4
    %v1986 = vshll.u32 %v1614, 16
    %v1988 = vrot.slane %v1986, 5
    %v1989 = vsel %vm1687, %v1984, %v1988
    %v1990 = vshrl.u32 %v1614, 16
    %v1992 = vrot.slane %v1990, 4
    %v1993 = vor.u32 %v1992, %v1988
    %v1994 = vrot.slane %v1993, 4
    %v1996 = vshll.u32 %v1665, 16
    %v1998 = vrot.slane %v1996, 5
    %v1999 = vsel %vm1687, %v1994, %v1998
    %v2001 = vshrl.u32 %v1615, 16
    %v2003 = vrot.slane %v2001, 4
    %v2004 = vshll.u32 %v1615, 16
    %v2006 = vrot.slane %v2004, 5
    %v2007 = vor.u32 %v2003, %v2006
    %v2008 = vrot.slane %v2007, 4
    %v2010 = vshll.u32 %v1616, 16
    %v2012 = vrot.slane %v2010, 5
    %v2013 = vsel %vm1687, %v2008, %v2012
    %v2014 = vshrl.u32 %v1616, 16
    %v2016 = vrot.slane %v2014, 4
    %v2017 = vor.u32 %v2016, %v2012
    %v2018 = vrot.slane %v2017, 4
    %v2020 = vshll.u32 %v1666, 16
    %v2022 = vrot.slane %v2020, 5
    %v2023 = vsel %vm1687, %v2018, %v2022
    %v2025 = vshrl.u32 %v1617, 16
    %v2027 = vrot.slane %v2025, 4
    %v2028 = vshll.u32 %v1617, 16
    %v2030 = vrot.slane %v2028, 5
    %v2031 = vor.u32 %v2027, %v2030
    %v2032 = vrot.slane %v2031, 4
    %v2034 = vshll.u32 %v1618, 16
    %v2036 = vrot.slane %v2034, 5
    %v2037 = vsel %vm1687, %v2032, %v2036
    %v2038 = vshrl.u32 %v1618, 16
    %v2040 = vrot.slane %v2038, 4
    %v2041 = vor.u32 %v2040, %v2036
    %v2042 = vrot.slane %v2041, 4
    %v2044 = vshll.u32 %v1667, 16
    %v2046 = vrot.slane %v2044, 5
    %v2047 = vsel %vm1687, %v2042, %v2046
    %v2049 = vshrl.u32 %v1619, 16
    %v2051 = vrot.slane %v2049, 4
    %v2052 = vshll.u32 %v1619, 16
    %v2054 = vrot.slane %v2052, 5
    %v2055 = vor.u32 %v2051, %v2054
    %v2056 = vrot.slane %v2055, 4
    %v2058 = vshll.u32 %v1620, 16
    %v2060 = vrot.slane %v2058, 5
    %v2061 = vsel %vm1687, %v2056, %v2060
    %v2062 = vshrl.u32 %v1620, 16
    %v2064 = vrot.slane %v2062, 4
    %v2065 = vor.u32 %v2064, %v2060
    %v2066 = vrot.slane %v2065, 4
    %v2068 = vshll.u32 %v1668, 16
    %v2070 = vrot.slane %v2068, 5
    %v2071 = vsel %vm1687, %v2066, %v2070
    %v2073 = vshrl.u32 %v1621, 16
    %v2075 = vrot.slane %v2073, 4
    %v2076 = vshll.u32 %v1621, 16
    %v2078 = vrot.slane %v2076, 5
    %v2079 = vor.u32 %v2075, %v2078
    %v2080 = vrot.slane %v2079, 4
    %v2082 = vshll.u32 %v1622, 16
    %v2084 = vrot.slane %v2082, 5
    %v2085 = vsel %vm1687, %v2080, %v2084
    %v2086 = vshrl.u32 %v1622, 16
    %v2088 = vrot.slane %v2086, 4
    %v2089 = vor.u32 %v2088, %v2084
    %v2090 = vrot.slane %v2089, 4
    %v2092 = vshll.u32 %v1669, 16
    %v2094 = vrot.slane %v2092, 5
    %v2095 = vsel %vm1687, %v2090, %v2094
    %v2097 = vshrl.u32 %v1623, 16
    %v2099 = vrot.slane %v2097, 4
    %v2100 = vshll.u32 %v1623, 16
    %v2102 = vrot.slane %v2100, 5
    %v2103 = vor.u32 %v2099, %v2102
    %v2104 = vrot.slane %v2103, 4
    %v2106 = vshll.u32 %v1624, 16
    %v2108 = vrot.slane %v2106, 5
    %v2109 = vsel %vm1687, %v2104, %v2108
    %v2110 = vshrl.u32 %v1624, 16
    %v2112 = vrot.slane %v2110, 4
    %v2113 = vor.u32 %v2112, %v2108
    %v2114 = vrot.slane %v2113, 4
    %v2116 = vshll.u32 %v1670, 16
    %v2118 = vrot.slane %v2116, 5
    %v2119 = vsel %vm1687, %v2114, %v2118
    %v2121 = vshrl.u32 %v1625, 16
    %v2123 = vrot.slane %v2121, 4
    %v2124 = vshll.u32 %v1625, 16
    %v2126 = vrot.slane %v2124, 5
    %v2127 = vor.u32 %v2123, %v2126
    %v2128 = vrot.slane %v2127, 4
    %v2130 = vshll.u32 %v1626, 16
    %v2132 = vrot.slane %v2130, 5
    %v2133 = vsel %vm1687, %v2128, %v2132
    %v2134 = vshrl.u32 %v1626, 16
    %v2136 = vrot.slane %v2134, 4
    %v2137 = vor.u32 %v2136, %v2132
    %v2138 = vrot.slane %v2137, 4
    %v2140 = vshll.u32 %v1671, 16
    %v2142 = vrot.slane %v2140, 5
    %v2143 = vsel %vm1687, %v2138, %v2142
    %v2145 = vshrl.u32 %v1627, 16
    %v2147 = vrot.slane %v2145, 4
    %v2148 = vshll.u32 %v1627, 16
    %v2150 = vrot.slane %v2148, 5
    %v2151 = vor.u32 %v2147, %v2150
    %v2152 = vrot.slane %v2151, 4
    %v2154 = vshll.u32 %v1628, 16
    %v2156 = vrot.slane %v2154, 5
    %v2157 = vsel %vm1687, %v2152, %v2156
    %v2158 = vshrl.u32 %v1628, 16
    %v2160 = vrot.slane %v2158, 4
    %v2161 = vor.u32 %v2160, %v2156
    %v2162 = vrot.slane %v2161, 4
    %v2164 = vshll.u32 %v1672, 16
    %v2166 = vrot.slane %v2164, 5
    %v2167 = vsel %vm1687, %v2162, %v2166
    %v2169 = vshrl.u32 %v1629, 16
    %v2171 = vrot.slane %v2169, 4
    %v2172 = vshll.u32 %v1629, 16
    %v2174 = vrot.slane %v2172, 5
    %v2175 = vor.u32 %v2171, %v2174
    %v2176 = vrot.slane %v2175, 4
    %v2178 = vshll.u32 %v1630, 16
    %v2180 = vrot.slane %v2178, 5
    %v2181 = vsel %vm1687, %v2176, %v2180
    %v2182 = vshrl.u32 %v1630, 16
    %v2184 = vrot.slane %v2182, 4
    %v2185 = vor.u32 %v2184, %v2180
    %v2186 = vrot.slane %v2185, 4
    %v2188 = vshll.u32 %v1673, 16
    %v2190 = vrot.slane %v2188, 5
    %v2191 = vsel %vm1687, %v2186, %v2190
    %v2193 = vshrl.u32 %v1631, 16
    %v2195 = vrot.slane %v2193, 4
    %v2196 = vshll.u32 %v1631, 16
    %v2198 = vrot.slane %v2196, 5
    %v2199 = vor.u32 %v2195, %v2198
    %v2200 = vrot.slane %v2199, 4
    %v2202 = vshll.u32 %v1632, 16
    %v2204 = vrot.slane %v2202, 5
    %v2205 = vsel %vm1687, %v2200, %v2204
    %v2206 = vshrl.u32 %v1632, 16
    %v2208 = vrot.slane %v2206, 4
    %v2209 = vor.u32 %v2208, %v2204
    %v2210 = vrot.slane %v2209, 4
    %v2212 = vshll.u32 %v1674, 16
    %v2214 = vrot.slane %v2212, 5
    %v2215 = vsel %vm1687, %v2210, %v2214
    %v2217 = vshrl.u32 %v1633, 16
    %v2219 = vrot.slane %v2217, 4
    %v2220 = vshll.u32 %v1633, 16
    %v2222 = vrot.slane %v2220, 5
    %v2223 = vor.u32 %v2219, %v2222
    %v2224 = vrot.slane %v2223, 4
    %v2226 = vshll.u32 %v1634, 16
    %v2228 = vrot.slane %v2226, 5
    %v2229 = vsel %vm1687, %v2224, %v2228
    %v2230 = vshrl.u32 %v1634, 16
    %v2232 = vrot.slane %v2230, 4
    %v2233 = vor.u32 %v2232, %v2228
    %v2234 = vrot.slane %v2233, 4
    %v2236 = vshll.u32 %v1675, 16
    %v2238 = vrot.slane %v2236, 5
    %v2239 = vsel %vm1687, %v2234, %v2238
    %v2241 = vshrl.u32 %v1635, 16
    %v2243 = vrot.slane %v2241, 4
    %v2244 = vshll.u32 %v1635, 16
    %v2246 = vrot.slane %v2244, 5
    %v2247 = vor.u32 %v2243, %v2246
    %v2248 = vrot.slane %v2247, 4
    %v2250 = vshll.u32 %v1636, 16
    %v2252 = vrot.slane %v2250, 5
    %v2253 = vsel %vm1687, %v2248, %v2252
    %v2254 = vshrl.u32 %v1636, 16
    %v2256 = vrot.slane %v2254, 4
    %v2257 = vor.u32 %v2256, %v2252
    %v2258 = vrot.slane %v2257, 4
    %v2260 = vshll.u32 %v1676, 16
    %v2262 = vrot.slane %v2260, 5
    %v2263 = vsel %vm1687, %v2258, %v2262
    %v2265 = vshrl.u32 %v1637, 16
    %v2267 = vrot.slane %v2265, 4
    %v2268 = vshll.u32 %v1637, 16
    %v2270 = vrot.slane %v2268, 5
    %v2271 = vor.u32 %v2267, %v2270
    %v2272 = vrot.slane %v2271, 4
    %v2274 = vshll.u32 %v1638, 16
    %v2276 = vrot.slane %v2274, 5
    %v2277 = vsel %vm1687, %v2272, %v2276
    %v2278 = vshrl.u32 %v1638, 16
    %v2280 = vrot.slane %v2278, 4
    %v2281 = vor.u32 %v2280, %v2276
    %v2282 = vrot.slane %v2281, 4
    %v2284 = vshll.u32 %v1677, 16
    %v2286 = vrot.slane %v2284, 5
    %v2287 = vsel %vm1687, %v2282, %v2286
    %v2289 = vshrl.u32 %v1639, 16
    %v2291 = vrot.slane %v2289, 4
    %v2292 = vshll.u32 %v1639, 16
    %v2294 = vrot.slane %v2292, 5
    %v2295 = vor.u32 %v2291, %v2294
    %v2296 = vrot.slane %v2295, 4
    %v2298 = vshll.u32 %v1640, 16
    %v2300 = vrot.slane %v2298, 5
    %v2301 = vsel %vm1687, %v2296, %v2300
    %v2302 = vshrl.u32 %v1640, 16
    %v2304 = vrot.slane %v2302, 4
    %v2305 = vor.u32 %v2304, %v2300
    %v2306 = vrot.slane %v2305, 4
    %v2308 = vshll.u32 %v1678, 16
    %v2310 = vrot.slane %v2308, 5
    %v2311 = vsel %vm1687, %v2306, %v2310
    %v2313 = vshrl.u32 %v1641, 16
    %v2315 = vrot.slane %v2313, 4
    %v2316 = vshll.u32 %v1641, 16
    %v2318 = vrot.slane %v2316, 5
    %v2319 = vor.u32 %v2315, %v2318
    %v2320 = vrot.slane %v2319, 4
    %v2322 = vshll.u32 %v1642, 16
    %v2324 = vrot.slane %v2322, 5
    %v2325 = vsel %vm1687, %v2320, %v2324
    %v2326 = vshrl.u32 %v1642, 16
    %v2328 = vrot.slane %v2326, 4
    %v2329 = vor.u32 %v2328, %v2324
    %v2330 = vrot.slane %v2329, 4
    %v2332 = vshll.u32 %v1679, 16
    %v2334 = vrot.slane %v2332, 5
    %v2335 = vsel %vm1687, %v2330, %v2334
    %v2337 = vshrl.u32 %v1643, 16
    %v2339 = vrot.slane %v2337, 4
    %v2340 = vshll.u32 %v1643, 16
    %v2342 = vrot.slane %v2340, 5
    %v2343 = vor.u32 %v2339, %v2342
    %v2344 = vrot.slane %v2343, 4
    %v2346 = vshll.u32 %v1644, 16
    %v2348 = vrot.slane %v2346, 5
    %v2349 = vsel %vm1687, %v2344, %v2348
    %v2350 = vshrl.u32 %v1644, 16
    %v2352 = vrot.slane %v2350, 4
    %v2353 = vor.u32 %v2352, %v2348
    %v2354 = vrot.slane %v2353, 4
    %v2356 = vshll.u32 %v1680, 16
    %v2358 = vrot.slane %v2356, 5
    %v2359 = vsel %vm1687, %v2354, %v2358
    %v2361 = vshrl.u32 %v1645, 16
    %v2363 = vrot.slane %v2361, 4
    %v2364 = vshll.u32 %v1645, 16
    %v2366 = vrot.slane %v2364, 5
    %v2367 = vor.u32 %v2363, %v2366
    %v2368 = vrot.slane %v2367, 4
    %v2370 = vshll.u32 %v1646, 16
    %v2372 = vrot.slane %v2370, 5
    %v2373 = vsel %vm1687, %v2368, %v2372
    %v2374 = vshrl.u32 %v1646, 16
    %v2376 = vrot.slane %v2374, 4
    %v2377 = vor.u32 %v2376, %v2372
    %v2378 = vrot.slane %v2377, 4
    %v2380 = vshll.u32 %v1681, 16
    %v2382 = vrot.slane %v2380, 5
    %v2383 = vsel %vm1687, %v2378, %v2382
    %v2385 = vshrl.u32 %v1647, 16
    %v2387 = vrot.slane %v2385, 4
    %v2388 = vshll.u32 %v1647, 16
    %v2390 = vrot.slane %v2388, 5
    %v2391 = vor.u32 %v2387, %v2390
    %v2392 = vrot.slane %v2391, 4
    %v2394 = vshll.u32 %v1648, 16
    %v2396 = vrot.slane %v2394, 5
    %v2397 = vsel %vm1687, %v2392, %v2396
    %v2398 = vshrl.u32 %v1648, 16
    %v2400 = vrot.slane %v2398, 4
    %v2401 = vor.u32 %v2400, %v2396
    %v2402 = vrot.slane %v2401, 4
    %v2404 = vshll.u32 %v1682, 16
    %v2406 = vrot.slane %v2404, 5
    %v2407 = vsel %vm1687, %v2402, %v2406
    %v2409 = vshrl.u32 %v1649, 16
    %v2411 = vrot.slane %v2409, 4
    %v2412 = vshll.u32 %v1649, 16
    %v2414 = vrot.slane %v2412, 5
    %v2415 = vor.u32 %v2411, %v2414
    %v2416 = vrot.slane %v2415, 4
    %v2418 = vshll.u32 %v1650, 16
    %v2420 = vrot.slane %v2418, 5
    %v2421 = vsel %vm1687, %v2416, %v2420
    %v2422 = vshrl.u32 %v1650, 16
    %v2424 = vrot.slane %v2422, 4
    %v2425 = vor.u32 %v2424, %v2420
    %v2426 = vrot.slane %v2425, 4
    %v2428 = vshll.u32 %v1683, 16
    %v2430 = vrot.slane %v2428, 5
    %v2431 = vsel %vm1687, %v2426, %v2430
    %v2433 = vshrl.u32 %v1651, 16
    %v2435 = vrot.slane %v2433, 4
    %v2436 = vshll.u32 %v1651, 16
    %v2438 = vrot.slane %v2436, 5
    %v2439 = vor.u32 %v2435, %v2438
    %v2440 = vrot.slane %v2439, 4
    %v2442 = vshll.u32 %v1652, 16
    %v2444 = vrot.slane %v2442, 5
    %v2445 = vsel %vm1687, %v2440, %v2444
    %v2446 = vshrl.u32 %v1652, 16
    %v2448 = vrot.slane %v2446, 4
    %v2449 = vor.u32 %v2448, %v2444
    %v2450 = vrot.slane %v2449, 4
    %v2452 = vshll.u32 %v1684, 16
    %v2454 = vrot.slane %v2452, 5
    %v2455 = vsel %vm1687, %v2450, %v2454
    %v2456 = vld [vmem:[#allocation2] sm:$0xe]
    %v2457 = vld [vmem:[#allocation2 + $0xc] sm:$0xe]
    %v2458 = vld [vmem:[#allocation2 + $0x18] sm:$0xe]
    %v2459 = vld [vmem:[#allocation2 + $0x24] sm:$0xe]
    %v2460 = vld [vmem:[#allocation2 + $0x30] sm:$0xe]
    %v2461 = vld [vmem:[#allocation2 + $0x3c] sm:$0xe]
    %v2462 = vld [vmem:[#allocation2 + $0x48] sm:$0xe]
    %v2463 = vld [vmem:[#allocation2 + $0x54] sm:$0xe]
    %v2464 = vld [vmem:[#allocation2 + $0x60] sm:$0xe]
    %v2465 = vld [vmem:[#allocation2 + $0x6c] sm:$0xe]
    %v2466 = vld [vmem:[#allocation2 + $0x78] sm:$0xe]
    %v2467 = vld [vmem:[#allocation2 + $0x84] sm:$0xe]
    %v2468 = vld [vmem:[#allocation2 + $0x90] sm:$0xe]
    %v2469 = vld [vmem:[#allocation2 + $0x9c] sm:$0xe]
    %v2470 = vld [vmem:[#allocation2 + $0xa8] sm:$0xe]
    %v2471 = vld [vmem:[#allocation2 + $0xb4] sm:$0xe]
    %v2472 = vld [vmem:[#allocation2 + $0xd8] sm:$0xe]
    %v2473 = vld [vmem:[#allocation2 + $0xe4] sm:$0xe]
    %v2474 = vld [vmem:[#allocation2 + $0xf0] sm:$0xe]
    %v2475 = vld [vmem:[#allocation2 + $0xfc] sm:$0xe]
    %v2476 = vld [vmem:[#allocation2 + $0x108] sm:$0xe]
    %v2477 = vld [vmem:[#allocation2 + $0x114] sm:$0xe]
    %v2478 = vld [vmem:[#allocation2 + $0x120] sm:$0xe]
    %v2479 = vld [vmem:[#allocation2 + $0x12c] sm:$0xe]
    %v2480 = vld [vmem:[#allocation2 + $0x138] sm:$0xe]
    %v2481 = vld [vmem:[#allocation2 + $0x144] sm:$0xe]
    %v2482 = vld [vmem:[#allocation2 + $0x150] sm:$0xe]
    %v2483 = vld [vmem:[#allocation2 + $0x15c] sm:$0xe]
    %v2484 = vld [vmem:[#allocation2 + $0x168] sm:$0xe]
    %v2485 = vld [vmem:[#allocation2 + $0x174] sm:$0xe]
    %v2486 = vld [vmem:[#allocation2 + $0x180] sm:$0xe]
    %v2487 = vld [vmem:[#allocation2 + $0x18c] sm:$0xe]
    %vm2584 = vcmask 1042432
    %vm2585 = vcmask 1046532
    %vm2586 = vmor %vm2584, %vm2585
    %v2587 = vrot.slane %v2456, 5
    %v2588 = vrot.slane %v2587, 4
    %v2589 = vrot.slane %v1590, 5
    %v2590 = vsel %vm2586, %v2588, %v2589
    %v2591 = vrot.slane %v2589, 4
    %v2592 = vrot.slane %v1653, 5
    %v2593 = vsel %vm2586, %v2591, %v2592
    %v2594 = vrot.slane %v2457, 5
    %v2595 = vrot.slane %v2594, 4
    %v2596 = vrot.slane %v1592, 5
    %v2597 = vsel %vm2586, %v2595, %v2596
    %v2598 = vrot.slane %v2596, 4
    %v2599 = vrot.slane %v1654, 5
    %v2600 = vsel %vm2586, %v2598, %v2599
    %v2601 = vrot.slane %v2458, 5
    %v2602 = vrot.slane %v2601, 4
    %v2603 = vrot.slane %v1594, 5
    %v2604 = vsel %vm2586, %v2602, %v2603
    %v2605 = vrot.slane %v2603, 4
    %v2606 = vrot.slane %v1655, 5
    %v2607 = vsel %vm2586, %v2605, %v2606
    %v2608 = vrot.slane %v2459, 5
    %v2609 = vrot.slane %v2608, 4
    %v2610 = vrot.slane %v1596, 5
    %v2611 = vsel %vm2586, %v2609, %v2610
    %v2612 = vrot.slane %v2610, 4
    %v2613 = vrot.slane %v1656, 5
    %v2614 = vsel %vm2586, %v2612, %v2613
    %v2615 = vrot.slane %v2460, 5
    %v2616 = vrot.slane %v2615, 4
    %v2617 = vrot.slane %v1598, 5
    %v2618 = vsel %vm2586, %v2616, %v2617
    %v2619 = vrot.slane %v2617, 4
    %v2620 = vrot.slane %v1657, 5
    %v2621 = vsel %vm2586, %v2619, %v2620
    %v2622 = vrot.slane %v2461, 5
    %v2623 = vrot.slane %v2622, 4
    %v2624 = vrot.slane %v1600, 5
    %v2625 = vsel %vm2586, %v2623, %v2624
    %v2626 = vrot.slane %v2624, 4
    %v2627 = vrot.slane %v1658, 5
    %v2628 = vsel %vm2586, %v2626, %v2627
    %v2629 = vrot.slane %v2462, 5
    %v2630 = vrot.slane %v2629, 4
    %v2631 = vrot.slane %v1602, 5
    %v2632 = vsel %vm2586, %v2630, %v2631
    %v2633 = vrot.slane %v2631, 4
    %v2634 = vrot.slane %v1659, 5
    %v2635 = vsel %vm2586, %v2633, %v2634
    %v2636 = vrot.slane %v2463, 5
    %v2637 = vrot.slane %v2636, 4
    %v2638 = vrot.slane %v1604, 5
    %v2639 = vsel %vm2586, %v2637, %v2638
    %v2640 = vrot.slane %v2638, 4
    %v2641 = vrot.slane %v1660, 5
    %v2642 = vsel %vm2586, %v2640, %v2641
    %v2643 = vrot.slane %v2464, 5
    %v2644 = vrot.slane %v2643, 4
    %v2645 = vrot.slane %v1606, 5
    %v2646 = vsel %vm2586, %v2644, %v2645
    %v2647 = vrot.slane %v2645, 4
    %v2648 = vrot.slane %v1661, 5
    %v2649 = vsel %vm2586, %v2647, %v2648
    %v2650 = vrot.slane %v2465, 5
    %v2651 = vrot.slane %v2650, 4
    %v2652 = vrot.slane %v1608, 5
    %v2653 = vsel %vm2586, %v2651, %v2652
    %v2654 = vrot.slane %v2652, 4
    %v2655 = vrot.slane %v1662, 5
    %v2656 = vsel %vm2586, %v2654, %v2655
    %v2657 = vrot.slane %v2466, 5
    %v2658 = vrot.slane %v2657, 4
    %v2659 = vrot.slane %v1610, 5
    %v2660 = vsel %vm2586, %v2658, %v2659
    %v2661 = vrot.slane %v2659, 4
    %v2662 = vrot.slane %v1663, 5
    %v2663 = vsel %vm2586, %v2661, %v2662
    %v2664 = vrot.slane %v2467, 5
    %v2665 = vrot.slane %v2664, 4
    %v2666 = vrot.slane %v1612, 5
    %v2667 = vsel %vm2586, %v2665, %v2666
    %v2668 = vrot.slane %v2666, 4
    %v2669 = vrot.slane %v1664, 5
    %v2670 = vsel %vm2586, %v2668, %v2669
    %v2671 = vrot.slane %v2468, 5
    %v2672 = vrot.slane %v2671, 4
    %v2673 = vrot.slane %v1614, 5
    %v2674 = vsel %vm2586, %v2672, %v2673
    %v2675 = vrot.slane %v2673, 4
    %v2676 = vrot.slane %v1665, 5
    %v2677 = vsel %vm2586, %v2675, %v2676
    %v2678 = vrot.slane %v2469, 5
    %v2679 = vrot.slane %v2678, 4
    %v2680 = vrot.slane %v1616, 5
    %v2681 = vsel %vm2586, %v2679, %v2680
    %v2682 = vrot.slane %v2680, 4
    %v2683 = vrot.slane %v1666, 5
    %v2684 = vsel %vm2586, %v2682, %v2683
    %v2685 = vrot.slane %v2470, 5
    %v2686 = vrot.slane %v2685, 4
    %v2687 = vrot.slane %v1618, 5
    %v2688 = vsel %vm2586, %v2686, %v2687
    %v2689 = vrot.slane %v2687, 4
    %v2690 = vrot.slane %v1667, 5
    %v2691 = vsel %vm2586, %v2689, %v2690
    %v2692 = vrot.slane %v2471, 5
    %v2693 = vrot.slane %v2692, 4
    %v2694 = vrot.slane %v1620, 5
    %v2695 = vsel %vm2586, %v2693, %v2694
    %v2696 = vrot.slane %v2694, 4
    %v2697 = vrot.slane %v1668, 5
    %v2698 = vsel %vm2586, %v2696, %v2697
    %v2699 = vrot.slane %v2472, 5
    %v2700 = vrot.slane %v2699, 4
    %v2701 = vrot.slane %v1622, 5
    %v2702 = vsel %vm2586, %v2700, %v2701
    %v2703 = vrot.slane %v2701, 4
    %v2704 = vrot.slane %v1669, 5
    %v2705 = vsel %vm2586, %v2703, %v2704
    %v2706 = vrot.slane %v2473, 5
    %v2707 = vrot.slane %v2706, 4
    %v2708 = vrot.slane %v1624, 5
    %v2709 = vsel %vm2586, %v2707, %v2708
    %v2710 = vrot.slane %v2708, 4
    %v2711 = vrot.slane %v1670, 5
    %v2712 = vsel %vm2586, %v2710, %v2711
    %v2713 = vrot.slane %v2474, 5
    %v2714 = vrot.slane %v2713, 4
    %v2715 = vrot.slane %v1626, 5
    %v2716 = vsel %vm2586, %v2714, %v2715
    %v2717 = vrot.slane %v2715, 4
    %v2718 = vrot.slane %v1671, 5
    %v2719 = vsel %vm2586, %v2717, %v2718
    %v2720 = vrot.slane %v2475, 5
    %v2721 = vrot.slane %v2720, 4
    %v2722 = vrot.slane %v1628, 5
    %v2723 = vsel %vm2586, %v2721, %v2722
    %v2724 = vrot.slane %v2722, 4
    %v2725 = vrot.slane %v1672, 5
    %v2726 = vsel %vm2586, %v2724, %v2725
    %v2727 = vrot.slane %v2476, 5
    %v2728 = vrot.slane %v2727, 4
    %v2729 = vrot.slane %v1630, 5
    %v2730 = vsel %vm2586, %v2728, %v2729
    %v2731 = vrot.slane %v2729, 4
    %v2732 = vrot.slane %v1673, 5
    %v2733 = vsel %vm2586, %v2731, %v2732
    %v2734 = vrot.slane %v2477, 5
    %v2735 = vrot.slane %v2734, 4
    %v2736 = vrot.slane %v1632, 5
    %v2737 = vsel %vm2586, %v2735, %v2736
    %v2738 = vrot.slane %v2736, 4
    %v2739 = vrot.slane %v1674, 5
    %v2740 = vsel %vm2586, %v2738, %v2739
    %v2741 = vrot.slane %v2478, 5
    %v2742 = vrot.slane %v2741, 4
    %v2743 = vrot.slane %v1634, 5
    %v2744 = vsel %vm2586, %v2742, %v2743
    %v2745 = vrot.slane %v2743, 4
    %v2746 = vrot.slane %v1675, 5
    %v2747 = vsel %vm2586, %v2745, %v2746
    %v2748 = vrot.slane %v2479, 5
    %v2749 = vrot.slane %v2748, 4
    %v2750 = vrot.slane %v1636, 5
    %v2751 = vsel %vm2586, %v2749, %v2750
    %v2752 = vrot.slane %v2750, 4
    %v2753 = vrot.slane %v1676, 5
    %v2754 = vsel %vm2586, %v2752, %v2753
    %v2755 = vrot.slane %v2480, 5
    %v2756 = vrot.slane %v2755, 4
    %v2757 = vrot.slane %v1638, 5
    %v2758 = vsel %vm2586, %v2756, %v2757
    %v2759 = vrot.slane %v2757, 4
    %v2760 = vrot.slane %v1677, 5
    %v2761 = vsel %vm2586, %v2759, %v2760
    %v2762 = vrot.slane %v2481, 5
    %v2763 = vrot.slane %v2762, 4
    %v2764 = vrot.slane %v1640, 5
    %v2765 = vsel %vm2586, %v2763, %v2764
    %v2766 = vrot.slane %v2764, 4
    %v2767 = vrot.slane %v1678, 5
    %v2768 = vsel %vm2586, %v2766, %v2767
    %v2769 = vrot.slane %v2482, 5
    %v2770 = vrot.slane %v2769, 4
    %v2771 = vrot.slane %v1642, 5
    %v2772 = vsel %vm2586, %v2770, %v2771
    %v2773 = vrot.slane %v2771, 4
    %v2774 = vrot.slane %v1679, 5
    %v2775 = vsel %vm2586, %v2773, %v2774
    %v2776 = vrot.slane %v2483, 5
    %v2777 = vrot.slane %v2776, 4
    %v2778 = vrot.slane %v1644, 5
    %v2779 = vsel %vm2586, %v2777, %v2778
    %v2780 = vrot.slane %v2778, 4
    %v2781 = vrot.slane %v1680, 5
    %v2782 = vsel %vm2586, %v2780, %v2781
    %v2783 = vrot.slane %v2484, 5
    %v2784 = vrot.slane %v2783, 4
    %v2785 = vrot.slane %v1646, 5
    %v2786 = vsel %vm2586, %v2784, %v2785
    %v2787 = vrot.slane %v2785, 4
    %v2788 = vrot.slane %v1681, 5
    %v2789 = vsel %vm2586, %v2787, %v2788
    %v2790 = vrot.slane %v2485, 5
    %v2791 = vrot.slane %v2790, 4
    %v2792 = vrot.slane %v1648, 5
    %v2793 = vsel %vm2586, %v2791, %v2792
    %v2794 = vrot.slane %v2792, 4
    %v2795 = vrot.slane %v1682, 5
    %v2796 = vsel %vm2586, %v2794, %v2795
    %v2797 = vrot.slane %v2486, 5
    %v2798 = vrot.slane %v2797, 4
    %v2799 = vrot.slane %v1650, 5
    %v2800 = vsel %vm2586, %v2798, %v2799
    %v2801 = vrot.slane %v2799, 4
    %v2802 = vrot.slane %v1683, 5
    %v2803 = vsel %vm2586, %v2801, %v2802
    %v2804 = vrot.slane %v2487, 5
    %v2805 = vrot.slane %v2804, 4
    %v2806 = vrot.slane %v1652, 5
    %v2807 = vsel %vm2586, %v2805, %v2806
    %v2808 = vrot.slane %v2806, 4
    %v2809 = vrot.slane %v1684, 5
    %v2810 = vsel %vm2586, %v2808, %v2809
    %v2811 = vld [vmem:[%s1362] sm:$0xf]
    %v2812 = vld [vmem:[%s1362 + $0x4] sm:$0xf]
    %v2813 = vld [vmem:[%s1362 + $0xc] sm:$0xf]
    %v2814 = vld [vmem:[%s1362 + $0x10] sm:$0xf]
    %v2815 = vld [vmem:[%s1362 + $0x18] sm:$0xf]
    %v2816 = vld [vmem:[%s1362 + $0x1c] sm:$0xf]
    %v2817 = vld [vmem:[%s1362 + $0x24] sm:$0xf]
    %v2818 = vld [vmem:[%s1362 + $0x28] sm:$0xf]
    %v2819 = vld [vmem:[%s1362 + $0x30] sm:$0xf]
    %v2820 = vld [vmem:[%s1362 + $0x34] sm:$0xf]
    %v2821 = vld [vmem:[%s1362 + $0x3c] sm:$0xf]
    %v2822 = vld [vmem:[%s1362 + $0x40] sm:$0xf]
    %v2823 = vld [vmem:[%s1362 + $0x48] sm:$0xf]
    %v2824 = vld [vmem:[%s1362 + $0x4c] sm:$0xf]
    %v2825 = vld [vmem:[%s1362 + $0x54] sm:$0xf]
    %v2826 = vld [vmem:[%s1362 + $0x58] sm:$0xf]
    %v2827 = vld [vmem:[%s1362 + $0x60] sm:$0xf]
    %v2828 = vld [vmem:[%s1362 + $0x64] sm:$0xf]
    %v2829 = vld [vmem:[%s1362 + $0x6c] sm:$0xf]
    %v2830 = vld [vmem:[%s1362 + $0x70] sm:$0xf]
    %v2831 = vld [vmem:[%s1362 + $0x78] sm:$0xf]
    %v2832 = vld [vmem:[%s1362 + $0x7c] sm:$0xf]
    %v2833 = vld [vmem:[%s1362 + $0x84] sm:$0xf]
    %v2834 = vld [vmem:[%s1362 + $0x88] sm:$0xf]
    %v2835 = vld [vmem:[%s1362 + $0x90] sm:$0xf]
    %v2836 = vld [vmem:[%s1362 + $0x94] sm:$0xf]
    %v2837 = vld [vmem:[%s1362 + $0x9c] sm:$0xf]
    %v2838 = vld [vmem:[%s1362 + $0xa0] sm:$0xf]
    %v2839 = vld [vmem:[%s1362 + $0xa8] sm:$0xf]
    %v2840 = vld [vmem:[%s1362 + $0xac] sm:$0xf]
    %v2841 = vld [vmem:[%s1362 + $0xb4] sm:$0xf]
    %v2842 = vld [vmem:[%s1362 + $0xb8] sm:$0xf]
    %v2843 = vld [vmem:[%s1362 + $0xd8] sm:$0xf]
    %v2844 = vld [vmem:[%s1362 + $0xdc] sm:$0xf]
    %v2845 = vld [vmem:[%s1362 + $0xe4] sm:$0xf]
    %v2846 = vld [vmem:[%s1362 + $0xe8] sm:$0xf]
    %v2847 = vld [vmem:[%s1362 + $0xf0] sm:$0xf]
    %v2848 = vld [vmem:[%s1362 + $0xf4] sm:$0xf]
    %v2849 = vld [vmem:[%s1362 + $0xfc] sm:$0xf]
    %v2850 = vld [vmem:[%s1362 + $0x100] sm:$0xf]
    %v2851 = vld [vmem:[%s1362 + $0x108] sm:$0xf]
    %v2852 = vld [vmem:[%s1362 + $0x10c] sm:$0xf]
    %v2853 = vld [vmem:[%s1362 + $0x114] sm:$0xf]
    %v2854 = vld [vmem:[%s1362 + $0x118] sm:$0xf]
    %v2855 = vld [vmem:[%s1362 + $0x120] sm:$0xf]
    %v2856 = vld [vmem:[%s1362 + $0x124] sm:$0xf]
    %v2857 = vld [vmem:[%s1362 + $0x12c] sm:$0xf]
    %v2858 = vld [vmem:[%s1362 + $0x130] sm:$0xf]
    %v2859 = vld [vmem:[%s1362 + $0x138] sm:$0xf]
    %v2860 = vld [vmem:[%s1362 + $0x13c] sm:$0xf]
    %v2861 = vld [vmem:[%s1362 + $0x144] sm:$0xf]
    %v2862 = vld [vmem:[%s1362 + $0x148] sm:$0xf]
    %v2863 = vld [vmem:[%s1362 + $0x150] sm:$0xf]
    %v2864 = vld [vmem:[%s1362 + $0x154] sm:$0xf]
    %v2865 = vld [vmem:[%s1362 + $0x15c] sm:$0xf]
    %v2866 = vld [vmem:[%s1362 + $0x160] sm:$0xf]
    %v2867 = vld [vmem:[%s1362 + $0x168] sm:$0xf]
    %v2868 = vld [vmem:[%s1362 + $0x16c] sm:$0xf]
    %v2869 = vld [vmem:[%s1362 + $0x174] sm:$0xf]
    %v2870 = vld [vmem:[%s1362 + $0x178] sm:$0xf]
    %v2871 = vld [vmem:[%s1362 + $0x180] sm:$0xf]
    %v2872 = vld [vmem:[%s1362 + $0x184] sm:$0xf]
    %v2873 = vld [vmem:[%s1362 + $0x18c] sm:$0xf]
    %v2874 = vld [vmem:[%s1362 + $0x190] sm:$0xf]
    %v2875 = vld [vmem:[%s1362 + $0x8] sm:$0x1]
    %v2876 = vld [vmem:[%s1362 + $0x14] sm:$0x1]
    %v2877 = vld [vmem:[%s1362 + $0x20] sm:$0x1]
    %v2878 = vld [vmem:[%s1362 + $0x2c] sm:$0x1]
    %v2879 = vld [vmem:[%s1362 + $0x38] sm:$0x1]
    %v2880 = vld [vmem:[%s1362 + $0x44] sm:$0x1]
    %v2881 = vld [vmem:[%s1362 + $0x50] sm:$0x1]
    %v2882 = vld [vmem:[%s1362 + $0x5c] sm:$0x1]
    %v2883 = vld [vmem:[%s1362 + $0x68] sm:$0x1]
    %v2884 = vld [vmem:[%s1362 + $0x74] sm:$0x1]
    %v2885 = vld [vmem:[%s1362 + $0x80] sm:$0x1]
    %v2886 = vld [vmem:[%s1362 + $0x8c] sm:$0x1]
    %v2887 = vld [vmem:[%s1362 + $0x98] sm:$0x1]
    %v2888 = vld [vmem:[%s1362 + $0xa4] sm:$0x1]
    %v2889 = vld [vmem:[%s1362 + $0xb0] sm:$0x1]
    %v2890 = vld [vmem:[%s1362 + $0xbc] sm:$0x1]
    %v2891 = vld [vmem:[%s1362 + $0xe0] sm:$0x1]
    %v2892 = vld [vmem:[%s1362 + $0xec] sm:$0x1]
    %v2893 = vld [vmem:[%s1362 + $0xf8] sm:$0x1]
    %v2894 = vld [vmem:[%s1362 + $0x104] sm:$0x1]
    %v2895 = vld [vmem:[%s1362 + $0x110] sm:$0x1]
    %v2896 = vld [vmem:[%s1362 + $0x11c] sm:$0x1]
    %v2897 = vld [vmem:[%s1362 + $0x128] sm:$0x1]
    %v2898 = vld [vmem:[%s1362 + $0x134] sm:$0x1]
    %v2899 = vld [vmem:[%s1362 + $0x140] sm:$0x1]
    %v2900 = vld [vmem:[%s1362 + $0x14c] sm:$0x1]
    %v2901 = vld [vmem:[%s1362 + $0x158] sm:$0x1]
    %v2902 = vld [vmem:[%s1362 + $0x164] sm:$0x1]
    %v2903 = vld [vmem:[%s1362 + $0x170] sm:$0x1]
    %v2904 = vld [vmem:[%s1362 + $0x17c] sm:$0x1]
    %v2905 = vld [vmem:[%s1362 + $0x188] sm:$0x1]
    %v2906 = vld [vmem:[%s1362 + $0x194] sm:$0x1]
    %v2908 = vshrl.u32 %v2811, 16
    %v2910 = vrot.slane %v2908, 4
    %v2911 = vshll.u32 %v2811, 16
    %v2913 = vrot.slane %v2911, 5
    %v2914 = vor.u32 %v2910, %v2913
    %v2915 = vrot.slane %v2914, 4
    %v2917 = vshll.u32 %v2812, 16
    %v2919 = vrot.slane %v2917, 5
    %v2920 = vsel %vm1687, %v2915, %v2919
    %v2921 = vshrl.u32 %v2812, 16
    %v2923 = vrot.slane %v2921, 4
    %v2924 = vor.u32 %v2923, %v2919
    %v2925 = vrot.slane %v2924, 4
    %v2927 = vshll.u32 %v2875, 16
    %v2929 = vrot.slane %v2927, 5
    %v2930 = vsel %vm1687, %v2925, %v2929
    %v2932 = vshrl.u32 %v2813, 16
    %v2934 = vrot.slane %v2932, 4
    %v2935 = vshll.u32 %v2813, 16
    %v2937 = vrot.slane %v2935, 5
    %v2938 = vor.u32 %v2934, %v2937
    %v2939 = vrot.slane %v2938, 4
    %v2941 = vshll.u32 %v2814, 16
    %v2943 = vrot.slane %v2941, 5
    %v2944 = vsel %vm1687, %v2939, %v2943
    %v2945 = vshrl.u32 %v2814, 16
    %v2947 = vrot.slane %v2945, 4
    %v2948 = vor.u32 %v2947, %v2943
    %v2949 = vrot.slane %v2948, 4
    %v2951 = vshll.u32 %v2876, 16
    %v2953 = vrot.slane %v2951, 5
    %v2954 = vsel %vm1687, %v2949, %v2953
    %v2956 = vshrl.u32 %v2815, 16
    %v2958 = vrot.slane %v2956, 4
    %v2959 = vshll.u32 %v2815, 16
    %v2961 = vrot.slane %v2959, 5
    %v2962 = vor.u32 %v2958, %v2961
    %v2963 = vrot.slane %v2962, 4
    %v2965 = vshll.u32 %v2816, 16
    %v2967 = vrot.slane %v2965, 5
    %v2968 = vsel %vm1687, %v2963, %v2967
    %v2969 = vshrl.u32 %v2816, 16
    %v2971 = vrot.slane %v2969, 4
    %v2972 = vor.u32 %v2971, %v2967
    %v2973 = vrot.slane %v2972, 4
    %v2975 = vshll.u32 %v2877, 16
    %v2977 = vrot.slane %v2975, 5
    %v2978 = vsel %vm1687, %v2973, %v2977
    %v2980 = vshrl.u32 %v2817, 16
    %v2982 = vrot.slane %v2980, 4
    %v2983 = vshll.u32 %v2817, 16
    %v2985 = vrot.slane %v2983, 5
    %v2986 = vor.u32 %v2982, %v2985
    %v2987 = vrot.slane %v2986, 4
    %v2989 = vshll.u32 %v2818, 16
    %v2991 = vrot.slane %v2989, 5
    %v2992 = vsel %vm1687, %v2987, %v2991
    %v2993 = vshrl.u32 %v2818, 16
    %v2995 = vrot.slane %v2993, 4
    %v2996 = vor.u32 %v2995, %v2991
    %v2997 = vrot.slane %v2996, 4
    %v2999 = vshll.u32 %v2878, 16
    %v3001 = vrot.slane %v2999, 5
    %v3002 = vsel %vm1687, %v2997, %v3001
    %v3004 = vshrl.u32 %v2819, 16
    %v3006 = vrot.slane %v3004, 4
    %v3007 = vshll.u32 %v2819, 16
    %v3009 = vrot.slane %v3007, 5
    %v3010 = vor.u32 %v3006, %v3009
    %v3011 = vrot.slane %v3010, 4
    %v3013 = vshll.u32 %v2820, 16
    %v3015 = vrot.slane %v3013, 5
    %v3016 = vsel %vm1687, %v3011, %v3015
    %v3017 = vshrl.u32 %v2820, 16
    %v3019 = vrot.slane %v3017, 4
    %v3020 = vor.u32 %v3019, %v3015
    %v3021 = vrot.slane %v3020, 4
    %v3023 = vshll.u32 %v2879, 16
    %v3025 = vrot.slane %v3023, 5
    %v3026 = vsel %vm1687, %v3021, %v3025
    %v3028 = vshrl.u32 %v2821, 16
    %v3030 = vrot.slane %v3028, 4
    %v3031 = vshll.u32 %v2821, 16
    %v3033 = vrot.slane %v3031, 5
    %v3034 = vor.u32 %v3030, %v3033
    %v3035 = vrot.slane %v3034, 4
    %v3037 = vshll.u32 %v2822, 16
    %v3039 = vrot.slane %v3037, 5
    %v3040 = vsel %vm1687, %v3035, %v3039
    %v3041 = vshrl.u32 %v2822, 16
    %v3043 = vrot.slane %v3041, 4
    %v3044 = vor.u32 %v3043, %v3039
    %v3045 = vrot.slane %v3044, 4
    %v3047 = vshll.u32 %v2880, 16
    %v3049 = vrot.slane %v3047, 5
    %v3050 = vsel %vm1687, %v3045, %v3049
    %v3052 = vshrl.u32 %v2823, 16
    %v3054 = vrot.slane %v3052, 4
    %v3055 = vshll.u32 %v2823, 16
    %v3057 = vrot.slane %v3055, 5
    %v3058 = vor.u32 %v3054, %v3057
    %v3059 = vrot.slane %v3058, 4
    %v3061 = vshll.u32 %v2824, 16
    %v3063 = vrot.slane %v3061, 5
    %v3064 = vsel %vm1687, %v3059, %v3063
    %v3065 = vshrl.u32 %v2824, 16
    %v3067 = vrot.slane %v3065, 4
    %v3068 = vor.u32 %v3067, %v3063
    %v3069 = vrot.slane %v3068, 4
    %v3071 = vshll.u32 %v2881, 16
    %v3073 = vrot.slane %v3071, 5
    %v3074 = vsel %vm1687, %v3069, %v3073
    %v3076 = vshrl.u32 %v2825, 16
    %v3078 = vrot.slane %v3076, 4
    %v3079 = vshll.u32 %v2825, 16
    %v3081 = vrot.slane %v3079, 5
    %v3082 = vor.u32 %v3078, %v3081
    %v3083 = vrot.slane %v3082, 4
    %v3085 = vshll.u32 %v2826, 16
    %v3087 = vrot.slane %v3085, 5
    %v3088 = vsel %vm1687, %v3083, %v3087
    %v3089 = vshrl.u32 %v2826, 16
    %v3091 = vrot.slane %v3089, 4
    %v3092 = vor.u32 %v3091, %v3087
    %v3093 = vrot.slane %v3092, 4
    %v3095 = vshll.u32 %v2882, 16
    %v3097 = vrot.slane %v3095, 5
    %v3098 = vsel %vm1687, %v3093, %v3097
    %v3100 = vshrl.u32 %v2827, 16
    %v3102 = vrot.slane %v3100, 4
    %v3103 = vshll.u32 %v2827, 16
    %v3105 = vrot.slane %v3103, 5
    %v3106 = vor.u32 %v3102, %v3105
    %v3107 = vrot.slane %v3106, 4
    %v3109 = vshll.u32 %v2828, 16
    %v3111 = vrot.slane %v3109, 5
    %v3112 = vsel %vm1687, %v3107, %v3111
    %v3113 = vshrl.u32 %v2828, 16
    %v3115 = vrot.slane %v3113, 4
    %v3116 = vor.u32 %v3115, %v3111
    %v3117 = vrot.slane %v3116, 4
    %v3119 = vshll.u32 %v2883, 16
    %v3121 = vrot.slane %v3119, 5
    %v3122 = vsel %vm1687, %v3117, %v3121
    %v3124 = vshrl.u32 %v2829, 16
    %v3126 = vrot.slane %v3124, 4
    %v3127 = vshll.u32 %v2829, 16
    %v3129 = vrot.slane %v3127, 5
    %v3130 = vor.u32 %v3126, %v3129
    %v3131 = vrot.slane %v3130, 4
    %v3133 = vshll.u32 %v2830, 16
    %v3135 = vrot.slane %v3133, 5
    %v3136 = vsel %vm1687, %v3131, %v3135
    %v3137 = vshrl.u32 %v2830, 16
    %v3139 = vrot.slane %v3137, 4
    %v3140 = vor.u32 %v3139, %v3135
    %v3141 = vrot.slane %v3140, 4
    %v3143 = vshll.u32 %v2884, 16
    %v3145 = vrot.slane %v3143, 5
    %v3146 = vsel %vm1687, %v3141, %v3145
    %v3148 = vshrl.u32 %v2831, 16
    %v3150 = vrot.slane %v3148, 4
    %v3151 = vshll.u32 %v2831, 16
    %v3153 = vrot.slane %v3151, 5
    %v3154 = vor.u32 %v3150, %v3153
    %v3155 = vrot.slane %v3154, 4
    %v3157 = vshll.u32 %v2832, 16
    %v3159 = vrot.slane %v3157, 5
    %v3160 = vsel %vm1687, %v3155, %v3159
    %v3161 = vshrl.u32 %v2832, 16
    %v3163 = vrot.slane %v3161, 4
    %v3164 = vor.u32 %v3163, %v3159
    %v3165 = vrot.slane %v3164, 4
    %v3167 = vshll.u32 %v2885, 16
    %v3169 = vrot.slane %v3167, 5
    %v3170 = vsel %vm1687, %v3165, %v3169
    %v3172 = vshrl.u32 %v2833, 16
    %v3174 = vrot.slane %v3172, 4
    %v3175 = vshll.u32 %v2833, 16
    %v3177 = vrot.slane %v3175, 5
    %v3178 = vor.u32 %v3174, %v3177
    %v3179 = vrot.slane %v3178, 4
    %v3181 = vshll.u32 %v2834, 16
    %v3183 = vrot.slane %v3181, 5
    %v3184 = vsel %vm1687, %v3179, %v3183
    %v3185 = vshrl.u32 %v2834, 16
    %v3187 = vrot.slane %v3185, 4
    %v3188 = vor.u32 %v3187, %v3183
    %v3189 = vrot.slane %v3188, 4
    %v3191 = vshll.u32 %v2886, 16
    %v3193 = vrot.slane %v3191, 5
    %v3194 = vsel %vm1687, %v3189, %v3193
    %v3196 = vshrl.u32 %v2835, 16
    %v3198 = vrot.slane %v3196, 4
    %v3199 = vshll.u32 %v2835, 16
    %v3201 = vrot.slane %v3199, 5
    %v3202 = vor.u32 %v3198, %v3201
    %v3203 = vrot.slane %v3202, 4
    %v3205 = vshll.u32 %v2836, 16
    %v3207 = vrot.slane %v3205, 5
    %v3208 = vsel %vm1687, %v3203, %v3207
    %v3209 = vshrl.u32 %v2836, 16
    %v3211 = vrot.slane %v3209, 4
    %v3212 = vor.u32 %v3211, %v3207
    %v3213 = vrot.slane %v3212, 4
    %v3215 = vshll.u32 %v2887, 16
    %v3217 = vrot.slane %v3215, 5
    %v3218 = vsel %vm1687, %v3213, %v3217
    %v3220 = vshrl.u32 %v2837, 16
    %v3222 = vrot.slane %v3220, 4
    %v3223 = vshll.u32 %v2837, 16
    %v3225 = vrot.slane %v3223, 5
    %v3226 = vor.u32 %v3222, %v3225
    %v3227 = vrot.slane %v3226, 4
    %v3229 = vshll.u32 %v2838, 16
    %v3231 = vrot.slane %v3229, 5
    %v3232 = vsel %vm1687, %v3227, %v3231
    %v3233 = vshrl.u32 %v2838, 16
    %v3235 = vrot.slane %v3233, 4
    %v3236 = vor.u32 %v3235, %v3231
    %v3237 = vrot.slane %v3236, 4
    %v3239 = vshll.u32 %v2888, 16
    %v3241 = vrot.slane %v3239, 5
    %v3242 = vsel %vm1687, %v3237, %v3241
    %v3244 = vshrl.u32 %v2839, 16
    %v3246 = vrot.slane %v3244, 4
    %v3247 = vshll.u32 %v2839, 16
    %v3249 = vrot.slane %v3247, 5
    %v3250 = vor.u32 %v3246, %v3249
    %v3251 = vrot.slane %v3250, 4
    %v3253 = vshll.u32 %v2840, 16
    %v3255 = vrot.slane %v3253, 5
    %v3256 = vsel %vm1687, %v3251, %v3255
    %v3257 = vshrl.u32 %v2840, 16
    %v3259 = vrot.slane %v3257, 4
    %v3260 = vor.u32 %v3259, %v3255
    %v3261 = vrot.slane %v3260, 4
    %v3263 = vshll.u32 %v2889, 16
    %v3265 = vrot.slane %v3263, 5
    %v3266 = vsel %vm1687, %v3261, %v3265
    %v3268 = vshrl.u32 %v2841, 16
    %v3270 = vrot.slane %v3268, 4
    %v3271 = vshll.u32 %v2841, 16
    %v3273 = vrot.slane %v3271, 5
    %v3274 = vor.u32 %v3270, %v3273
    %v3275 = vrot.slane %v3274, 4
    %v3277 = vshll.u32 %v2842, 16
    %v3279 = vrot.slane %v3277, 5
    %v3280 = vsel %vm1687, %v3275, %v3279
    %v3281 = vshrl.u32 %v2842, 16
    %v3283 = vrot.slane %v3281, 4
    %v3284 = vor.u32 %v3283, %v3279
    %v3285 = vrot.slane %v3284, 4
    %v3287 = vshll.u32 %v2890, 16
    %v3289 = vrot.slane %v3287, 5
    %v3290 = vsel %vm1687, %v3285, %v3289
    %v3292 = vshrl.u32 %v2843, 16
    %v3294 = vrot.slane %v3292, 4
    %v3295 = vshll.u32 %v2843, 16
    %v3297 = vrot.slane %v3295, 5
    %v3298 = vor.u32 %v3294, %v3297
    %v3299 = vrot.slane %v3298, 4
    %v3301 = vshll.u32 %v2844, 16
    %v3303 = vrot.slane %v3301, 5
    %v3304 = vsel %vm1687, %v3299, %v3303
    %v3305 = vshrl.u32 %v2844, 16
    %v3307 = vrot.slane %v3305, 4
    %v3308 = vor.u32 %v3307, %v3303
    %v3309 = vrot.slane %v3308, 4
    %v3311 = vshll.u32 %v2891, 16
    %v3313 = vrot.slane %v3311, 5
    %v3314 = vsel %vm1687, %v3309, %v3313
    %v3316 = vshrl.u32 %v2845, 16
    %v3318 = vrot.slane %v3316, 4
    %v3319 = vshll.u32 %v2845, 16
    %v3321 = vrot.slane %v3319, 5
    %v3322 = vor.u32 %v3318, %v3321
    %v3323 = vrot.slane %v3322, 4
    %v3325 = vshll.u32 %v2846, 16
    %v3327 = vrot.slane %v3325, 5
    %v3328 = vsel %vm1687, %v3323, %v3327
    %v3329 = vshrl.u32 %v2846, 16
    %v3331 = vrot.slane %v3329, 4
    %v3332 = vor.u32 %v3331, %v3327
    %v3333 = vrot.slane %v3332, 4
    %v3335 = vshll.u32 %v2892, 16
    %v3337 = vrot.slane %v3335, 5
    %v3338 = vsel %vm1687, %v3333, %v3337
    %v3340 = vshrl.u32 %v2847, 16
    %v3342 = vrot.slane %v3340, 4
    %v3343 = vshll.u32 %v2847, 16
    %v3345 = vrot.slane %v3343, 5
    %v3346 = vor.u32 %v3342, %v3345
    %v3347 = vrot.slane %v3346, 4
    %v3349 = vshll.u32 %v2848, 16
    %v3351 = vrot.slane %v3349, 5
    %v3352 = vsel %vm1687, %v3347, %v3351
    %v3353 = vshrl.u32 %v2848, 16
    %v3355 = vrot.slane %v3353, 4
    %v3356 = vor.u32 %v3355, %v3351
    %v3357 = vrot.slane %v3356, 4
    %v3359 = vshll.u32 %v2893, 16
    %v3361 = vrot.slane %v3359, 5
    %v3362 = vsel %vm1687, %v3357, %v3361
    %v3364 = vshrl.u32 %v2849, 16
    %v3366 = vrot.slane %v3364, 4
    %v3367 = vshll.u32 %v2849, 16
    %v3369 = vrot.slane %v3367, 5
    %v3370 = vor.u32 %v3366, %v3369
    %v3371 = vrot.slane %v3370, 4
    %v3373 = vshll.u32 %v2850, 16
    %v3375 = vrot.slane %v3373, 5
    %v3376 = vsel %vm1687, %v3371, %v3375
    %v3377 = vshrl.u32 %v2850, 16
    %v3379 = vrot.slane %v3377, 4
    %v3380 = vor.u32 %v3379, %v3375
    %v3381 = vrot.slane %v3380, 4
    %v3383 = vshll.u32 %v2894, 16
    %v3385 = vrot.slane %v3383, 5
    %v3386 = vsel %vm1687, %v3381, %v3385
    %v3388 = vshrl.u32 %v2851, 16
    %v3390 = vrot.slane %v3388, 4
    %v3391 = vshll.u32 %v2851, 16
    %v3393 = vrot.slane %v3391, 5
    %v3394 = vor.u32 %v3390, %v3393
    %v3395 = vrot.slane %v3394, 4
    %v3397 = vshll.u32 %v2852, 16
    %v3399 = vrot.slane %v3397, 5
    %v3400 = vsel %vm1687, %v3395, %v3399
    %v3401 = vshrl.u32 %v2852, 16
    %v3403 = vrot.slane %v3401, 4
    %v3404 = vor.u32 %v3403, %v3399
    %v3405 = vrot.slane %v3404, 4
    %v3407 = vshll.u32 %v2895, 16
    %v3409 = vrot.slane %v3407, 5
    %v3410 = vsel %vm1687, %v3405, %v3409
    %v3412 = vshrl.u32 %v2853, 16
    %v3414 = vrot.slane %v3412, 4
    %v3415 = vshll.u32 %v2853, 16
    %v3417 = vrot.slane %v3415, 5
    %v3418 = vor.u32 %v3414, %v3417
    %v3419 = vrot.slane %v3418, 4
    %v3421 = vshll.u32 %v2854, 16
    %v3423 = vrot.slane %v3421, 5
    %v3424 = vsel %vm1687, %v3419, %v3423
    %v3425 = vshrl.u32 %v2854, 16
    %v3427 = vrot.slane %v3425, 4
    %v3428 = vor.u32 %v3427, %v3423
    %v3429 = vrot.slane %v3428, 4
    %v3431 = vshll.u32 %v2896, 16
    %v3433 = vrot.slane %v3431, 5
    %v3434 = vsel %vm1687, %v3429, %v3433
    %v3436 = vshrl.u32 %v2855, 16
    %v3438 = vrot.slane %v3436, 4
    %v3439 = vshll.u32 %v2855, 16
    %v3441 = vrot.slane %v3439, 5
    %v3442 = vor.u32 %v3438, %v3441
    %v3443 = vrot.slane %v3442, 4
    %v3445 = vshll.u32 %v2856, 16
    %v3447 = vrot.slane %v3445, 5
    %v3448 = vsel %vm1687, %v3443, %v3447
    %v3449 = vshrl.u32 %v2856, 16
    %v3451 = vrot.slane %v3449, 4
    %v3452 = vor.u32 %v3451, %v3447
    %v3453 = vrot.slane %v3452, 4
    %v3455 = vshll.u32 %v2897, 16
    %v3457 = vrot.slane %v3455, 5
    %v3458 = vsel %vm1687, %v3453, %v3457
    %v3460 = vshrl.u32 %v2857, 16
    %v3462 = vrot.slane %v3460, 4
    %v3463 = vshll.u32 %v2857, 16
    %v3465 = vrot.slane %v3463, 5
    %v3466 = vor.u32 %v3462, %v3465
    %v3467 = vrot.slane %v3466, 4
    %v3469 = vshll.u32 %v2858, 16
    %v3471 = vrot.slane %v3469, 5
    %v3472 = vsel %vm1687, %v3467, %v3471
    %v3473 = vshrl.u32 %v2858, 16
    %v3475 = vrot.slane %v3473, 4
    %v3476 = vor.u32 %v3475, %v3471
    %v3477 = vrot.slane %v3476, 4
    %v3479 = vshll.u32 %v2898, 16
    %v3481 = vrot.slane %v3479, 5
    %v3482 = vsel %vm1687, %v3477, %v3481
    %v3484 = vshrl.u32 %v2859, 16
    %v3486 = vrot.slane %v3484, 4
    %v3487 = vshll.u32 %v2859, 16
    %v3489 = vrot.slane %v3487, 5
    %v3490 = vor.u32 %v3486, %v3489
    %v3491 = vrot.slane %v3490, 4
    %v3493 = vshll.u32 %v2860, 16
    %v3495 = vrot.slane %v3493, 5
    %v3496 = vsel %vm1687, %v3491, %v3495
    %v3497 = vshrl.u32 %v2860, 16
    %v3499 = vrot.slane %v3497, 4
    %v3500 = vor.u32 %v3499, %v3495
    %v3501 = vrot.slane %v3500, 4
    %v3503 = vshll.u32 %v2899, 16
    %v3505 = vrot.slane %v3503, 5
    %v3506 = vsel %vm1687, %v3501, %v3505
    %v3508 = vshrl.u32 %v2861, 16
    %v3510 = vrot.slane %v3508, 4
    %v3511 = vshll.u32 %v2861, 16
    %v3513 = vrot.slane %v3511, 5
    %v3514 = vor.u32 %v3510, %v3513
    %v3515 = vrot.slane %v3514, 4
    %v3517 = vshll.u32 %v2862, 16
    %v3519 = vrot.slane %v3517, 5
    %v3520 = vsel %vm1687, %v3515, %v3519
    %v3521 = vshrl.u32 %v2862, 16
    %v3523 = vrot.slane %v3521, 4
    %v3524 = vor.u32 %v3523, %v3519
    %v3525 = vrot.slane %v3524, 4
    %v3527 = vshll.u32 %v2900, 16
    %v3529 = vrot.slane %v3527, 5
    %v3530 = vsel %vm1687, %v3525, %v3529
    %v3532 = vshrl.u32 %v2863, 16
    %v3534 = vrot.slane %v3532, 4
    %v3535 = vshll.u32 %v2863, 16
    %v3537 = vrot.slane %v3535, 5
    %v3538 = vor.u32 %v3534, %v3537
    %v3539 = vrot.slane %v3538, 4
    %v3541 = vshll.u32 %v2864, 16
    %v3543 = vrot.slane %v3541, 5
    %v3544 = vsel %vm1687, %v3539, %v3543
    %v3545 = vshrl.u32 %v2864, 16
    %v3547 = vrot.slane %v3545, 4
    %v3548 = vor.u32 %v3547, %v3543
    %v3549 = vrot.slane %v3548, 4
    %v3551 = vshll.u32 %v2901, 16
    %v3553 = vrot.slane %v3551, 5
    %v3554 = vsel %vm1687, %v3549, %v3553
    %v3556 = vshrl.u32 %v2865, 16
    %v3558 = vrot.slane %v3556, 4
    %v3559 = vshll.u32 %v2865, 16
    %v3561 = vrot.slane %v3559, 5
    %v3562 = vor.u32 %v3558, %v3561
    %v3563 = vrot.slane %v3562, 4
    %v3565 = vshll.u32 %v2866, 16
    %v3567 = vrot.slane %v3565, 5
    %v3568 = vsel %vm1687, %v3563, %v3567
    %v3569 = vshrl.u32 %v2866, 16
    %v3571 = vrot.slane %v3569, 4
    %v3572 = vor.u32 %v3571, %v3567
    %v3573 = vrot.slane %v3572, 4
    %v3575 = vshll.u32 %v2902, 16
    %v3577 = vrot.slane %v3575, 5
    %v3578 = vsel %vm1687, %v3573, %v3577
    %v3580 = vshrl.u32 %v2867, 16
    %v3582 = vrot.slane %v3580, 4
    %v3583 = vshll.u32 %v2867, 16
    %v3585 = vrot.slane %v3583, 5
    %v3586 = vor.u32 %v3582, %v3585
    %v3587 = vrot.slane %v3586, 4
    %v3589 = vshll.u32 %v2868, 16
    %v3591 = vrot.slane %v3589, 5
    %v3592 = vsel %vm1687, %v3587, %v3591
    %v3593 = vshrl.u32 %v2868, 16
    %v3595 = vrot.slane %v3593, 4
    %v3596 = vor.u32 %v3595, %v3591
    %v3597 = vrot.slane %v3596, 4
    %v3599 = vshll.u32 %v2903, 16
    %v3601 = vrot.slane %v3599, 5
    %v3602 = vsel %vm1687, %v3597, %v3601
    %v3604 = vshrl.u32 %v2869, 16
    %v3606 = vrot.slane %v3604, 4
    %v3607 = vshll.u32 %v2869, 16
    %v3609 = vrot.slane %v3607, 5
    %v3610 = vor.u32 %v3606, %v3609
    %v3611 = vrot.slane %v3610, 4
    %v3613 = vshll.u32 %v2870, 16
    %v3615 = vrot.slane %v3613, 5
    %v3616 = vsel %vm1687, %v3611, %v3615
    %v3617 = vshrl.u32 %v2870, 16
    %v3619 = vrot.slane %v3617, 4
    %v3620 = vor.u32 %v3619, %v3615
    %v3621 = vrot.slane %v3620, 4
    %v3623 = vshll.u32 %v2904, 16
    %v3625 = vrot.slane %v3623, 5
    %v3626 = vsel %vm1687, %v3621, %v3625
    %v3628 = vshrl.u32 %v2871, 16
    %v3630 = vrot.slane %v3628, 4
    %v3631 = vshll.u32 %v2871, 16
    %v3633 = vrot.slane %v3631, 5
    %v3634 = vor.u32 %v3630, %v3633
    %v3635 = vrot.slane %v3634, 4
    %v3637 = vshll.u32 %v2872, 16
    %v3639 = vrot.slane %v3637, 5
    %v3640 = vsel %vm1687, %v3635, %v3639
    %v3641 = vshrl.u32 %v2872, 16
    %v3643 = vrot.slane %v3641, 4
    %v3644 = vor.u32 %v3643, %v3639
    %v3645 = vrot.slane %v3644, 4
    %v3647 = vshll.u32 %v2905, 16
    %v3649 = vrot.slane %v3647, 5
    %v3650 = vsel %vm1687, %v3645, %v3649
    %v3652 = vshrl.u32 %v2873, 16
    %v3654 = vrot.slane %v3652, 4
    %v3655 = vshll.u32 %v2873, 16
    %v3657 = vrot.slane %v3655, 5
    %v3658 = vor.u32 %v3654, %v3657
    %v3659 = vrot.slane %v3658, 4
    %v3661 = vshll.u32 %v2874, 16
    %v3663 = vrot.slane %v3661, 5
    %v3664 = vsel %vm1687, %v3659, %v3663
    %v3665 = vshrl.u32 %v2874, 16
    %v3667 = vrot.slane %v3665, 4
    %v3668 = vor.u32 %v3667, %v3663
    %v3669 = vrot.slane %v3668, 4
    %v3671 = vshll.u32 %v2906, 16
    %v3673 = vrot.slane %v3671, 5
    %v3674 = vsel %vm1687, %v3669, %v3673
    %v3675 = vld [vmem:[%s1362] sm:$0xe]
    %v3676 = vld [vmem:[%s1362 + $0xc] sm:$0xe]
    %v3677 = vld [vmem:[%s1362 + $0x18] sm:$0xe]
    %v3678 = vld [vmem:[%s1362 + $0x24] sm:$0xe]
    %v3679 = vld [vmem:[%s1362 + $0x30] sm:$0xe]
    %v3680 = vld [vmem:[%s1362 + $0x3c] sm:$0xe]
    %v3681 = vld [vmem:[%s1362 + $0x48] sm:$0xe]
    %v3682 = vld [vmem:[%s1362 + $0x54] sm:$0xe]
    %v3683 = vld [vmem:[%s1362 + $0x60] sm:$0xe]
    %v3684 = vld [vmem:[%s1362 + $0x6c] sm:$0xe]
    %v3685 = vld [vmem:[%s1362 + $0x78] sm:$0xe]
    %v3686 = vld [vmem:[%s1362 + $0x84] sm:$0xe]
    %v3687 = vld [vmem:[%s1362 + $0x90] sm:$0xe]
    %v3688 = vld [vmem:[%s1362 + $0x9c] sm:$0xe]
    %v3689 = vld [vmem:[%s1362 + $0xa8] sm:$0xe]
    %v3690 = vld [vmem:[%s1362 + $0xb4] sm:$0xe]
    %v3691 = vld [vmem:[%s1362 + $0xd8] sm:$0xe]
    %v3692 = vld [vmem:[%s1362 + $0xe4] sm:$0xe]
    %v3693 = vld [vmem:[%s1362 + $0xf0] sm:$0xe]
    %v3694 = vld [vmem:[%s1362 + $0xfc] sm:$0xe]
    %v3695 = vld [vmem:[%s1362 + $0x108] sm:$0xe]
    %v3696 = vld [vmem:[%s1362 + $0x114] sm:$0xe]
    %v3697 = vld [vmem:[%s1362 + $0x120] sm:$0xe]
    %v3698 = vld [vmem:[%s1362 + $0x12c] sm:$0xe]
    %v3699 = vld [vmem:[%s1362 + $0x138] sm:$0xe]
    %v3700 = vld [vmem:[%s1362 + $0x144] sm:$0xe]
    %v3701 = vld [vmem:[%s1362 + $0x150] sm:$0xe]
    %v3702 = vld [vmem:[%s1362 + $0x15c] sm:$0xe]
    %v3703 = vld [vmem:[%s1362 + $0x168] sm:$0xe]
    %v3704 = vld [vmem:[%s1362 + $0x174] sm:$0xe]
    %v3705 = vld [vmem:[%s1362 + $0x180] sm:$0xe]
    %v3706 = vld [vmem:[%s1362 + $0x18c] sm:$0xe]
    %v3803 = vrot.slane %v3675, 5
    %v3804 = vrot.slane %v3803, 4
    %v3805 = vrot.slane %v2812, 5
    %v3806 = vsel %vm2586, %v3804, %v3805
    %v3807 = vrot.slane %v3805, 4
    %v3808 = vrot.slane %v2875, 5
    %v3809 = vsel %vm2586, %v3807, %v3808
    %v3810 = vrot.slane %v3676, 5
    %v3811 = vrot.slane %v3810, 4
    %v3812 = vrot.slane %v2814, 5
    %v3813 = vsel %vm2586, %v3811, %v3812
    %v3814 = vrot.slane %v3812, 4
    %v3815 = vrot.slane %v2876, 5
    %v3816 = vsel %vm2586, %v3814, %v3815
    %v3817 = vrot.slane %v3677, 5
    %v3818 = vrot.slane %v3817, 4
    %v3819 = vrot.slane %v2816, 5
    %v3820 = vsel %vm2586, %v3818, %v3819
    %v3821 = vrot.slane %v3819, 4
    %v3822 = vrot.slane %v2877, 5
    %v3823 = vsel %vm2586, %v3821, %v3822
    %v3824 = vrot.slane %v3678, 5
    %v3825 = vrot.slane %v3824, 4
    %v3826 = vrot.slane %v2818, 5
    %v3827 = vsel %vm2586, %v3825, %v3826
    %v3828 = vrot.slane %v3826, 4
    %v3829 = vrot.slane %v2878, 5
    %v3830 = vsel %vm2586, %v3828, %v3829
    %v3831 = vrot.slane %v3679, 5
    %v3832 = vrot.slane %v3831, 4
    %v3833 = vrot.slane %v2820, 5
    %v3834 = vsel %vm2586, %v3832, %v3833
    %v3835 = vrot.slane %v3833, 4
    %v3836 = vrot.slane %v2879, 5
    %v3837 = vsel %vm2586, %v3835, %v3836
    %v3838 = vrot.slane %v3680, 5
    %v3839 = vrot.slane %v3838, 4
    %v3840 = vrot.slane %v2822, 5
    %v3841 = vsel %vm2586, %v3839, %v3840
    %v3842 = vrot.slane %v3840, 4
    %v3843 = vrot.slane %v2880, 5
    %v3844 = vsel %vm2586, %v3842, %v3843
    %v3845 = vrot.slane %v3681, 5
    %v3846 = vrot.slane %v3845, 4
    %v3847 = vrot.slane %v2824, 5
    %v3848 = vsel %vm2586, %v3846, %v3847
    %v3849 = vrot.slane %v3847, 4
    %v3850 = vrot.slane %v2881, 5
    %v3851 = vsel %vm2586, %v3849, %v3850
    %v3852 = vrot.slane %v3682, 5
    %v3853 = vrot.slane %v3852, 4
    %v3854 = vrot.slane %v2826, 5
    %v3855 = vsel %vm2586, %v3853, %v3854
    %v3856 = vrot.slane %v3854, 4
    %v3857 = vrot.slane %v2882, 5
    %v3858 = vsel %vm2586, %v3856, %v3857
    %v3859 = vrot.slane %v3683, 5
    %v3860 = vrot.slane %v3859, 4
    %v3861 = vrot.slane %v2828, 5
    %v3862 = vsel %vm2586, %v3860, %v3861
    %v3863 = vrot.slane %v3861, 4
    %v3864 = vrot.slane %v2883, 5
    %v3865 = vsel %vm2586, %v3863, %v3864
    %v3866 = vrot.slane %v3684, 5
    %v3867 = vrot.slane %v3866, 4
    %v3868 = vrot.slane %v2830, 5
    %v3869 = vsel %vm2586, %v3867, %v3868
    %v3870 = vrot.slane %v3868, 4
    %v3871 = vrot.slane %v2884, 5
    %v3872 = vsel %vm2586, %v3870, %v3871
    %v3873 = vrot.slane %v3685, 5
    %v3874 = vrot.slane %v3873, 4
    %v3875 = vrot.slane %v2832, 5
    %v3876 = vsel %vm2586, %v3874, %v3875
    %v3877 = vrot.slane %v3875, 4
    %v3878 = vrot.slane %v2885, 5
    %v3879 = vsel %vm2586, %v3877, %v3878
    %v3880 = vrot.slane %v3686, 5
    %v3881 = vrot.slane %v3880, 4
    %v3882 = vrot.slane %v2834, 5
    %v3883 = vsel %vm2586, %v3881, %v3882
    %v3884 = vrot.slane %v3882, 4
    %v3885 = vrot.slane %v2886, 5
    %v3886 = vsel %vm2586, %v3884, %v3885
    %v3887 = vrot.slane %v3687, 5
    %v3888 = vrot.slane %v3887, 4
    %v3889 = vrot.slane %v2836, 5
    %v3890 = vsel %vm2586, %v3888, %v3889
    %v3891 = vrot.slane %v3889, 4
    %v3892 = vrot.slane %v2887, 5
    %v3893 = vsel %vm2586, %v3891, %v3892
    %v3894 = vrot.slane %v3688, 5
    %v3895 = vrot.slane %v3894, 4
    %v3896 = vrot.slane %v2838, 5
    %v3897 = vsel %vm2586, %v3895, %v3896
    %v3898 = vrot.slane %v3896, 4
    %v3899 = vrot.slane %v2888, 5
    %v3900 = vsel %vm2586, %v3898, %v3899
    %v3901 = vrot.slane %v3689, 5
    %v3902 = vrot.slane %v3901, 4
    %v3903 = vrot.slane %v2840, 5
    %v3904 = vsel %vm2586, %v3902, %v3903
    %v3905 = vrot.slane %v3903, 4
    %v3906 = vrot.slane %v2889, 5
    %v3907 = vsel %vm2586, %v3905, %v3906
    %v3908 = vrot.slane %v3690, 5
    %v3909 = vrot.slane %v3908, 4
    %v3910 = vrot.slane %v2842, 5
    %v3911 = vsel %vm2586, %v3909, %v3910
    %v3912 = vrot.slane %v3910, 4
    %v3913 = vrot.slane %v2890, 5
    %v3914 = vsel %vm2586, %v3912, %v3913
    %v3915 = vrot.slane %v3691, 5
    %v3916 = vrot.slane %v3915, 4
    %v3917 = vrot.slane %v2844, 5
    %v3918 = vsel %vm2586, %v3916, %v3917
    %v3919 = vrot.slane %v3917, 4
    %v3920 = vrot.slane %v2891, 5
    %v3921 = vsel %vm2586, %v3919, %v3920
    %v3922 = vrot.slane %v3692, 5
    %v3923 = vrot.slane %v3922, 4
    %v3924 = vrot.slane %v2846, 5
    %v3925 = vsel %vm2586, %v3923, %v3924
    %v3926 = vrot.slane %v3924, 4
    %v3927 = vrot.slane %v2892, 5
    %v3928 = vsel %vm2586, %v3926, %v3927
    %v3929 = vrot.slane %v3693, 5
    %v3930 = vrot.slane %v3929, 4
    %v3931 = vrot.slane %v2848, 5
    %v3932 = vsel %vm2586, %v3930, %v3931
    %v3933 = vrot.slane %v3931, 4
    %v3934 = vrot.slane %v2893, 5
    %v3935 = vsel %vm2586, %v3933, %v3934
    %v3936 = vrot.slane %v3694, 5
    %v3937 = vrot.slane %v3936, 4
    %v3938 = vrot.slane %v2850, 5
    %v3939 = vsel %vm2586, %v3937, %v3938
    %v3940 = vrot.slane %v3938, 4
    %v3941 = vrot.slane %v2894, 5
    %v3942 = vsel %vm2586, %v3940, %v3941
    %v3943 = vrot.slane %v3695, 5
    %v3944 = vrot.slane %v3943, 4
    %v3945 = vrot.slane %v2852, 5
    %v3946 = vsel %vm2586, %v3944, %v3945
    %v3947 = vrot.slane %v3945, 4
    %v3948 = vrot.slane %v2895, 5
    %v3949 = vsel %vm2586, %v3947, %v3948
    %v3950 = vrot.slane %v3696, 5
    %v3951 = vrot.slane %v3950, 4
    %v3952 = vrot.slane %v2854, 5
    %v3953 = vsel %vm2586, %v3951, %v3952
    %v3954 = vrot.slane %v3952, 4
    %v3955 = vrot.slane %v2896, 5
    %v3956 = vsel %vm2586, %v3954, %v3955
    %v3957 = vrot.slane %v3697, 5
    %v3958 = vrot.slane %v3957, 4
    %v3959 = vrot.slane %v2856, 5
    %v3960 = vsel %vm2586, %v3958, %v3959
    %v3961 = vrot.slane %v3959, 4
    %v3962 = vrot.slane %v2897, 5
    %v3963 = vsel %vm2586, %v3961, %v3962
    %v3964 = vrot.slane %v3698, 5
    %v3965 = vrot.slane %v3964, 4
    %v3966 = vrot.slane %v2858, 5
    %v3967 = vsel %vm2586, %v3965, %v3966
    %v3968 = vrot.slane %v3966, 4
    %v3969 = vrot.slane %v2898, 5
    %v3970 = vsel %vm2586, %v3968, %v3969
    %v3971 = vrot.slane %v3699, 5
    %v3972 = vrot.slane %v3971, 4
    %v3973 = vrot.slane %v2860, 5
    %v3974 = vsel %vm2586, %v3972, %v3973
    %v3975 = vrot.slane %v3973, 4
    %v3976 = vrot.slane %v2899, 5
    %v3977 = vsel %vm2586, %v3975, %v3976
    %v3978 = vrot.slane %v3700, 5
    %v3979 = vrot.slane %v3978, 4
    %v3980 = vrot.slane %v2862, 5
    %v3981 = vsel %vm2586, %v3979, %v3980
    %v3982 = vrot.slane %v3980, 4
    %v3983 = vrot.slane %v2900, 5
    %v3984 = vsel %vm2586, %v3982, %v3983
    %v3985 = vrot.slane %v3701, 5
    %v3986 = vrot.slane %v3985, 4
    %v3987 = vrot.slane %v2864, 5
    %v3988 = vsel %vm2586, %v3986, %v3987
    %v3989 = vrot.slane %v3987, 4
    %v3990 = vrot.slane %v2901, 5
    %v3991 = vsel %vm2586, %v3989, %v3990
    %v3992 = vrot.slane %v3702, 5
    %v3993 = vrot.slane %v3992, 4
    %v3994 = vrot.slane %v2866, 5
    %v3995 = vsel %vm2586, %v3993, %v3994
    %v3996 = vrot.slane %v3994, 4
    %v3997 = vrot.slane %v2902, 5
    %v3998 = vsel %vm2586, %v3996, %v3997
    %v3999 = vrot.slane %v3703, 5
    %v4000 = vrot.slane %v3999, 4
    %v4001 = vrot.slane %v2868, 5
    %v4002 = vsel %vm2586, %v4000, %v4001
    %v4003 = vrot.slane %v4001, 4
    %v4004 = vrot.slane %v2903, 5
    %v4005 = vsel %vm2586, %v4003, %v4004
    %v4006 = vrot.slane %v3704, 5
    %v4007 = vrot.slane %v4006, 4
    %v4008 = vrot.slane %v2870, 5
    %v4009 = vsel %vm2586, %v4007, %v4008
    %v4010 = vrot.slane %v4008, 4
    %v4011 = vrot.slane %v2904, 5
    %v4012 = vsel %vm2586, %v4010, %v4011
    %v4013 = vrot.slane %v3705, 5
    %v4014 = vrot.slane %v4013, 4
    %v4015 = vrot.slane %v2872, 5
    %v4016 = vsel %vm2586, %v4014, %v4015
    %v4017 = vrot.slane %v4015, 4
    %v4018 = vrot.slane %v2905, 5
    %v4019 = vsel %vm2586, %v4017, %v4018
    %v4020 = vrot.slane %v3706, 5
    %v4021 = vrot.slane %v4020, 4
    %v4022 = vrot.slane %v2874, 5
    %v4023 = vsel %vm2586, %v4021, %v4022
    %v4024 = vrot.slane %v4022, 4
    %v4025 = vrot.slane %v2906, 5
    %v4026 = vsel %vm2586, %v4024, %v4025
    %s4027 = scalar_lea.vmem [#allocation2], 24
    %v4028 = vld [vmem:[%s4027] sm:$0xf]
    %v4029 = vld [vmem:[%s4027 + $0x4] sm:$0xf]
    %v4030 = vld [vmem:[%s4027 + $0xc] sm:$0xf]
    %v4031 = vld [vmem:[%s4027 + $0x10] sm:$0xf]
    %v4032 = vld [vmem:[%s4027 + $0x18] sm:$0xf]
    %v4033 = vld [vmem:[%s4027 + $0x1c] sm:$0xf]
    %v4034 = vld [vmem:[%s4027 + $0x24] sm:$0xf]
    %v4035 = vld [vmem:[%s4027 + $0x28] sm:$0xf]
    %v4036 = vld [vmem:[%s4027 + $0x30] sm:$0xf]
    %v4037 = vld [vmem:[%s4027 + $0x34] sm:$0xf]
    %v4038 = vld [vmem:[%s4027 + $0x3c] sm:$0xf]
    %v4039 = vld [vmem:[%s4027 + $0x40] sm:$0xf]
    %v4040 = vld [vmem:[%s4027 + $0x48] sm:$0xf]
    %v4041 = vld [vmem:[%s4027 + $0x4c] sm:$0xf]
    %v4042 = vld [vmem:[%s4027 + $0x54] sm:$0xf]
    %v4043 = vld [vmem:[%s4027 + $0x58] sm:$0xf]
    %v4044 = vld [vmem:[%s4027 + $0x60] sm:$0xf]
    %v4045 = vld [vmem:[%s4027 + $0x64] sm:$0xf]
    %v4046 = vld [vmem:[%s4027 + $0x6c] sm:$0xf]
    %v4047 = vld [vmem:[%s4027 + $0x70] sm:$0xf]
    %v4048 = vld [vmem:[%s4027 + $0x78] sm:$0xf]
    %v4049 = vld [vmem:[%s4027 + $0x7c] sm:$0xf]
    %v4050 = vld [vmem:[%s4027 + $0x84] sm:$0xf]
    %v4051 = vld [vmem:[%s4027 + $0x88] sm:$0xf]
    %v4052 = vld [vmem:[%s4027 + $0x90] sm:$0xf]
    %v4053 = vld [vmem:[%s4027 + $0x94] sm:$0xf]
    %v4054 = vld [vmem:[%s4027 + $0x9c] sm:$0xf]
    %v4055 = vld [vmem:[%s4027 + $0xa0] sm:$0xf]
    %v4056 = vld [vmem:[%s4027 + $0xa8] sm:$0xf]
    %v4057 = vld [vmem:[%s4027 + $0xac] sm:$0xf]
    %v4058 = vld [vmem:[%s4027 + $0xb4] sm:$0xf]
    %v4059 = vld [vmem:[%s4027 + $0xb8] sm:$0xf]
    %v4060 = vld [vmem:[%s4027 + $0xd8] sm:$0xf]
    %v4061 = vld [vmem:[%s4027 + $0xdc] sm:$0xf]
    %v4062 = vld [vmem:[%s4027 + $0xe4] sm:$0xf]
    %v4063 = vld [vmem:[%s4027 + $0xe8] sm:$0xf]
    %v4064 = vld [vmem:[%s4027 + $0xf0] sm:$0xf]
    %v4065 = vld [vmem:[%s4027 + $0xf4] sm:$0xf]
    %v4066 = vld [vmem:[%s4027 + $0xfc] sm:$0xf]
    %v4067 = vld [vmem:[%s4027 + $0x100] sm:$0xf]
    %v4068 = vld [vmem:[%s4027 + $0x108] sm:$0xf]
    %v4069 = vld [vmem:[%s4027 + $0x10c] sm:$0xf]
    %v4070 = vld [vmem:[%s4027 + $0x114] sm:$0xf]
    %v4071 = vld [vmem:[%s4027 + $0x118] sm:$0xf]
    %v4072 = vld [vmem:[%s4027 + $0x120] sm:$0xf]
    %v4073 = vld [vmem:[%s4027 + $0x124] sm:$0xf]
    %v4074 = vld [vmem:[%s4027 + $0x12c] sm:$0xf]
    %v4075 = vld [vmem:[%s4027 + $0x130] sm:$0xf]
    %v4076 = vld [vmem:[%s4027 + $0x138] sm:$0xf]
    %v4077 = vld [vmem:[%s4027 + $0x13c] sm:$0xf]
    %v4078 = vld [vmem:[%s4027 + $0x144] sm:$0xf]
    %v4079 = vld [vmem:[%s4027 + $0x148] sm:$0xf]
    %v4080 = vld [vmem:[%s4027 + $0x150] sm:$0xf]
    %v4081 = vld [vmem:[%s4027 + $0x154] sm:$0xf]
    %v4082 = vld [vmem:[%s4027 + $0x15c] sm:$0xf]
    %v4083 = vld [vmem:[%s4027 + $0x160] sm:$0xf]
    %v4084 = vld [vmem:[%s4027 + $0x168] sm:$0xf]
    %v4085 = vld [vmem:[%s4027 + $0x16c] sm:$0xf]
    %v4086 = vld [vmem:[%s4027 + $0x174] sm:$0xf]
    %v4087 = vld [vmem:[%s4027 + $0x178] sm:$0xf]
    %v4088 = vld [vmem:[%s4027 + $0x180] sm:$0xf]
    %v4089 = vld [vmem:[%s4027 + $0x184] sm:$0xf]
    %v4090 = vld [vmem:[%s4027 + $0x18c] sm:$0xf]
    %v4091 = vld [vmem:[%s4027 + $0x190] sm:$0xf]
    %v4092 = vld [vmem:[%s4027 + $0x8] sm:$0x1]
    %v4093 = vld [vmem:[%s4027 + $0x14] sm:$0x1]
    %v4094 = vld [vmem:[%s4027 + $0x20] sm:$0x1]
    %v4095 = vld [vmem:[%s4027 + $0x2c] sm:$0x1]
    %v4096 = vld [vmem:[%s4027 + $0x38] sm:$0x1]
    %v4097 = vld [vmem:[%s4027 + $0x44] sm:$0x1]
    %v4098 = vld [vmem:[%s4027 + $0x50] sm:$0x1]
    %v4099 = vld [vmem:[%s4027 + $0x5c] sm:$0x1]
    %v4100 = vld [vmem:[%s4027 + $0x68] sm:$0x1]
    %v4101 = vld [vmem:[%s4027 + $0x74] sm:$0x1]
    %v4102 = vld [vmem:[%s4027 + $0x80] sm:$0x1]
    %v4103 = vld [vmem:[%s4027 + $0x8c] sm:$0x1]
    %v4104 = vld [vmem:[%s4027 + $0x98] sm:$0x1]
    %v4105 = vld [vmem:[%s4027 + $0xa4] sm:$0x1]
    %v4106 = vld [vmem:[%s4027 + $0xb0] sm:$0x1]
    %v4107 = vld [vmem:[%s4027 + $0xbc] sm:$0x1]
    %v4108 = vld [vmem:[%s4027 + $0xe0] sm:$0x1]
    %v4109 = vld [vmem:[%s4027 + $0xec] sm:$0x1]
    %v4110 = vld [vmem:[%s4027 + $0xf8] sm:$0x1]
    %v4111 = vld [vmem:[%s4027 + $0x104] sm:$0x1]
    %v4112 = vld [vmem:[%s4027 + $0x110] sm:$0x1]
    %v4113 = vld [vmem:[%s4027 + $0x11c] sm:$0x1]
    %v4114 = vld [vmem:[%s4027 + $0x128] sm:$0x1]
    %v4115 = vld [vmem:[%s4027 + $0x134] sm:$0x1]
    %v4116 = vld [vmem:[%s4027 + $0x140] sm:$0x1]
    %v4117 = vld [vmem:[%s4027 + $0x14c] sm:$0x1]
    %v4118 = vld [vmem:[%s4027 + $0x158] sm:$0x1]
    %v4119 = vld [vmem:[%s4027 + $0x164] sm:$0x1]
    %v4120 = vld [vmem:[%s4027 + $0x170] sm:$0x1]
    %v4121 = vld [vmem:[%s4027 + $0x17c] sm:$0x1]
    %v4122 = vld [vmem:[%s4027 + $0x188] sm:$0x1]
    %v4123 = vld [vmem:[%s4027 + $0x194] sm:$0x1]
    %v4125 = vshrl.u32 %v4028, 16
    %v4127 = vrot.slane %v4125, 4
    %v4128 = vshll.u32 %v4028, 16
    %v4130 = vrot.slane %v4128, 5
    %v4131 = vor.u32 %v4127, %v4130
    %v4132 = vrot.slane %v4131, 4
    %v4134 = vshll.u32 %v4029, 16
    %v4136 = vrot.slane %v4134, 5
    %v4137 = vsel %vm1687, %v4132, %v4136
    %v4138 = vshrl.u32 %v4029, 16
    %v4140 = vrot.slane %v4138, 4
    %v4141 = vor.u32 %v4140, %v4136
    %v4142 = vrot.slane %v4141, 4
    %v4144 = vshll.u32 %v4092, 16
    %v4146 = vrot.slane %v4144, 5
    %v4147 = vsel %vm1687, %v4142, %v4146
    %v4149 = vshrl.u32 %v4030, 16
    %v4151 = vrot.slane %v4149, 4
    %v4152 = vshll.u32 %v4030, 16
    %v4154 = vrot.slane %v4152, 5
    %v4155 = vor.u32 %v4151, %v4154
    %v4156 = vrot.slane %v4155, 4
    %v4158 = vshll.u32 %v4031, 16
    %v4160 = vrot.slane %v4158, 5
    %v4161 = vsel %vm1687, %v4156, %v4160
    %v4162 = vshrl.u32 %v4031, 16
    %v4164 = vrot.slane %v4162, 4
    %v4165 = vor.u32 %v4164, %v4160
    %v4166 = vrot.slane %v4165, 4
    %v4168 = vshll.u32 %v4093, 16
    %v4170 = vrot.slane %v4168, 5
    %v4171 = vsel %vm1687, %v4166, %v4170
    %v4173 = vshrl.u32 %v4032, 16
    %v4175 = vrot.slane %v4173, 4
    %v4176 = vshll.u32 %v4032, 16
    %v4178 = vrot.slane %v4176, 5
    %v4179 = vor.u32 %v4175, %v4178
    %v4180 = vrot.slane %v4179, 4
    %v4182 = vshll.u32 %v4033, 16
    %v4184 = vrot.slane %v4182, 5
    %v4185 = vsel %vm1687, %v4180, %v4184
    %v4186 = vshrl.u32 %v4033, 16
    %v4188 = vrot.slane %v4186, 4
    %v4189 = vor.u32 %v4188, %v4184
    %v4190 = vrot.slane %v4189, 4
    %v4192 = vshll.u32 %v4094, 16
    %v4194 = vrot.slane %v4192, 5
    %v4195 = vsel %vm1687, %v4190, %v4194
    %v4197 = vshrl.u32 %v4034, 16
    %v4199 = vrot.slane %v4197, 4
    %v4200 = vshll.u32 %v4034, 16
    %v4202 = vrot.slane %v4200, 5
    %v4203 = vor.u32 %v4199, %v4202
    %v4204 = vrot.slane %v4203, 4
    %v4206 = vshll.u32 %v4035, 16
    %v4208 = vrot.slane %v4206, 5
    %v4209 = vsel %vm1687, %v4204, %v4208
    %v4210 = vshrl.u32 %v4035, 16
    %v4212 = vrot.slane %v4210, 4
    %v4213 = vor.u32 %v4212, %v4208
    %v4214 = vrot.slane %v4213, 4
    %v4216 = vshll.u32 %v4095, 16
    %v4218 = vrot.slane %v4216, 5
    %v4219 = vsel %vm1687, %v4214, %v4218
    %v4221 = vshrl.u32 %v4036, 16
    %v4223 = vrot.slane %v4221, 4
    %v4224 = vshll.u32 %v4036, 16
    %v4226 = vrot.slane %v4224, 5
    %v4227 = vor.u32 %v4223, %v4226
    %v4228 = vrot.slane %v4227, 4
    %v4230 = vshll.u32 %v4037, 16
    %v4232 = vrot.slane %v4230, 5
    %v4233 = vsel %vm1687, %v4228, %v4232
    %v4234 = vshrl.u32 %v4037, 16
    %v4236 = vrot.slane %v4234, 4
    %v4237 = vor.u32 %v4236, %v4232
    %v4238 = vrot.slane %v4237, 4
    %v4240 = vshll.u32 %v4096, 16
    %v4242 = vrot.slane %v4240, 5
    %v4243 = vsel %vm1687, %v4238, %v4242
    %v4245 = vshrl.u32 %v4038, 16
    %v4247 = vrot.slane %v4245, 4
    %v4248 = vshll.u32 %v4038, 16
    %v4250 = vrot.slane %v4248, 5
    %v4251 = vor.u32 %v4247, %v4250
    %v4252 = vrot.slane %v4251, 4
    %v4254 = vshll.u32 %v4039, 16
    %v4256 = vrot.slane %v4254, 5
    %v4257 = vsel %vm1687, %v4252, %v4256
    %v4258 = vshrl.u32 %v4039, 16
    %v4260 = vrot.slane %v4258, 4
    %v4261 = vor.u32 %v4260, %v4256
    %v4262 = vrot.slane %v4261, 4
    %v4264 = vshll.u32 %v4097, 16
    %v4266 = vrot.slane %v4264, 5
    %v4267 = vsel %vm1687, %v4262, %v4266
    %v4269 = vshrl.u32 %v4040, 16
    %v4271 = vrot.slane %v4269, 4
    %v4272 = vshll.u32 %v4040, 16
    %v4274 = vrot.slane %v4272, 5
    %v4275 = vor.u32 %v4271, %v4274
    %v4276 = vrot.slane %v4275, 4
    %v4278 = vshll.u32 %v4041, 16
    %v4280 = vrot.slane %v4278, 5
    %v4281 = vsel %vm1687, %v4276, %v4280
    %v4282 = vshrl.u32 %v4041, 16
    %v4284 = vrot.slane %v4282, 4
    %v4285 = vor.u32 %v4284, %v4280
    %v4286 = vrot.slane %v4285, 4
    %v4288 = vshll.u32 %v4098, 16
    %v4290 = vrot.slane %v4288, 5
    %v4291 = vsel %vm1687, %v4286, %v4290
    %v4293 = vshrl.u32 %v4042, 16
    %v4295 = vrot.slane %v4293, 4
    %v4296 = vshll.u32 %v4042, 16
    %v4298 = vrot.slane %v4296, 5
    %v4299 = vor.u32 %v4295, %v4298
    %v4300 = vrot.slane %v4299, 4
    %v4302 = vshll.u32 %v4043, 16
    %v4304 = vrot.slane %v4302, 5
    %v4305 = vsel %vm1687, %v4300, %v4304
    %v4306 = vshrl.u32 %v4043, 16
    %v4308 = vrot.slane %v4306, 4
    %v4309 = vor.u32 %v4308, %v4304
    %v4310 = vrot.slane %v4309, 4
    %v4312 = vshll.u32 %v4099, 16
    %v4314 = vrot.slane %v4312, 5
    %v4315 = vsel %vm1687, %v4310, %v4314
    %v4317 = vshrl.u32 %v4044, 16
    %v4319 = vrot.slane %v4317, 4
    %v4320 = vshll.u32 %v4044, 16
    %v4322 = vrot.slane %v4320, 5
    %v4323 = vor.u32 %v4319, %v4322
    %v4324 = vrot.slane %v4323, 4
    %v4326 = vshll.u32 %v4045, 16
    %v4328 = vrot.slane %v4326, 5
    %v4329 = vsel %vm1687, %v4324, %v4328
    %v4330 = vshrl.u32 %v4045, 16
    %v4332 = vrot.slane %v4330, 4
    %v4333 = vor.u32 %v4332, %v4328
    %v4334 = vrot.slane %v4333, 4
    %v4336 = vshll.u32 %v4100, 16
    %v4338 = vrot.slane %v4336, 5
    %v4339 = vsel %vm1687, %v4334, %v4338
    %v4341 = vshrl.u32 %v4046, 16
    %v4343 = vrot.slane %v4341, 4
    %v4344 = vshll.u32 %v4046, 16
    %v4346 = vrot.slane %v4344, 5
    %v4347 = vor.u32 %v4343, %v4346
    %v4348 = vrot.slane %v4347, 4
    %v4350 = vshll.u32 %v4047, 16
    %v4352 = vrot.slane %v4350, 5
    %v4353 = vsel %vm1687, %v4348, %v4352
    %v4354 = vshrl.u32 %v4047, 16
    %v4356 = vrot.slane %v4354, 4
    %v4357 = vor.u32 %v4356, %v4352
    %v4358 = vrot.slane %v4357, 4
    %v4360 = vshll.u32 %v4101, 16
    %v4362 = vrot.slane %v4360, 5
    %v4363 = vsel %vm1687, %v4358, %v4362
    %v4365 = vshrl.u32 %v4048, 16
    %v4367 = vrot.slane %v4365, 4
    %v4368 = vshll.u32 %v4048, 16
    %v4370 = vrot.slane %v4368, 5
    %v4371 = vor.u32 %v4367, %v4370
    %v4372 = vrot.slane %v4371, 4
    %v4374 = vshll.u32 %v4049, 16
    %v4376 = vrot.slane %v4374, 5
    %v4377 = vsel %vm1687, %v4372, %v4376
    %v4378 = vshrl.u32 %v4049, 16
    %v4380 = vrot.slane %v4378, 4
    %v4381 = vor.u32 %v4380, %v4376
    %v4382 = vrot.slane %v4381, 4
    %v4384 = vshll.u32 %v4102, 16
    %v4386 = vrot.slane %v4384, 5
    %v4387 = vsel %vm1687, %v4382, %v4386
    %v4389 = vshrl.u32 %v4050, 16
    %v4391 = vrot.slane %v4389, 4
    %v4392 = vshll.u32 %v4050, 16
    %v4394 = vrot.slane %v4392, 5
    %v4395 = vor.u32 %v4391, %v4394
    %v4396 = vrot.slane %v4395, 4
    %v4398 = vshll.u32 %v4051, 16
    %v4400 = vrot.slane %v4398, 5
    %v4401 = vsel %vm1687, %v4396, %v4400
    %v4402 = vshrl.u32 %v4051, 16
    %v4404 = vrot.slane %v4402, 4
    %v4405 = vor.u32 %v4404, %v4400
    %v4406 = vrot.slane %v4405, 4
    %v4408 = vshll.u32 %v4103, 16
    %v4410 = vrot.slane %v4408, 5
    %v4411 = vsel %vm1687, %v4406, %v4410
    %v4413 = vshrl.u32 %v4052, 16
    %v4415 = vrot.slane %v4413, 4
    %v4416 = vshll.u32 %v4052, 16
    %v4418 = vrot.slane %v4416, 5
    %v4419 = vor.u32 %v4415, %v4418
    %v4420 = vrot.slane %v4419, 4
    %v4422 = vshll.u32 %v4053, 16
    %v4424 = vrot.slane %v4422, 5
    %v4425 = vsel %vm1687, %v4420, %v4424
    %v4426 = vshrl.u32 %v4053, 16
    %v4428 = vrot.slane %v4426, 4
    %v4429 = vor.u32 %v4428, %v4424
    %v4430 = vrot.slane %v4429, 4
    %v4432 = vshll.u32 %v4104, 16
    %v4434 = vrot.slane %v4432, 5
    %v4435 = vsel %vm1687, %v4430, %v4434
    %v4437 = vshrl.u32 %v4054, 16
    %v4439 = vrot.slane %v4437, 4
    %v4440 = vshll.u32 %v4054, 16
    %v4442 = vrot.slane %v4440, 5
    %v4443 = vor.u32 %v4439, %v4442
    %v4444 = vrot.slane %v4443, 4
    %v4446 = vshll.u32 %v4055, 16
    %v4448 = vrot.slane %v4446, 5
    %v4449 = vsel %vm1687, %v4444, %v4448
    %v4450 = vshrl.u32 %v4055, 16
    %v4452 = vrot.slane %v4450, 4
    %v4453 = vor.u32 %v4452, %v4448
    %v4454 = vrot.slane %v4453, 4
    %v4456 = vshll.u32 %v4105, 16
    %v4458 = vrot.slane %v4456, 5
    %v4459 = vsel %vm1687, %v4454, %v4458
    %v4461 = vshrl.u32 %v4056, 16
    %v4463 = vrot.slane %v4461, 4
    %v4464 = vshll.u32 %v4056, 16
    %v4466 = vrot.slane %v4464, 5
    %v4467 = vor.u32 %v4463, %v4466
    %v4468 = vrot.slane %v4467, 4
    %v4470 = vshll.u32 %v4057, 16
    %v4472 = vrot.slane %v4470, 5
    %v4473 = vsel %vm1687, %v4468, %v4472
    %v4474 = vshrl.u32 %v4057, 16
    %v4476 = vrot.slane %v4474, 4
    %v4477 = vor.u32 %v4476, %v4472
    %v4478 = vrot.slane %v4477, 4
    %v4480 = vshll.u32 %v4106, 16
    %v4482 = vrot.slane %v4480, 5
    %v4483 = vsel %vm1687, %v4478, %v4482
    %v4485 = vshrl.u32 %v4058, 16
    %v4487 = vrot.slane %v4485, 4
    %v4488 = vshll.u32 %v4058, 16
    %v4490 = vrot.slane %v4488, 5
    %v4491 = vor.u32 %v4487, %v4490
    %v4492 = vrot.slane %v4491, 4
    %v4494 = vshll.u32 %v4059, 16
    %v4496 = vrot.slane %v4494, 5
    %v4497 = vsel %vm1687, %v4492, %v4496
    %v4498 = vshrl.u32 %v4059, 16
    %v4500 = vrot.slane %v4498, 4
    %v4501 = vor.u32 %v4500, %v4496
    %v4502 = vrot.slane %v4501, 4
    %v4504 = vshll.u32 %v4107, 16
    %v4506 = vrot.slane %v4504, 5
    %v4507 = vsel %vm1687, %v4502, %v4506
    %v4509 = vshrl.u32 %v4060, 16
    %v4511 = vrot.slane %v4509, 4
    %v4512 = vshll.u32 %v4060, 16
    %v4514 = vrot.slane %v4512, 5
    %v4515 = vor.u32 %v4511, %v4514
    %v4516 = vrot.slane %v4515, 4
    %v4518 = vshll.u32 %v4061, 16
    %v4520 = vrot.slane %v4518, 5
    %v4521 = vsel %vm1687, %v4516, %v4520
    %v4522 = vshrl.u32 %v4061, 16
    %v4524 = vrot.slane %v4522, 4
    %v4525 = vor.u32 %v4524, %v4520
    %v4526 = vrot.slane %v4525, 4
    %v4528 = vshll.u32 %v4108, 16
    %v4530 = vrot.slane %v4528, 5
    %v4531 = vsel %vm1687, %v4526, %v4530
    %v4533 = vshrl.u32 %v4062, 16
    %v4535 = vrot.slane %v4533, 4
    %v4536 = vshll.u32 %v4062, 16
    %v4538 = vrot.slane %v4536, 5
    %v4539 = vor.u32 %v4535, %v4538
    %v4540 = vrot.slane %v4539, 4
    %v4542 = vshll.u32 %v4063, 16
    %v4544 = vrot.slane %v4542, 5
    %v4545 = vsel %vm1687, %v4540, %v4544
    %v4546 = vshrl.u32 %v4063, 16
    %v4548 = vrot.slane %v4546, 4
    %v4549 = vor.u32 %v4548, %v4544
    %v4550 = vrot.slane %v4549, 4
    %v4552 = vshll.u32 %v4109, 16
    %v4554 = vrot.slane %v4552, 5
    %v4555 = vsel %vm1687, %v4550, %v4554
    %v4557 = vshrl.u32 %v4064, 16
    %v4559 = vrot.slane %v4557, 4
    %v4560 = vshll.u32 %v4064, 16
    %v4562 = vrot.slane %v4560, 5
    %v4563 = vor.u32 %v4559, %v4562
    %v4564 = vrot.slane %v4563, 4
    %v4566 = vshll.u32 %v4065, 16
    %v4568 = vrot.slane %v4566, 5
    %v4569 = vsel %vm1687, %v4564, %v4568
    %v4570 = vshrl.u32 %v4065, 16
    %v4572 = vrot.slane %v4570, 4
    %v4573 = vor.u32 %v4572, %v4568
    %v4574 = vrot.slane %v4573, 4
    %v4576 = vshll.u32 %v4110, 16
    %v4578 = vrot.slane %v4576, 5
    %v4579 = vsel %vm1687, %v4574, %v4578
    %v4581 = vshrl.u32 %v4066, 16
    %v4583 = vrot.slane %v4581, 4
    %v4584 = vshll.u32 %v4066, 16
    %v4586 = vrot.slane %v4584, 5
    %v4587 = vor.u32 %v4583, %v4586
    %v4588 = vrot.slane %v4587, 4
    %v4590 = vshll.u32 %v4067, 16
    %v4592 = vrot.slane %v4590, 5
    %v4593 = vsel %vm1687, %v4588, %v4592
    %v4594 = vshrl.u32 %v4067, 16
    %v4596 = vrot.slane %v4594, 4
    %v4597 = vor.u32 %v4596, %v4592
    %v4598 = vrot.slane %v4597, 4
    %v4600 = vshll.u32 %v4111, 16
    %v4602 = vrot.slane %v4600, 5
    %v4603 = vsel %vm1687, %v4598, %v4602
    %v4605 = vshrl.u32 %v4068, 16
    %v4607 = vrot.slane %v4605, 4
    %v4608 = vshll.u32 %v4068, 16
    %v4610 = vrot.slane %v4608, 5
    %v4611 = vor.u32 %v4607, %v4610
    %v4612 = vrot.slane %v4611, 4
    %v4614 = vshll.u32 %v4069, 16
    %v4616 = vrot.slane %v4614, 5
    %v4617 = vsel %vm1687, %v4612, %v4616
    %v4618 = vshrl.u32 %v4069, 16
    %v4620 = vrot.slane %v4618, 4
    %v4621 = vor.u32 %v4620, %v4616
    %v4622 = vrot.slane %v4621, 4
    %v4624 = vshll.u32 %v4112, 16
    %v4626 = vrot.slane %v4624, 5
    %v4627 = vsel %vm1687, %v4622, %v4626
    %v4629 = vshrl.u32 %v4070, 16
    %v4631 = vrot.slane %v4629, 4
    %v4632 = vshll.u32 %v4070, 16
    %v4634 = vrot.slane %v4632, 5
    %v4635 = vor.u32 %v4631, %v4634
    %v4636 = vrot.slane %v4635, 4
    %v4638 = vshll.u32 %v4071, 16
    %v4640 = vrot.slane %v4638, 5
    %v4641 = vsel %vm1687, %v4636, %v4640
    %v4642 = vshrl.u32 %v4071, 16
    %v4644 = vrot.slane %v4642, 4
    %v4645 = vor.u32 %v4644, %v4640
    %v4646 = vrot.slane %v4645, 4
    %v4648 = vshll.u32 %v4113, 16
    %v4650 = vrot.slane %v4648, 5
    %v4651 = vsel %vm1687, %v4646, %v4650
    %v4653 = vshrl.u32 %v4072, 16
    %v4655 = vrot.slane %v4653, 4
    %v4656 = vshll.u32 %v4072, 16
    %v4658 = vrot.slane %v4656, 5
    %v4659 = vor.u32 %v4655, %v4658
    %v4660 = vrot.slane %v4659, 4
    %v4662 = vshll.u32 %v4073, 16
    %v4664 = vrot.slane %v4662, 5
    %v4665 = vsel %vm1687, %v4660, %v4664
    %v4666 = vshrl.u32 %v4073, 16
    %v4668 = vrot.slane %v4666, 4
    %v4669 = vor.u32 %v4668, %v4664
    %v4670 = vrot.slane %v4669, 4
    %v4672 = vshll.u32 %v4114, 16
    %v4674 = vrot.slane %v4672, 5
    %v4675 = vsel %vm1687, %v4670, %v4674
    %v4677 = vshrl.u32 %v4074, 16
    %v4679 = vrot.slane %v4677, 4
    %v4680 = vshll.u32 %v4074, 16
    %v4682 = vrot.slane %v4680, 5
    %v4683 = vor.u32 %v4679, %v4682
    %v4684 = vrot.slane %v4683, 4
    %v4686 = vshll.u32 %v4075, 16
    %v4688 = vrot.slane %v4686, 5
    %v4689 = vsel %vm1687, %v4684, %v4688
    %v4690 = vshrl.u32 %v4075, 16
    %v4692 = vrot.slane %v4690, 4
    %v4693 = vor.u32 %v4692, %v4688
    %v4694 = vrot.slane %v4693, 4
    %v4696 = vshll.u32 %v4115, 16
    %v4698 = vrot.slane %v4696, 5
    %v4699 = vsel %vm1687, %v4694, %v4698
    %v4701 = vshrl.u32 %v4076, 16
    %v4703 = vrot.slane %v4701, 4
    %v4704 = vshll.u32 %v4076, 16
    %v4706 = vrot.slane %v4704, 5
    %v4707 = vor.u32 %v4703, %v4706
    %v4708 = vrot.slane %v4707, 4
    %v4710 = vshll.u32 %v4077, 16
    %v4712 = vrot.slane %v4710, 5
    %v4713 = vsel %vm1687, %v4708, %v4712
    %v4714 = vshrl.u32 %v4077, 16
    %v4716 = vrot.slane %v4714, 4
    %v4717 = vor.u32 %v4716, %v4712
    %v4718 = vrot.slane %v4717, 4
    %v4720 = vshll.u32 %v4116, 16
    %v4722 = vrot.slane %v4720, 5
    %v4723 = vsel %vm1687, %v4718, %v4722
    %v4725 = vshrl.u32 %v4078, 16
    %v4727 = vrot.slane %v4725, 4
    %v4728 = vshll.u32 %v4078, 16
    %v4730 = vrot.slane %v4728, 5
    %v4731 = vor.u32 %v4727, %v4730
    %v4732 = vrot.slane %v4731, 4
    %v4734 = vshll.u32 %v4079, 16
    %v4736 = vrot.slane %v4734, 5
    %v4737 = vsel %vm1687, %v4732, %v4736
    %v4738 = vshrl.u32 %v4079, 16
    %v4740 = vrot.slane %v4738, 4
    %v4741 = vor.u32 %v4740, %v4736
    %v4742 = vrot.slane %v4741, 4
    %v4744 = vshll.u32 %v4117, 16
    %v4746 = vrot.slane %v4744, 5
    %v4747 = vsel %vm1687, %v4742, %v4746
    %v4749 = vshrl.u32 %v4080, 16
    %v4751 = vrot.slane %v4749, 4
    %v4752 = vshll.u32 %v4080, 16
    %v4754 = vrot.slane %v4752, 5
    %v4755 = vor.u32 %v4751, %v4754
    %v4756 = vrot.slane %v4755, 4
    %v4758 = vshll.u32 %v4081, 16
    %v4760 = vrot.slane %v4758, 5
    %v4761 = vsel %vm1687, %v4756, %v4760
    %v4762 = vshrl.u32 %v4081, 16
    %v4764 = vrot.slane %v4762, 4
    %v4765 = vor.u32 %v4764, %v4760
    %v4766 = vrot.slane %v4765, 4
    %v4768 = vshll.u32 %v4118, 16
    %v4770 = vrot.slane %v4768, 5
    %v4771 = vsel %vm1687, %v4766, %v4770
    %v4773 = vshrl.u32 %v4082, 16
    %v4775 = vrot.slane %v4773, 4
    %v4776 = vshll.u32 %v4082, 16
    %v4778 = vrot.slane %v4776, 5
    %v4779 = vor.u32 %v4775, %v4778
    %v4780 = vrot.slane %v4779, 4
    %v4782 = vshll.u32 %v4083, 16
    %v4784 = vrot.slane %v4782, 5
    %v4785 = vsel %vm1687, %v4780, %v4784
    %v4786 = vshrl.u32 %v4083, 16
    %v4788 = vrot.slane %v4786, 4
    %v4789 = vor.u32 %v4788, %v4784
    %v4790 = vrot.slane %v4789, 4
    %v4792 = vshll.u32 %v4119, 16
    %v4794 = vrot.slane %v4792, 5
    %v4795 = vsel %vm1687, %v4790, %v4794
    %v4797 = vshrl.u32 %v4084, 16
    %v4799 = vrot.slane %v4797, 4
    %v4800 = vshll.u32 %v4084, 16
    %v4802 = vrot.slane %v4800, 5
    %v4803 = vor.u32 %v4799, %v4802
    %v4804 = vrot.slane %v4803, 4
    %v4806 = vshll.u32 %v4085, 16
    %v4808 = vrot.slane %v4806, 5
    %v4809 = vsel %vm1687, %v4804, %v4808
    %v4810 = vshrl.u32 %v4085, 16
    %v4812 = vrot.slane %v4810, 4
    %v4813 = vor.u32 %v4812, %v4808
    %v4814 = vrot.slane %v4813, 4
    %v4816 = vshll.u32 %v4120, 16
    %v4818 = vrot.slane %v4816, 5
    %v4819 = vsel %vm1687, %v4814, %v4818
    %v4821 = vshrl.u32 %v4086, 16
    %v4823 = vrot.slane %v4821, 4
    %v4824 = vshll.u32 %v4086, 16
    %v4826 = vrot.slane %v4824, 5
    %v4827 = vor.u32 %v4823, %v4826
    %v4828 = vrot.slane %v4827, 4
    %v4830 = vshll.u32 %v4087, 16
    %v4832 = vrot.slane %v4830, 5
    %v4833 = vsel %vm1687, %v4828, %v4832
    %v4834 = vshrl.u32 %v4087, 16
    %v4836 = vrot.slane %v4834, 4
    %v4837 = vor.u32 %v4836, %v4832
    %v4838 = vrot.slane %v4837, 4
    %v4840 = vshll.u32 %v4121, 16
    %v4842 = vrot.slane %v4840, 5
    %v4843 = vsel %vm1687, %v4838, %v4842
    %v4845 = vshrl.u32 %v4088, 16
    %v4847 = vrot.slane %v4845, 4
    %v4848 = vshll.u32 %v4088, 16
    %v4850 = vrot.slane %v4848, 5
    %v4851 = vor.u32 %v4847, %v4850
    %v4852 = vrot.slane %v4851, 4
    %v4854 = vshll.u32 %v4089, 16
    %v4856 = vrot.slane %v4854, 5
    %v4857 = vsel %vm1687, %v4852, %v4856
    %v4858 = vshrl.u32 %v4089, 16
    %v4860 = vrot.slane %v4858, 4
    %v4861 = vor.u32 %v4860, %v4856
    %v4862 = vrot.slane %v4861, 4
    %v4864 = vshll.u32 %v4122, 16
    %v4866 = vrot.slane %v4864, 5
    %v4867 = vsel %vm1687, %v4862, %v4866
    %v4869 = vshrl.u32 %v4090, 16
    %v4871 = vrot.slane %v4869, 4
    %v4872 = vshll.u32 %v4090, 16
    %v4874 = vrot.slane %v4872, 5
    %v4875 = vor.u32 %v4871, %v4874
    %v4876 = vrot.slane %v4875, 4
    %v4878 = vshll.u32 %v4091, 16
    %v4880 = vrot.slane %v4878, 5
    %v4881 = vsel %vm1687, %v4876, %v4880
    %v4882 = vshrl.u32 %v4091, 16
    %v4884 = vrot.slane %v4882, 4
    %v4885 = vor.u32 %v4884, %v4880
    %v4886 = vrot.slane %v4885, 4
    %v4888 = vshll.u32 %v4123, 16
    %v4890 = vrot.slane %v4888, 5
    %v4891 = vsel %vm1687, %v4886, %v4890
    %v4892 = vld [vmem:[%s4027] sm:$0xe]
    %v4893 = vld [vmem:[%s4027 + $0xc] sm:$0xe]
    %v4894 = vld [vmem:[%s4027 + $0x18] sm:$0xe]
    %v4895 = vld [vmem:[%s4027 + $0x24] sm:$0xe]
    %v4896 = vld [vmem:[%s4027 + $0x30] sm:$0xe]
    %v4897 = vld [vmem:[%s4027 + $0x3c] sm:$0xe]
    %v4898 = vld [vmem:[%s4027 + $0x48] sm:$0xe]
    %v4899 = vld [vmem:[%s4027 + $0x54] sm:$0xe]
    %v4900 = vld [vmem:[%s4027 + $0x60] sm:$0xe]
    %v4901 = vld [vmem:[%s4027 + $0x6c] sm:$0xe]
    %v4902 = vld [vmem:[%s4027 + $0x78] sm:$0xe]
    %v4903 = vld [vmem:[%s4027 + $0x84] sm:$0xe]
    %v4904 = vld [vmem:[%s4027 + $0x90] sm:$0xe]
    %v4905 = vld [vmem:[%s4027 + $0x9c] sm:$0xe]
    %v4906 = vld [vmem:[%s4027 + $0xa8] sm:$0xe]
    %v4907 = vld [vmem:[%s4027 + $0xb4] sm:$0xe]
    %v4908 = vld [vmem:[%s4027 + $0xd8] sm:$0xe]
    %v4909 = vld [vmem:[%s4027 + $0xe4] sm:$0xe]
    %v4910 = vld [vmem:[%s4027 + $0xf0] sm:$0xe]
    %v4911 = vld [vmem:[%s4027 + $0xfc] sm:$0xe]
    %v4912 = vld [vmem:[%s4027 + $0x108] sm:$0xe]
    %v4913 = vld [vmem:[%s4027 + $0x114] sm:$0xe]
    %v4914 = vld [vmem:[%s4027 + $0x120] sm:$0xe]
    %v4915 = vld [vmem:[%s4027 + $0x12c] sm:$0xe]
    %v4916 = vld [vmem:[%s4027 + $0x138] sm:$0xe]
    %v4917 = vld [vmem:[%s4027 + $0x144] sm:$0xe]
    %v4918 = vld [vmem:[%s4027 + $0x150] sm:$0xe]
    %v4919 = vld [vmem:[%s4027 + $0x15c] sm:$0xe]
    %v4920 = vld [vmem:[%s4027 + $0x168] sm:$0xe]
    %v4921 = vld [vmem:[%s4027 + $0x174] sm:$0xe]
    %v4922 = vld [vmem:[%s4027 + $0x180] sm:$0xe]
    %v4923 = vld [vmem:[%s4027 + $0x18c] sm:$0xe]
    %v5020 = vrot.slane %v4892, 5
    %v5021 = vrot.slane %v5020, 4
    %v5022 = vrot.slane %v4029, 5
    %v5023 = vsel %vm2586, %v5021, %v5022
    %v5024 = vrot.slane %v5022, 4
    %v5025 = vrot.slane %v4092, 5
    %v5026 = vsel %vm2586, %v5024, %v5025
    %v5027 = vrot.slane %v4893, 5
    %v5028 = vrot.slane %v5027, 4
    %v5029 = vrot.slane %v4031, 5
    %v5030 = vsel %vm2586, %v5028, %v5029
    %v5031 = vrot.slane %v5029, 4
    %v5032 = vrot.slane %v4093, 5
    %v5033 = vsel %vm2586, %v5031, %v5032
    %v5034 = vrot.slane %v4894, 5
    %v5035 = vrot.slane %v5034, 4
    %v5036 = vrot.slane %v4033, 5
    %v5037 = vsel %vm2586, %v5035, %v5036
    %v5038 = vrot.slane %v5036, 4
    %v5039 = vrot.slane %v4094, 5
    %v5040 = vsel %vm2586, %v5038, %v5039
    %v5041 = vrot.slane %v4895, 5
    %v5042 = vrot.slane %v5041, 4
    %v5043 = vrot.slane %v4035, 5
    %v5044 = vsel %vm2586, %v5042, %v5043
    %v5045 = vrot.slane %v5043, 4
    %v5046 = vrot.slane %v4095, 5
    %v5047 = vsel %vm2586, %v5045, %v5046
    %v5048 = vrot.slane %v4896, 5
    %v5049 = vrot.slane %v5048, 4
    %v5050 = vrot.slane %v4037, 5
    %v5051 = vsel %vm2586, %v5049, %v5050
    %v5052 = vrot.slane %v5050, 4
    %v5053 = vrot.slane %v4096, 5
    %v5054 = vsel %vm2586, %v5052, %v5053
    %v5055 = vrot.slane %v4897, 5
    %v5056 = vrot.slane %v5055, 4
    %v5057 = vrot.slane %v4039, 5
    %v5058 = vsel %vm2586, %v5056, %v5057
    %v5059 = vrot.slane %v5057, 4
    %v5060 = vrot.slane %v4097, 5
    %v5061 = vsel %vm2586, %v5059, %v5060
    %v5062 = vrot.slane %v4898, 5
    %v5063 = vrot.slane %v5062, 4
    %v5064 = vrot.slane %v4041, 5
    %v5065 = vsel %vm2586, %v5063, %v5064
    %v5066 = vrot.slane %v5064, 4
    %v5067 = vrot.slane %v4098, 5
    %v5068 = vsel %vm2586, %v5066, %v5067
    %v5069 = vrot.slane %v4899, 5
    %v5070 = vrot.slane %v5069, 4
    %v5071 = vrot.slane %v4043, 5
    %v5072 = vsel %vm2586, %v5070, %v5071
    %v5073 = vrot.slane %v5071, 4
    %v5074 = vrot.slane %v4099, 5
    %v5075 = vsel %vm2586, %v5073, %v5074
    %v5076 = vrot.slane %v4900, 5
    %v5077 = vrot.slane %v5076, 4
    %v5078 = vrot.slane %v4045, 5
    %v5079 = vsel %vm2586, %v5077, %v5078
    %v5080 = vrot.slane %v5078, 4
    %v5081 = vrot.slane %v4100, 5
    %v5082 = vsel %vm2586, %v5080, %v5081
    %v5083 = vrot.slane %v4901, 5
    %v5084 = vrot.slane %v5083, 4
    %v5085 = vrot.slane %v4047, 5
    %v5086 = vsel %vm2586, %v5084, %v5085
    %v5087 = vrot.slane %v5085, 4
    %v5088 = vrot.slane %v4101, 5
    %v5089 = vsel %vm2586, %v5087, %v5088
    %v5090 = vrot.slane %v4902, 5
    %v5091 = vrot.slane %v5090, 4
    %v5092 = vrot.slane %v4049, 5
    %v5093 = vsel %vm2586, %v5091, %v5092
    %v5094 = vrot.slane %v5092, 4
    %v5095 = vrot.slane %v4102, 5
    %v5096 = vsel %vm2586, %v5094, %v5095
    %v5097 = vrot.slane %v4903, 5
    %v5098 = vrot.slane %v5097, 4
    %v5099 = vrot.slane %v4051, 5
    %v5100 = vsel %vm2586, %v5098, %v5099
    %v5101 = vrot.slane %v5099, 4
    %v5102 = vrot.slane %v4103, 5
    %v5103 = vsel %vm2586, %v5101, %v5102
    %v5104 = vrot.slane %v4904, 5
    %v5105 = vrot.slane %v5104, 4
    %v5106 = vrot.slane %v4053, 5
    %v5107 = vsel %vm2586, %v5105, %v5106
    %v5108 = vrot.slane %v5106, 4
    %v5109 = vrot.slane %v4104, 5
    %v5110 = vsel %vm2586, %v5108, %v5109
    %v5111 = vrot.slane %v4905, 5
    %v5112 = vrot.slane %v5111, 4
    %v5113 = vrot.slane %v4055, 5
    %v5114 = vsel %vm2586, %v5112, %v5113
    %v5115 = vrot.slane %v5113, 4
    %v5116 = vrot.slane %v4105, 5
    %v5117 = vsel %vm2586, %v5115, %v5116
    %v5118 = vrot.slane %v4906, 5
    %v5119 = vrot.slane %v5118, 4
    %v5120 = vrot.slane %v4057, 5
    %v5121 = vsel %vm2586, %v5119, %v5120
    %v5122 = vrot.slane %v5120, 4
    %v5123 = vrot.slane %v4106, 5
    %v5124 = vsel %vm2586, %v5122, %v5123
    %v5125 = vrot.slane %v4907, 5
    %v5126 = vrot.slane %v5125, 4
    %v5127 = vrot.slane %v4059, 5
    %v5128 = vsel %vm2586, %v5126, %v5127
    %v5129 = vrot.slane %v5127, 4
    %v5130 = vrot.slane %v4107, 5
    %v5131 = vsel %vm2586, %v5129, %v5130
    %v5132 = vrot.slane %v4908, 5
    %v5133 = vrot.slane %v5132, 4
    %v5134 = vrot.slane %v4061, 5
    %v5135 = vsel %vm2586, %v5133, %v5134
    %v5136 = vrot.slane %v5134, 4
    %v5137 = vrot.slane %v4108, 5
    %v5138 = vsel %vm2586, %v5136, %v5137
    %v5139 = vrot.slane %v4909, 5
    %v5140 = vrot.slane %v5139, 4
    %v5141 = vrot.slane %v4063, 5
    %v5142 = vsel %vm2586, %v5140, %v5141
    %v5143 = vrot.slane %v5141, 4
    %v5144 = vrot.slane %v4109, 5
    %v5145 = vsel %vm2586, %v5143, %v5144
    %v5146 = vrot.slane %v4910, 5
    %v5147 = vrot.slane %v5146, 4
    %v5148 = vrot.slane %v4065, 5
    %v5149 = vsel %vm2586, %v5147, %v5148
    %v5150 = vrot.slane %v5148, 4
    %v5151 = vrot.slane %v4110, 5
    %v5152 = vsel %vm2586, %v5150, %v5151
    %v5153 = vrot.slane %v4911, 5
    %v5154 = vrot.slane %v5153, 4
    %v5155 = vrot.slane %v4067, 5
    %v5156 = vsel %vm2586, %v5154, %v5155
    %v5157 = vrot.slane %v5155, 4
    %v5158 = vrot.slane %v4111, 5
    %v5159 = vsel %vm2586, %v5157, %v5158
    %v5160 = vrot.slane %v4912, 5
    %v5161 = vrot.slane %v5160, 4
    %v5162 = vrot.slane %v4069, 5
    %v5163 = vsel %vm2586, %v5161, %v5162
    %v5164 = vrot.slane %v5162, 4
    %v5165 = vrot.slane %v4112, 5
    %v5166 = vsel %vm2586, %v5164, %v5165
    %v5167 = vrot.slane %v4913, 5
    %v5168 = vrot.slane %v5167, 4
    %v5169 = vrot.slane %v4071, 5
    %v5170 = vsel %vm2586, %v5168, %v5169
    %v5171 = vrot.slane %v5169, 4
    %v5172 = vrot.slane %v4113, 5
    %v5173 = vsel %vm2586, %v5171, %v5172
    %v5174 = vrot.slane %v4914, 5
    %v5175 = vrot.slane %v5174, 4
    %v5176 = vrot.slane %v4073, 5
    %v5177 = vsel %vm2586, %v5175, %v5176
    %v5178 = vrot.slane %v5176, 4
    %v5179 = vrot.slane %v4114, 5
    %v5180 = vsel %vm2586, %v5178, %v5179
    %v5181 = vrot.slane %v4915, 5
    %v5182 = vrot.slane %v5181, 4
    %v5183 = vrot.slane %v4075, 5
    %v5184 = vsel %vm2586, %v5182, %v5183
    %v5185 = vrot.slane %v5183, 4
    %v5186 = vrot.slane %v4115, 5
    %v5187 = vsel %vm2586, %v5185, %v5186
    %v5188 = vrot.slane %v4916, 5
    %v5189 = vrot.slane %v5188, 4
    %v5190 = vrot.slane %v4077, 5
    %v5191 = vsel %vm2586, %v5189, %v5190
    %v5192 = vrot.slane %v5190, 4
    %v5193 = vrot.slane %v4116, 5
    %v5194 = vsel %vm2586, %v5192, %v5193
    %v5195 = vrot.slane %v4917, 5
    %v5196 = vrot.slane %v5195, 4
    %v5197 = vrot.slane %v4079, 5
    %v5198 = vsel %vm2586, %v5196, %v5197
    %v5199 = vrot.slane %v5197, 4
    %v5200 = vrot.slane %v4117, 5
    %v5201 = vsel %vm2586, %v5199, %v5200
    %v5202 = vrot.slane %v4918, 5
    %v5203 = vrot.slane %v5202, 4
    %v5204 = vrot.slane %v4081, 5
    %v5205 = vsel %vm2586, %v5203, %v5204
    %v5206 = vrot.slane %v5204, 4
    %v5207 = vrot.slane %v4118, 5
    %v5208 = vsel %vm2586, %v5206, %v5207
    %v5209 = vrot.slane %v4919, 5
    %v5210 = vrot.slane %v5209, 4
    %v5211 = vrot.slane %v4083, 5
    %v5212 = vsel %vm2586, %v5210, %v5211
    %v5213 = vrot.slane %v5211, 4
    %v5214 = vrot.slane %v4119, 5
    %v5215 = vsel %vm2586, %v5213, %v5214
    %v5216 = vrot.slane %v4920, 5
    %v5217 = vrot.slane %v5216, 4
    %v5218 = vrot.slane %v4085, 5
    %v5219 = vsel %vm2586, %v5217, %v5218
    %v5220 = vrot.slane %v5218, 4
    %v5221 = vrot.slane %v4120, 5
    %v5222 = vsel %vm2586, %v5220, %v5221
    %v5223 = vrot.slane %v4921, 5
    %v5224 = vrot.slane %v5223, 4
    %v5225 = vrot.slane %v4087, 5
    %v5226 = vsel %vm2586, %v5224, %v5225
    %v5227 = vrot.slane %v5225, 4
    %v5228 = vrot.slane %v4121, 5
    %v5229 = vsel %vm2586, %v5227, %v5228
    %v5230 = vrot.slane %v4922, 5
    %v5231 = vrot.slane %v5230, 4
    %v5232 = vrot.slane %v4089, 5
    %v5233 = vsel %vm2586, %v5231, %v5232
    %v5234 = vrot.slane %v5232, 4
    %v5235 = vrot.slane %v4122, 5
    %v5236 = vsel %vm2586, %v5234, %v5235
    %v5237 = vrot.slane %v4923, 5
    %v5238 = vrot.slane %v5237, 4
    %v5239 = vrot.slane %v4091, 5
    %v5240 = vsel %vm2586, %v5238, %v5239
    %v5241 = vrot.slane %v5239, 4
    %v5242 = vrot.slane %v4123, 5
    %v5243 = vsel %vm2586, %v5241, %v5242
    %v5276 = vunpack.c.l.b16 %v1589
    %v5277 = vunpack.c.l.b16 %v1590
    %v5278 = vunpack.c.l.b16 %v1591
    %v5279 = vunpack.c.l.b16 %v1592
    %v5280 = vunpack.c.l.b16 %v1593
    %v5281 = vunpack.c.l.b16 %v1594
    %v5282 = vunpack.c.l.b16 %v1595
    %v5283 = vunpack.c.l.b16 %v1596
    %v5284 = vunpack.c.l.b16 %v1597
    %v5285 = vunpack.c.l.b16 %v1598
    %v5286 = vunpack.c.l.b16 %v1599
    %v5287 = vunpack.c.l.b16 %v1600
    %v5288 = vunpack.c.l.b16 %v1601
    %v5289 = vunpack.c.l.b16 %v1602
    %v5290 = vunpack.c.l.b16 %v1603
    %v5291 = vunpack.c.l.b16 %v1604
    %v5292 = vunpack.c.l.b16 %v1605
    %v5293 = vunpack.c.l.b16 %v1606
    %v5294 = vunpack.c.l.b16 %v1607
    %v5295 = vunpack.c.l.b16 %v1608
    %v5296 = vunpack.c.l.b16 %v1609
    %v5297 = vunpack.c.l.b16 %v1610
    %v5298 = vunpack.c.l.b16 %v1611
    %v5299 = vunpack.c.l.b16 %v1612
    %v5300 = vunpack.c.l.b16 %v1613
    %v5301 = vunpack.c.l.b16 %v1614
    %v5302 = vunpack.c.l.b16 %v1615
    %v5303 = vunpack.c.l.b16 %v1616
    %v5304 = vunpack.c.l.b16 %v1617
    %v5305 = vunpack.c.l.b16 %v1618
    %v5306 = vunpack.c.l.b16 %v1619
    %v5307 = vunpack.c.l.b16 %v1620
    %v5308 = vunpack.c.l.b16 %v1621
    %v5309 = vunpack.c.l.b16 %v1622
    %v5310 = vunpack.c.l.b16 %v1623
    %v5311 = vunpack.c.l.b16 %v1624
    %v5312 = vunpack.c.l.b16 %v1625
    %v5313 = vunpack.c.l.b16 %v1626
    %v5314 = vunpack.c.l.b16 %v1627
    %v5315 = vunpack.c.l.b16 %v1628
    %v5316 = vunpack.c.l.b16 %v1629
    %v5317 = vunpack.c.l.b16 %v1630
    %v5318 = vunpack.c.l.b16 %v1631
    %v5319 = vunpack.c.l.b16 %v1632
    %v5320 = vunpack.c.l.b16 %v1633
    %v5321 = vunpack.c.l.b16 %v1634
    %v5322 = vunpack.c.l.b16 %v1635
    %v5323 = vunpack.c.l.b16 %v1636
    %v5324 = vunpack.c.l.b16 %v1637
    %v5325 = vunpack.c.l.b16 %v1638
    %v5326 = vunpack.c.l.b16 %v1639
    %v5327 = vunpack.c.l.b16 %v1640
    %v5328 = vunpack.c.l.b16 %v1641
    %v5329 = vunpack.c.l.b16 %v1642
    %v5330 = vunpack.c.l.b16 %v1643
    %v5331 = vunpack.c.l.b16 %v1644
    %v5332 = vunpack.c.l.b16 %v1645
    %v5333 = vunpack.c.l.b16 %v1646
    %v5334 = vunpack.c.l.b16 %v1647
    %v5335 = vunpack.c.l.b16 %v1648
    %v5336 = vunpack.c.l.b16 %v1649
    %v5337 = vunpack.c.l.b16 %v1650
    %v5338 = vunpack.c.l.b16 %v1651
    %v5339 = vunpack.c.l.b16 %v1652
    %v5340 = vpack.c.b16 %v5277, %v5276
    %v5341 = vpack.c.b16 %v5279, %v5278
    %v5342 = vpack.c.b16 %v5281, %v5280
    %v5343 = vpack.c.b16 %v5283, %v5282
    %v5344 = vpack.c.b16 %v5285, %v5284
    %v5345 = vpack.c.b16 %v5287, %v5286
    %v5346 = vpack.c.b16 %v5289, %v5288
    %v5347 = vpack.c.b16 %v5291, %v5290
    %v5348 = vpack.c.b16 %v5293, %v5292
    %v5349 = vpack.c.b16 %v5295, %v5294
    %v5350 = vpack.c.b16 %v5297, %v5296
    %v5351 = vpack.c.b16 %v5299, %v5298
    %v5352 = vpack.c.b16 %v5301, %v5300
    %v5353 = vpack.c.b16 %v5303, %v5302
    %v5354 = vpack.c.b16 %v5305, %v5304
    %v5355 = vpack.c.b16 %v5307, %v5306
    %v5356 = vpack.c.b16 %v5309, %v5308
    %v5357 = vpack.c.b16 %v5311, %v5310
    %v5358 = vpack.c.b16 %v5313, %v5312
    %v5359 = vpack.c.b16 %v5315, %v5314
    %v5360 = vpack.c.b16 %v5317, %v5316
    %v5361 = vpack.c.b16 %v5319, %v5318
    %v5362 = vpack.c.b16 %v5321, %v5320
    %v5363 = vpack.c.b16 %v5323, %v5322
    %v5364 = vpack.c.b16 %v5325, %v5324
    %v5365 = vpack.c.b16 %v5327, %v5326
    %v5366 = vpack.c.b16 %v5329, %v5328
    %v5367 = vpack.c.b16 %v5331, %v5330
    %v5368 = vpack.c.b16 %v5333, %v5332
    %v5369 = vpack.c.b16 %v5335, %v5334
    %v5370 = vpack.c.b16 %v5337, %v5336
    %v5371 = vpack.c.b16 %v5339, %v5338
    %v5372 = vunpack.c.l.b16 %v1701
    %v5373 = vunpack.c.l.b16 %v1711
    %v5374 = vunpack.c.l.b16 %v1725
    %v5375 = vunpack.c.l.b16 %v1735
    %v5376 = vunpack.c.l.b16 %v1749
    %v5377 = vunpack.c.l.b16 %v1759
    %v5378 = vunpack.c.l.b16 %v1773
    %v5379 = vunpack.c.l.b16 %v1783
    %v5380 = vunpack.c.l.b16 %v1797
    %v5381 = vunpack.c.l.b16 %v1807
    %v5382 = vunpack.c.l.b16 %v1821
    %v5383 = vunpack.c.l.b16 %v1831
    %v5384 = vunpack.c.l.b16 %v1845
    %v5385 = vunpack.c.l.b16 %v1855
    %v5386 = vunpack.c.l.b16 %v1869
    %v5387 = vunpack.c.l.b16 %v1879
    %v5388 = vunpack.c.l.b16 %v1893
    %v5389 = vunpack.c.l.b16 %v1903
    %v5390 = vunpack.c.l.b16 %v1917
    %v5391 = vunpack.c.l.b16 %v1927
    %v5392 = vunpack.c.l.b16 %v1941
    %v5393 = vunpack.c.l.b16 %v1951
    %v5394 = vunpack.c.l.b16 %v1965
    %v5395 = vunpack.c.l.b16 %v1975
    %v5396 = vunpack.c.l.b16 %v1989
    %v5397 = vunpack.c.l.b16 %v1999
    %v5398 = vunpack.c.l.b16 %v2013
    %v5399 = vunpack.c.l.b16 %v2023
    %v5400 = vunpack.c.l.b16 %v2037
    %v5401 = vunpack.c.l.b16 %v2047
    %v5402 = vunpack.c.l.b16 %v2061
    %v5403 = vunpack.c.l.b16 %v2071
    %v5404 = vunpack.c.l.b16 %v2085
    %v5405 = vunpack.c.l.b16 %v2095
    %v5406 = vunpack.c.l.b16 %v2109
    %v5407 = vunpack.c.l.b16 %v2119
    %v5408 = vunpack.c.l.b16 %v2133
    %v5409 = vunpack.c.l.b16 %v2143
    %v5410 = vunpack.c.l.b16 %v2157
    %v5411 = vunpack.c.l.b16 %v2167
    %v5412 = vunpack.c.l.b16 %v2181
    %v5413 = vunpack.c.l.b16 %v2191
    %v5414 = vunpack.c.l.b16 %v2205
    %v5415 = vunpack.c.l.b16 %v2215
    %v5416 = vunpack.c.l.b16 %v2229
    %v5417 = vunpack.c.l.b16 %v2239
    %v5418 = vunpack.c.l.b16 %v2253
    %v5419 = vunpack.c.l.b16 %v2263
    %v5420 = vunpack.c.l.b16 %v2277
    %v5421 = vunpack.c.l.b16 %v2287
    %v5422 = vunpack.c.l.b16 %v2301
    %v5423 = vunpack.c.l.b16 %v2311
    %v5424 = vunpack.c.l.b16 %v2325
    %v5425 = vunpack.c.l.b16 %v2335
    %v5426 = vunpack.c.l.b16 %v2349
    %v5427 = vunpack.c.l.b16 %v2359
    %v5428 = vunpack.c.l.b16 %v2373
    %v5429 = vunpack.c.l.b16 %v2383
    %v5430 = vunpack.c.l.b16 %v2397
    %v5431 = vunpack.c.l.b16 %v2407
    %v5432 = vunpack.c.l.b16 %v2421
    %v5433 = vunpack.c.l.b16 %v2431
    %v5434 = vunpack.c.l.b16 %v2445
    %v5435 = vunpack.c.l.b16 %v2455
    %v5436 = vpack.c.b16 %v5373, %v5372
    %v5437 = vpack.c.b16 %v5375, %v5374
    %v5438 = vpack.c.b16 %v5377, %v5376
    %v5439 = vpack.c.b16 %v5379, %v5378
    %v5440 = vpack.c.b16 %v5381, %v5380
    %v5441 = vpack.c.b16 %v5383, %v5382
    %v5442 = vpack.c.b16 %v5385, %v5384
    %v5443 = vpack.c.b16 %v5387, %v5386
    %v5444 = vpack.c.b16 %v5389, %v5388
    %v5445 = vpack.c.b16 %v5391, %v5390
    %v5446 = vpack.c.b16 %v5393, %v5392
    %v5447 = vpack.c.b16 %v5395, %v5394
    %v5448 = vpack.c.b16 %v5397, %v5396
    %v5449 = vpack.c.b16 %v5399, %v5398
    %v5450 = vpack.c.b16 %v5401, %v5400
    %v5451 = vpack.c.b16 %v5403, %v5402
    %v5452 = vpack.c.b16 %v5405, %v5404
    %v5453 = vpack.c.b16 %v5407, %v5406
    %v5454 = vpack.c.b16 %v5409, %v5408
    %v5455 = vpack.c.b16 %v5411, %v5410
    %v5456 = vpack.c.b16 %v5413, %v5412
    %v5457 = vpack.c.b16 %v5415, %v5414
    %v5458 = vpack.c.b16 %v5417, %v5416
    %v5459 = vpack.c.b16 %v5419, %v5418
    %v5460 = vpack.c.b16 %v5421, %v5420
    %v5461 = vpack.c.b16 %v5423, %v5422
    %v5462 = vpack.c.b16 %v5425, %v5424
    %v5463 = vpack.c.b16 %v5427, %v5426
    %v5464 = vpack.c.b16 %v5429, %v5428
    %v5465 = vpack.c.b16 %v5431, %v5430
    %v5466 = vpack.c.b16 %v5433, %v5432
    %v5467 = vpack.c.b16 %v5435, %v5434
    %5468 = vrot.lane.b32.xlu0 %v5436, 4
    %v5469 = vpop.permute.xlu0 %5468
    %5470 = vrot.lane.b32.xlu0 %v5437, 4
    %v5471 = vpop.permute.xlu0 %5470
    %5472 = vrot.lane.b32.xlu0 %v5438, 4
    %v5473 = vpop.permute.xlu0 %5472
    %5474 = vrot.lane.b32.xlu0 %v5439, 4
    %v5475 = vpop.permute.xlu0 %5474
    %5476 = vrot.lane.b32.xlu0 %v5440, 4
    %v5477 = vpop.permute.xlu0 %5476
    %5478 = vrot.lane.b32.xlu0 %v5441, 4
    %v5479 = vpop.permute.xlu0 %5478
    %5480 = vrot.lane.b32.xlu0 %v5442, 4
    %v5481 = vpop.permute.xlu0 %5480
    %5482 = vrot.lane.b32.xlu0 %v5443, 4
    %v5483 = vpop.permute.xlu0 %5482
    %5484 = vrot.lane.b32.xlu0 %v5444, 4
    %v5485 = vpop.permute.xlu0 %5484
    %5486 = vrot.lane.b32.xlu0 %v5445, 4
    %v5487 = vpop.permute.xlu0 %5486
    %5488 = vrot.lane.b32.xlu0 %v5446, 4
    %v5489 = vpop.permute.xlu0 %5488
    %5490 = vrot.lane.b32.xlu0 %v5447, 4
    %v5491 = vpop.permute.xlu0 %5490
    %5492 = vrot.lane.b32.xlu0 %v5448, 4
    %v5493 = vpop.permute.xlu0 %5492
    %5494 = vrot.lane.b32.xlu0 %v5449, 4
    %v5495 = vpop.permute.xlu0 %5494
    %5496 = vrot.lane.b32.xlu0 %v5450, 4
    %v5497 = vpop.permute.xlu0 %5496
    %5498 = vrot.lane.b32.xlu0 %v5451, 4
    %v5499 = vpop.permute.xlu0 %5498
    %5500 = vrot.lane.b32.xlu0 %v5452, 4
    %v5501 = vpop.permute.xlu0 %5500
    %5502 = vrot.lane.b32.xlu0 %v5453, 4
    %v5503 = vpop.permute.xlu0 %5502
    %5504 = vrot.lane.b32.xlu0 %v5454, 4
    %v5505 = vpop.permute.xlu0 %5504
    %5506 = vrot.lane.b32.xlu0 %v5455, 4
    %v5507 = vpop.permute.xlu0 %5506
    %5508 = vrot.lane.b32.xlu0 %v5456, 4
    %v5509 = vpop.permute.xlu0 %5508
    %5510 = vrot.lane.b32.xlu0 %v5457, 4
    %v5511 = vpop.permute.xlu0 %5510
    %5512 = vrot.lane.b32.xlu0 %v5458, 4
    %v5513 = vpop.permute.xlu0 %5512
    %5514 = vrot.lane.b32.xlu0 %v5459, 4
    %v5515 = vpop.permute.xlu0 %5514
    %5516 = vrot.lane.b32.xlu0 %v5460, 4
    %v5517 = vpop.permute.xlu0 %5516
    %5518 = vrot.lane.b32.xlu0 %v5461, 4
    %v5519 = vpop.permute.xlu0 %5518
    %5520 = vrot.lane.b32.xlu0 %v5462, 4
    %v5521 = vpop.permute.xlu0 %5520
    %5522 = vrot.lane.b32.xlu0 %v5463, 4
    %v5523 = vpop.permute.xlu0 %5522
    %5524 = vrot.lane.b32.xlu0 %v5464, 4
    %v5525 = vpop.permute.xlu0 %5524
    %5526 = vrot.lane.b32.xlu0 %v5465, 4
    %v5527 = vpop.permute.xlu0 %5526
    %5528 = vrot.lane.b32.xlu0 %v5466, 4
    %v5529 = vpop.permute.xlu0 %5528
    %5530 = vrot.lane.b32.xlu0 %v5467, 4
    %v5531 = vpop.permute.xlu0 %5530
    %v5532 = vunpack.c.l.b16 %v2590
    %v5533 = vunpack.c.l.b16 %v2593
    %v5534 = vunpack.c.l.b16 %v2597
    %v5535 = vunpack.c.l.b16 %v2600
    %v5536 = vunpack.c.l.b16 %v2604
    %v5537 = vunpack.c.l.b16 %v2607
    %v5538 = vunpack.c.l.b16 %v2611
    %v5539 = vunpack.c.l.b16 %v2614
    %v5540 = vunpack.c.l.b16 %v2618
    %v5541 = vunpack.c.l.b16 %v2621
    %v5542 = vunpack.c.l.b16 %v2625
    %v5543 = vunpack.c.l.b16 %v2628
    %v5544 = vunpack.c.l.b16 %v2632
    %v5545 = vunpack.c.l.b16 %v2635
    %v5546 = vunpack.c.l.b16 %v2639
    %v5547 = vunpack.c.l.b16 %v2642
    %v5548 = vunpack.c.l.b16 %v2646
    %v5549 = vunpack.c.l.b16 %v2649
    %v5550 = vunpack.c.l.b16 %v2653
    %v5551 = vunpack.c.l.b16 %v2656
    %v5552 = vunpack.c.l.b16 %v2660
    %v5553 = vunpack.c.l.b16 %v2663
    %v5554 = vunpack.c.l.b16 %v2667
    %v5555 = vunpack.c.l.b16 %v2670
    %v5556 = vunpack.c.l.b16 %v2674
    %v5557 = vunpack.c.l.b16 %v2677
    %v5558 = vunpack.c.l.b16 %v2681
    %v5559 = vunpack.c.l.b16 %v2684
    %v5560 = vunpack.c.l.b16 %v2688
    %v5561 = vunpack.c.l.b16 %v2691
    %v5562 = vunpack.c.l.b16 %v2695
    %v5563 = vunpack.c.l.b16 %v2698
    %v5564 = vunpack.c.l.b16 %v2702
    %v5565 = vunpack.c.l.b16 %v2705
    %v5566 = vunpack.c.l.b16 %v2709
    %v5567 = vunpack.c.l.b16 %v2712
    %v5568 = vunpack.c.l.b16 %v2716
    %v5569 = vunpack.c.l.b16 %v2719
    %v5570 = vunpack.c.l.b16 %v2723
    %v5571 = vunpack.c.l.b16 %v2726
    %v5572 = vunpack.c.l.b16 %v2730
    %v5573 = vunpack.c.l.b16 %v2733
    %v5574 = vunpack.c.l.b16 %v2737
    %v5575 = vunpack.c.l.b16 %v2740
    %v5576 = vunpack.c.l.b16 %v2744
    %v5577 = vunpack.c.l.b16 %v2747
    %v5578 = vunpack.c.l.b16 %v2751
    %v5579 = vunpack.c.l.b16 %v2754
    %v5580 = vunpack.c.l.b16 %v2758
    %v5581 = vunpack.c.l.b16 %v2761
    %v5582 = vunpack.c.l.b16 %v2765
    %v5583 = vunpack.c.l.b16 %v2768
    %v5584 = vunpack.c.l.b16 %v2772
    %v5585 = vunpack.c.l.b16 %v2775
    %v5586 = vunpack.c.l.b16 %v2779
    %v5587 = vunpack.c.l.b16 %v2782
    %v5588 = vunpack.c.l.b16 %v2786
    %v5589 = vunpack.c.l.b16 %v2789
    %v5590 = vunpack.c.l.b16 %v2793
    %v5591 = vunpack.c.l.b16 %v2796
    %v5592 = vunpack.c.l.b16 %v2800
    %v5593 = vunpack.c.l.b16 %v2803
    %v5594 = vunpack.c.l.b16 %v2807
    %v5595 = vunpack.c.l.b16 %v2810
    %v5596 = vpack.c.b16 %v5533, %v5532
    %v5597 = vpack.c.b16 %v5535, %v5534
    %v5598 = vpack.c.b16 %v5537, %v5536
    %v5599 = vpack.c.b16 %v5539, %v5538
    %v5600 = vpack.c.b16 %v5541, %v5540
    %v5601 = vpack.c.b16 %v5543, %v5542
    %v5602 = vpack.c.b16 %v5545, %v5544
    %v5603 = vpack.c.b16 %v5547, %v5546
    %v5604 = vpack.c.b16 %v5549, %v5548
    %v5605 = vpack.c.b16 %v5551, %v5550
    %v5606 = vpack.c.b16 %v5553, %v5552
    %v5607 = vpack.c.b16 %v5555, %v5554
    %v5608 = vpack.c.b16 %v5557, %v5556
    %v5609 = vpack.c.b16 %v5559, %v5558
    %v5610 = vpack.c.b16 %v5561, %v5560
    %v5611 = vpack.c.b16 %v5563, %v5562
    %v5612 = vpack.c.b16 %v5565, %v5564
    %v5613 = vpack.c.b16 %v5567, %v5566
    %v5614 = vpack.c.b16 %v5569, %v5568
    %v5615 = vpack.c.b16 %v5571, %v5570
    %v5616 = vpack.c.b16 %v5573, %v5572
    %v5617 = vpack.c.b16 %v5575, %v5574
    %v5618 = vpack.c.b16 %v5577, %v5576
    %v5619 = vpack.c.b16 %v5579, %v5578
    %v5620 = vpack.c.b16 %v5581, %v5580
    %v5621 = vpack.c.b16 %v5583, %v5582
    %v5622 = vpack.c.b16 %v5585, %v5584
    %v5623 = vpack.c.b16 %v5587, %v5586
    %v5624 = vpack.c.b16 %v5589, %v5588
    %v5625 = vpack.c.b16 %v5591, %v5590
    %v5626 = vpack.c.b16 %v5593, %v5592
    %v5627 = vpack.c.b16 %v5595, %v5594
    %5628 = vrot.lane.b32.xlu0 %v5596, 8
    %v5629 = vpop.permute.xlu0 %5628
    %5630 = vrot.lane.b32.xlu0 %v5597, 8
    %v5631 = vpop.permute.xlu0 %5630
    %5632 = vrot.lane.b32.xlu0 %v5598, 8
    %v5633 = vpop.permute.xlu0 %5632
    %5634 = vrot.lane.b32.xlu0 %v5599, 8
    %v5635 = vpop.permute.xlu0 %5634
    %5636 = vrot.lane.b32.xlu0 %v5600, 8
    %v5637 = vpop.permute.xlu0 %5636
    %5638 = vrot.lane.b32.xlu0 %v5601, 8
    %v5639 = vpop.permute.xlu0 %5638
    %5640 = vrot.lane.b32.xlu0 %v5602, 8
    %v5641 = vpop.permute.xlu0 %5640
    %5642 = vrot.lane.b32.xlu0 %v5603, 8
    %v5643 = vpop.permute.xlu0 %5642
    %5644 = vrot.lane.b32.xlu0 %v5604, 8
    %v5645 = vpop.permute.xlu0 %5644
    %5646 = vrot.lane.b32.xlu0 %v5605, 8
    %v5647 = vpop.permute.xlu0 %5646
    %5648 = vrot.lane.b32.xlu0 %v5606, 8
    %v5649 = vpop.permute.xlu0 %5648
    %5650 = vrot.lane.b32.xlu0 %v5607, 8
    %v5651 = vpop.permute.xlu0 %5650
    %5652 = vrot.lane.b32.xlu0 %v5608, 8
    %v5653 = vpop.permute.xlu0 %5652
    %5654 = vrot.lane.b32.xlu0 %v5609, 8
    %v5655 = vpop.permute.xlu0 %5654
    %5656 = vrot.lane.b32.xlu0 %v5610, 8
    %v5657 = vpop.permute.xlu0 %5656
    %5658 = vrot.lane.b32.xlu0 %v5611, 8
    %v5659 = vpop.permute.xlu0 %5658
    %5660 = vrot.lane.b32.xlu0 %v5612, 8
    %v5661 = vpop.permute.xlu0 %5660
    %5662 = vrot.lane.b32.xlu0 %v5613, 8
    %v5663 = vpop.permute.xlu0 %5662
    %5664 = vrot.lane.b32.xlu0 %v5614, 8
    %v5665 = vpop.permute.xlu0 %5664
    %5666 = vrot.lane.b32.xlu0 %v5615, 8
    %v5667 = vpop.permute.xlu0 %5666
    %5668 = vrot.lane.b32.xlu0 %v5616, 8
    %v5669 = vpop.permute.xlu0 %5668
    %5670 = vrot.lane.b32.xlu0 %v5617, 8
    %v5671 = vpop.permute.xlu0 %5670
    %5672 = vrot.lane.b32.xlu0 %v5618, 8
    %v5673 = vpop.permute.xlu0 %5672
    %5674 = vrot.lane.b32.xlu0 %v5619, 8
    %v5675 = vpop.permute.xlu0 %5674
    %5676 = vrot.lane.b32.xlu0 %v5620, 8
    %v5677 = vpop.permute.xlu0 %5676
    %5678 = vrot.lane.b32.xlu0 %v5621, 8
    %v5679 = vpop.permute.xlu0 %5678
    %5680 = vrot.lane.b32.xlu0 %v5622, 8
    %v5681 = vpop.permute.xlu0 %5680
    %5682 = vrot.lane.b32.xlu0 %v5623, 8
    %v5683 = vpop.permute.xlu0 %5682
    %5684 = vrot.lane.b32.xlu0 %v5624, 8
    %v5685 = vpop.permute.xlu0 %5684
    %5686 = vrot.lane.b32.xlu0 %v5625, 8
    %v5687 = vpop.permute.xlu0 %5686
    %5688 = vrot.lane.b32.xlu0 %v5626, 8
    %v5689 = vpop.permute.xlu0 %5688
    %5690 = vrot.lane.b32.xlu0 %v5627, 8
    %v5691 = vpop.permute.xlu0 %5690
    %v5724 = vunpack.c.l.b16 %v2811
    %v5725 = vunpack.c.l.b16 %v2812
    %v5726 = vunpack.c.l.b16 %v2813
    %v5727 = vunpack.c.l.b16 %v2814
    %v5728 = vunpack.c.l.b16 %v2815
    %v5729 = vunpack.c.l.b16 %v2816
    %v5730 = vunpack.c.l.b16 %v2817
    %v5731 = vunpack.c.l.b16 %v2818
    %v5732 = vunpack.c.l.b16 %v2819
    %v5733 = vunpack.c.l.b16 %v2820
    %v5734 = vunpack.c.l.b16 %v2821
    %v5735 = vunpack.c.l.b16 %v2822
    %v5736 = vunpack.c.l.b16 %v2823
    %v5737 = vunpack.c.l.b16 %v2824
    %v5738 = vunpack.c.l.b16 %v2825
    %v5739 = vunpack.c.l.b16 %v2826
    %v5740 = vunpack.c.l.b16 %v2827
    %v5741 = vunpack.c.l.b16 %v2828
    %v5742 = vunpack.c.l.b16 %v2829
    %v5743 = vunpack.c.l.b16 %v2830
    %v5744 = vunpack.c.l.b16 %v2831
    %v5745 = vunpack.c.l.b16 %v2832
    %v5746 = vunpack.c.l.b16 %v2833
    %v5747 = vunpack.c.l.b16 %v2834
    %v5748 = vunpack.c.l.b16 %v2835
    %v5749 = vunpack.c.l.b16 %v2836
    %v5750 = vunpack.c.l.b16 %v2837
    %v5751 = vunpack.c.l.b16 %v2838
    %v5752 = vunpack.c.l.b16 %v2839
    %v5753 = vunpack.c.l.b16 %v2840
    %v5754 = vunpack.c.l.b16 %v2841
    %v5755 = vunpack.c.l.b16 %v2842
    %v5756 = vunpack.c.l.b16 %v2843
    %v5757 = vunpack.c.l.b16 %v2844
    %v5758 = vunpack.c.l.b16 %v2845
    %v5759 = vunpack.c.l.b16 %v2846
    %v5760 = vunpack.c.l.b16 %v2847
    %v5761 = vunpack.c.l.b16 %v2848
    %v5762 = vunpack.c.l.b16 %v2849
    %v5763 = vunpack.c.l.b16 %v2850
    %v5764 = vunpack.c.l.b16 %v2851
    %v5765 = vunpack.c.l.b16 %v2852
    %v5766 = vunpack.c.l.b16 %v2853
    %v5767 = vunpack.c.l.b16 %v2854
    %v5768 = vunpack.c.l.b16 %v2855
    %v5769 = vunpack.c.l.b16 %v2856
    %v5770 = vunpack.c.l.b16 %v2857
    %v5771 = vunpack.c.l.b16 %v2858
    %v5772 = vunpack.c.l.b16 %v2859
    %v5773 = vunpack.c.l.b16 %v2860
    %v5774 = vunpack.c.l.b16 %v2861
    %v5775 = vunpack.c.l.b16 %v2862
    %v5776 = vunpack.c.l.b16 %v2863
    %v5777 = vunpack.c.l.b16 %v2864
    %v5778 = vunpack.c.l.b16 %v2865
    %v5779 = vunpack.c.l.b16 %v2866
    %v5780 = vunpack.c.l.b16 %v2867
    %v5781 = vunpack.c.l.b16 %v2868
    %v5782 = vunpack.c.l.b16 %v2869
    %v5783 = vunpack.c.l.b16 %v2870
    %v5784 = vunpack.c.l.b16 %v2871
    %v5785 = vunpack.c.l.b16 %v2872
    %v5786 = vunpack.c.l.b16 %v2873
    %v5787 = vunpack.c.l.b16 %v2874
    %v5788 = vpack.c.b16 %v5725, %v5724
    %v5789 = vpack.c.b16 %v5727, %v5726
    %v5790 = vpack.c.b16 %v5729, %v5728
    %v5791 = vpack.c.b16 %v5731, %v5730
    %v5792 = vpack.c.b16 %v5733, %v5732
    %v5793 = vpack.c.b16 %v5735, %v5734
    %v5794 = vpack.c.b16 %v5737, %v5736
    %v5795 = vpack.c.b16 %v5739, %v5738
    %v5796 = vpack.c.b16 %v5741, %v5740
    %v5797 = vpack.c.b16 %v5743, %v5742
    %v5798 = vpack.c.b16 %v5745, %v5744
    %v5799 = vpack.c.b16 %v5747, %v5746
    %v5800 = vpack.c.b16 %v5749, %v5748
    %v5801 = vpack.c.b16 %v5751, %v5750
    %v5802 = vpack.c.b16 %v5753, %v5752
    %v5803 = vpack.c.b16 %v5755, %v5754
    %v5804 = vpack.c.b16 %v5757, %v5756
    %v5805 = vpack.c.b16 %v5759, %v5758
    %v5806 = vpack.c.b16 %v5761, %v5760
    %v5807 = vpack.c.b16 %v5763, %v5762
    %v5808 = vpack.c.b16 %v5765, %v5764
    %v5809 = vpack.c.b16 %v5767, %v5766
    %v5810 = vpack.c.b16 %v5769, %v5768
    %v5811 = vpack.c.b16 %v5771, %v5770
    %v5812 = vpack.c.b16 %v5773, %v5772
    %v5813 = vpack.c.b16 %v5775, %v5774
    %v5814 = vpack.c.b16 %v5777, %v5776
    %v5815 = vpack.c.b16 %v5779, %v5778
    %v5816 = vpack.c.b16 %v5781, %v5780
    %v5817 = vpack.c.b16 %v5783, %v5782
    %v5818 = vpack.c.b16 %v5785, %v5784
    %v5819 = vpack.c.b16 %v5787, %v5786
    %5820 = vrot.lane.b32.xlu0 %v5788, 12
    %v5821 = vpop.permute.xlu0 %5820
    %5822 = vrot.lane.b32.xlu0 %v5789, 12
    %v5823 = vpop.permute.xlu0 %5822
    %5824 = vrot.lane.b32.xlu0 %v5790, 12
    %v5825 = vpop.permute.xlu0 %5824
    %5826 = vrot.lane.b32.xlu0 %v5791, 12
    %v5827 = vpop.permute.xlu0 %5826
    %5828 = vrot.lane.b32.xlu0 %v5792, 12
    %v5829 = vpop.permute.xlu0 %5828
    %5830 = vrot.lane.b32.xlu0 %v5793, 12
    %v5831 = vpop.permute.xlu0 %5830
    %5832 = vrot.lane.b32.xlu0 %v5794, 12
    %v5833 = vpop.permute.xlu0 %5832
    %5834 = vrot.lane.b32.xlu0 %v5795, 12
    %v5835 = vpop.permute.xlu0 %5834
    %5836 = vrot.lane.b32.xlu0 %v5796, 12
    %v5837 = vpop.permute.xlu0 %5836
    %5838 = vrot.lane.b32.xlu0 %v5797, 12
    %v5839 = vpop.permute.xlu0 %5838
    %5840 = vrot.lane.b32.xlu0 %v5798, 12
    %v5841 = vpop.permute.xlu0 %5840
    %5842 = vrot.lane.b32.xlu0 %v5799, 12
    %v5843 = vpop.permute.xlu0 %5842
    %5844 = vrot.lane.b32.xlu0 %v5800, 12
    %v5845 = vpop.permute.xlu0 %5844
    %5846 = vrot.lane.b32.xlu0 %v5801, 12
    %v5847 = vpop.permute.xlu0 %5846
    %5848 = vrot.lane.b32.xlu0 %v5802, 12
    %v5849 = vpop.permute.xlu0 %5848
    %5850 = vrot.lane.b32.xlu0 %v5803, 12
    %v5851 = vpop.permute.xlu0 %5850
    %5852 = vrot.lane.b32.xlu0 %v5804, 12
    %v5853 = vpop.permute.xlu0 %5852
    %5854 = vrot.lane.b32.xlu0 %v5805, 12
    %v5855 = vpop.permute.xlu0 %5854
    %5856 = vrot.lane.b32.xlu0 %v5806, 12
    %v5857 = vpop.permute.xlu0 %5856
    %5858 = vrot.lane.b32.xlu0 %v5807, 12
    %v5859 = vpop.permute.xlu0 %5858
    %5860 = vrot.lane.b32.xlu0 %v5808, 12
    %v5861 = vpop.permute.xlu0 %5860
    %5862 = vrot.lane.b32.xlu0 %v5809, 12
    %v5863 = vpop.permute.xlu0 %5862
    %5864 = vrot.lane.b32.xlu0 %v5810, 12
    %v5865 = vpop.permute.xlu0 %5864
    %5866 = vrot.lane.b32.xlu0 %v5811, 12
    %v5867 = vpop.permute.xlu0 %5866
    %5868 = vrot.lane.b32.xlu0 %v5812, 12
    %v5869 = vpop.permute.xlu0 %5868
    %5870 = vrot.lane.b32.xlu0 %v5813, 12
    %v5871 = vpop.permute.xlu0 %5870
    %5872 = vrot.lane.b32.xlu0 %v5814, 12
    %v5873 = vpop.permute.xlu0 %5872
    %5874 = vrot.lane.b32.xlu0 %v5815, 12
    %v5875 = vpop.permute.xlu0 %5874
    %5876 = vrot.lane.b32.xlu0 %v5816, 12
    %v5877 = vpop.permute.xlu0 %5876
    %5878 = vrot.lane.b32.xlu0 %v5817, 12
    %v5879 = vpop.permute.xlu0 %5878
    %5880 = vrot.lane.b32.xlu0 %v5818, 12
    %v5881 = vpop.permute.xlu0 %5880
    %5882 = vrot.lane.b32.xlu0 %v5819, 12
    %v5883 = vpop.permute.xlu0 %5882
    %v5884 = vunpack.c.l.b16 %v2920
    %v5885 = vunpack.c.l.b16 %v2930
    %v5886 = vunpack.c.l.b16 %v2944
    %v5887 = vunpack.c.l.b16 %v2954
    %v5888 = vunpack.c.l.b16 %v2968
    %v5889 = vunpack.c.l.b16 %v2978
    %v5890 = vunpack.c.l.b16 %v2992
    %v5891 = vunpack.c.l.b16 %v3002
    %v5892 = vunpack.c.l.b16 %v3016
    %v5893 = vunpack.c.l.b16 %v3026
    %v5894 = vunpack.c.l.b16 %v3040
    %v5895 = vunpack.c.l.b16 %v3050
    %v5896 = vunpack.c.l.b16 %v3064
    %v5897 = vunpack.c.l.b16 %v3074
    %v5898 = vunpack.c.l.b16 %v3088
    %v5899 = vunpack.c.l.b16 %v3098
    %v5900 = vunpack.c.l.b16 %v3112
    %v5901 = vunpack.c.l.b16 %v3122
    %v5902 = vunpack.c.l.b16 %v3136
    %v5903 = vunpack.c.l.b16 %v3146
    %v5904 = vunpack.c.l.b16 %v3160
    %v5905 = vunpack.c.l.b16 %v3170
    %v5906 = vunpack.c.l.b16 %v3184
    %v5907 = vunpack.c.l.b16 %v3194
    %v5908 = vunpack.c.l.b16 %v3208
    %v5909 = vunpack.c.l.b16 %v3218
    %v5910 = vunpack.c.l.b16 %v3232
    %v5911 = vunpack.c.l.b16 %v3242
    %v5912 = vunpack.c.l.b16 %v3256
    %v5913 = vunpack.c.l.b16 %v3266
    %v5914 = vunpack.c.l.b16 %v3280
    %v5915 = vunpack.c.l.b16 %v3290
    %v5916 = vunpack.c.l.b16 %v3304
    %v5917 = vunpack.c.l.b16 %v3314
    %v5918 = vunpack.c.l.b16 %v3328
    %v5919 = vunpack.c.l.b16 %v3338
    %v5920 = vunpack.c.l.b16 %v3352
    %v5921 = vunpack.c.l.b16 %v3362
    %v5922 = vunpack.c.l.b16 %v3376
    %v5923 = vunpack.c.l.b16 %v3386
    %v5924 = vunpack.c.l.b16 %v3400
    %v5925 = vunpack.c.l.b16 %v3410
    %v5926 = vunpack.c.l.b16 %v3424
    %v5927 = vunpack.c.l.b16 %v3434
    %v5928 = vunpack.c.l.b16 %v3448
    %v5929 = vunpack.c.l.b16 %v3458
    %v5930 = vunpack.c.l.b16 %v3472
    %v5931 = vunpack.c.l.b16 %v3482
    %v5932 = vunpack.c.l.b16 %v3496
    %v5933 = vunpack.c.l.b16 %v3506
    %v5934 = vunpack.c.l.b16 %v3520
    %v5935 = vunpack.c.l.b16 %v3530
    %v5936 = vunpack.c.l.b16 %v3544
    %v5937 = vunpack.c.l.b16 %v3554
    %v5938 = vunpack.c.l.b16 %v3568
    %v5939 = vunpack.c.l.b16 %v3578
    %v5940 = vunpack.c.l.b16 %v3592
    %v5941 = vunpack.c.l.b16 %v3602
    %v5942 = vunpack.c.l.b16 %v3616
    %v5943 = vunpack.c.l.b16 %v3626
    %v5944 = vunpack.c.l.b16 %v3640
    %v5945 = vunpack.c.l.b16 %v3650
    %v5946 = vunpack.c.l.b16 %v3664
    %v5947 = vunpack.c.l.b16 %v3674
    %v5948 = vpack.c.b16 %v5885, %v5884
    %v5949 = vpack.c.b16 %v5887, %v5886
    %v5950 = vpack.c.b16 %v5889, %v5888
    %v5951 = vpack.c.b16 %v5891, %v5890
    %v5952 = vpack.c.b16 %v5893, %v5892
    %v5953 = vpack.c.b16 %v5895, %v5894
    %v5954 = vpack.c.b16 %v5897, %v5896
    %v5955 = vpack.c.b16 %v5899, %v5898
    %v5956 = vpack.c.b16 %v5901, %v5900
    %v5957 = vpack.c.b16 %v5903, %v5902
    %v5958 = vpack.c.b16 %v5905, %v5904
    %v5959 = vpack.c.b16 %v5907, %v5906
    %v5960 = vpack.c.b16 %v5909, %v5908
    %v5961 = vpack.c.b16 %v5911, %v5910
    %v5962 = vpack.c.b16 %v5913, %v5912
    %v5963 = vpack.c.b16 %v5915, %v5914
    %v5964 = vpack.c.b16 %v5917, %v5916
    %v5965 = vpack.c.b16 %v5919, %v5918
    %v5966 = vpack.c.b16 %v5921, %v5920
    %v5967 = vpack.c.b16 %v5923, %v5922
    %v5968 = vpack.c.b16 %v5925, %v5924
    %v5969 = vpack.c.b16 %v5927, %v5926
    %v5970 = vpack.c.b16 %v5929, %v5928
    %v5971 = vpack.c.b16 %v5931, %v5930
    %v5972 = vpack.c.b16 %v5933, %v5932
    %v5973 = vpack.c.b16 %v5935, %v5934
    %v5974 = vpack.c.b16 %v5937, %v5936
    %v5975 = vpack.c.b16 %v5939, %v5938
    %v5976 = vpack.c.b16 %v5941, %v5940
    %v5977 = vpack.c.b16 %v5943, %v5942
    %v5978 = vpack.c.b16 %v5945, %v5944
    %v5979 = vpack.c.b16 %v5947, %v5946
    %5980 = vrot.lane.b32.xlu0 %v5948, 16
    %v5981 = vpop.permute.xlu0 %5980
    %5982 = vrot.lane.b32.xlu0 %v5949, 16
    %v5983 = vpop.permute.xlu0 %5982
    %5984 = vrot.lane.b32.xlu0 %v5950, 16
    %v5985 = vpop.permute.xlu0 %5984
    %5986 = vrot.lane.b32.xlu0 %v5951, 16
    %v5987 = vpop.permute.xlu0 %5986
    %5988 = vrot.lane.b32.xlu0 %v5952, 16
    %v5989 = vpop.permute.xlu0 %5988
    %5990 = vrot.lane.b32.xlu0 %v5953, 16
    %v5991 = vpop.permute.xlu0 %5990
    %5992 = vrot.lane.b32.xlu0 %v5954, 16
    %v5993 = vpop.permute.xlu0 %5992
    %5994 = vrot.lane.b32.xlu0 %v5955, 16
    %v5995 = vpop.permute.xlu0 %5994
    %5996 = vrot.lane.b32.xlu0 %v5956, 16
    %v5997 = vpop.permute.xlu0 %5996
    %5998 = vrot.lane.b32.xlu0 %v5957, 16
    %v5999 = vpop.permute.xlu0 %5998
    %6000 = vrot.lane.b32.xlu0 %v5958, 16
    %v6001 = vpop.permute.xlu0 %6000
    %6002 = vrot.lane.b32.xlu0 %v5959, 16
    %v6003 = vpop.permute.xlu0 %6002
    %6004 = vrot.lane.b32.xlu0 %v5960, 16
    %v6005 = vpop.permute.xlu0 %6004
    %6006 = vrot.lane.b32.xlu0 %v5961, 16
    %v6007 = vpop.permute.xlu0 %6006
    %6008 = vrot.lane.b32.xlu0 %v5962, 16
    %v6009 = vpop.permute.xlu0 %6008
    %6010 = vrot.lane.b32.xlu0 %v5963, 16
    %v6011 = vpop.permute.xlu0 %6010
    %6012 = vrot.lane.b32.xlu0 %v5964, 16
    %v6013 = vpop.permute.xlu0 %6012
    %6014 = vrot.lane.b32.xlu0 %v5965, 16
    %v6015 = vpop.permute.xlu0 %6014
    %6016 = vrot.lane.b32.xlu0 %v5966, 16
    %v6017 = vpop.permute.xlu0 %6016
    %6018 = vrot.lane.b32.xlu0 %v5967, 16
    %v6019 = vpop.permute.xlu0 %6018
    %6020 = vrot.lane.b32.xlu0 %v5968, 16
    %v6021 = vpop.permute.xlu0 %6020
    %6022 = vrot.lane.b32.xlu0 %v5969, 16
    %v6023 = vpop.permute.xlu0 %6022
    %6024 = vrot.lane.b32.xlu0 %v5970, 16
    %v6025 = vpop.permute.xlu0 %6024
    %6026 = vrot.lane.b32.xlu0 %v5971, 16
    %v6027 = vpop.permute.xlu0 %6026
    %6028 = vrot.lane.b32.xlu0 %v5972, 16
    %v6029 = vpop.permute.xlu0 %6028
    %6030 = vrot.lane.b32.xlu0 %v5973, 16
    %v6031 = vpop.permute.xlu0 %6030
    %6032 = vrot.lane.b32.xlu0 %v5974, 16
    %v6033 = vpop.permute.xlu0 %6032
    %6034 = vrot.lane.b32.xlu0 %v5975, 16
    %v6035 = vpop.permute.xlu0 %6034
    %6036 = vrot.lane.b32.xlu0 %v5976, 16
    %v6037 = vpop.permute.xlu0 %6036
    %6038 = vrot.lane.b32.xlu0 %v5977, 16
    %v6039 = vpop.permute.xlu0 %6038
    %6040 = vrot.lane.b32.xlu0 %v5978, 16
    %v6041 = vpop.permute.xlu0 %6040
    %6042 = vrot.lane.b32.xlu0 %v5979, 16
    %v6043 = vpop.permute.xlu0 %6042
    %v6044 = vunpack.c.l.b16 %v3806
    %v6045 = vunpack.c.l.b16 %v3809
    %v6046 = vunpack.c.l.b16 %v3813
    %v6047 = vunpack.c.l.b16 %v3816
    %v6048 = vunpack.c.l.b16 %v3820
    %v6049 = vunpack.c.l.b16 %v3823
    %v6050 = vunpack.c.l.b16 %v3827
    %v6051 = vunpack.c.l.b16 %v3830
    %v6052 = vunpack.c.l.b16 %v3834
    %v6053 = vunpack.c.l.b16 %v3837
    %v6054 = vunpack.c.l.b16 %v3841
    %v6055 = vunpack.c.l.b16 %v3844
    %v6056 = vunpack.c.l.b16 %v3848
    %v6057 = vunpack.c.l.b16 %v3851
    %v6058 = vunpack.c.l.b16 %v3855
    %v6059 = vunpack.c.l.b16 %v3858
    %v6060 = vunpack.c.l.b16 %v3862
    %v6061 = vunpack.c.l.b16 %v3865
    %v6062 = vunpack.c.l.b16 %v3869
    %v6063 = vunpack.c.l.b16 %v3872
    %v6064 = vunpack.c.l.b16 %v3876
    %v6065 = vunpack.c.l.b16 %v3879
    %v6066 = vunpack.c.l.b16 %v3883
    %v6067 = vunpack.c.l.b16 %v3886
    %v6068 = vunpack.c.l.b16 %v3890
    %v6069 = vunpack.c.l.b16 %v3893
    %v6070 = vunpack.c.l.b16 %v3897
    %v6071 = vunpack.c.l.b16 %v3900
    %v6072 = vunpack.c.l.b16 %v3904
    %v6073 = vunpack.c.l.b16 %v3907
    %v6074 = vunpack.c.l.b16 %v3911
    %v6075 = vunpack.c.l.b16 %v3914
    %v6076 = vunpack.c.l.b16 %v3918
    %v6077 = vunpack.c.l.b16 %v3921
    %v6078 = vunpack.c.l.b16 %v3925
    %v6079 = vunpack.c.l.b16 %v3928
    %v6080 = vunpack.c.l.b16 %v3932
    %v6081 = vunpack.c.l.b16 %v3935
    %v6082 = vunpack.c.l.b16 %v3939
    %v6083 = vunpack.c.l.b16 %v3942
    %v6084 = vunpack.c.l.b16 %v3946
    %v6085 = vunpack.c.l.b16 %v3949
    %v6086 = vunpack.c.l.b16 %v3953
    %v6087 = vunpack.c.l.b16 %v3956
    %v6088 = vunpack.c.l.b16 %v3960
    %v6089 = vunpack.c.l.b16 %v3963
    %v6090 = vunpack.c.l.b16 %v3967
    %v6091 = vunpack.c.l.b16 %v3970
    %v6092 = vunpack.c.l.b16 %v3974
    %v6093 = vunpack.c.l.b16 %v3977
    %v6094 = vunpack.c.l.b16 %v3981
    %v6095 = vunpack.c.l.b16 %v3984
    %v6096 = vunpack.c.l.b16 %v3988
    %v6097 = vunpack.c.l.b16 %v3991
    %v6098 = vunpack.c.l.b16 %v3995
    %v6099 = vunpack.c.l.b16 %v3998
    %v6100 = vunpack.c.l.b16 %v4002
    %v6101 = vunpack.c.l.b16 %v4005
    %v6102 = vunpack.c.l.b16 %v4009
    %v6103 = vunpack.c.l.b16 %v4012
    %v6104 = vunpack.c.l.b16 %v4016
    %v6105 = vunpack.c.l.b16 %v4019
    %v6106 = vunpack.c.l.b16 %v4023
    %v6107 = vunpack.c.l.b16 %v4026
    %v6108 = vpack.c.b16 %v6045, %v6044
    %v6109 = vpack.c.b16 %v6047, %v6046
    %v6110 = vpack.c.b16 %v6049, %v6048
    %v6111 = vpack.c.b16 %v6051, %v6050
    %v6112 = vpack.c.b16 %v6053, %v6052
    %v6113 = vpack.c.b16 %v6055, %v6054
    %v6114 = vpack.c.b16 %v6057, %v6056
    %v6115 = vpack.c.b16 %v6059, %v6058
    %v6116 = vpack.c.b16 %v6061, %v6060
    %v6117 = vpack.c.b16 %v6063, %v6062
    %v6118 = vpack.c.b16 %v6065, %v6064
    %v6119 = vpack.c.b16 %v6067, %v6066
    %v6120 = vpack.c.b16 %v6069, %v6068
    %v6121 = vpack.c.b16 %v6071, %v6070
    %v6122 = vpack.c.b16 %v6073, %v6072
    %v6123 = vpack.c.b16 %v6075, %v6074
    %v6124 = vpack.c.b16 %v6077, %v6076
    %v6125 = vpack.c.b16 %v6079, %v6078
    %v6126 = vpack.c.b16 %v6081, %v6080
    %v6127 = vpack.c.b16 %v6083, %v6082
    %v6128 = vpack.c.b16 %v6085, %v6084
    %v6129 = vpack.c.b16 %v6087, %v6086
    %v6130 = vpack.c.b16 %v6089, %v6088
    %v6131 = vpack.c.b16 %v6091, %v6090
    %v6132 = vpack.c.b16 %v6093, %v6092
    %v6133 = vpack.c.b16 %v6095, %v6094
    %v6134 = vpack.c.b16 %v6097, %v6096
    %v6135 = vpack.c.b16 %v6099, %v6098
    %v6136 = vpack.c.b16 %v6101, %v6100
    %v6137 = vpack.c.b16 %v6103, %v6102
    %v6138 = vpack.c.b16 %v6105, %v6104
    %v6139 = vpack.c.b16 %v6107, %v6106
    %6140 = vrot.lane.b32.xlu0 %v6108, 20
    %v6141 = vpop.permute.xlu0 %6140
    %6142 = vrot.lane.b32.xlu0 %v6109, 20
    %v6143 = vpop.permute.xlu0 %6142
    %6144 = vrot.lane.b32.xlu0 %v6110, 20
    %v6145 = vpop.permute.xlu0 %6144
    %6146 = vrot.lane.b32.xlu0 %v6111, 20
    %v6147 = vpop.permute.xlu0 %6146
    %6148 = vrot.lane.b32.xlu0 %v6112, 20
    %v6149 = vpop.permute.xlu0 %6148
    %6150 = vrot.lane.b32.xlu0 %v6113, 20
    %v6151 = vpop.permute.xlu0 %6150
    %6152 = vrot.lane.b32.xlu0 %v6114, 20
    %v6153 = vpop.permute.xlu0 %6152
    %6154 = vrot.lane.b32.xlu0 %v6115, 20
    %v6155 = vpop.permute.xlu0 %6154
    %6156 = vrot.lane.b32.xlu0 %v6116, 20
    %v6157 = vpop.permute.xlu0 %6156
    %6158 = vrot.lane.b32.xlu0 %v6117, 20
    %v6159 = vpop.permute.xlu0 %6158
    %6160 = vrot.lane.b32.xlu0 %v6118, 20
    %v6161 = vpop.permute.xlu0 %6160
    %6162 = vrot.lane.b32.xlu0 %v6119, 20
    %v6163 = vpop.permute.xlu0 %6162
    %6164 = vrot.lane.b32.xlu0 %v6120, 20
    %v6165 = vpop.permute.xlu0 %6164
    %6166 = vrot.lane.b32.xlu0 %v6121, 20
    %v6167 = vpop.permute.xlu0 %6166
    %6168 = vrot.lane.b32.xlu0 %v6122, 20
    %v6169 = vpop.permute.xlu0 %6168
    %6170 = vrot.lane.b32.xlu0 %v6123, 20
    %v6171 = vpop.permute.xlu0 %6170
    %6172 = vrot.lane.b32.xlu0 %v6124, 20
    %v6173 = vpop.permute.xlu0 %6172
    %6174 = vrot.lane.b32.xlu0 %v6125, 20
    %v6175 = vpop.permute.xlu0 %6174
    %6176 = vrot.lane.b32.xlu0 %v6126, 20
    %v6177 = vpop.permute.xlu0 %6176
    %6178 = vrot.lane.b32.xlu0 %v6127, 20
    %v6179 = vpop.permute.xlu0 %6178
    %6180 = vrot.lane.b32.xlu0 %v6128, 20
    %v6181 = vpop.permute.xlu0 %6180
    %6182 = vrot.lane.b32.xlu0 %v6129, 20
    %v6183 = vpop.permute.xlu0 %6182
    %6184 = vrot.lane.b32.xlu0 %v6130, 20
    %v6185 = vpop.permute.xlu0 %6184
    %6186 = vrot.lane.b32.xlu0 %v6131, 20
    %v6187 = vpop.permute.xlu0 %6186
    %6188 = vrot.lane.b32.xlu0 %v6132, 20
    %v6189 = vpop.permute.xlu0 %6188
    %6190 = vrot.lane.b32.xlu0 %v6133, 20
    %v6191 = vpop.permute.xlu0 %6190
    %6192 = vrot.lane.b32.xlu0 %v6134, 20
    %v6193 = vpop.permute.xlu0 %6192
    %6194 = vrot.lane.b32.xlu0 %v6135, 20
    %v6195 = vpop.permute.xlu0 %6194
    %6196 = vrot.lane.b32.xlu0 %v6136, 20
    %v6197 = vpop.permute.xlu0 %6196
    %6198 = vrot.lane.b32.xlu0 %v6137, 20
    %v6199 = vpop.permute.xlu0 %6198
    %6200 = vrot.lane.b32.xlu0 %v6138, 20
    %v6201 = vpop.permute.xlu0 %6200
    %6202 = vrot.lane.b32.xlu0 %v6139, 20
    %v6203 = vpop.permute.xlu0 %6202
    %v6236 = vunpack.c.l.b16 %v4028
    %v6237 = vunpack.c.l.b16 %v4029
    %v6238 = vunpack.c.l.b16 %v4030
    %v6239 = vunpack.c.l.b16 %v4031
    %v6240 = vunpack.c.l.b16 %v4032
    %v6241 = vunpack.c.l.b16 %v4033
    %v6242 = vunpack.c.l.b16 %v4034
    %v6243 = vunpack.c.l.b16 %v4035
    %v6244 = vunpack.c.l.b16 %v4036
    %v6245 = vunpack.c.l.b16 %v4037
    %v6246 = vunpack.c.l.b16 %v4038
    %v6247 = vunpack.c.l.b16 %v4039
    %v6248 = vunpack.c.l.b16 %v4040
    %v6249 = vunpack.c.l.b16 %v4041
    %v6250 = vunpack.c.l.b16 %v4042
    %v6251 = vunpack.c.l.b16 %v4043
    %v6252 = vunpack.c.l.b16 %v4044
    %v6253 = vunpack.c.l.b16 %v4045
    %v6254 = vunpack.c.l.b16 %v4046
    %v6255 = vunpack.c.l.b16 %v4047
    %v6256 = vunpack.c.l.b16 %v4048
    %v6257 = vunpack.c.l.b16 %v4049
    %v6258 = vunpack.c.l.b16 %v4050
    %v6259 = vunpack.c.l.b16 %v4051
    %v6260 = vunpack.c.l.b16 %v4052
    %v6261 = vunpack.c.l.b16 %v4053
    %v6262 = vunpack.c.l.b16 %v4054
    %v6263 = vunpack.c.l.b16 %v4055
    %v6264 = vunpack.c.l.b16 %v4056
    %v6265 = vunpack.c.l.b16 %v4057
    %v6266 = vunpack.c.l.b16 %v4058
    %v6267 = vunpack.c.l.b16 %v4059
    %v6268 = vunpack.c.l.b16 %v4060
    %v6269 = vunpack.c.l.b16 %v4061
    %v6270 = vunpack.c.l.b16 %v4062
    %v6271 = vunpack.c.l.b16 %v4063
    %v6272 = vunpack.c.l.b16 %v4064
    %v6273 = vunpack.c.l.b16 %v4065
    %v6274 = vunpack.c.l.b16 %v4066
    %v6275 = vunpack.c.l.b16 %v4067
    %v6276 = vunpack.c.l.b16 %v4068
    %v6277 = vunpack.c.l.b16 %v4069
    %v6278 = vunpack.c.l.b16 %v4070
    %v6279 = vunpack.c.l.b16 %v4071
    %v6280 = vunpack.c.l.b16 %v4072
    %v6281 = vunpack.c.l.b16 %v4073
    %v6282 = vunpack.c.l.b16 %v4074
    %v6283 = vunpack.c.l.b16 %v4075
    %v6284 = vunpack.c.l.b16 %v4076
    %v6285 = vunpack.c.l.b16 %v4077
    %v6286 = vunpack.c.l.b16 %v4078
    %v6287 = vunpack.c.l.b16 %v4079
    %v6288 = vunpack.c.l.b16 %v4080
    %v6289 = vunpack.c.l.b16 %v4081
    %v6290 = vunpack.c.l.b16 %v4082
    %v6291 = vunpack.c.l.b16 %v4083
    %v6292 = vunpack.c.l.b16 %v4084
    %v6293 = vunpack.c.l.b16 %v4085
    %v6294 = vunpack.c.l.b16 %v4086
    %v6295 = vunpack.c.l.b16 %v4087
    %v6296 = vunpack.c.l.b16 %v4088
    %v6297 = vunpack.c.l.b16 %v4089
    %v6298 = vunpack.c.l.b16 %v4090
    %v6299 = vunpack.c.l.b16 %v4091
    %v6300 = vpack.c.b16 %v6237, %v6236
    %v6301 = vpack.c.b16 %v6239, %v6238
    %v6302 = vpack.c.b16 %v6241, %v6240
    %v6303 = vpack.c.b16 %v6243, %v6242
    %v6304 = vpack.c.b16 %v6245, %v6244
    %v6305 = vpack.c.b16 %v6247, %v6246
    %v6306 = vpack.c.b16 %v6249, %v6248
    %v6307 = vpack.c.b16 %v6251, %v6250
    %v6308 = vpack.c.b16 %v6253, %v6252
    %v6309 = vpack.c.b16 %v6255, %v6254
    %v6310 = vpack.c.b16 %v6257, %v6256
    %v6311 = vpack.c.b16 %v6259, %v6258
    %v6312 = vpack.c.b16 %v6261, %v6260
    %v6313 = vpack.c.b16 %v6263, %v6262
    %v6314 = vpack.c.b16 %v6265, %v6264
    %v6315 = vpack.c.b16 %v6267, %v6266
    %v6316 = vpack.c.b16 %v6269, %v6268
    %v6317 = vpack.c.b16 %v6271, %v6270
    %v6318 = vpack.c.b16 %v6273, %v6272
    %v6319 = vpack.c.b16 %v6275, %v6274
    %v6320 = vpack.c.b16 %v6277, %v6276
    %v6321 = vpack.c.b16 %v6279, %v6278
    %v6322 = vpack.c.b16 %v6281, %v6280
    %v6323 = vpack.c.b16 %v6283, %v6282
    %v6324 = vpack.c.b16 %v6285, %v6284
    %v6325 = vpack.c.b16 %v6287, %v6286
    %v6326 = vpack.c.b16 %v6289, %v6288
    %v6327 = vpack.c.b16 %v6291, %v6290
    %v6328 = vpack.c.b16 %v6293, %v6292
    %v6329 = vpack.c.b16 %v6295, %v6294
    %v6330 = vpack.c.b16 %v6297, %v6296
    %v6331 = vpack.c.b16 %v6299, %v6298
    %6332 = vrot.lane.b32.xlu0 %v6300, 24
    %v6333 = vpop.permute.xlu0 %6332
    %6334 = vrot.lane.b32.xlu0 %v6301, 24
    %v6335 = vpop.permute.xlu0 %6334
    %6336 = vrot.lane.b32.xlu0 %v6302, 24
    %v6337 = vpop.permute.xlu0 %6336
    %6338 = vrot.lane.b32.xlu0 %v6303, 24
    %v6339 = vpop.permute.xlu0 %6338
    %6340 = vrot.lane.b32.xlu0 %v6304, 24
    %v6341 = vpop.permute.xlu0 %6340
    %6342 = vrot.lane.b32.xlu0 %v6305, 24
    %v6343 = vpop.permute.xlu0 %6342
    %6344 = vrot.lane.b32.xlu0 %v6306, 24
    %v6345 = vpop.permute.xlu0 %6344
    %6346 = vrot.lane.b32.xlu0 %v6307, 24
    %v6347 = vpop.permute.xlu0 %6346
    %6348 = vrot.lane.b32.xlu0 %v6308, 24
    %v6349 = vpop.permute.xlu0 %6348
    %6350 = vrot.lane.b32.xlu0 %v6309, 24
    %v6351 = vpop.permute.xlu0 %6350
    %6352 = vrot.lane.b32.xlu0 %v6310, 24
    %v6353 = vpop.permute.xlu0 %6352
    %6354 = vrot.lane.b32.xlu0 %v6311, 24
    %v6355 = vpop.permute.xlu0 %6354
    %6356 = vrot.lane.b32.xlu0 %v6312, 24
    %v6357 = vpop.permute.xlu0 %6356
    %6358 = vrot.lane.b32.xlu0 %v6313, 24
    %v6359 = vpop.permute.xlu0 %6358
    %6360 = vrot.lane.b32.xlu0 %v6314, 24
    %v6361 = vpop.permute.xlu0 %6360
    %6362 = vrot.lane.b32.xlu0 %v6315, 24
    %v6363 = vpop.permute.xlu0 %6362
    %6364 = vrot.lane.b32.xlu0 %v6316, 24
    %v6365 = vpop.permute.xlu0 %6364
    %6366 = vrot.lane.b32.xlu0 %v6317, 24
    %v6367 = vpop.permute.xlu0 %6366
    %6368 = vrot.lane.b32.xlu0 %v6318, 24
    %v6369 = vpop.permute.xlu0 %6368
    %6370 = vrot.lane.b32.xlu0 %v6319, 24
    %v6371 = vpop.permute.xlu0 %6370
    %6372 = vrot.lane.b32.xlu0 %v6320, 24
    %v6373 = vpop.permute.xlu0 %6372
    %6374 = vrot.lane.b32.xlu0 %v6321, 24
    %v6375 = vpop.permute.xlu0 %6374
    %6376 = vrot.lane.b32.xlu0 %v6322, 24
    %v6377 = vpop.permute.xlu0 %6376
    %6378 = vrot.lane.b32.xlu0 %v6323, 24
    %v6379 = vpop.permute.xlu0 %6378
    %6380 = vrot.lane.b32.xlu0 %v6324, 24
    %v6381 = vpop.permute.xlu0 %6380
    %6382 = vrot.lane.b32.xlu0 %v6325, 24
    %v6383 = vpop.permute.xlu0 %6382
    %6384 = vrot.lane.b32.xlu0 %v6326, 24
    %v6385 = vpop.permute.xlu0 %6384
    %6386 = vrot.lane.b32.xlu0 %v6327, 24
    %v6387 = vpop.permute.xlu0 %6386
    %6388 = vrot.lane.b32.xlu0 %v6328, 24
    %v6389 = vpop.permute.xlu0 %6388
    %6390 = vrot.lane.b32.xlu0 %v6329, 24
    %v6391 = vpop.permute.xlu0 %6390
    %6392 = vrot.lane.b32.xlu0 %v6330, 24
    %v6393 = vpop.permute.xlu0 %6392
    %6394 = vrot.lane.b32.xlu0 %v6331, 24
    %v6395 = vpop.permute.xlu0 %6394
    %v6396 = vunpack.c.l.b16 %v4137
    %v6397 = vunpack.c.l.b16 %v4147
    %v6398 = vunpack.c.l.b16 %v4161
    %v6399 = vunpack.c.l.b16 %v4171
    %v6400 = vunpack.c.l.b16 %v4185
    %v6401 = vunpack.c.l.b16 %v4195
    %v6402 = vunpack.c.l.b16 %v4209
    %v6403 = vunpack.c.l.b16 %v4219
    %v6404 = vunpack.c.l.b16 %v4233
    %v6405 = vunpack.c.l.b16 %v4243
    %v6406 = vunpack.c.l.b16 %v4257
    %v6407 = vunpack.c.l.b16 %v4267
    %v6408 = vunpack.c.l.b16 %v4281
    %v6409 = vunpack.c.l.b16 %v4291
    %v6410 = vunpack.c.l.b16 %v4305
    %v6411 = vunpack.c.l.b16 %v4315
    %v6412 = vunpack.c.l.b16 %v4329
    %v6413 = vunpack.c.l.b16 %v4339
    %v6414 = vunpack.c.l.b16 %v4353
    %v6415 = vunpack.c.l.b16 %v4363
    %v6416 = vunpack.c.l.b16 %v4377
    %v6417 = vunpack.c.l.b16 %v4387
    %v6418 = vunpack.c.l.b16 %v4401
    %v6419 = vunpack.c.l.b16 %v4411
    %v6420 = vunpack.c.l.b16 %v4425
    %v6421 = vunpack.c.l.b16 %v4435
    %v6422 = vunpack.c.l.b16 %v4449
    %v6423 = vunpack.c.l.b16 %v4459
    %v6424 = vunpack.c.l.b16 %v4473
    %v6425 = vunpack.c.l.b16 %v4483
    %v6426 = vunpack.c.l.b16 %v4497
    %v6427 = vunpack.c.l.b16 %v4507
    %v6428 = vunpack.c.l.b16 %v4521
    %v6429 = vunpack.c.l.b16 %v4531
    %v6430 = vunpack.c.l.b16 %v4545
    %v6431 = vunpack.c.l.b16 %v4555
    %v6432 = vunpack.c.l.b16 %v4569
    %v6433 = vunpack.c.l.b16 %v4579
    %v6434 = vunpack.c.l.b16 %v4593
    %v6435 = vunpack.c.l.b16 %v4603
    %v6436 = vunpack.c.l.b16 %v4617
    %v6437 = vunpack.c.l.b16 %v4627
    %v6438 = vunpack.c.l.b16 %v4641
    %v6439 = vunpack.c.l.b16 %v4651
    %v6440 = vunpack.c.l.b16 %v4665
    %v6441 = vunpack.c.l.b16 %v4675
    %v6442 = vunpack.c.l.b16 %v4689
    %v6443 = vunpack.c.l.b16 %v4699
    %v6444 = vunpack.c.l.b16 %v4713
    %v6445 = vunpack.c.l.b16 %v4723
    %v6446 = vunpack.c.l.b16 %v4737
    %v6447 = vunpack.c.l.b16 %v4747
    %v6448 = vunpack.c.l.b16 %v4761
    %v6449 = vunpack.c.l.b16 %v4771
    %v6450 = vunpack.c.l.b16 %v4785
    %v6451 = vunpack.c.l.b16 %v4795
    %v6452 = vunpack.c.l.b16 %v4809
    %v6453 = vunpack.c.l.b16 %v4819
    %v6454 = vunpack.c.l.b16 %v4833
    %v6455 = vunpack.c.l.b16 %v4843
    %v6456 = vunpack.c.l.b16 %v4857
    %v6457 = vunpack.c.l.b16 %v4867
    %v6458 = vunpack.c.l.b16 %v4881
    %v6459 = vunpack.c.l.b16 %v4891
    %v6460 = vpack.c.b16 %v6397, %v6396
    %v6461 = vpack.c.b16 %v6399, %v6398
    %v6462 = vpack.c.b16 %v6401, %v6400
    %v6463 = vpack.c.b16 %v6403, %v6402
    %v6464 = vpack.c.b16 %v6405, %v6404
    %v6465 = vpack.c.b16 %v6407, %v6406
    %v6466 = vpack.c.b16 %v6409, %v6408
    %v6467 = vpack.c.b16 %v6411, %v6410
    %v6468 = vpack.c.b16 %v6413, %v6412
    %v6469 = vpack.c.b16 %v6415, %v6414
    %v6470 = vpack.c.b16 %v6417, %v6416
    %v6471 = vpack.c.b16 %v6419, %v6418
    %v6472 = vpack.c.b16 %v6421, %v6420
    %v6473 = vpack.c.b16 %v6423, %v6422
    %v6474 = vpack.c.b16 %v6425, %v6424
    %v6475 = vpack.c.b16 %v6427, %v6426
    %v6476 = vpack.c.b16 %v6429, %v6428
    %v6477 = vpack.c.b16 %v6431, %v6430
    %v6478 = vpack.c.b16 %v6433, %v6432
    %v6479 = vpack.c.b16 %v6435, %v6434
    %v6480 = vpack.c.b16 %v6437, %v6436
    %v6481 = vpack.c.b16 %v6439, %v6438
    %v6482 = vpack.c.b16 %v6441, %v6440
    %v6483 = vpack.c.b16 %v6443, %v6442
    %v6484 = vpack.c.b16 %v6445, %v6444
    %v6485 = vpack.c.b16 %v6447, %v6446
    %v6486 = vpack.c.b16 %v6449, %v6448
    %v6487 = vpack.c.b16 %v6451, %v6450
    %v6488 = vpack.c.b16 %v6453, %v6452
    %v6489 = vpack.c.b16 %v6455, %v6454
    %v6490 = vpack.c.b16 %v6457, %v6456
    %v6491 = vpack.c.b16 %v6459, %v6458
    %6492 = vrot.lane.b32.xlu0 %v6460, 28
    %v6493 = vpop.permute.xlu0 %6492
    %6494 = vrot.lane.b32.xlu0 %v6461, 28
    %v6495 = vpop.permute.xlu0 %6494
    %6496 = vrot.lane.b32.xlu0 %v6462, 28
    %v6497 = vpop.permute.xlu0 %6496
    %6498 = vrot.lane.b32.xlu0 %v6463, 28
    %v6499 = vpop.permute.xlu0 %6498
    %6500 = vrot.lane.b32.xlu0 %v6464, 28
    %v6501 = vpop.permute.xlu0 %6500
    %6502 = vrot.lane.b32.xlu0 %v6465, 28
    %v6503 = vpop.permute.xlu0 %6502
    %6504 = vrot.lane.b32.xlu0 %v6466, 28
    %v6505 = vpop.permute.xlu0 %6504
    %6506 = vrot.lane.b32.xlu0 %v6467, 28
    %v6507 = vpop.permute.xlu0 %6506
    %6508 = vrot.lane.b32.xlu0 %v6468, 28
    %v6509 = vpop.permute.xlu0 %6508
    %6510 = vrot.lane.b32.xlu0 %v6469, 28
    %v6511 = vpop.permute.xlu0 %6510
    %6512 = vrot.lane.b32.xlu0 %v6470, 28
    %v6513 = vpop.permute.xlu0 %6512
    %6514 = vrot.lane.b32.xlu0 %v6471, 28
    %v6515 = vpop.permute.xlu0 %6514
    %6516 = vrot.lane.b32.xlu0 %v6472, 28
    %v6517 = vpop.permute.xlu0 %6516
    %6518 = vrot.lane.b32.xlu0 %v6473, 28
    %v6519 = vpop.permute.xlu0 %6518
    %6520 = vrot.lane.b32.xlu0 %v6474, 28
    %v6521 = vpop.permute.xlu0 %6520
    %6522 = vrot.lane.b32.xlu0 %v6475, 28
    %v6523 = vpop.permute.xlu0 %6522
    %6524 = vrot.lane.b32.xlu0 %v6476, 28
    %v6525 = vpop.permute.xlu0 %6524
    %6526 = vrot.lane.b32.xlu0 %v6477, 28
    %v6527 = vpop.permute.xlu0 %6526
    %6528 = vrot.lane.b32.xlu0 %v6478, 28
    %v6529 = vpop.permute.xlu0 %6528
    %6530 = vrot.lane.b32.xlu0 %v6479, 28
    %v6531 = vpop.permute.xlu0 %6530
    %6532 = vrot.lane.b32.xlu0 %v6480, 28
    %v6533 = vpop.permute.xlu0 %6532
    %6534 = vrot.lane.b32.xlu0 %v6481, 28
    %v6535 = vpop.permute.xlu0 %6534
    %6536 = vrot.lane.b32.xlu0 %v6482, 28
    %v6537 = vpop.permute.xlu0 %6536
    %6538 = vrot.lane.b32.xlu0 %v6483, 28
    %v6539 = vpop.permute.xlu0 %6538
    %6540 = vrot.lane.b32.xlu0 %v6484, 28
    %v6541 = vpop.permute.xlu0 %6540
    %6542 = vrot.lane.b32.xlu0 %v6485, 28
    %v6543 = vpop.permute.xlu0 %6542
    %6544 = vrot.lane.b32.xlu0 %v6486, 28
    %v6545 = vpop.permute.xlu0 %6544
    %6546 = vrot.lane.b32.xlu0 %v6487, 28
    %v6547 = vpop.permute.xlu0 %6546
    %6548 = vrot.lane.b32.xlu0 %v6488, 28
    %v6549 = vpop.permute.xlu0 %6548
    %6550 = vrot.lane.b32.xlu0 %v6489, 28
    %v6551 = vpop.permute.xlu0 %6550
    %6552 = vrot.lane.b32.xlu0 %v6490, 28
    %v6553 = vpop.permute.xlu0 %6552
    %6554 = vrot.lane.b32.xlu0 %v6491, 28
    %v6555 = vpop.permute.xlu0 %6554
    %v6556 = vunpack.c.l.b16 %v5023
    %v6557 = vunpack.c.l.b16 %v5026
    %v6558 = vunpack.c.l.b16 %v5030
    %v6559 = vunpack.c.l.b16 %v5033
    %v6560 = vunpack.c.l.b16 %v5037
    %v6561 = vunpack.c.l.b16 %v5040
    %v6562 = vunpack.c.l.b16 %v5044
    %v6563 = vunpack.c.l.b16 %v5047
    %v6564 = vunpack.c.l.b16 %v5051
    %v6565 = vunpack.c.l.b16 %v5054
    %v6566 = vunpack.c.l.b16 %v5058
    %v6567 = vunpack.c.l.b16 %v5061
    %v6568 = vunpack.c.l.b16 %v5065
    %v6569 = vunpack.c.l.b16 %v5068
    %v6570 = vunpack.c.l.b16 %v5072
    %v6571 = vunpack.c.l.b16 %v5075
    %v6572 = vunpack.c.l.b16 %v5079
    %v6573 = vunpack.c.l.b16 %v5082
    %v6574 = vunpack.c.l.b16 %v5086
    %v6575 = vunpack.c.l.b16 %v5089
    %v6576 = vunpack.c.l.b16 %v5093
    %v6577 = vunpack.c.l.b16 %v5096
    %v6578 = vunpack.c.l.b16 %v5100
    %v6579 = vunpack.c.l.b16 %v5103
    %v6580 = vunpack.c.l.b16 %v5107
    %v6581 = vunpack.c.l.b16 %v5110
    %v6582 = vunpack.c.l.b16 %v5114
    %v6583 = vunpack.c.l.b16 %v5117
    %v6584 = vunpack.c.l.b16 %v5121
    %v6585 = vunpack.c.l.b16 %v5124
    %v6586 = vunpack.c.l.b16 %v5128
    %v6587 = vunpack.c.l.b16 %v5131
    %v6588 = vunpack.c.l.b16 %v5135
    %v6589 = vunpack.c.l.b16 %v5138
    %v6590 = vunpack.c.l.b16 %v5142
    %v6591 = vunpack.c.l.b16 %v5145
    %v6592 = vunpack.c.l.b16 %v5149
    %v6593 = vunpack.c.l.b16 %v5152
    %v6594 = vunpack.c.l.b16 %v5156
    %v6595 = vunpack.c.l.b16 %v5159
    %v6596 = vunpack.c.l.b16 %v5163
    %v6597 = vunpack.c.l.b16 %v5166
    %v6598 = vunpack.c.l.b16 %v5170
    %v6599 = vunpack.c.l.b16 %v5173
    %v6600 = vunpack.c.l.b16 %v5177
    %v6601 = vunpack.c.l.b16 %v5180
    %v6602 = vunpack.c.l.b16 %v5184
    %v6603 = vunpack.c.l.b16 %v5187
    %v6604 = vunpack.c.l.b16 %v5191
    %v6605 = vunpack.c.l.b16 %v5194
    %v6606 = vunpack.c.l.b16 %v5198
    %v6607 = vunpack.c.l.b16 %v5201
    %v6608 = vunpack.c.l.b16 %v5205
    %v6609 = vunpack.c.l.b16 %v5208
    %v6610 = vunpack.c.l.b16 %v5212
    %v6611 = vunpack.c.l.b16 %v5215
    %v6612 = vunpack.c.l.b16 %v5219
    %v6613 = vunpack.c.l.b16 %v5222
    %v6614 = vunpack.c.l.b16 %v5226
    %v6615 = vunpack.c.l.b16 %v5229
    %v6616 = vunpack.c.l.b16 %v5233
    %v6617 = vunpack.c.l.b16 %v5236
    %v6618 = vunpack.c.l.b16 %v5240
    %v6619 = vunpack.c.l.b16 %v5243
    %v6620 = vpack.c.b16 %v6557, %v6556
    %v6621 = vpack.c.b16 %v6559, %v6558
    %v6622 = vpack.c.b16 %v6561, %v6560
    %v6623 = vpack.c.b16 %v6563, %v6562
    %v6624 = vpack.c.b16 %v6565, %v6564
    %v6625 = vpack.c.b16 %v6567, %v6566
    %v6626 = vpack.c.b16 %v6569, %v6568
    %v6627 = vpack.c.b16 %v6571, %v6570
    %v6628 = vpack.c.b16 %v6573, %v6572
    %v6629 = vpack.c.b16 %v6575, %v6574
    %v6630 = vpack.c.b16 %v6577, %v6576
    %v6631 = vpack.c.b16 %v6579, %v6578
    %v6632 = vpack.c.b16 %v6581, %v6580
    %v6633 = vpack.c.b16 %v6583, %v6582
    %v6634 = vpack.c.b16 %v6585, %v6584
    %v6635 = vpack.c.b16 %v6587, %v6586
    %v6636 = vpack.c.b16 %v6589, %v6588
    %v6637 = vpack.c.b16 %v6591, %v6590
    %v6638 = vpack.c.b16 %v6593, %v6592
    %v6639 = vpack.c.b16 %v6595, %v6594
    %v6640 = vpack.c.b16 %v6597, %v6596
    %v6641 = vpack.c.b16 %v6599, %v6598
    %v6642 = vpack.c.b16 %v6601, %v6600
    %v6643 = vpack.c.b16 %v6603, %v6602
    %v6644 = vpack.c.b16 %v6605, %v6604
    %v6645 = vpack.c.b16 %v6607, %v6606
    %v6646 = vpack.c.b16 %v6609, %v6608
    %v6647 = vpack.c.b16 %v6611, %v6610
    %v6648 = vpack.c.b16 %v6613, %v6612
    %v6649 = vpack.c.b16 %v6615, %v6614
    %v6650 = vpack.c.b16 %v6617, %v6616
    %v6651 = vpack.c.b16 %v6619, %v6618
    %6652 = vrot.lane.b32.xlu0 %v6620, 32
    %v6653 = vpop.permute.xlu0 %6652
    %6654 = vrot.lane.b32.xlu0 %v6621, 32
    %v6655 = vpop.permute.xlu0 %6654
    %6656 = vrot.lane.b32.xlu0 %v6622, 32
    %v6657 = vpop.permute.xlu0 %6656
    %6658 = vrot.lane.b32.xlu0 %v6623, 32
    %v6659 = vpop.permute.xlu0 %6658
    %6660 = vrot.lane.b32.xlu0 %v6624, 32
    %v6661 = vpop.permute.xlu0 %6660
    %6662 = vrot.lane.b32.xlu0 %v6625, 32
    %v6663 = vpop.permute.xlu0 %6662
    %6664 = vrot.lane.b32.xlu0 %v6626, 32
    %v6665 = vpop.permute.xlu0 %6664
    %6666 = vrot.lane.b32.xlu0 %v6627, 32
    %v6667 = vpop.permute.xlu0 %6666
    %6668 = vrot.lane.b32.xlu0 %v6628, 32
    %v6669 = vpop.permute.xlu0 %6668
    %6670 = vrot.lane.b32.xlu0 %v6629, 32
    %v6671 = vpop.permute.xlu0 %6670
    %6672 = vrot.lane.b32.xlu0 %v6630, 32
    %v6673 = vpop.permute.xlu0 %6672
    %6674 = vrot.lane.b32.xlu0 %v6631, 32
    %v6675 = vpop.permute.xlu0 %6674
    %6676 = vrot.lane.b32.xlu0 %v6632, 32
    %v6677 = vpop.permute.xlu0 %6676
    %6678 = vrot.lane.b32.xlu0 %v6633, 32
    %v6679 = vpop.permute.xlu0 %6678
    %6680 = vrot.lane.b32.xlu0 %v6634, 32
    %v6681 = vpop.permute.xlu0 %6680
    %6682 = vrot.lane.b32.xlu0 %v6635, 32
    %v6683 = vpop.permute.xlu0 %6682
    %6684 = vrot.lane.b32.xlu0 %v6636, 32
    %v6685 = vpop.permute.xlu0 %6684
    %6686 = vrot.lane.b32.xlu0 %v6637, 32
    %v6687 = vpop.permute.xlu0 %6686
    %6688 = vrot.lane.b32.xlu0 %v6638, 32
    %v6689 = vpop.permute.xlu0 %6688
    %6690 = vrot.lane.b32.xlu0 %v6639, 32
    %v6691 = vpop.permute.xlu0 %6690
    %6692 = vrot.lane.b32.xlu0 %v6640, 32
    %v6693 = vpop.permute.xlu0 %6692
    %6694 = vrot.lane.b32.xlu0 %v6641, 32
    %v6695 = vpop.permute.xlu0 %6694
    %6696 = vrot.lane.b32.xlu0 %v6642, 32
    %v6697 = vpop.permute.xlu0 %6696
    %6698 = vrot.lane.b32.xlu0 %v6643, 32
    %v6699 = vpop.permute.xlu0 %6698
    %6700 = vrot.lane.b32.xlu0 %v6644, 32
    %v6701 = vpop.permute.xlu0 %6700
    %6702 = vrot.lane.b32.xlu0 %v6645, 32
    %v6703 = vpop.permute.xlu0 %6702
    %6704 = vrot.lane.b32.xlu0 %v6646, 32
    %v6705 = vpop.permute.xlu0 %6704
    %6706 = vrot.lane.b32.xlu0 %v6647, 32
    %v6707 = vpop.permute.xlu0 %6706
    %6708 = vrot.lane.b32.xlu0 %v6648, 32
    %v6709 = vpop.permute.xlu0 %6708
    %6710 = vrot.lane.b32.xlu0 %v6649, 32
    %v6711 = vpop.permute.xlu0 %6710
    %6712 = vrot.lane.b32.xlu0 %v6650, 32
    %v6713 = vpop.permute.xlu0 %6712
    %6714 = vrot.lane.b32.xlu0 %v6651, 32
    %v6715 = vpop.permute.xlu0 %6714
    %vm6716 = vcmask 31744
    %v6719 = vsel %vm6716, %v5340, %v5469
    %v6722 = vsel %vm6716, %v5341, %v5471
    %v6725 = vsel %vm6716, %v5342, %v5473
    %v6728 = vsel %vm6716, %v5343, %v5475
    %v6731 = vsel %vm6716, %v5344, %v5477
    %v6734 = vsel %vm6716, %v5345, %v5479
    %v6737 = vsel %vm6716, %v5346, %v5481
    %v6740 = vsel %vm6716, %v5347, %v5483
    %v6743 = vsel %vm6716, %v5348, %v5485
    %v6746 = vsel %vm6716, %v5349, %v5487
    %v6749 = vsel %vm6716, %v5350, %v5489
    %v6752 = vsel %vm6716, %v5351, %v5491
    %v6755 = vsel %vm6716, %v5352, %v5493
    %v6758 = vsel %vm6716, %v5353, %v5495
    %v6761 = vsel %vm6716, %v5354, %v5497
    %v6764 = vsel %vm6716, %v5355, %v5499
    %v6767 = vsel %vm6716, %v5356, %v5501
    %v6770 = vsel %vm6716, %v5357, %v5503
    %v6773 = vsel %vm6716, %v5358, %v5505
    %v6776 = vsel %vm6716, %v5359, %v5507
    %v6779 = vsel %vm6716, %v5360, %v5509
    %v6782 = vsel %vm6716, %v5361, %v5511
    %v6785 = vsel %vm6716, %v5362, %v5513
    %v6788 = vsel %vm6716, %v5363, %v5515
    %v6791 = vsel %vm6716, %v5364, %v5517
    %v6794 = vsel %vm6716, %v5365, %v5519
    %v6797 = vsel %vm6716, %v5366, %v5521
    %v6800 = vsel %vm6716, %v5367, %v5523
    %v6803 = vsel %vm6716, %v5368, %v5525
    %v6806 = vsel %vm6716, %v5369, %v5527
    %v6809 = vsel %vm6716, %v5370, %v5529
    %v6812 = vsel %vm6716, %v5371, %v5531
    %vm6813 = vcmask 64512
    %v6815 = vsel %vm6813, %v6719, %v5629
    %v6817 = vsel %vm6813, %v6722, %v5631
    %v6819 = vsel %vm6813, %v6725, %v5633
    %v6821 = vsel %vm6813, %v6728, %v5635
    %v6823 = vsel %vm6813, %v6731, %v5637
    %v6825 = vsel %vm6813, %v6734, %v5639
    %v6827 = vsel %vm6813, %v6737, %v5641
    %v6829 = vsel %vm6813, %v6740, %v5643
    %v6831 = vsel %vm6813, %v6743, %v5645
    %v6833 = vsel %vm6813, %v6746, %v5647
    %v6835 = vsel %vm6813, %v6749, %v5649
    %v6837 = vsel %vm6813, %v6752, %v5651
    %v6839 = vsel %vm6813, %v6755, %v5653
    %v6841 = vsel %vm6813, %v6758, %v5655
    %v6843 = vsel %vm6813, %v6761, %v5657
    %v6845 = vsel %vm6813, %v6764, %v5659
    %v6847 = vsel %vm6813, %v6767, %v5661
    %v6849 = vsel %vm6813, %v6770, %v5663
    %v6851 = vsel %vm6813, %v6773, %v5665
    %v6853 = vsel %vm6813, %v6776, %v5667
    %v6855 = vsel %vm6813, %v6779, %v5669
    %v6857 = vsel %vm6813, %v6782, %v5671
    %v6859 = vsel %vm6813, %v6785, %v5673
    %v6861 = vsel %vm6813, %v6788, %v5675
    %v6863 = vsel %vm6813, %v6791, %v5677
    %v6865 = vsel %vm6813, %v6794, %v5679
    %v6867 = vsel %vm6813, %v6797, %v5681
    %v6869 = vsel %vm6813, %v6800, %v5683
    %v6871 = vsel %vm6813, %v6803, %v5685
    %v6873 = vsel %vm6813, %v6806, %v5687
    %v6875 = vsel %vm6813, %v6809, %v5689
    %v6877 = vsel %vm6813, %v6812, %v5691
    %vm6878 = vcmask 97280
    %v6880 = vsel %vm6878, %v6815, %v5821
    %v6882 = vsel %vm6878, %v6817, %v5823
    %v6884 = vsel %vm6878, %v6819, %v5825
    %v6886 = vsel %vm6878, %v6821, %v5827
    %v6888 = vsel %vm6878, %v6823, %v5829
    %v6890 = vsel %vm6878, %v6825, %v5831
    %v6892 = vsel %vm6878, %v6827, %v5833
    %v6894 = vsel %vm6878, %v6829, %v5835
    %v6896 = vsel %vm6878, %v6831, %v5837
    %v6898 = vsel %vm6878, %v6833, %v5839
    %v6900 = vsel %vm6878, %v6835, %v5841
    %v6902 = vsel %vm6878, %v6837, %v5843
    %v6904 = vsel %vm6878, %v6839, %v5845
    %v6906 = vsel %vm6878, %v6841, %v5847
    %v6908 = vsel %vm6878, %v6843, %v5849
    %v6910 = vsel %vm6878, %v6845, %v5851
    %v6912 = vsel %vm6878, %v6847, %v5853
    %v6914 = vsel %vm6878, %v6849, %v5855
    %v6916 = vsel %vm6878, %v6851, %v5857
    %v6918 = vsel %vm6878, %v6853, %v5859
    %v6920 = vsel %vm6878, %v6855, %v5861
    %v6922 = vsel %vm6878, %v6857, %v5863
    %v6924 = vsel %vm6878, %v6859, %v5865
    %v6926 = vsel %vm6878, %v6861, %v5867
    %v6928 = vsel %vm6878, %v6863, %v5869
    %v6930 = vsel %vm6878, %v6865, %v5871
    %v6932 = vsel %vm6878, %v6867, %v5873
    %v6934 = vsel %vm6878, %v6869, %v5875
    %v6936 = vsel %vm6878, %v6871, %v5877
    %v6938 = vsel %vm6878, %v6873, %v5879
    %v6940 = vsel %vm6878, %v6875, %v5881
    %v6942 = vsel %vm6878, %v6877, %v5883
    %vm6943 = vcmask 130048
    %v6945 = vsel %vm6943, %v6880, %v5981
    %v6947 = vsel %vm6943, %v6882, %v5983
    %v6949 = vsel %vm6943, %v6884, %v5985
    %v6951 = vsel %vm6943, %v6886, %v5987
    %v6953 = vsel %vm6943, %v6888, %v5989
    %v6955 = vsel %vm6943, %v6890, %v5991
    %v6957 = vsel %vm6943, %v6892, %v5993
    %v6959 = vsel %vm6943, %v6894, %v5995
    %v6961 = vsel %vm6943, %v6896, %v5997
    %v6963 = vsel %vm6943, %v6898, %v5999
    %v6965 = vsel %vm6943, %v6900, %v6001
    %v6967 = vsel %vm6943, %v6902, %v6003
    %v6969 = vsel %vm6943, %v6904, %v6005
    %v6971 = vsel %vm6943, %v6906, %v6007
    %v6973 = vsel %vm6943, %v6908, %v6009
    %v6975 = vsel %vm6943, %v6910, %v6011
    %v6977 = vsel %vm6943, %v6912, %v6013
    %v6979 = vsel %vm6943, %v6914, %v6015
    %v6981 = vsel %vm6943, %v6916, %v6017
    %v6983 = vsel %vm6943, %v6918, %v6019
    %v6985 = vsel %vm6943, %v6920, %v6021
    %v6987 = vsel %vm6943, %v6922, %v6023
    %v6989 = vsel %vm6943, %v6924, %v6025
    %v6991 = vsel %vm6943, %v6926, %v6027
    %v6993 = vsel %vm6943, %v6928, %v6029
    %v6995 = vsel %vm6943, %v6930, %v6031
    %v6997 = vsel %vm6943, %v6932, %v6033
    %v6999 = vsel %vm6943, %v6934, %v6035
    %v7001 = vsel %vm6943, %v6936, %v6037
    %v7003 = vsel %vm6943, %v6938, %v6039
    %v7005 = vsel %vm6943, %v6940, %v6041
    %v7007 = vsel %vm6943, %v6942, %v6043
    %vm7008 = vcmask 162816
    %v7010 = vsel %vm7008, %v6945, %v6141
    %v7012 = vsel %vm7008, %v6947, %v6143
    %v7014 = vsel %vm7008, %v6949, %v6145
    %v7016 = vsel %vm7008, %v6951, %v6147
    %v7018 = vsel %vm7008, %v6953, %v6149
    %v7020 = vsel %vm7008, %v6955, %v6151
    %v7022 = vsel %vm7008, %v6957, %v6153
    %v7024 = vsel %vm7008, %v6959, %v6155
    %v7026 = vsel %vm7008, %v6961, %v6157
    %v7028 = vsel %vm7008, %v6963, %v6159
    %v7030 = vsel %vm7008, %v6965, %v6161
    %v7032 = vsel %vm7008, %v6967, %v6163
    %v7034 = vsel %vm7008, %v6969, %v6165
    %v7036 = vsel %vm7008, %v6971, %v6167
    %v7038 = vsel %vm7008, %v6973, %v6169
    %v7040 = vsel %vm7008, %v6975, %v6171
    %v7042 = vsel %vm7008, %v6977, %v6173
    %v7044 = vsel %vm7008, %v6979, %v6175
    %v7046 = vsel %vm7008, %v6981, %v6177
    %v7048 = vsel %vm7008, %v6983, %v6179
    %v7050 = vsel %vm7008, %v6985, %v6181
    %v7052 = vsel %vm7008, %v6987, %v6183
    %v7054 = vsel %vm7008, %v6989, %v6185
    %v7056 = vsel %vm7008, %v6991, %v6187
    %v7058 = vsel %vm7008, %v6993, %v6189
    %v7060 = vsel %vm7008, %v6995, %v6191
    %v7062 = vsel %vm7008, %v6997, %v6193
    %v7064 = vsel %vm7008, %v6999, %v6195
    %v7066 = vsel %vm7008, %v7001, %v6197
    %v7068 = vsel %vm7008, %v7003, %v6199
    %v7070 = vsel %vm7008, %v7005, %v6201
    %v7072 = vsel %vm7008, %v7007, %v6203
    %vm7073 = vcmask 195584
    %v7075 = vsel %vm7073, %v7010, %v6333
    %v7077 = vsel %vm7073, %v7012, %v6335
    %v7079 = vsel %vm7073, %v7014, %v6337
    %v7081 = vsel %vm7073, %v7016, %v6339
    %v7083 = vsel %vm7073, %v7018, %v6341
    %v7085 = vsel %vm7073, %v7020, %v6343
    %v7087 = vsel %vm7073, %v7022, %v6345
    %v7089 = vsel %vm7073, %v7024, %v6347
    %v7091 = vsel %vm7073, %v7026, %v6349
    %v7093 = vsel %vm7073, %v7028, %v6351
    %v7095 = vsel %vm7073, %v7030, %v6353
    %v7097 = vsel %vm7073, %v7032, %v6355
    %v7099 = vsel %vm7073, %v7034, %v6357
    %v7101 = vsel %vm7073, %v7036, %v6359
    %v7103 = vsel %vm7073, %v7038, %v6361
    %v7105 = vsel %vm7073, %v7040, %v6363
    %v7107 = vsel %vm7073, %v7042, %v6365
    %v7109 = vsel %vm7073, %v7044, %v6367
    %v7111 = vsel %vm7073, %v7046, %v6369
    %v7113 = vsel %vm7073, %v7048, %v6371
    %v7115 = vsel %vm7073, %v7050, %v6373
    %v7117 = vsel %vm7073, %v7052, %v6375
    %v7119 = vsel %vm7073, %v7054, %v6377
    %v7121 = vsel %vm7073, %v7056, %v6379
    %v7123 = vsel %vm7073, %v7058, %v6381
    %v7125 = vsel %vm7073, %v7060, %v6383
    %v7127 = vsel %vm7073, %v7062, %v6385
    %v7129 = vsel %vm7073, %v7064, %v6387
    %v7131 = vsel %vm7073, %v7066, %v6389
    %v7133 = vsel %vm7073, %v7068, %v6391
    %v7135 = vsel %vm7073, %v7070, %v6393
    %v7137 = vsel %vm7073, %v7072, %v6395
    %vm7138 = vcmask 228352
    %v7140 = vsel %vm7138, %v7075, %v6493
    %v7142 = vsel %vm7138, %v7077, %v6495
    %v7144 = vsel %vm7138, %v7079, %v6497
    %v7146 = vsel %vm7138, %v7081, %v6499
    %v7148 = vsel %vm7138, %v7083, %v6501
    %v7150 = vsel %vm7138, %v7085, %v6503
    %v7152 = vsel %vm7138, %v7087, %v6505
    %v7154 = vsel %vm7138, %v7089, %v6507
    %v7156 = vsel %vm7138, %v7091, %v6509
    %v7158 = vsel %vm7138, %v7093, %v6511
    %v7160 = vsel %vm7138, %v7095, %v6513
    %v7162 = vsel %vm7138, %v7097, %v6515
    %v7164 = vsel %vm7138, %v7099, %v6517
    %v7166 = vsel %vm7138, %v7101, %v6519
    %v7168 = vsel %vm7138, %v7103, %v6521
    %v7170 = vsel %vm7138, %v7105, %v6523
    %v7172 = vsel %vm7138, %v7107, %v6525
    %v7174 = vsel %vm7138, %v7109, %v6527
    %v7176 = vsel %vm7138, %v7111, %v6529
    %v7178 = vsel %vm7138, %v7113, %v6531
    %v7180 = vsel %vm7138, %v7115, %v6533
    %v7182 = vsel %vm7138, %v7117, %v6535
    %v7184 = vsel %vm7138, %v7119, %v6537
    %v7186 = vsel %vm7138, %v7121, %v6539
    %v7188 = vsel %vm7138, %v7123, %v6541
    %v7190 = vsel %vm7138, %v7125, %v6543
    %v7192 = vsel %vm7138, %v7127, %v6545
    %v7194 = vsel %vm7138, %v7129, %v6547
    %v7196 = vsel %vm7138, %v7131, %v6549
    %v7198 = vsel %vm7138, %v7133, %v6551
    %v7200 = vsel %vm7138, %v7135, %v6553
    %v7202 = vsel %vm7138, %v7137, %v6555
    %vm7203 = vcmask 261120
    %v7205 = vsel %vm7203, %v7140, %v6653
    %v7207 = vsel %vm7203, %v7142, %v6655
    %v7209 = vsel %vm7203, %v7144, %v6657
    %v7211 = vsel %vm7203, %v7146, %v6659
    %v7213 = vsel %vm7203, %v7148, %v6661
    %v7215 = vsel %vm7203, %v7150, %v6663
    %v7217 = vsel %vm7203, %v7152, %v6665
    %v7219 = vsel %vm7203, %v7154, %v6667
    %v7221 = vsel %vm7203, %v7156, %v6669
    %v7223 = vsel %vm7203, %v7158, %v6671
    %v7225 = vsel %vm7203, %v7160, %v6673
    %v7227 = vsel %vm7203, %v7162, %v6675
    %v7229 = vsel %vm7203, %v7164, %v6677
    %v7231 = vsel %vm7203, %v7166, %v6679
    %v7233 = vsel %vm7203, %v7168, %v6681
    %v7235 = vsel %vm7203, %v7170, %v6683
    %v7237 = vsel %vm7203, %v7172, %v6685
    %v7239 = vsel %vm7203, %v7174, %v6687
    %v7241 = vsel %vm7203, %v7176, %v6689
    %v7243 = vsel %vm7203, %v7178, %v6691
    %v7245 = vsel %vm7203, %v7180, %v6693
    %v7247 = vsel %vm7203, %v7182, %v6695
    %v7249 = vsel %vm7203, %v7184, %v6697
    %v7251 = vsel %vm7203, %v7186, %v6699
    %v7253 = vsel %vm7203, %v7188, %v6701
    %v7255 = vsel %vm7203, %v7190, %v6703
    %v7257 = vsel %vm7203, %v7192, %v6705
    %v7259 = vsel %vm7203, %v7194, %v6707
    %v7261 = vsel %vm7203, %v7196, %v6709
    %v7263 = vsel %vm7203, %v7198, %v6711
    %v7265 = vsel %vm7203, %v7200, %v6713
    %v7267 = vsel %vm7203, %v7202, %v6715
    %v7268 = vld [vmem:[%s3] sm:$0xf]
    %v7269 = vld [vmem:[%s3 + $0x4] sm:$0xf]
    %v7270 = vld [vmem:[%s3 + $0x8] sm:$0xf]
    %v7271 = vld [vmem:[%s3 + $0xc] sm:$0xf]
    %v7272 = vld [vmem:[%s3 + $0x10] sm:$0x3]
    %v7278 = vunpack.c.l.b16 %v7268
    %v7279 = vunpack.c.l.b16 %v7269
    %v7280 = vunpack.c.l.b16 %v7270
    %v7281 = vunpack.c.l.b16 %v7271
    %v7282 = vunpack.c.l.b16 %v7272
    %v7283 = vpack.c.b16 %v7279, %v7278
    %v7284 = vpack.c.b16 %v7281, %v7280
    %v7285 = vpack.c.b16 %v7282, %v7282
    %vm7288 = vcmask 293888
    %v7289 = vsel %vm7288, %v7205, 0
    %v7291 = vsel %vm7288, %v7207, 0
    %v7293 = vsel %vm7288, %v7209, 0
    %v7295 = vsel %vm7288, %v7211, 0
    %v7297 = vsel %vm7288, %v7213, 0
    %v7299 = vsel %vm7288, %v7215, 0
    %v7301 = vsel %vm7288, %v7217, 0
    %v7303 = vsel %vm7288, %v7219, 0
    %v7305 = vsel %vm7288, %v7221, 0
    %v7307 = vsel %vm7288, %v7223, 0
    %v7309 = vsel %vm7288, %v7225, 0
    %v7311 = vsel %vm7288, %v7227, 0
    %v7313 = vsel %vm7288, %v7229, 0
    %v7315 = vsel %vm7288, %v7231, 0
    %v7317 = vsel %vm7288, %v7233, 0
    %v7319 = vsel %vm7288, %v7235, 0
    %v7321 = vsel %vm7288, %v7237, 0
    %v7323 = vsel %vm7288, %v7239, 0
    %v7325 = vsel %vm7288, %v7241, 0
    %v7327 = vsel %vm7288, %v7243, 0
    %v7329 = vsel %vm7288, %v7245, 0
    %v7331 = vsel %vm7288, %v7247, 0
    %v7333 = vsel %vm7288, %v7249, 0
    %v7335 = vsel %vm7288, %v7251, 0
    %v7337 = vsel %vm7288, %v7253, 0
    %v7339 = vsel %vm7288, %v7255, 0
    %v7341 = vsel %vm7288, %v7257, 0
    %v7343 = vsel %vm7288, %v7259, 0
    %v7345 = vsel %vm7288, %v7261, 0
    %v7347 = vsel %vm7288, %v7263, 0
    %v7349 = vsel %vm7288, %v7265, 0
    %v7351 = vsel %vm7288, %v7267, 0
    %vm7353 = vcmask 1041408
    %v7355 = vsel %vm7353, %v7285, 0
    %7357 = vmatprep.subr.bf16.mxu0 0
    %7358 = vmatpush1.bf16.msra.mxu0 0
    %7359 = vmatprep.subr.bf16.mxu0 0
    %7360 = vmatpush1.bf16.msra.mxu0 0
    %7361 = vmatprep.subr.bf16.mxu0 0
    %7362 = vmatpush1.bf16.msra.mxu0 0
    %7363 = vmatprep.subr.bf16.mxu0 0
    %7364 = vmatpush1.bf16.msra.mxu0 0
    %7365 = vmatprep.subr.bf16.mxu0 0
    %7366 = vmatpush1.bf16.msra.mxu0 0
    %7367 = vmatprep.subr.bf16.mxu0 0
    %7368 = vmatpush1.bf16.msra.mxu0 %v7355
    %7369 = vmatprep.subr.bf16.mxu0 0
    %7370 = vmatpush1.bf16.msra.mxu0 %v7284
    %7371 = vmatprep.subr.bf16.mxu0 0
    %7372 = vmatpush1.bf16.msra.mxu0 %v7283
    %7373 = vmatprep.subr.bf16.mxu0 0
    %7374 = vmatpush2.bf16.msra.mxu0 0
    %7375 = vmatprep.subr.bf16.mxu0 0
    %7376 = vmatpush2.bf16.msra.mxu0 0
    %7377 = vmatprep.subr.bf16.mxu0 0
    %7378 = vmatpush2.bf16.msra.mxu0 0
    %7379 = vmatprep.subr.bf16.mxu0 0
    %7380 = vmatpush2.bf16.msra.mxu0 0
    %7381 = vmatprep.subr.bf16.mxu0 0
    %7382 = vmatpush2.bf16.msra.mxu0 0
    %7383 = vmatprep.subr.bf16.mxu0 0
    %7384 = vmatpush2.bf16.msra.mxu0 0
    %7385 = vmatprep.subr.bf16.mxu0 0
    %7386 = vmatpush2.bf16.msra.mxu0 0
    %7387 = vmatprep.subr.bf16.mxu0 0
    %7388 = vmatpush2.bf16.msra.mxu0 0
    %7389 = vmatprep.mubr.bf16.mxu0 0
    %7390 = vmatmul.mubr.bf16.gmra.mxu0 %v7289
    %v7391 = vpop.f32.mrf.mxu0
    %v7392 = vadd.f32 0.0, %v7391
    %v7393 = vpop.f32.mrf.mxu0
    %v7394 = vpop.f32.mrf.mxu0
    %v7395 = vadd.f32 0.0, %v7394
    %v7396 = vpop.f32.mrf.mxu0
    %7397 = vmatprep.mubr.bf16.mxu0 0
    %7398 = vmatmul.mubr.bf16.gmra.mxu0 %v7291
    %v7399 = vpop.f32.mrf.mxu0
    %v7400 = vadd.f32 0.0, %v7399
    %v7401 = vpop.f32.mrf.mxu0
    %v7402 = vpop.f32.mrf.mxu0
    %v7403 = vadd.f32 0.0, %v7402
    %v7404 = vpop.f32.mrf.mxu0
    %7405 = vmatprep.mubr.bf16.mxu0 0
    %7406 = vmatmul.mubr.bf16.gmra.mxu0 %v7293
    %v7407 = vpop.f32.mrf.mxu0
    %v7408 = vadd.f32 0.0, %v7407
    %v7409 = vpop.f32.mrf.mxu0
    %v7410 = vpop.f32.mrf.mxu0
    %v7411 = vadd.f32 0.0, %v7410
    %v7412 = vpop.f32.mrf.mxu0
    %7413 = vmatprep.mubr.bf16.mxu0 0
    %7414 = vmatmul.mubr.bf16.gmra.mxu0 %v7295
    %v7415 = vpop.f32.mrf.mxu0
    %v7416 = vadd.f32 0.0, %v7415
    %v7417 = vpop.f32.mrf.mxu0
    %v7418 = vpop.f32.mrf.mxu0
    %v7419 = vadd.f32 0.0, %v7418
    %v7420 = vpop.f32.mrf.mxu0
    %7421 = vmatprep.mubr.bf16.mxu0 0
    %7422 = vmatmul.mubr.bf16.gmra.mxu0 %v7297
    %v7423 = vpop.f32.mrf.mxu0
    %v7424 = vadd.f32 0.0, %v7423
    %v7425 = vpop.f32.mrf.mxu0
    %v7426 = vpop.f32.mrf.mxu0
    %v7427 = vadd.f32 0.0, %v7426
    %v7428 = vpop.f32.mrf.mxu0
    %7429 = vmatprep.mubr.bf16.mxu0 0
    %7430 = vmatmul.mubr.bf16.gmra.mxu0 %v7299
    %v7431 = vpop.f32.mrf.mxu0
    %v7432 = vadd.f32 0.0, %v7431
    %v7433 = vpop.f32.mrf.mxu0
    %v7434 = vpop.f32.mrf.mxu0
    %v7435 = vadd.f32 0.0, %v7434
    %v7436 = vpop.f32.mrf.mxu0
    %7437 = vmatprep.mubr.bf16.mxu0 0
    %7438 = vmatmul.mubr.bf16.gmra.mxu0 %v7301
    %v7439 = vpop.f32.mrf.mxu0
    %v7440 = vadd.f32 0.0, %v7439
    %v7441 = vpop.f32.mrf.mxu0
    %v7442 = vpop.f32.mrf.mxu0
    %v7443 = vadd.f32 0.0, %v7442
    %v7444 = vpop.f32.mrf.mxu0
    %7445 = vmatprep.mubr.bf16.mxu0 0
    %7446 = vmatmul.mubr.bf16.gmra.mxu0 %v7303
    %v7447 = vpop.f32.mrf.mxu0
    %v7448 = vadd.f32 0.0, %v7447
    %v7449 = vpop.f32.mrf.mxu0
    %v7450 = vpop.f32.mrf.mxu0
    %v7451 = vadd.f32 0.0, %v7450
    %v7452 = vpop.f32.mrf.mxu0
    %7453 = vmatprep.mubr.bf16.mxu0 0
    %7454 = vmatmul.mubr.bf16.gmra.mxu0 %v7305
    %v7455 = vpop.f32.mrf.mxu0
    %v7456 = vadd.f32 0.0, %v7455
    %v7457 = vpop.f32.mrf.mxu0
    %v7458 = vpop.f32.mrf.mxu0
    %v7459 = vadd.f32 0.0, %v7458
    %v7460 = vpop.f32.mrf.mxu0
    %7461 = vmatprep.mubr.bf16.mxu0 0
    %7462 = vmatmul.mubr.bf16.gmra.mxu0 %v7307
    %v7463 = vpop.f32.mrf.mxu0
    %v7464 = vadd.f32 0.0, %v7463
    %v7465 = vpop.f32.mrf.mxu0
    %v7466 = vpop.f32.mrf.mxu0
    %v7467 = vadd.f32 0.0, %v7466
    %v7468 = vpop.f32.mrf.mxu0
    %7469 = vmatprep.mubr.bf16.mxu0 0
    %7470 = vmatmul.mubr.bf16.gmra.mxu0 %v7309
    %v7471 = vpop.f32.mrf.mxu0
    %v7472 = vadd.f32 0.0, %v7471
    %v7473 = vpop.f32.mrf.mxu0
    %v7474 = vpop.f32.mrf.mxu0
    %v7475 = vadd.f32 0.0, %v7474
    %v7476 = vpop.f32.mrf.mxu0
    %7477 = vmatprep.mubr.bf16.mxu0 0
    %7478 = vmatmul.mubr.bf16.gmra.mxu0 %v7311
    %v7479 = vpop.f32.mrf.mxu0
    %v7480 = vadd.f32 0.0, %v7479
    %v7481 = vpop.f32.mrf.mxu0
    %v7482 = vpop.f32.mrf.mxu0
    %v7483 = vadd.f32 0.0, %v7482
    %v7484 = vpop.f32.mrf.mxu0
    %7485 = vmatprep.mubr.bf16.mxu0 0
    %7486 = vmatmul.mubr.bf16.gmra.mxu0 %v7313
    %v7487 = vpop.f32.mrf.mxu0
    %v7488 = vadd.f32 0.0, %v7487
    %v7489 = vpop.f32.mrf.mxu0
    %v7490 = vpop.f32.mrf.mxu0
    %v7491 = vadd.f32 0.0, %v7490
    %v7492 = vpop.f32.mrf.mxu0
    %7493 = vmatprep.mubr.bf16.mxu0 0
    %7494 = vmatmul.mubr.bf16.gmra.mxu0 %v7315
    %v7495 = vpop.f32.mrf.mxu0
    %v7496 = vadd.f32 0.0, %v7495
    %v7497 = vpop.f32.mrf.mxu0
    %v7498 = vpop.f32.mrf.mxu0
    %v7499 = vadd.f32 0.0, %v7498
    %v7500 = vpop.f32.mrf.mxu0
    %7501 = vmatprep.mubr.bf16.mxu0 0
    %7502 = vmatmul.mubr.bf16.gmra.mxu0 %v7317
    %v7503 = vpop.f32.mrf.mxu0
    %v7504 = vadd.f32 0.0, %v7503
    %v7505 = vpop.f32.mrf.mxu0
    %v7506 = vpop.f32.mrf.mxu0
    %v7507 = vadd.f32 0.0, %v7506
    %v7508 = vpop.f32.mrf.mxu0
    %7509 = vmatprep.mubr.bf16.mxu0 0
    %7510 = vmatmul.mubr.bf16.gmra.mxu0 %v7319
    %v7511 = vpop.f32.mrf.mxu0
    %v7512 = vadd.f32 0.0, %v7511
    %v7513 = vpop.f32.mrf.mxu0
    %v7514 = vpop.f32.mrf.mxu0
    %v7515 = vadd.f32 0.0, %v7514
    %v7516 = vpop.f32.mrf.mxu0
    %7517 = vmatprep.mubr.bf16.mxu0 0
    %7518 = vmatmul.mubr.bf16.gmra.mxu0 %v7321
    %v7519 = vpop.f32.mrf.mxu0
    %v7520 = vadd.f32 0.0, %v7519
    %v7521 = vpop.f32.mrf.mxu0
    %v7522 = vpop.f32.mrf.mxu0
    %v7523 = vadd.f32 0.0, %v7522
    %v7524 = vpop.f32.mrf.mxu0
    %7525 = vmatprep.mubr.bf16.mxu0 0
    %7526 = vmatmul.mubr.bf16.gmra.mxu0 %v7323
    %v7527 = vpop.f32.mrf.mxu0
    %v7528 = vadd.f32 0.0, %v7527
    %v7529 = vpop.f32.mrf.mxu0
    %v7530 = vpop.f32.mrf.mxu0
    %v7531 = vadd.f32 0.0, %v7530
    %v7532 = vpop.f32.mrf.mxu0
    %7533 = vmatprep.mubr.bf16.mxu0 0
    %7534 = vmatmul.mubr.bf16.gmra.mxu0 %v7325
    %v7535 = vpop.f32.mrf.mxu0
    %v7536 = vadd.f32 0.0, %v7535
    %v7537 = vpop.f32.mrf.mxu0
    %v7538 = vpop.f32.mrf.mxu0
    %v7539 = vadd.f32 0.0, %v7538
    %v7540 = vpop.f32.mrf.mxu0
    %7541 = vmatprep.mubr.bf16.mxu0 0
    %7542 = vmatmul.mubr.bf16.gmra.mxu0 %v7327
    %v7543 = vpop.f32.mrf.mxu0
    %v7544 = vadd.f32 0.0, %v7543
    %v7545 = vpop.f32.mrf.mxu0
    %v7546 = vpop.f32.mrf.mxu0
    %v7547 = vadd.f32 0.0, %v7546
    %v7548 = vpop.f32.mrf.mxu0
    %7549 = vmatprep.mubr.bf16.mxu0 0
    %7550 = vmatmul.mubr.bf16.gmra.mxu0 %v7329
    %v7551 = vpop.f32.mrf.mxu0
    %v7552 = vadd.f32 0.0, %v7551
    %v7553 = vpop.f32.mrf.mxu0
    %v7554 = vpop.f32.mrf.mxu0
    %v7555 = vadd.f32 0.0, %v7554
    %v7556 = vpop.f32.mrf.mxu0
    %7557 = vmatprep.mubr.bf16.mxu0 0
    %7558 = vmatmul.mubr.bf16.gmra.mxu0 %v7331
    %v7559 = vpop.f32.mrf.mxu0
    %v7560 = vadd.f32 0.0, %v7559
    %v7561 = vpop.f32.mrf.mxu0
    %v7562 = vpop.f32.mrf.mxu0
    %v7563 = vadd.f32 0.0, %v7562
    %v7564 = vpop.f32.mrf.mxu0
    %7565 = vmatprep.mubr.bf16.mxu0 0
    %7566 = vmatmul.mubr.bf16.gmra.mxu0 %v7333
    %v7567 = vpop.f32.mrf.mxu0
    %v7568 = vadd.f32 0.0, %v7567
    %v7569 = vpop.f32.mrf.mxu0
    %v7570 = vpop.f32.mrf.mxu0
    %v7571 = vadd.f32 0.0, %v7570
    %v7572 = vpop.f32.mrf.mxu0
    %7573 = vmatprep.mubr.bf16.mxu0 0
    %7574 = vmatmul.mubr.bf16.gmra.mxu0 %v7335
    %v7575 = vpop.f32.mrf.mxu0
    %v7576 = vadd.f32 0.0, %v7575
    %v7577 = vpop.f32.mrf.mxu0
    %v7578 = vpop.f32.mrf.mxu0
    %v7579 = vadd.f32 0.0, %v7578
    %v7580 = vpop.f32.mrf.mxu0
    %7581 = vmatprep.mubr.bf16.mxu0 0
    %7582 = vmatmul.mubr.bf16.gmra.mxu0 %v7337
    %v7583 = vpop.f32.mrf.mxu0
    %v7584 = vadd.f32 0.0, %v7583
    %v7585 = vpop.f32.mrf.mxu0
    %v7586 = vpop.f32.mrf.mxu0
    %v7587 = vadd.f32 0.0, %v7586
    %v7588 = vpop.f32.mrf.mxu0
    %7589 = vmatprep.mubr.bf16.mxu0 0
    %7590 = vmatmul.mubr.bf16.gmra.mxu0 %v7339
    %v7591 = vpop.f32.mrf.mxu0
    %v7592 = vadd.f32 0.0, %v7591
    %v7593 = vpop.f32.mrf.mxu0
    %v7594 = vpop.f32.mrf.mxu0
    %v7595 = vadd.f32 0.0, %v7594
    %v7596 = vpop.f32.mrf.mxu0
    %7597 = vmatprep.mubr.bf16.mxu0 0
    %7598 = vmatmul.mubr.bf16.gmra.mxu0 %v7341
    %v7599 = vpop.f32.mrf.mxu0
    %v7600 = vadd.f32 0.0, %v7599
    %v7601 = vpop.f32.mrf.mxu0
    %v7602 = vpop.f32.mrf.mxu0
    %v7603 = vadd.f32 0.0, %v7602
    %v7604 = vpop.f32.mrf.mxu0
    %7605 = vmatprep.mubr.bf16.mxu0 0
    %7606 = vmatmul.mubr.bf16.gmra.mxu0 %v7343
    %v7607 = vpop.f32.mrf.mxu0
    %v7608 = vadd.f32 0.0, %v7607
    %v7609 = vpop.f32.mrf.mxu0
    %v7610 = vpop.f32.mrf.mxu0
    %v7611 = vadd.f32 0.0, %v7610
    %v7612 = vpop.f32.mrf.mxu0
    %7613 = vmatprep.mubr.bf16.mxu0 0
    %7614 = vmatmul.mubr.bf16.gmra.mxu0 %v7345
    %v7615 = vpop.f32.mrf.mxu0
    %v7616 = vadd.f32 0.0, %v7615
    %v7617 = vpop.f32.mrf.mxu0
    %v7618 = vpop.f32.mrf.mxu0
    %v7619 = vadd.f32 0.0, %v7618
    %v7620 = vpop.f32.mrf.mxu0
    %7621 = vmatprep.mubr.bf16.mxu0 0
    %7622 = vmatmul.mubr.bf16.gmra.mxu0 %v7347
    %v7623 = vpop.f32.mrf.mxu0
    %v7624 = vadd.f32 0.0, %v7623
    %v7625 = vpop.f32.mrf.mxu0
    %v7626 = vpop.f32.mrf.mxu0
    %v7627 = vadd.f32 0.0, %v7626
    %v7628 = vpop.f32.mrf.mxu0
    %7629 = vmatprep.mubr.bf16.mxu0 0
    %7630 = vmatmul.mubr.bf16.gmra.mxu0 %v7349
    %v7631 = vpop.f32.mrf.mxu0
    %v7632 = vadd.f32 0.0, %v7631
    %v7633 = vpop.f32.mrf.mxu0
    %v7634 = vpop.f32.mrf.mxu0
    %v7635 = vadd.f32 0.0, %v7634
    %v7636 = vpop.f32.mrf.mxu0
    %7637 = vmatprep.mubr.bf16.mxu0 0
    %7638 = vmatmul.mubr.bf16.gmra.mxu0 %v7351
    %v7639 = vpop.f32.mrf.mxu0
    %v7640 = vadd.f32 0.0, %v7639
    %v7641 = vpop.f32.mrf.mxu0
    %v7642 = vpop.f32.mrf.mxu0
    %v7643 = vadd.f32 0.0, %v7642
    %v7644 = vpop.f32.mrf.mxu0
    %7645 = vdwg.mxu0
    %7646 = vst [vmem:[#allocation3] sm:$0xff] %v7392
    %7647 = vst [vmem:[#allocation3 + $0x8] sm:$0xff] %v7395
    %7648 = vst [vmem:[#allocation3 + $0x10] sm:$0xff] %v7400
    %7649 = vst [vmem:[#allocation3 + $0x18] sm:$0xff] %v7403
    %7650 = vst [vmem:[#allocation3 + $0x20] sm:$0xff] %v7408
    %7651 = vst [vmem:[#allocation3 + $0x28] sm:$0xff] %v7411
    %7652 = vst [vmem:[#allocation3 + $0x30] sm:$0xff] %v7416
    %7653 = vst [vmem:[#allocation3 + $0x38] sm:$0xff] %v7419
    %7654 = vst [vmem:[#allocation3 + $0x40] sm:$0xff] %v7424
    %7655 = vst [vmem:[#allocation3 + $0x48] sm:$0xff] %v7427
    %7656 = vst [vmem:[#allocation3 + $0x50] sm:$0xff] %v7432
    %7657 = vst [vmem:[#allocation3 + $0x58] sm:$0xff] %v7435
    %7658 = vst [vmem:[#allocation3 + $0x60] sm:$0xff] %v7440
    %7659 = vst [vmem:[#allocation3 + $0x68] sm:$0xff] %v7443
    %7660 = vst [vmem:[#allocation3 + $0x70] sm:$0xff] %v7448
    %7661 = vst [vmem:[#allocation3 + $0x78] sm:$0xff] %v7451
    %7662 = vst [vmem:[#allocation3 + $0x80] sm:$0xff] %v7456
    %7663 = vst [vmem:[#allocation3 + $0x88] sm:$0xff] %v7459
    %7664 = vst [vmem:[#allocation3 + $0x90] sm:$0xff] %v7464
    %7665 = vst [vmem:[#allocation3 + $0x98] sm:$0xff] %v7467
    %7666 = vst [vmem:[#allocation3 + $0xa0] sm:$0xff] %v7472
    %7667 = vst [vmem:[#allocation3 + $0xa8] sm:$0xff] %v7475
    %7668 = vst [vmem:[#allocation3 + $0xb0] sm:$0xff] %v7480
    %7669 = vst [vmem:[#allocation3 + $0xb8] sm:$0xff] %v7483
    %7670 = vst [vmem:[#allocation3 + $0xc0] sm:$0xff] %v7488
    %7671 = vst [vmem:[#allocation3 + $0xc8] sm:$0xff] %v7491
    %7672 = vst [vmem:[#allocation3 + $0xd0] sm:$0xff] %v7496
    %7673 = vst [vmem:[#allocation3 + $0xd8] sm:$0xff] %v7499
    %7674 = vst [vmem:[#allocation3 + $0xe0] sm:$0xff] %v7504
    %7675 = vst [vmem:[#allocation3 + $0xe8] sm:$0xff] %v7507
    %7676 = vst [vmem:[#allocation3 + $0xf0] sm:$0xff] %v7512
    %7677 = vst [vmem:[#allocation3 + $0xf8] sm:$0xff] %v7515
    %7678 = vst [vmem:[#allocation3 + $0x100] sm:$0xff] %v7520
    %7679 = vst [vmem:[#allocation3 + $0x108] sm:$0xff] %v7523
    %7680 = vst [vmem:[#allocation3 + $0x110] sm:$0xff] %v7528
    %7681 = vst [vmem:[#allocation3 + $0x118] sm:$0xff] %v7531
    %7682 = vst [vmem:[#allocation3 + $0x120] sm:$0xff] %v7536
    %7683 = vst [vmem:[#allocation3 + $0x128] sm:$0xff] %v7539
    %7684 = vst [vmem:[#allocation3 + $0x130] sm:$0xff] %v7544
    %7685 = vst [vmem:[#allocation3 + $0x138] sm:$0xff] %v7547
    %7686 = vst [vmem:[#allocation3 + $0x140] sm:$0xff] %v7552
    %7687 = vst [vmem:[#allocation3 + $0x148] sm:$0xff] %v7555
    %7688 = vst [vmem:[#allocation3 + $0x150] sm:$0xff] %v7560
    %7689 = vst [vmem:[#allocation3 + $0x158] sm:$0xff] %v7563
    %7690 = vst [vmem:[#allocation3 + $0x160] sm:$0xff] %v7568
    %7691 = vst [vmem:[#allocation3 + $0x168] sm:$0xff] %v7571
    %7692 = vst [vmem:[#allocation3 + $0x170] sm:$0xff] %v7576
    %7693 = vst [vmem:[#allocation3 + $0x178] sm:$0xff] %v7579
    %7694 = vst [vmem:[#allocation3 + $0x180] sm:$0xff] %v7584
    %7695 = vst [vmem:[#allocation3 + $0x188] sm:$0xff] %v7587
    %7696 = vst [vmem:[#allocation3 + $0x190] sm:$0xff] %v7592
    %7697 = vst [vmem:[#allocation3 + $0x198] sm:$0xff] %v7595
    %7698 = vst [vmem:[#allocation3 + $0x1a0] sm:$0xff] %v7600
    %7699 = vst [vmem:[#allocation3 + $0x1a8] sm:$0xff] %v7603
    %7700 = vst [vmem:[#allocation3 + $0x1b0] sm:$0xff] %v7608
    %7701 = vst [vmem:[#allocation3 + $0x1b8] sm:$0xff] %v7611
    %7702 = vst [vmem:[#allocation3 + $0x1c0] sm:$0xff] %v7616
    %7703 = vst [vmem:[#allocation3 + $0x1c8] sm:$0xff] %v7619
    %7704 = vst [vmem:[#allocation3 + $0x1d0] sm:$0xff] %v7624
    %7705 = vst [vmem:[#allocation3 + $0x1d8] sm:$0xff] %v7627
    %7706 = vst [vmem:[#allocation3 + $0x1e0] sm:$0xff] %v7632
    %7707 = vst [vmem:[#allocation3 + $0x1e8] sm:$0xff] %v7635
    %7708 = vst [vmem:[#allocation3 + $0x1f0] sm:$0xff] %v7640
    %7709 = vst [vmem:[#allocation3 + $0x1f8] sm:$0xff] %v7643
    %v7710 = vadd.f32 %v7392, %v7395
    %v7711 = vadd.f32 %v7710, %v7400
    %v7712 = vadd.f32 %v7711, %v7403
    %v7713 = vadd.f32 %v7712, %v7408
    %v7714 = vadd.f32 %v7713, %v7411
    %v7715 = vadd.f32 %v7714, %v7416
    %v7716 = vadd.f32 %v7715, %v7419
    %v7717 = vadd.f32 %v7716, %v7424
    %v7718 = vadd.f32 %v7717, %v7427
    %v7719 = vadd.f32 %v7718, %v7432
    %v7720 = vadd.f32 %v7719, %v7435
    %v7721 = vadd.f32 %v7720, %v7440
    %v7722 = vadd.f32 %v7721, %v7443
    %v7723 = vadd.f32 %v7722, %v7448
    %v7724 = vadd.f32 %v7723, %v7451
    %v7725 = vadd.f32 %v7724, %v7456
    %v7726 = vadd.f32 %v7725, %v7459
    %v7727 = vadd.f32 %v7726, %v7464
    %v7728 = vadd.f32 %v7727, %v7467
    %v7729 = vadd.f32 %v7728, %v7472
    %v7730 = vadd.f32 %v7729, %v7475
    %v7731 = vadd.f32 %v7730, %v7480
    %v7732 = vadd.f32 %v7731, %v7483
    %v7733 = vadd.f32 %v7732, %v7488
    %v7734 = vadd.f32 %v7733, %v7491
    %v7735 = vadd.f32 %v7734, %v7496
    %v7736 = vadd.f32 %v7735, %v7499
    %v7737 = vadd.f32 %v7736, %v7504
    %v7738 = vadd.f32 %v7737, %v7507
    %v7739 = vadd.f32 %v7738, %v7512
    %v7740 = vadd.f32 %v7739, %v7515
    %v7741 = vadd.f32 %v7740, %v7520
    %v7742 = vadd.f32 %v7741, %v7523
    %v7743 = vadd.f32 %v7742, %v7528
    %v7744 = vadd.f32 %v7743, %v7531
    %v7745 = vadd.f32 %v7744, %v7536
    %v7746 = vadd.f32 %v7745, %v7539
    %v7747 = vadd.f32 %v7746, %v7544
    %v7748 = vadd.f32 %v7747, %v7547
    %v7749 = vadd.f32 %v7748, %v7552
    %v7750 = vadd.f32 %v7749, %v7555
    %v7751 = vadd.f32 %v7750, %v7560
    %v7752 = vadd.f32 %v7751, %v7563
    %v7753 = vadd.f32 %v7752, %v7568
    %v7754 = vadd.f32 %v7753, %v7571
    %v7755 = vadd.f32 %v7754, %v7576
    %v7756 = vadd.f32 %v7755, %v7579
    %v7757 = vadd.f32 %v7756, %v7584
    %v7758 = vadd.f32 %v7757, %v7587
    %v7759 = vadd.f32 %v7758, %v7592
    %v7760 = vadd.f32 %v7759, %v7595
    %v7761 = vadd.f32 %v7760, %v7600
    %v7762 = vadd.f32 %v7761, %v7603
    %v7763 = vadd.f32 %v7762, %v7608
    %v7764 = vadd.f32 %v7763, %v7611
    %v7765 = vadd.f32 %v7764, %v7616
    %v7766 = vadd.f32 %v7765, %v7619
    %v7767 = vadd.f32 %v7766, %v7624
    %v7768 = vadd.f32 %v7767, %v7627
    %v7769 = vadd.f32 %v7768, %v7632
    %v7770 = vadd.f32 %v7769, %v7635
    %v7771 = vadd.f32 %v7770, %v7640
    %v7772 = vadd.f32 %v7771, %v7643
    %v7773 = vrot.slane %v7772, 4
    %v7774 = vadd.f32 %v7772, %v7773
    %v7775 = vrot.slane %v7774, 2
    %v7776 = vadd.f32 %v7774, %v7775
    %v7777 = vrot.slane %v7776, 1
    %v7778 = vadd.f32 %v7776, %v7777
    %v7779 = vmul.f32 %v7392, %v7392
    %v7780 = vmul.f32 %v7395, %v7395
    %v7781 = vmul.f32 %v7400, %v7400
    %v7782 = vmul.f32 %v7403, %v7403
    %v7783 = vmul.f32 %v7408, %v7408
    %v7784 = vmul.f32 %v7411, %v7411
    %v7785 = vmul.f32 %v7416, %v7416
    %v7786 = vmul.f32 %v7419, %v7419
    %v7787 = vmul.f32 %v7424, %v7424
    %v7788 = vmul.f32 %v7427, %v7427
    %v7789 = vmul.f32 %v7432, %v7432
    %v7790 = vmul.f32 %v7435, %v7435
    %v7791 = vmul.f32 %v7440, %v7440
    %v7792 = vmul.f32 %v7443, %v7443
    %v7793 = vmul.f32 %v7448, %v7448
    %v7794 = vmul.f32 %v7451, %v7451
    %v7795 = vmul.f32 %v7456, %v7456
    %v7796 = vmul.f32 %v7459, %v7459
    %v7797 = vmul.f32 %v7464, %v7464
    %v7798 = vmul.f32 %v7467, %v7467
    %v7799 = vmul.f32 %v7472, %v7472
    %v7800 = vmul.f32 %v7475, %v7475
    %v7801 = vmul.f32 %v7480, %v7480
    %v7802 = vmul.f32 %v7483, %v7483
    %v7803 = vmul.f32 %v7488, %v7488
    %v7804 = vmul.f32 %v7491, %v7491
    %v7805 = vmul.f32 %v7496, %v7496
    %v7806 = vmul.f32 %v7499, %v7499
    %v7807 = vmul.f32 %v7504, %v7504
    %v7808 = vmul.f32 %v7507, %v7507
    %v7809 = vmul.f32 %v7512, %v7512
    %v7810 = vmul.f32 %v7515, %v7515
    %v7811 = vmul.f32 %v7520, %v7520
    %v7812 = vmul.f32 %v7523, %v7523
    %v7813 = vmul.f32 %v7528, %v7528
    %v7814 = vmul.f32 %v7531, %v7531
    %v7815 = vmul.f32 %v7536, %v7536
    %v7816 = vmul.f32 %v7539, %v7539
    %v7817 = vmul.f32 %v7544, %v7544
    %v7818 = vmul.f32 %v7547, %v7547
    %v7819 = vmul.f32 %v7552, %v7552
    %v7820 = vmul.f32 %v7555, %v7555
    %v7821 = vmul.f32 %v7560, %v7560
    %v7822 = vmul.f32 %v7563, %v7563
    %v7823 = vmul.f32 %v7568, %v7568
    %v7824 = vmul.f32 %v7571, %v7571
    %v7825 = vmul.f32 %v7576, %v7576
    %v7826 = vmul.f32 %v7579, %v7579
    %v7827 = vmul.f32 %v7584, %v7584
    %v7828 = vmul.f32 %v7587, %v7587
    %v7829 = vmul.f32 %v7592, %v7592
    %v7830 = vmul.f32 %v7595, %v7595
    %v7831 = vmul.f32 %v7600, %v7600
    %v7832 = vmul.f32 %v7603, %v7603
    %v7833 = vmul.f32 %v7608, %v7608
    %v7834 = vmul.f32 %v7611, %v7611
    %v7835 = vmul.f32 %v7616, %v7616
    %v7836 = vmul.f32 %v7619, %v7619
    %v7837 = vmul.f32 %v7624, %v7624
    %v7838 = vmul.f32 %v7627, %v7627
    %v7839 = vmul.f32 %v7632, %v7632
    %v7840 = vmul.f32 %v7635, %v7635
    %v7841 = vmul.f32 %v7640, %v7640
    %v7842 = vmul.f32 %v7643, %v7643
    %v7843 = vadd.f32 %v7779, %v7780
    %v7844 = vadd.f32 %v7843, %v7781
    %v7845 = vadd.f32 %v7844, %v7782
    %v7846 = vadd.f32 %v7845, %v7783
    %v7847 = vadd.f32 %v7846, %v7784
    %v7848 = vadd.f32 %v7847, %v7785
    %v7849 = vadd.f32 %v7848, %v7786
    %v7850 = vadd.f32 %v7849, %v7787
    %v7851 = vadd.f32 %v7850, %v7788
    %v7852 = vadd.f32 %v7851, %v7789
    %v7853 = vadd.f32 %v7852, %v7790
    %v7854 = vadd.f32 %v7853, %v7791
    %v7855 = vadd.f32 %v7854, %v7792
    %v7856 = vadd.f32 %v7855, %v7793
    %v7857 = vadd.f32 %v7856, %v7794
    %v7858 = vadd.f32 %v7857, %v7795
    %v7859 = vadd.f32 %v7858, %v7796
    %v7860 = vadd.f32 %v7859, %v7797
    %v7861 = vadd.f32 %v7860, %v7798
    %v7862 = vadd.f32 %v7861, %v7799
    %v7863 = vadd.f32 %v7862, %v7800
    %v7864 = vadd.f32 %v7863, %v7801
    %v7865 = vadd.f32 %v7864, %v7802
    %v7866 = vadd.f32 %v7865, %v7803
    %v7867 = vadd.f32 %v7866, %v7804
    %v7868 = vadd.f32 %v7867, %v7805
    %v7869 = vadd.f32 %v7868, %v7806
    %v7870 = vadd.f32 %v7869, %v7807
    %v7871 = vadd.f32 %v7870, %v7808
    %v7872 = vadd.f32 %v7871, %v7809
    %v7873 = vadd.f32 %v7872, %v7810
    %v7874 = vadd.f32 %v7873, %v7811
    %v7875 = vadd.f32 %v7874, %v7812
    %v7876 = vadd.f32 %v7875, %v7813
    %v7877 = vadd.f32 %v7876, %v7814
    %v7878 = vadd.f32 %v7877, %v7815
    %v7879 = vadd.f32 %v7878, %v7816
    %v7880 = vadd.f32 %v7879, %v7817
    %v7881 = vadd.f32 %v7880, %v7818
    %v7882 = vadd.f32 %v7881, %v7819
    %v7883 = vadd.f32 %v7882, %v7820
    %v7884 = vadd.f32 %v7883, %v7821
    %v7885 = vadd.f32 %v7884, %v7822
    %v7886 = vadd.f32 %v7885, %v7823
    %v7887 = vadd.f32 %v7886, %v7824
    %v7888 = vadd.f32 %v7887, %v7825
    %v7889 = vadd.f32 %v7888, %v7826
    %v7890 = vadd.f32 %v7889, %v7827
    %v7891 = vadd.f32 %v7890, %v7828
    %v7892 = vadd.f32 %v7891, %v7829
    %v7893 = vadd.f32 %v7892, %v7830
    %v7894 = vadd.f32 %v7893, %v7831
    %v7895 = vadd.f32 %v7894, %v7832
    %v7896 = vadd.f32 %v7895, %v7833
    %v7897 = vadd.f32 %v7896, %v7834
    %v7898 = vadd.f32 %v7897, %v7835
    %v7899 = vadd.f32 %v7898, %v7836
    %v7900 = vadd.f32 %v7899, %v7837
    %v7901 = vadd.f32 %v7900, %v7838
    %v7902 = vadd.f32 %v7901, %v7839
    %v7903 = vadd.f32 %v7902, %v7840
    %v7904 = vadd.f32 %v7903, %v7841
    %v7905 = vadd.f32 %v7904, %v7842
    %v7906 = vrot.slane %v7905, 4
    %v7907 = vadd.f32 %v7905, %v7906
    %v7908 = vrot.slane %v7907, 2
    %v7909 = vadd.f32 %v7907, %v7908
    %v7910 = vrot.slane %v7909, 1
    %v7911 = vadd.f32 %v7909, %v7910
    %vm7912 = vcmask 1040384
    %v7913 = vsel %vm7912, %v7778, %v7911
    %7914 = vst [vmem:[#allocation5] sm:$0x3] %v7913
    // Predicated region
    $region18: #{tpu_custom_call.1} parent=1 // pred_check
      _
    $region19: #{tpu_custom_call.1} parent=1 // pred_check_branch
      %7916 = sbr.rel (0) target = $region21
    $region20: #{tpu_custom_call.1} parent=1 // pred_region
      %s7918 = ssub.s32 8192, 8192
      %7919 = vsyncadd [#allocation4], %s7918
      %s7920 = sshll.u32 [#allocation3], 4
      %s7921 = int_to_ptr.vmem [resolvable:$true] %s7920
      %7926 = dma.vmem_to_hbm [thread:$0]  %s7921, 8192, %s4, [#allocation4], 128, 128, 8
    $region21: #{tpu_custom_call.1} parent=1 // pred_fallthru
      _
    // Predicated region
    $region22: #{tpu_custom_call.1} parent=1 // pred_check
      _
    $region23: #{tpu_custom_call.1} parent=1 // pred_check_branch
      %7928 = sbr.rel (0) target = $region25
    $region24: #{tpu_custom_call.1} parent=1 // pred_region
      %s7930 = ssub.s32 32, 32
      %7931 = vsyncadd [#allocation6], %s7930
      %s7933 = sshll.u32 [#allocation5], 4
      %s7934 = int_to_ptr.vmem [resolvable:$true] %s7933
      %7936 = dma.vmem_to_hbm [thread:$0]  %s7934, 32, %s5, [#allocation6]
    $region25: #{tpu_custom_call.1} parent=1 // pred_fallthru
      _
    // Predicated region
    $region26: #{tpu_custom_call.1} parent=1 // pred_check
      _
    $region27: #{tpu_custom_call.1} parent=1 // pred_check_branch
      %7938 = sbr.rel (0) target = $region29
    $region28: #{tpu_custom_call.1} parent=1 // pred_region
      %7939 = dma.done [#allocation4], 8192
    $region29: #{tpu_custom_call.1} parent=1 // pred_fallthru
      _
    // Predicated region
    $region30: #{tpu_custom_call.1} parent=1 // pred_check
      _
    $region31: #{tpu_custom_call.1} parent=1 // pred_check_branch
      %7941 = sbr.rel (0) target = $region33
    $region32: #{tpu_custom_call.1} parent=1 // pred_region
      %7942 = dma.done [#allocation6], 32
    $region33: #{tpu_custom_call.1} parent=1 // pred_fallthru
      _
    %7943 = vsyncpa [#allocation4], 1
    %7944 = vsyncpa [#allocation6], 1

</llo_original>
